<compile_context>
chip_gen: v7x
topology: tpu7x:2x2x1
jax: 0.10.0
libtpu: 0.0.40
codegen_flags: <defaults>
</compile_context>

<pallas_src>
import jax
import jax.numpy as jnp
import numpy as np
from jax.experimental import pallas as pl
from jax.experimental.pallas import tpu as pltpu


# ------------------------- model hyper-parameters ------------------------- #
B = 2            # batch (videos)
T = 5            # max_num_frames
C = 4            # input channels per frame
SP = 16          # spatial H = W
F_ENC = 32       # encoder_flat_feature_dim (lstm_in_dim)
H_LSTM = 32      # lstm_hidden_dim (scaled down from 1024)
H_CLS = 128      # classifier hidden
HW = SP * SP


# --------------------------------- kernel --------------------------------- #
def deepfake_kernel(x_ref, w_enc_ref, b_enc_ref,
                    w_ih_t_ref, w_hh_t_ref, b_gates_ref,
                    w1_blk_ref, b1_ref, w2_t_ref, b2_ref,
                    out_ref):
    t, b_pad, c, hw = x_ref.shape
    f_enc = w_enc_ref.shape[0]
    h_dim = w_hh_t_ref.shape[0]
    h_cls = b1_ref.shape[-1]
    tb = t * b_pad

    # ---- encoder stub: 1x1 conv on the VPU (C unrolled FMAs) + ReLU + pool --
    x = x_ref[...].reshape(tb, c, hw)                         # (T*B, C, HW)
    w_enc = w_enc_ref[...]                                    # (F, C)
    fm = b_enc_ref[...].reshape(1, f_enc, 1)                  # bias, broadcasts
    for ci in range(c):                                       # C = 4, unrolled
        fm = fm + (w_enc[:, ci].reshape(1, f_enc, 1)
                   * x[:, ci, :].reshape(tb, 1, hw))
    fm = jnp.maximum(fm, 0.0)
    feats = jnp.mean(fm, axis=-1)                             # (T*B, F)

    # ---- hoisted LSTM input projection: one (T*B,F) x (F,4H) matmul --------
    gates_x = jnp.dot(feats, w_ih_t_ref[...],
                      preferred_element_type=jnp.float32) + b_gates_ref[...]

    # ---- LSTM recurrence (batch_first, zero initial state) -----------------
    w_hh_t = w_hh_t_ref[...]                                  # (H, 4H), g-cols x2
    h = jnp.zeros((b_pad, h_dim), jnp.float32)
    cstate = jnp.zeros((b_pad, h_dim), jnp.float32)
    z = jnp.zeros((b_pad, h_cls), jnp.float32)                # classifier accum

    for step in range(t):                                     # T is small/static
        gates = (gates_x[step * b_pad:(step + 1) * b_pad, :]
                 + jnp.dot(h, w_hh_t, preferred_element_type=jnp.float32))
        # single full-width sigmoid; g-gate pre-scaled by 2 on the host so
        # tanh(x) = 2*sigmoid(2x) - 1 is recovered with one fused mul/sub.
        act = jax.nn.sigmoid(gates)                           # (B, 4H) one EUP pass
        i_g = act[:, 0 * h_dim:1 * h_dim]
        f_g = act[:, 1 * h_dim:2 * h_dim]
        g_g = 2.0 * act[:, 2 * h_dim:3 * h_dim] - 1.0
        o_g = act[:, 3 * h_dim:4 * h_dim]
        cstate = f_g * cstate + i_g * g_g
        h = o_g * jnp.tanh(cstate)
        # per-step classifier accumulation (replaces concat + big matmul)
        z = z + jnp.dot(h, w1_blk_ref[step],
                        preferred_element_type=jnp.float32)

    # ------- classifier tail: +b1 -> Dropout(eval=id) -> ReLU -> Linear ------
    z = jnp.maximum(z + b1_ref[...], 0.0)
    out_ref[...] = (jnp.dot(z, w2_t_ref[...],
                            preferred_element_type=jnp.float32) + b2_ref[...])


# -------------------------------- wrapper ---------------------------------- #
def deepfake_forward(x, params):
    """x: (B, T, C, H, W) float32 -> (B, 1) float32"""
    b, t, c, hh, ww = x.shape
    hw = hh * ww
    h_dim = params["w_hh"].shape[1]
    h_cls = params["w1"].shape[0]
    f_enc = params["w_enc"].shape[0]

    # time-major, batch padded to a full sublane tile (multiple of 8 rows)
    x_flat = jnp.transpose(x.reshape(b, t, c, hw), (1, 0, 2, 3))  # (T,B,C,HW)
    b_pad = ((b + 7) // 8) * 8
    if b_pad != b:
        x_flat = jnp.pad(x_flat, ((0, 0), (0, b_pad - b), (0, 0), (0, 0)))

    # host-side weight prep: transposes, bias folding, g-gate pre-scale by 2.
    scale = jnp.ones((4 * h_dim,), jnp.float32).at[2 * h_dim:3 * h_dim].set(2.0)
    w_ih_t = params["w_ih"].T * scale                         # (F, 4H)
    w_hh_t = params["w_hh"].T * scale                         # (H, 4H)
    b_gates = (params["b_ih"] + params["b_hh"]) * scale       # (1, 4H)
    w1_blk = params["w1"].reshape(h_cls, t, h_dim).transpose(1, 2, 0)  # (T,H,Hc)
    w2_t = params["w2"].T                                     # (H_CLS, 1)

    inputs = (x_flat, params["w_enc"], params["b_enc"],
              w_ih_t, w_hh_t, b_gates,
              w1_blk, params["b1"], w2_t, params["b2"])

    flops = int(2 * t * b_pad * f_enc * hw * c                # encoder FMAs
                + 2 * t * b_pad * f_enc * hw                  # relu + avg pool
                + 2 * t * b_pad * f_enc * 4 * h_dim           # input projection
                + t * 2 * b_pad * h_dim * 4 * h_dim           # recurrent matmuls
                + t * 2 * b_pad * h_dim * h_cls               # classifier accum
                + 2 * b_pad * h_cls)                          # final linear
    transcendentals = int(t * b_pad * (4 * h_dim + h_dim))
    bytes_accessed = int(4 * (x_flat.size
                              + sum(int(np.prod(p.shape)) for p in inputs[1:])
                              + b_pad))

    vmem_spec = pl.BlockSpec(memory_space=pltpu.MemorySpace.VMEM)
    out = pl.pallas_call(
        deepfake_kernel,
        out_shape=jax.ShapeDtypeStruct((b_pad, 1), jnp.float32),
        in_specs=[vmem_spec] * len(inputs),
        out_specs=vmem_spec,
        cost_estimate=pl.CostEstimate(flops=flops,
                                      transcendentals=transcendentals,
                                      bytes_accessed=bytes_accessed),
        # NOTE: no vmem_limit override -- live data is < 1 MiB so the default
        # scoped VMEM is ample on v5e/v6e/v7x.  For many-video throughput, a
        # batch grid with dimension_semantics=("parallel",) would also engage
        # v7x's second TensorCore; at B=2 a single grid point is optimal.
    )(*inputs)
    return out[:b]                                            # drop padded rows


# --------------------------- pure-JAX reference ----------------------------- #
def deepfake_reference(x, p):
    b, t, c, hh, ww = x.shape
    xf = x.reshape(b * t, c, hh * ww)
    fm = jnp.einsum("fc,nch->nfh", p["w_enc"], xf)
    fm = jnp.maximum(fm + p["b_enc"].reshape(1, -1, 1), 0.0)
    feats = jnp.mean(fm, axis=-1).reshape(b, t, -1)

    h = jnp.zeros((b, H_LSTM), jnp.float32)
    cstate = jnp.zeros((b, H_LSTM), jnp.float32)
    outs = []
    for step in range(t):
        gates = (feats[:, step, :] @ p["w_ih"].T + p["b_ih"]
                 + h @ p["w_hh"].T + p["b_hh"])
        i_g = jax.nn.sigmoid(gates[:, :H_LSTM])
        f_g = jax.nn.sigmoid(gates[:, H_LSTM:2 * H_LSTM])
        g_g = jnp.tanh(gates[:, 2 * H_LSTM:3 * H_LSTM])
        o_g = jax.nn.sigmoid(gates[:, 3 * H_LSTM:])
        cstate = f_g * cstate + i_g * g_g
        h = o_g * jnp.tanh(cstate)
        outs.append(h)
    r_flat = jnp.concatenate(outs, axis=1)
    z = jnp.maximum(r_flat @ p["w1"].T + p["b1"], 0.0)
    return z @ p["w2"].T + p["b2"]


# ------------------------------ param init ---------------------------------- #
def init_params(key):
    ks = jax.random.split(key, 11)
    s = 0.1
    return {
        "w_enc": s * jax.random.normal(ks[0], (F_ENC, C), jnp.float32),
        "b_enc": s * jax.random.normal(ks[1], (1, F_ENC), jnp.float32),
        "w_ih":  s * jax.random.normal(ks[2], (4 * H_LSTM, F_ENC), jnp.float32),
        "w_hh":  s * jax.random.normal(ks[3], (4 * H_LSTM, H_LSTM), jnp.float32),
        "b_ih":  s * jax.random.normal(ks[4], (1, 4 * H_LSTM), jnp.float32),
        "b_hh":  s * jax.random.normal(ks[5], (1, 4 * H_LSTM), jnp.float32),
        "w1":    s * jax.random.normal(ks[6], (H_CLS, H_LSTM * T), jnp.float32),
        "b1":    s * jax.random.normal(ks[7], (1, H_CLS), jnp.float32),
        "w2":    s * jax.random.normal(ks[8], (1, H_CLS), jnp.float32),
        "b2":    s * jax.random.normal(ks[9], (1, 1), jnp.float32),
    }


if __name__ == "__main__":
    key = jax.random.PRNGKey(0)
    k_x, k_p = jax.random.split(key)
    x = jax.random.normal(k_x, (B, T, C, SP, SP), jnp.float32)
    params = init_params(k_p)

    out = deepfake_forward(x, params)
    out = jax.block_until_ready(out)
    assert out.shape == (B, 1), out.shape

    ref = jax.block_until_ready(deepfake_reference(x, params))
    np.testing.assert_allclose(np.asarray(out), np.asarray(ref),
                               rtol=1e-2, atol=1e-2)
    print("KERNEL_OK")
</pallas_src>

<mosaic_0001>
module attributes {stable_mosaic.version = 11 : i64} {
  func.func @deepfake_kernel(%arg0: memref<5x8x4x256xf32, #tpu.memory_space<vmem>>, %arg1: memref<32x4xf32, #tpu.memory_space<vmem>>, %arg2: memref<1x32xf32, #tpu.memory_space<vmem>>, %arg3: memref<32x128xf32, #tpu.memory_space<vmem>>, %arg4: memref<32x128xf32, #tpu.memory_space<vmem>>, %arg5: memref<1x128xf32, #tpu.memory_space<vmem>>, %arg6: memref<5x32x128xf32, #tpu.memory_space<vmem>>, %arg7: memref<1x128xf32, #tpu.memory_space<vmem>>, %arg8: memref<128x1xf32, #tpu.memory_space<vmem>>, %arg9: memref<1x1xf32, #tpu.memory_space<vmem>>, %arg10: memref<8x1xf32, #tpu.memory_space<vmem>>) attributes {dimension_semantics = [], scalar_prefetch = 0 : i64, scratch_operands = 0 : i64, tpu.core_type = #tpu.core_type<tc>} {
    %c0 = arith.constant 0 : index
    %c0_0 = arith.constant 0 : index
    %c0_1 = arith.constant 0 : index
    %c0_2 = arith.constant 0 : index
    %0 = vector.load %arg0[%c0, %c0_0, %c0_1, %c0_2] : memref<5x8x4x256xf32, #tpu.memory_space<vmem>>, vector<5x8x4x256xf32>
    %1 = vector.shape_cast %0 : vector<5x8x4x256xf32> to vector<40x4x256xf32>
    %c0_3 = arith.constant 0 : index
    %c0_4 = arith.constant 0 : index
    %2 = vector.load %arg1[%c0_3, %c0_4] : memref<32x4xf32, #tpu.memory_space<vmem>>, vector<32x4xf32>
    %c0_5 = arith.constant 0 : index
    %c0_6 = arith.constant 0 : index
    %3 = vector.load %arg2[%c0_5, %c0_6] : memref<1x32xf32, #tpu.memory_space<vmem>>, vector<1x32xf32>
    %4 = vector.shape_cast %3 : vector<1x32xf32> to vector<1x32x1xf32>
    %5 = vector.extract_strided_slice %2 {offsets = [0, 0], sizes = [32, 1], strides = [1, 1]} : vector<32x4xf32> to vector<32x1xf32>
    %6 = vector.shape_cast %5 : vector<32x1xf32> to vector<32xf32>
    %7 = vector.shape_cast %6 : vector<32xf32> to vector<1x32x1xf32>
    %8 = vector.extract_strided_slice %1 {offsets = [0, 0, 0], sizes = [40, 1, 256], strides = [1, 1, 1]} : vector<40x4x256xf32> to vector<40x1x256xf32>
    %9 = vector.shape_cast %8 : vector<40x1x256xf32> to vector<40x256xf32>
    %10 = vector.shape_cast %9 : vector<40x256xf32> to vector<40x1x256xf32>
    %11 = vector.broadcast %7 : vector<1x32x1xf32> to vector<40x32x256xf32>
    %12 = vector.broadcast %10 : vector<40x1x256xf32> to vector<40x32x256xf32>
    %13 = arith.mulf %11, %12 : vector<40x32x256xf32>
    %14 = vector.broadcast %4 : vector<1x32x1xf32> to vector<40x32x256xf32>
    %15 = arith.addf %14, %13 : vector<40x32x256xf32>
    %16 = vector.extract_strided_slice %2 {offsets = [0, 1], sizes = [32, 1], strides = [1, 1]} : vector<32x4xf32> to vector<32x1xf32>
    %17 = vector.shape_cast %16 : vector<32x1xf32> to vector<32xf32>
    %18 = vector.shape_cast %17 : vector<32xf32> to vector<1x32x1xf32>
    %19 = vector.extract_strided_slice %1 {offsets = [0, 1, 0], sizes = [40, 1, 256], strides = [1, 1, 1]} : vector<40x4x256xf32> to vector<40x1x256xf32>
    %20 = vector.shape_cast %19 : vector<40x1x256xf32> to vector<40x256xf32>
    %21 = vector.shape_cast %20 : vector<40x256xf32> to vector<40x1x256xf32>
    %22 = vector.broadcast %18 : vector<1x32x1xf32> to vector<40x32x256xf32>
    %23 = vector.broadcast %21 : vector<40x1x256xf32> to vector<40x32x256xf32>
    %24 = arith.mulf %22, %23 : vector<40x32x256xf32>
    %25 = arith.addf %15, %24 : vector<40x32x256xf32>
    %26 = vector.extract_strided_slice %2 {offsets = [0, 2], sizes = [32, 1], strides = [1, 1]} : vector<32x4xf32> to vector<32x1xf32>
    %27 = vector.shape_cast %26 : vector<32x1xf32> to vector<32xf32>
    %28 = vector.shape_cast %27 : vector<32xf32> to vector<1x32x1xf32>
    %29 = vector.extract_strided_slice %1 {offsets = [0, 2, 0], sizes = [40, 1, 256], strides = [1, 1, 1]} : vector<40x4x256xf32> to vector<40x1x256xf32>
    %30 = vector.shape_cast %29 : vector<40x1x256xf32> to vector<40x256xf32>
    %31 = vector.shape_cast %30 : vector<40x256xf32> to vector<40x1x256xf32>
    %32 = vector.broadcast %28 : vector<1x32x1xf32> to vector<40x32x256xf32>
    %33 = vector.broadcast %31 : vector<40x1x256xf32> to vector<40x32x256xf32>
    %34 = arith.mulf %32, %33 : vector<40x32x256xf32>
    %35 = arith.addf %25, %34 : vector<40x32x256xf32>
    %36 = vector.extract_strided_slice %2 {offsets = [0, 3], sizes = [32, 1], strides = [1, 1]} : vector<32x4xf32> to vector<32x1xf32>
    %37 = vector.shape_cast %36 : vector<32x1xf32> to vector<32xf32>
    %38 = vector.shape_cast %37 : vector<32xf32> to vector<1x32x1xf32>
    %39 = vector.extract_strided_slice %1 {offsets = [0, 3, 0], sizes = [40, 1, 256], strides = [1, 1, 1]} : vector<40x4x256xf32> to vector<40x1x256xf32>
    %40 = vector.shape_cast %39 : vector<40x1x256xf32> to vector<40x256xf32>
    %41 = vector.shape_cast %40 : vector<40x256xf32> to vector<40x1x256xf32>
    %42 = vector.broadcast %38 : vector<1x32x1xf32> to vector<40x32x256xf32>
    %43 = vector.broadcast %41 : vector<40x1x256xf32> to vector<40x32x256xf32>
    %44 = arith.mulf %42, %43 : vector<40x32x256xf32>
    %45 = arith.addf %35, %44 : vector<40x32x256xf32>
    %cst = arith.constant 0.000000e+00 : f32
    %46 = vector.broadcast %cst : f32 to vector<40x32x256xf32>
    %47 = arith.maximumf %45, %46 : vector<40x32x256xf32>
    %cst_7 = arith.constant dense<0.000000e+00> : vector<40x32xf32>
    %48 = vector.multi_reduction <add>, %47, %cst_7 [2] : vector<40x32x256xf32> to vector<40x32xf32>
    %cst_8 = arith.constant 2.560000e+02 : f32
    %49 = vector.broadcast %cst_8 : f32 to vector<40x32xf32>
    %50 = arith.divf %48, %49 : vector<40x32xf32>
    %c0_9 = arith.constant 0 : index
    %c0_10 = arith.constant 0 : index
    %51 = vector.load %arg3[%c0_9, %c0_10] : memref<32x128xf32, #tpu.memory_space<vmem>>, vector<32x128xf32>
    %cst_11 = arith.constant dense<0.000000e+00> : vector<40x128xf32>
    %52 = tpu.matmul %50, %51, %cst_11 {dimension_numbers = #tpu.dot_dimension_numbers<[1], [0], [0], [1], [0, 0, 1, 1], [], []>} : vector<40x32xf32>, vector<32x128xf32>, vector<40x128xf32> -> vector<40x128xf32>
    %c0_12 = arith.constant 0 : index
    %c0_13 = arith.constant 0 : index
    %53 = vector.load %arg5[%c0_12, %c0_13] : memref<1x128xf32, #tpu.memory_space<vmem>>, vector<1x128xf32>
    %54 = vector.broadcast %53 : vector<1x128xf32> to vector<40x128xf32>
    %55 = arith.addf %52, %54 : vector<40x128xf32>
    %c0_14 = arith.constant 0 : index
    %c0_15 = arith.constant 0 : index
    %56 = vector.load %arg4[%c0_14, %c0_15] : memref<32x128xf32, #tpu.memory_space<vmem>>, vector<32x128xf32>
    %cst_16 = arith.constant 0.000000e+00 : f32
    %57 = vector.broadcast %cst_16 : f32 to vector<8x32xf32>
    %cst_17 = arith.constant 0.000000e+00 : f32
    %58 = vector.broadcast %cst_17 : f32 to vector<8x32xf32>
    %cst_18 = arith.constant 0.000000e+00 : f32
    %59 = vector.broadcast %cst_18 : f32 to vector<8x128xf32>
    %60 = vector.extract_strided_slice %55 {offsets = [0, 0], sizes = [8, 128], strides = [1, 1]} : vector<40x128xf32> to vector<8x128xf32>
    %cst_19 = arith.constant dense<0.000000e+00> : vector<8x128xf32>
    %61 = tpu.matmul %57, %56, %cst_19 {dimension_numbers = #tpu.dot_dimension_numbers<[1], [0], [0], [1], [0, 0, 1, 1], [], []>} : vector<8x32xf32>, vector<32x128xf32>, vector<8x128xf32> -> vector<8x128xf32>
    %62 = arith.addf %60, %61 : vector<8x128xf32>
    %63 = arith.negf %62 : vector<8x128xf32>
    %64 = math.exp %63 : vector<8x128xf32>
    %cst_20 = arith.constant 1.000000e+00 : f32
    %65 = vector.broadcast %cst_20 : f32 to vector<8x128xf32>
    %66 = arith.addf %65, %64 : vector<8x128xf32>
    %67 = arith.divf %65, %66 : vector<8x128xf32>
    %68 = vector.extract_strided_slice %67 {offsets = [0, 0], sizes = [8, 32], strides = [1, 1]} : vector<8x128xf32> to vector<8x32xf32>
    %69 = vector.extract_strided_slice %67 {offsets = [0, 32], sizes = [8, 32], strides = [1, 1]} : vector<8x128xf32> to vector<8x32xf32>
    %70 = vector.extract_strided_slice %67 {offsets = [0, 64], sizes = [8, 32], strides = [1, 1]} : vector<8x128xf32> to vector<8x32xf32>
    %cst_21 = arith.constant 2.000000e+00 : f32
    %71 = vector.broadcast %cst_21 : f32 to vector<8x32xf32>
    %72 = arith.mulf %71, %70 : vector<8x32xf32>
    %cst_22 = arith.constant 1.000000e+00 : f32
    %73 = vector.broadcast %cst_22 : f32 to vector<8x32xf32>
    %74 = arith.subf %72, %73 : vector<8x32xf32>
    %75 = vector.extract_strided_slice %67 {offsets = [0, 96], sizes = [8, 32], strides = [1, 1]} : vector<8x128xf32> to vector<8x32xf32>
    %76 = arith.mulf %69, %58 : vector<8x32xf32>
    %77 = arith.mulf %68, %74 : vector<8x32xf32>
    %78 = arith.addf %76, %77 : vector<8x32xf32>
    %79 = math.tanh %78 : vector<8x32xf32>
    %80 = arith.mulf %75, %79 : vector<8x32xf32>
    %c0_23 = arith.constant 0 : index
    %c0_24 = arith.constant 0 : index
    %c0_25 = arith.constant 0 : index
    %81 = vector.load %arg6[%c0_23, %c0_24, %c0_25] : memref<5x32x128xf32, #tpu.memory_space<vmem>>, vector<1x32x128xf32>
    %82 = vector.shape_cast %81 : vector<1x32x128xf32> to vector<32x128xf32>
    %cst_26 = arith.constant dense<0.000000e+00> : vector<8x128xf32>
    %83 = tpu.matmul %80, %82, %cst_26 {dimension_numbers = #tpu.dot_dimension_numbers<[1], [0], [0], [1], [0, 0, 1, 1], [], []>} : vector<8x32xf32>, vector<32x128xf32>, vector<8x128xf32> -> vector<8x128xf32>
    %84 = arith.addf %59, %83 : vector<8x128xf32>
    %85 = vector.extract_strided_slice %55 {offsets = [8, 0], sizes = [8, 128], strides = [1, 1]} : vector<40x128xf32> to vector<8x128xf32>
    %cst_27 = arith.constant dense<0.000000e+00> : vector<8x128xf32>
    %86 = tpu.matmul %80, %56, %cst_27 {dimension_numbers = #tpu.dot_dimension_numbers<[1], [0], [0], [1], [0, 0, 1, 1], [], []>} : vector<8x32xf32>, vector<32x128xf32>, vector<8x128xf32> -> vector<8x128xf32>
    %87 = arith.addf %85, %86 : vector<8x128xf32>
    %88 = arith.negf %87 : vector<8x128xf32>
    %89 = math.exp %88 : vector<8x128xf32>
    %cst_28 = arith.constant 1.000000e+00 : f32
    %90 = vector.broadcast %cst_28 : f32 to vector<8x128xf32>
    %91 = arith.addf %90, %89 : vector<8x128xf32>
    %92 = arith.divf %90, %91 : vector<8x128xf32>
    %93 = vector.extract_strided_slice %92 {offsets = [0, 0], sizes = [8, 32], strides = [1, 1]} : vector<8x128xf32> to vector<8x32xf32>
    %94 = vector.extract_strided_slice %92 {offsets = [0, 32], sizes = [8, 32], strides = [1, 1]} : vector<8x128xf32> to vector<8x32xf32>
    %95 = vector.extract_strided_slice %92 {offsets = [0, 64], sizes = [8, 32], strides = [1, 1]} : vector<8x128xf32> to vector<8x32xf32>
    %cst_29 = arith.constant 2.000000e+00 : f32
    %96 = vector.broadcast %cst_29 : f32 to vector<8x32xf32>
    %97 = arith.mulf %96, %95 : vector<8x32xf32>
    %cst_30 = arith.constant 1.000000e+00 : f32
    %98 = vector.broadcast %cst_30 : f32 to vector<8x32xf32>
    %99 = arith.subf %97, %98 : vector<8x32xf32>
    %100 = vector.extract_strided_slice %92 {offsets = [0, 96], sizes = [8, 32], strides = [1, 1]} : vector<8x128xf32> to vector<8x32xf32>
    %101 = arith.mulf %94, %78 : vector<8x32xf32>
    %102 = arith.mulf %93, %99 : vector<8x32xf32>
    %103 = arith.addf %101, %102 : vector<8x32xf32>
    %104 = math.tanh %103 : vector<8x32xf32>
    %105 = arith.mulf %100, %104 : vector<8x32xf32>
    %c1 = arith.constant 1 : index
    %c0_31 = arith.constant 0 : index
    %c0_32 = arith.constant 0 : index
    %106 = vector.load %arg6[%c1, %c0_31, %c0_32] : memref<5x32x128xf32, #tpu.memory_space<vmem>>, vector<1x32x128xf32>
    %107 = vector.shape_cast %106 : vector<1x32x128xf32> to vector<32x128xf32>
    %cst_33 = arith.constant dense<0.000000e+00> : vector<8x128xf32>
    %108 = tpu.matmul %105, %107, %cst_33 {dimension_numbers = #tpu.dot_dimension_numbers<[1], [0], [0], [1], [0, 0, 1, 1], [], []>} : vector<8x32xf32>, vector<32x128xf32>, vector<8x128xf32> -> vector<8x128xf32>
    %109 = arith.addf %84, %108 : vector<8x128xf32>
    %110 = vector.extract_strided_slice %55 {offsets = [16, 0], sizes = [8, 128], strides = [1, 1]} : vector<40x128xf32> to vector<8x128xf32>
    %cst_34 = arith.constant dense<0.000000e+00> : vector<8x128xf32>
    %111 = tpu.matmul %105, %56, %cst_34 {dimension_numbers = #tpu.dot_dimension_numbers<[1], [0], [0], [1], [0, 0, 1, 1], [], []>} : vector<8x32xf32>, vector<32x128xf32>, vector<8x128xf32> -> vector<8x128xf32>
    %112 = arith.addf %110, %111 : vector<8x128xf32>
    %113 = arith.negf %112 : vector<8x128xf32>
    %114 = math.exp %113 : vector<8x128xf32>
    %cst_35 = arith.constant 1.000000e+00 : f32
    %115 = vector.broadcast %cst_35 : f32 to vector<8x128xf32>
    %116 = arith.addf %115, %114 : vector<8x128xf32>
    %117 = arith.divf %115, %116 : vector<8x128xf32>
    %118 = vector.extract_strided_slice %117 {offsets = [0, 0], sizes = [8, 32], strides = [1, 1]} : vector<8x128xf32> to vector<8x32xf32>
    %119 = vector.extract_strided_slice %117 {offsets = [0, 32], sizes = [8, 32], strides = [1, 1]} : vector<8x128xf32> to vector<8x32xf32>
    %120 = vector.extract_strided_slice %117 {offsets = [0, 64], sizes = [8, 32], strides = [1, 1]} : vector<8x128xf32> to vector<8x32xf32>
    %cst_36 = arith.constant 2.000000e+00 : f32
    %121 = vector.broadcast %cst_36 : f32 to vector<8x32xf32>
    %122 = arith.mulf %121, %120 : vector<8x32xf32>
    %cst_37 = arith.constant 1.000000e+00 : f32
    %123 = vector.broadcast %cst_37 : f32 to vector<8x32xf32>
    %124 = arith.subf %122, %123 : vector<8x32xf32>
    %125 = vector.extract_strided_slice %117 {offsets = [0, 96], sizes = [8, 32], strides = [1, 1]} : vector<8x128xf32> to vector<8x32xf32>
    %126 = arith.mulf %119, %103 : vector<8x32xf32>
    %127 = arith.mulf %118, %124 : vector<8x32xf32>
    %128 = arith.addf %126, %127 : vector<8x32xf32>
    %129 = math.tanh %128 : vector<8x32xf32>
    %130 = arith.mulf %125, %129 : vector<8x32xf32>
    %c2 = arith.constant 2 : index
    %c0_38 = arith.constant 0 : index
    %c0_39 = arith.constant 0 : index
    %131 = vector.load %arg6[%c2, %c0_38, %c0_39] : memref<5x32x128xf32, #tpu.memory_space<vmem>>, vector<1x32x128xf32>
    %132 = vector.shape_cast %131 : vector<1x32x128xf32> to vector<32x128xf32>
    %cst_40 = arith.constant dense<0.000000e+00> : vector<8x128xf32>
    %133 = tpu.matmul %130, %132, %cst_40 {dimension_numbers = #tpu.dot_dimension_numbers<[1], [0], [0], [1], [0, 0, 1, 1], [], []>} : vector<8x32xf32>, vector<32x128xf32>, vector<8x128xf32> -> vector<8x128xf32>
    %134 = arith.addf %109, %133 : vector<8x128xf32>
    %135 = vector.extract_strided_slice %55 {offsets = [24, 0], sizes = [8, 128], strides = [1, 1]} : vector<40x128xf32> to vector<8x128xf32>
    %cst_41 = arith.constant dense<0.000000e+00> : vector<8x128xf32>
    %136 = tpu.matmul %130, %56, %cst_41 {dimension_numbers = #tpu.dot_dimension_numbers<[1], [0], [0], [1], [0, 0, 1, 1], [], []>} : vector<8x32xf32>, vector<32x128xf32>, vector<8x128xf32> -> vector<8x128xf32>
    %137 = arith.addf %135, %136 : vector<8x128xf32>
    %138 = arith.negf %137 : vector<8x128xf32>
    %139 = math.exp %138 : vector<8x128xf32>
    %cst_42 = arith.constant 1.000000e+00 : f32
    %140 = vector.broadcast %cst_42 : f32 to vector<8x128xf32>
    %141 = arith.addf %140, %139 : vector<8x128xf32>
    %142 = arith.divf %140, %141 : vector<8x128xf32>
    %143 = vector.extract_strided_slice %142 {offsets = [0, 0], sizes = [8, 32], strides = [1, 1]} : vector<8x128xf32> to vector<8x32xf32>
    %144 = vector.extract_strided_slice %142 {offsets = [0, 32], sizes = [8, 32], strides = [1, 1]} : vector<8x128xf32> to vector<8x32xf32>
    %145 = vector.extract_strided_slice %142 {offsets = [0, 64], sizes = [8, 32], strides = [1, 1]} : vector<8x128xf32> to vector<8x32xf32>
    %cst_43 = arith.constant 2.000000e+00 : f32
    %146 = vector.broadcast %cst_43 : f32 to vector<8x32xf32>
    %147 = arith.mulf %146, %145 : vector<8x32xf32>
    %cst_44 = arith.constant 1.000000e+00 : f32
    %148 = vector.broadcast %cst_44 : f32 to vector<8x32xf32>
    %149 = arith.subf %147, %148 : vector<8x32xf32>
    %150 = vector.extract_strided_slice %142 {offsets = [0, 96], sizes = [8, 32], strides = [1, 1]} : vector<8x128xf32> to vector<8x32xf32>
    %151 = arith.mulf %144, %128 : vector<8x32xf32>
    %152 = arith.mulf %143, %149 : vector<8x32xf32>
    %153 = arith.addf %151, %152 : vector<8x32xf32>
    %154 = math.tanh %153 : vector<8x32xf32>
    %155 = arith.mulf %150, %154 : vector<8x32xf32>
    %c3 = arith.constant 3 : index
    %c0_45 = arith.constant 0 : index
    %c0_46 = arith.constant 0 : index
    %156 = vector.load %arg6[%c3, %c0_45, %c0_46] : memref<5x32x128xf32, #tpu.memory_space<vmem>>, vector<1x32x128xf32>
    %157 = vector.shape_cast %156 : vector<1x32x128xf32> to vector<32x128xf32>
    %cst_47 = arith.constant dense<0.000000e+00> : vector<8x128xf32>
    %158 = tpu.matmul %155, %157, %cst_47 {dimension_numbers = #tpu.dot_dimension_numbers<[1], [0], [0], [1], [0, 0, 1, 1], [], []>} : vector<8x32xf32>, vector<32x128xf32>, vector<8x128xf32> -> vector<8x128xf32>
    %159 = arith.addf %134, %158 : vector<8x128xf32>
    %160 = vector.extract_strided_slice %55 {offsets = [32, 0], sizes = [8, 128], strides = [1, 1]} : vector<40x128xf32> to vector<8x128xf32>
    %cst_48 = arith.constant dense<0.000000e+00> : vector<8x128xf32>
    %161 = tpu.matmul %155, %56, %cst_48 {dimension_numbers = #tpu.dot_dimension_numbers<[1], [0], [0], [1], [0, 0, 1, 1], [], []>} : vector<8x32xf32>, vector<32x128xf32>, vector<8x128xf32> -> vector<8x128xf32>
    %162 = arith.addf %160, %161 : vector<8x128xf32>
    %163 = arith.negf %162 : vector<8x128xf32>
    %164 = math.exp %163 : vector<8x128xf32>
    %cst_49 = arith.constant 1.000000e+00 : f32
    %165 = vector.broadcast %cst_49 : f32 to vector<8x128xf32>
    %166 = arith.addf %165, %164 : vector<8x128xf32>
    %167 = arith.divf %165, %166 : vector<8x128xf32>
    %168 = vector.extract_strided_slice %167 {offsets = [0, 0], sizes = [8, 32], strides = [1, 1]} : vector<8x128xf32> to vector<8x32xf32>
    %169 = vector.extract_strided_slice %167 {offsets = [0, 32], sizes = [8, 32], strides = [1, 1]} : vector<8x128xf32> to vector<8x32xf32>
    %170 = vector.extract_strided_slice %167 {offsets = [0, 64], sizes = [8, 32], strides = [1, 1]} : vector<8x128xf32> to vector<8x32xf32>
    %cst_50 = arith.constant 2.000000e+00 : f32
    %171 = vector.broadcast %cst_50 : f32 to vector<8x32xf32>
    %172 = arith.mulf %171, %170 : vector<8x32xf32>
    %cst_51 = arith.constant 1.000000e+00 : f32
    %173 = vector.broadcast %cst_51 : f32 to vector<8x32xf32>
    %174 = arith.subf %172, %173 : vector<8x32xf32>
    %175 = vector.extract_strided_slice %167 {offsets = [0, 96], sizes = [8, 32], strides = [1, 1]} : vector<8x128xf32> to vector<8x32xf32>
    %176 = arith.mulf %169, %153 : vector<8x32xf32>
    %177 = arith.mulf %168, %174 : vector<8x32xf32>
    %178 = arith.addf %176, %177 : vector<8x32xf32>
    %179 = math.tanh %178 : vector<8x32xf32>
    %180 = arith.mulf %175, %179 : vector<8x32xf32>
    %c4 = arith.constant 4 : index
    %c0_52 = arith.constant 0 : index
    %c0_53 = arith.constant 0 : index
    %181 = vector.load %arg6[%c4, %c0_52, %c0_53] : memref<5x32x128xf32, #tpu.memory_space<vmem>>, vector<1x32x128xf32>
    %182 = vector.shape_cast %181 : vector<1x32x128xf32> to vector<32x128xf32>
    %cst_54 = arith.constant dense<0.000000e+00> : vector<8x128xf32>
    %183 = tpu.matmul %180, %182, %cst_54 {dimension_numbers = #tpu.dot_dimension_numbers<[1], [0], [0], [1], [0, 0, 1, 1], [], []>} : vector<8x32xf32>, vector<32x128xf32>, vector<8x128xf32> -> vector<8x128xf32>
    %184 = arith.addf %159, %183 : vector<8x128xf32>
    %c0_55 = arith.constant 0 : index
    %c0_56 = arith.constant 0 : index
    %185 = vector.load %arg7[%c0_55, %c0_56] : memref<1x128xf32, #tpu.memory_space<vmem>>, vector<1x128xf32>
    %186 = vector.broadcast %185 : vector<1x128xf32> to vector<8x128xf32>
    %187 = arith.addf %184, %186 : vector<8x128xf32>
    %cst_57 = arith.constant 0.000000e+00 : f32
    %188 = vector.broadcast %cst_57 : f32 to vector<8x128xf32>
    %189 = arith.maximumf %187, %188 : vector<8x128xf32>
    %c0_58 = arith.constant 0 : index
    %c0_59 = arith.constant 0 : index
    %190 = vector.load %arg8[%c0_58, %c0_59] : memref<128x1xf32, #tpu.memory_space<vmem>>, vector<128x1xf32>
    %cst_60 = arith.constant dense<0.000000e+00> : vector<8x1xf32>
    %191 = tpu.matmul %189, %190, %cst_60 {dimension_numbers = #tpu.dot_dimension_numbers<[1], [0], [0], [1], [0, 0, 1, 1], [], []>} : vector<8x128xf32>, vector<128x1xf32>, vector<8x1xf32> -> vector<8x1xf32>
    %c0_61 = arith.constant 0 : index
    %c0_62 = arith.constant 0 : index
    %192 = vector.load %arg9[%c0_61, %c0_62] : memref<1x1xf32, #tpu.memory_space<vmem>>, vector<1x1xf32>
    %193 = vector.broadcast %192 : vector<1x1xf32> to vector<8x1xf32>
    %194 = arith.addf %191, %193 : vector<8x1xf32>
    %c0_63 = arith.constant 0 : index
    %c0_64 = arith.constant 0 : index
    %195 = vector.load %arg10[%c0_63, %c0_64] : memref<8x1xf32, #tpu.memory_space<vmem>>, vector<8x1xf32>
    tpu.vector_store %arg10[%c0_63, %c0_64], %194 {strides = array<i32>} : memref<8x1xf32, #tpu.memory_space<vmem>>, vector<8x1xf32>,
    return
  }
}

</mosaic_0001>

<llo_original>
// kernel: tpu_custom_call.1
$region0: #{tpu_custom_call.1}
  #allocation0 [shape = 'u32[]', space=smem, size = 0x4, offset = 0x4, fixed_abs, tag = 'smem constant byte address 0x4 - core index']
  #allocation1 [shape = 'u32[144,128]{1,0:T(1,128)}', space=vmem, size = 0x12000, scoped, tag = 'internal scratch']
  #allocation2 [shape = 'f32[1,1]{1,0:T(1,128)S(1)}', space=vmem, size = 0x200, scoped, tag = 'scoped memory for tpu_custom_call.1']
  %s0 = inlined_call_operand.hbm [shape: f32[5,8,4,256], index: 0, kind: input, shape index: {}]
  %s1 = inlined_call_operand.vmem [shape: f32[32,4], index: 1, kind: input, shape index: {}]
  %s2 = inlined_call_operand.vmem [shape: f32[1,32], index: 2, kind: input, shape index: {}]
  %s3 = inlined_call_operand.hbm [shape: f32[32,128], index: 3, kind: input, shape index: {}]
  %s4 = inlined_call_operand.hbm [shape: f32[32,128], index: 4, kind: input, shape index: {}]
  %s5 = inlined_call_operand.vmem [shape: f32[1,128], index: 5, kind: input, shape index: {}]
  %s6 = inlined_call_operand.vmem [shape: f32[5,32,128], index: 6, kind: input, shape index: {}]
  %s7 = inlined_call_operand.vmem [shape: f32[1,128], index: 7, kind: input, shape index: {}]
  %s8 = inlined_call_operand.vmem [shape: f32[128,1], index: 8, kind: input, shape index: {}]
  %s9 = inlined_call_operand.<no memory space> [shape: f32[1,1], index: 9, kind: input, shape index: {}]
  %s10 = inlined_call_operand.vmem [shape: f32[8,1], index: 10, kind: output, shape index: {}]
  %s11 = sld [smem:[#allocation0]]
  $region62: #{tpu_custom_call.1} parent=0
    _
  %s13 = ssub.s32 1, %s11
  %s14 = scalar_select 0, %s13, %s11
  %v15 = vstv %s9
  %16 = vst [vmem:[#allocation2] sm:$0x1] %v15
  $region1: #{tpu_custom_call.1} parent=0
    #allocation3 [shape = 'u8[163840]{0}', space=vmem, size = 0x28000, scoped, tag = 'input window, operand 0, single buffered']
    #allocation4 [shape = 's32[1]{0}', space=sflag, size = 0x4, scoped, tag = 'scoped memory for tpu_custom_call.1']
    #allocation5 [shape = 'u8[16384]{0}', space=vmem, size = 0x4000, scoped, tag = 'input window, operand 3, single buffered']
    #allocation6 [shape = 's32[1]{0}', space=sflag, size = 0x4, scoped, tag = 'scoped memory for tpu_custom_call.1']
    #allocation7 [shape = 'u8[16384]{0}', space=vmem, size = 0x4000, scoped, tag = 'input window, operand 4, single buffered']
    %17 = vsyncpa [#allocation4], 0
    %18 = vsyncpa [#allocation6], 0
    // Predicated region
    $region2: #{tpu_custom_call.1} parent=1 // pred_check
      _
    $region3: #{tpu_custom_call.1} parent=1 // pred_check_branch
      %20 = sbr.rel (0) target = $region5
    $region4: #{tpu_custom_call.1} parent=1 // pred_region
      %s22 = ssub.s32 5120, 5120
      %23 = vsyncadd [#allocation4], %s22
      %s24 = sshll.u32 [#allocation3], 4
      %s25 = int_to_ptr.vmem [resolvable:$true] %s24
      %30 = dma.hbm_to_vmem [thread:$0]  %s0, 5120, %s25, [#allocation4], 128, 128, 8
    $region5: #{tpu_custom_call.1} parent=1 // pred_fallthru
      _
    // Predicated region
    $region6: #{tpu_custom_call.1} parent=1 // pred_check
      _
    $region7: #{tpu_custom_call.1} parent=1 // pred_check_branch
      %32 = sbr.rel (0) target = $region9
    $region8: #{tpu_custom_call.1} parent=1 // pred_region
      _
    $region9: #{tpu_custom_call.1} parent=1 // pred_fallthru
      _
    // Predicated region
    $region10: #{tpu_custom_call.1} parent=1 // pred_check
      _
    $region11: #{tpu_custom_call.1} parent=1 // pred_check_branch
      %34 = sbr.rel (0) target = $region13
    $region12: #{tpu_custom_call.1} parent=1 // pred_region
      _
    $region13: #{tpu_custom_call.1} parent=1 // pred_fallthru
      _
    // Predicated region
    $region14: #{tpu_custom_call.1} parent=1 // pred_check
      _
    $region15: #{tpu_custom_call.1} parent=1 // pred_check_branch
      %36 = sbr.rel (0) target = $region17
    $region16: #{tpu_custom_call.1} parent=1 // pred_region
      %s38 = ssub.s32 512, 512
      %39 = vsyncadd [#allocation6], %s38
      %s40 = sshll.u32 [#allocation5], 4
      %s41 = int_to_ptr.vmem [resolvable:$true] %s40
      %46 = dma.hbm_to_vmem [thread:$0]  %s3, 512, %s41, [#allocation6], 128, 128, 8
    $region17: #{tpu_custom_call.1} parent=1 // pred_fallthru
      _
    // Predicated region
    $region18: #{tpu_custom_call.1} parent=1 // pred_check
      _
    $region19: #{tpu_custom_call.1} parent=1 // pred_check_branch
      %48 = sbr.rel (0) target = $region21
    $region20: #{tpu_custom_call.1} parent=1 // pred_region
      %s50 = ssub.s32 512, 512
      %51 = vsyncadd [#allocation6], %s50
      %s52 = sshll.u32 [#allocation7], 4
      %s53 = int_to_ptr.vmem [resolvable:$true] %s52
      %58 = dma.hbm_to_vmem [thread:$0]  %s4, 512, %s53, [#allocation6], 128, 128, 8
    $region21: #{tpu_custom_call.1} parent=1 // pred_fallthru
      _
    // Predicated region
    $region22: #{tpu_custom_call.1} parent=1 // pred_check
      _
    $region23: #{tpu_custom_call.1} parent=1 // pred_check_branch
      %60 = sbr.rel (0) target = $region25
    $region24: #{tpu_custom_call.1} parent=1 // pred_region
      _
    $region25: #{tpu_custom_call.1} parent=1 // pred_fallthru
      _
    // Predicated region
    $region26: #{tpu_custom_call.1} parent=1 // pred_check
      _
    $region27: #{tpu_custom_call.1} parent=1 // pred_check_branch
      %62 = sbr.rel (0) target = $region29
    $region28: #{tpu_custom_call.1} parent=1 // pred_region
      _
    $region29: #{tpu_custom_call.1} parent=1 // pred_fallthru
      _
    // Predicated region
    $region30: #{tpu_custom_call.1} parent=1 // pred_check
      _
    $region31: #{tpu_custom_call.1} parent=1 // pred_check_branch
      %64 = sbr.rel (0) target = $region33
    $region32: #{tpu_custom_call.1} parent=1 // pred_region
      _
    $region33: #{tpu_custom_call.1} parent=1 // pred_fallthru
      _
    // Predicated region
    $region34: #{tpu_custom_call.1} parent=1 // pred_check
      _
    $region35: #{tpu_custom_call.1} parent=1 // pred_check_branch
      %66 = sbr.rel (0) target = $region37
    $region36: #{tpu_custom_call.1} parent=1 // pred_region
      _
    $region37: #{tpu_custom_call.1} parent=1 // pred_fallthru
      _
    // Predicated region
    $region38: #{tpu_custom_call.1} parent=1 // pred_check
      _
    $region39: #{tpu_custom_call.1} parent=1 // pred_check_branch
      %68 = sbr.rel (0) target = $region41
    $region40: #{tpu_custom_call.1} parent=1 // pred_region
      _
    $region41: #{tpu_custom_call.1} parent=1 // pred_fallthru
      _
    // Predicated region
    $region42: #{tpu_custom_call.1} parent=1 // pred_check
      _
    $region43: #{tpu_custom_call.1} parent=1 // pred_check_branch
      %70 = sbr.rel (0) target = $region45
    $region44: #{tpu_custom_call.1} parent=1 // pred_region
      %71 = dma.done [#allocation4], 5120
    $region45: #{tpu_custom_call.1} parent=1 // pred_fallthru
      _
    // Predicated region
    $region46: #{tpu_custom_call.1} parent=1 // pred_check
      _
    $region47: #{tpu_custom_call.1} parent=1 // pred_check_branch
      %73 = sbr.rel (0) target = $region49
    $region48: #{tpu_custom_call.1} parent=1 // pred_region
      %74 = dma.done [#allocation6], 512
    $region49: #{tpu_custom_call.1} parent=1 // pred_fallthru
      _
    // Predicated region
    $region50: #{tpu_custom_call.1} parent=1 // pred_check
      _
    $region51: #{tpu_custom_call.1} parent=1 // pred_check_branch
      %76 = sbr.rel (0) target = $region53
    $region52: #{tpu_custom_call.1} parent=1 // pred_region
      %77 = dma.done [#allocation6], 512
    $region53: #{tpu_custom_call.1} parent=1 // pred_fallthru
      _
    %v78 = vld [vmem:[#allocation3] sm:$0xff]
    %v79 = vld [vmem:[#allocation3 + $0x8] sm:$0xff]
    %v80 = vld [vmem:[#allocation3 + $0x10] sm:$0xff]
    %v81 = vld [vmem:[#allocation3 + $0x18] sm:$0xff]
    %v82 = vld [vmem:[#allocation3 + $0x20] sm:$0xff]
    %v83 = vld [vmem:[#allocation3 + $0x28] sm:$0xff]
    %v84 = vld [vmem:[#allocation3 + $0x30] sm:$0xff]
    %v85 = vld [vmem:[#allocation3 + $0x38] sm:$0xff]
    %v86 = vld [vmem:[#allocation3 + $0x40] sm:$0xff]
    %v87 = vld [vmem:[#allocation3 + $0x48] sm:$0xff]
    %v88 = vld [vmem:[#allocation3 + $0x50] sm:$0xff]
    %v89 = vld [vmem:[#allocation3 + $0x58] sm:$0xff]
    %v90 = vld [vmem:[#allocation3 + $0x60] sm:$0xff]
    %v91 = vld [vmem:[#allocation3 + $0x68] sm:$0xff]
    %v92 = vld [vmem:[#allocation3 + $0x70] sm:$0xff]
    %v93 = vld [vmem:[#allocation3 + $0x78] sm:$0xff]
    %v94 = vld [vmem:[#allocation3 + $0x80] sm:$0xff]
    %v95 = vld [vmem:[#allocation3 + $0x88] sm:$0xff]
    %v96 = vld [vmem:[#allocation3 + $0x90] sm:$0xff]
    %v97 = vld [vmem:[#allocation3 + $0x98] sm:$0xff]
    %v98 = vld [vmem:[#allocation3 + $0xa0] sm:$0xff]
    %v99 = vld [vmem:[#allocation3 + $0xa8] sm:$0xff]
    %v100 = vld [vmem:[#allocation3 + $0xb0] sm:$0xff]
    %v101 = vld [vmem:[#allocation3 + $0xb8] sm:$0xff]
    %v102 = vld [vmem:[#allocation3 + $0xc0] sm:$0xff]
    %v103 = vld [vmem:[#allocation3 + $0xc8] sm:$0xff]
    %v104 = vld [vmem:[#allocation3 + $0xd0] sm:$0xff]
    %v105 = vld [vmem:[#allocation3 + $0xd8] sm:$0xff]
    %v106 = vld [vmem:[#allocation3 + $0xe0] sm:$0xff]
    %v107 = vld [vmem:[#allocation3 + $0xe8] sm:$0xff]
    %v108 = vld [vmem:[#allocation3 + $0xf0] sm:$0xff]
    %v109 = vld [vmem:[#allocation3 + $0xf8] sm:$0xff]
    %v110 = vld [vmem:[#allocation3 + $0x100] sm:$0xff]
    %v111 = vld [vmem:[#allocation3 + $0x108] sm:$0xff]
    %v112 = vld [vmem:[#allocation3 + $0x110] sm:$0xff]
    %v113 = vld [vmem:[#allocation3 + $0x118] sm:$0xff]
    %v114 = vld [vmem:[#allocation3 + $0x120] sm:$0xff]
    %v115 = vld [vmem:[#allocation3 + $0x128] sm:$0xff]
    %v116 = vld [vmem:[#allocation3 + $0x130] sm:$0xff]
    %v117 = vld [vmem:[#allocation3 + $0x138] sm:$0xff]
    %v118 = vld [vmem:[%s1] sm:$0xff]
    %v119 = vld [vmem:[%s1 + $0x8] sm:$0xff]
    %v120 = vld [vmem:[%s1 + $0x10] sm:$0xff]
    %v121 = vld [vmem:[%s1 + $0x18] sm:$0xff]
    %v122 = vld [vmem:[%s2] sm:$0x1]
    %v123 = vlaneseq
    %v124 = vshrl.u32 %v123, 7
    %v125 = vsub.s32 0, %v124
    %v126 = vrot.slane %v122, %v125
    %128 = vbcast.lane.b32.xlu0 %v126, 256
    %v129 = vpop.permute.xlu0 %128
    %s131 = sor.u32 256, 8
    %132 = vbcast.lane.b32.xlu0 %v126, %s131
    %v133 = vpop.permute.xlu0 %132
    %s135 = sor.u32 256, 16
    %136 = vbcast.lane.b32.xlu0 %v126, %s135
    %v137 = vpop.permute.xlu0 %136
    %s139 = sor.u32 256, 24
    %140 = vbcast.lane.b32.xlu0 %v126, %s139
    %v141 = vpop.permute.xlu0 %140
    %143 = vset.pattern.permute.xlu0 0
    %144 = vperm.xlu0 %143, %v118
    %v145 = vpop.permute.xlu0 %144
    %148 = vset.pattern.permute.xlu0 0
    %149 = vperm.xlu0 %148, %v119
    %v150 = vpop.permute.xlu0 %149
    %153 = vset.pattern.permute.xlu0 0
    %154 = vperm.xlu0 %153, %v120
    %v155 = vpop.permute.xlu0 %154
    %158 = vset.pattern.permute.xlu0 0
    %159 = vperm.xlu0 %158, %v121
    %v160 = vpop.permute.xlu0 %159
    %v202 = vlaneseq
    %v203 = vshrl.u32 %v202, 7
    %v204 = vsub.s32 0, %v203
    %v205 = vrot.slane %v78, %v204
    %v206 = vlaneseq
    %v207 = vshrl.u32 %v206, 7
    %v208 = vsub.s32 4, %v207
    %v209 = vrot.slane %v78, %v208
    %v210 = vlaneseq
    %v211 = vshrl.u32 %v210, 7
    %v212 = vsub.s32 0, %v211
    %v213 = vrot.slane %v79, %v212
    %v214 = vlaneseq
    %v215 = vshrl.u32 %v214, 7
    %v216 = vsub.s32 4, %v215
    %v217 = vrot.slane %v79, %v216
    %v218 = vlaneseq
    %v219 = vshrl.u32 %v218, 7
    %v220 = vsub.s32 0, %v219
    %v221 = vrot.slane %v80, %v220
    %v222 = vlaneseq
    %v223 = vshrl.u32 %v222, 7
    %v224 = vsub.s32 4, %v223
    %v225 = vrot.slane %v80, %v224
    %v226 = vlaneseq
    %v227 = vshrl.u32 %v226, 7
    %v228 = vsub.s32 0, %v227
    %v229 = vrot.slane %v81, %v228
    %v230 = vlaneseq
    %v231 = vshrl.u32 %v230, 7
    %v232 = vsub.s32 4, %v231
    %v233 = vrot.slane %v81, %v232
    %v234 = vlaneseq
    %v235 = vshrl.u32 %v234, 7
    %v236 = vsub.s32 0, %v235
    %v237 = vrot.slane %v82, %v236
    %v238 = vlaneseq
    %v239 = vshrl.u32 %v238, 7
    %v240 = vsub.s32 4, %v239
    %v241 = vrot.slane %v82, %v240
    %v242 = vlaneseq
    %v243 = vshrl.u32 %v242, 7
    %v244 = vsub.s32 0, %v243
    %v245 = vrot.slane %v83, %v244
    %v246 = vlaneseq
    %v247 = vshrl.u32 %v246, 7
    %v248 = vsub.s32 4, %v247
    %v249 = vrot.slane %v83, %v248
    %v250 = vlaneseq
    %v251 = vshrl.u32 %v250, 7
    %v252 = vsub.s32 0, %v251
    %v253 = vrot.slane %v84, %v252
    %v254 = vlaneseq
    %v255 = vshrl.u32 %v254, 7
    %v256 = vsub.s32 4, %v255
    %v257 = vrot.slane %v84, %v256
    %v258 = vlaneseq
    %v259 = vshrl.u32 %v258, 7
    %v260 = vsub.s32 0, %v259
    %v261 = vrot.slane %v85, %v260
    %v262 = vlaneseq
    %v263 = vshrl.u32 %v262, 7
    %v264 = vsub.s32 4, %v263
    %v265 = vrot.slane %v85, %v264
    %v266 = vlaneseq
    %v267 = vshrl.u32 %v266, 7
    %v268 = vsub.s32 0, %v267
    %v269 = vrot.slane %v86, %v268
    %v270 = vlaneseq
    %v271 = vshrl.u32 %v270, 7
    %v272 = vsub.s32 4, %v271
    %v273 = vrot.slane %v86, %v272
    %v274 = vlaneseq
    %v275 = vshrl.u32 %v274, 7
    %v276 = vsub.s32 0, %v275
    %v277 = vrot.slane %v87, %v276
    %v278 = vlaneseq
    %v279 = vshrl.u32 %v278, 7
    %v280 = vsub.s32 4, %v279
    %v281 = vrot.slane %v87, %v280
    %v282 = vlaneseq
    %v283 = vshrl.u32 %v282, 7
    %v284 = vsub.s32 0, %v283
    %v285 = vrot.slane %v88, %v284
    %v286 = vlaneseq
    %v287 = vshrl.u32 %v286, 7
    %v288 = vsub.s32 4, %v287
    %v289 = vrot.slane %v88, %v288
    %v290 = vlaneseq
    %v291 = vshrl.u32 %v290, 7
    %v292 = vsub.s32 0, %v291
    %v293 = vrot.slane %v89, %v292
    %v294 = vlaneseq
    %v295 = vshrl.u32 %v294, 7
    %v296 = vsub.s32 4, %v295
    %v297 = vrot.slane %v89, %v296
    %v298 = vlaneseq
    %v299 = vshrl.u32 %v298, 7
    %v300 = vsub.s32 0, %v299
    %v301 = vrot.slane %v90, %v300
    %v302 = vlaneseq
    %v303 = vshrl.u32 %v302, 7
    %v304 = vsub.s32 4, %v303
    %v305 = vrot.slane %v90, %v304
    %v306 = vlaneseq
    %v307 = vshrl.u32 %v306, 7
    %v308 = vsub.s32 0, %v307
    %v309 = vrot.slane %v91, %v308
    %v310 = vlaneseq
    %v311 = vshrl.u32 %v310, 7
    %v312 = vsub.s32 4, %v311
    %v313 = vrot.slane %v91, %v312
    %v314 = vlaneseq
    %v315 = vshrl.u32 %v314, 7
    %v316 = vsub.s32 0, %v315
    %v317 = vrot.slane %v92, %v316
    %v318 = vlaneseq
    %v319 = vshrl.u32 %v318, 7
    %v320 = vsub.s32 4, %v319
    %v321 = vrot.slane %v92, %v320
    %v322 = vlaneseq
    %v323 = vshrl.u32 %v322, 7
    %v324 = vsub.s32 0, %v323
    %v325 = vrot.slane %v93, %v324
    %v326 = vlaneseq
    %v327 = vshrl.u32 %v326, 7
    %v328 = vsub.s32 4, %v327
    %v329 = vrot.slane %v93, %v328
    %v330 = vlaneseq
    %v331 = vshrl.u32 %v330, 7
    %v332 = vsub.s32 0, %v331
    %v333 = vrot.slane %v94, %v332
    %v334 = vlaneseq
    %v335 = vshrl.u32 %v334, 7
    %v336 = vsub.s32 4, %v335
    %v337 = vrot.slane %v94, %v336
    %v338 = vlaneseq
    %v339 = vshrl.u32 %v338, 7
    %v340 = vsub.s32 0, %v339
    %v341 = vrot.slane %v95, %v340
    %v342 = vlaneseq
    %v343 = vshrl.u32 %v342, 7
    %v344 = vsub.s32 4, %v343
    %v345 = vrot.slane %v95, %v344
    %v346 = vlaneseq
    %v347 = vshrl.u32 %v346, 7
    %v348 = vsub.s32 0, %v347
    %v349 = vrot.slane %v96, %v348
    %v350 = vlaneseq
    %v351 = vshrl.u32 %v350, 7
    %v352 = vsub.s32 4, %v351
    %v353 = vrot.slane %v96, %v352
    %v354 = vlaneseq
    %v355 = vshrl.u32 %v354, 7
    %v356 = vsub.s32 0, %v355
    %v357 = vrot.slane %v97, %v356
    %v358 = vlaneseq
    %v359 = vshrl.u32 %v358, 7
    %v360 = vsub.s32 4, %v359
    %v361 = vrot.slane %v97, %v360
    %v362 = vlaneseq
    %v363 = vshrl.u32 %v362, 7
    %v364 = vsub.s32 0, %v363
    %v365 = vrot.slane %v98, %v364
    %v366 = vlaneseq
    %v367 = vshrl.u32 %v366, 7
    %v368 = vsub.s32 4, %v367
    %v369 = vrot.slane %v98, %v368
    %v370 = vlaneseq
    %v371 = vshrl.u32 %v370, 7
    %v372 = vsub.s32 0, %v371
    %v373 = vrot.slane %v99, %v372
    %v374 = vlaneseq
    %v375 = vshrl.u32 %v374, 7
    %v376 = vsub.s32 4, %v375
    %v377 = vrot.slane %v99, %v376
    %v378 = vlaneseq
    %v379 = vshrl.u32 %v378, 7
    %v380 = vsub.s32 0, %v379
    %v381 = vrot.slane %v100, %v380
    %v382 = vlaneseq
    %v383 = vshrl.u32 %v382, 7
    %v384 = vsub.s32 4, %v383
    %v385 = vrot.slane %v100, %v384
    %v386 = vlaneseq
    %v387 = vshrl.u32 %v386, 7
    %v388 = vsub.s32 0, %v387
    %v389 = vrot.slane %v101, %v388
    %v390 = vlaneseq
    %v391 = vshrl.u32 %v390, 7
    %v392 = vsub.s32 4, %v391
    %v393 = vrot.slane %v101, %v392
    %v394 = vlaneseq
    %v395 = vshrl.u32 %v394, 7
    %v396 = vsub.s32 0, %v395
    %v397 = vrot.slane %v102, %v396
    %v398 = vlaneseq
    %v399 = vshrl.u32 %v398, 7
    %v400 = vsub.s32 4, %v399
    %v401 = vrot.slane %v102, %v400
    %v402 = vlaneseq
    %v403 = vshrl.u32 %v402, 7
    %v404 = vsub.s32 0, %v403
    %v405 = vrot.slane %v103, %v404
    %v406 = vlaneseq
    %v407 = vshrl.u32 %v406, 7
    %v408 = vsub.s32 4, %v407
    %v409 = vrot.slane %v103, %v408
    %v410 = vlaneseq
    %v411 = vshrl.u32 %v410, 7
    %v412 = vsub.s32 0, %v411
    %v413 = vrot.slane %v104, %v412
    %v414 = vlaneseq
    %v415 = vshrl.u32 %v414, 7
    %v416 = vsub.s32 4, %v415
    %v417 = vrot.slane %v104, %v416
    %v418 = vlaneseq
    %v419 = vshrl.u32 %v418, 7
    %v420 = vsub.s32 0, %v419
    %v421 = vrot.slane %v105, %v420
    %v422 = vlaneseq
    %v423 = vshrl.u32 %v422, 7
    %v424 = vsub.s32 4, %v423
    %v425 = vrot.slane %v105, %v424
    %v426 = vlaneseq
    %v427 = vshrl.u32 %v426, 7
    %v428 = vsub.s32 0, %v427
    %v429 = vrot.slane %v106, %v428
    %v430 = vlaneseq
    %v431 = vshrl.u32 %v430, 7
    %v432 = vsub.s32 4, %v431
    %v433 = vrot.slane %v106, %v432
    %v434 = vlaneseq
    %v435 = vshrl.u32 %v434, 7
    %v436 = vsub.s32 0, %v435
    %v437 = vrot.slane %v107, %v436
    %v438 = vlaneseq
    %v439 = vshrl.u32 %v438, 7
    %v440 = vsub.s32 4, %v439
    %v441 = vrot.slane %v107, %v440
    %v442 = vlaneseq
    %v443 = vshrl.u32 %v442, 7
    %v444 = vsub.s32 0, %v443
    %v445 = vrot.slane %v108, %v444
    %v446 = vlaneseq
    %v447 = vshrl.u32 %v446, 7
    %v448 = vsub.s32 4, %v447
    %v449 = vrot.slane %v108, %v448
    %v450 = vlaneseq
    %v451 = vshrl.u32 %v450, 7
    %v452 = vsub.s32 0, %v451
    %v453 = vrot.slane %v109, %v452
    %v454 = vlaneseq
    %v455 = vshrl.u32 %v454, 7
    %v456 = vsub.s32 4, %v455
    %v457 = vrot.slane %v109, %v456
    %v458 = vlaneseq
    %v459 = vshrl.u32 %v458, 7
    %v460 = vsub.s32 0, %v459
    %v461 = vrot.slane %v110, %v460
    %v462 = vlaneseq
    %v463 = vshrl.u32 %v462, 7
    %v464 = vsub.s32 4, %v463
    %v465 = vrot.slane %v110, %v464
    %v466 = vlaneseq
    %v467 = vshrl.u32 %v466, 7
    %v468 = vsub.s32 0, %v467
    %v469 = vrot.slane %v111, %v468
    %v470 = vlaneseq
    %v471 = vshrl.u32 %v470, 7
    %v472 = vsub.s32 4, %v471
    %v473 = vrot.slane %v111, %v472
    %v474 = vlaneseq
    %v475 = vshrl.u32 %v474, 7
    %v476 = vsub.s32 0, %v475
    %v477 = vrot.slane %v112, %v476
    %v478 = vlaneseq
    %v479 = vshrl.u32 %v478, 7
    %v480 = vsub.s32 4, %v479
    %v481 = vrot.slane %v112, %v480
    %v482 = vlaneseq
    %v483 = vshrl.u32 %v482, 7
    %v484 = vsub.s32 0, %v483
    %v485 = vrot.slane %v113, %v484
    %v486 = vlaneseq
    %v487 = vshrl.u32 %v486, 7
    %v488 = vsub.s32 4, %v487
    %v489 = vrot.slane %v113, %v488
    %v490 = vlaneseq
    %v491 = vshrl.u32 %v490, 7
    %v492 = vsub.s32 0, %v491
    %v493 = vrot.slane %v114, %v492
    %v494 = vlaneseq
    %v495 = vshrl.u32 %v494, 7
    %v496 = vsub.s32 4, %v495
    %v497 = vrot.slane %v114, %v496
    %v498 = vlaneseq
    %v499 = vshrl.u32 %v498, 7
    %v500 = vsub.s32 0, %v499
    %v501 = vrot.slane %v115, %v500
    %v502 = vlaneseq
    %v503 = vshrl.u32 %v502, 7
    %v504 = vsub.s32 4, %v503
    %v505 = vrot.slane %v115, %v504
    %v506 = vlaneseq
    %v507 = vshrl.u32 %v506, 7
    %v508 = vsub.s32 0, %v507
    %v509 = vrot.slane %v116, %v508
    %v510 = vlaneseq
    %v511 = vshrl.u32 %v510, 7
    %v512 = vsub.s32 4, %v511
    %v513 = vrot.slane %v116, %v512
    %v514 = vlaneseq
    %v515 = vshrl.u32 %v514, 7
    %v516 = vsub.s32 0, %v515
    %v517 = vrot.slane %v117, %v516
    %v518 = vlaneseq
    %v519 = vshrl.u32 %v518, 7
    %v520 = vsub.s32 4, %v519
    %v521 = vrot.slane %v117, %v520
    %v602 = vlaneseq
    %v603 = vshrl.u32 %v602, 7
    %v604 = vsub.s32 0, %v603
    %v605 = vrot.slane %v205, %v604
    %v606 = vlaneseq
    %v607 = vshrl.u32 %v606, 7
    %v608 = vsub.s32 0, %v607
    %v609 = vrot.slane %v209, %v608
    %v610 = vlaneseq
    %v611 = vshrl.u32 %v610, 7
    %v612 = vsub.s32 0, %v611
    %v613 = vrot.slane %v213, %v612
    %v614 = vlaneseq
    %v615 = vshrl.u32 %v614, 7
    %v616 = vsub.s32 0, %v615
    %v617 = vrot.slane %v217, %v616
    %v618 = vlaneseq
    %v619 = vshrl.u32 %v618, 7
    %v620 = vsub.s32 0, %v619
    %v621 = vrot.slane %v221, %v620
    %v622 = vlaneseq
    %v623 = vshrl.u32 %v622, 7
    %v624 = vsub.s32 0, %v623
    %v625 = vrot.slane %v225, %v624
    %v626 = vlaneseq
    %v627 = vshrl.u32 %v626, 7
    %v628 = vsub.s32 0, %v627
    %v629 = vrot.slane %v229, %v628
    %v630 = vlaneseq
    %v631 = vshrl.u32 %v630, 7
    %v632 = vsub.s32 0, %v631
    %v633 = vrot.slane %v233, %v632
    %v634 = vlaneseq
    %v635 = vshrl.u32 %v634, 7
    %v636 = vsub.s32 0, %v635
    %v637 = vrot.slane %v237, %v636
    %v638 = vlaneseq
    %v639 = vshrl.u32 %v638, 7
    %v640 = vsub.s32 0, %v639
    %v641 = vrot.slane %v241, %v640
    %v642 = vlaneseq
    %v643 = vshrl.u32 %v642, 7
    %v644 = vsub.s32 0, %v643
    %v645 = vrot.slane %v245, %v644
    %v646 = vlaneseq
    %v647 = vshrl.u32 %v646, 7
    %v648 = vsub.s32 0, %v647
    %v649 = vrot.slane %v249, %v648
    %v650 = vlaneseq
    %v651 = vshrl.u32 %v650, 7
    %v652 = vsub.s32 0, %v651
    %v653 = vrot.slane %v253, %v652
    %v654 = vlaneseq
    %v655 = vshrl.u32 %v654, 7
    %v656 = vsub.s32 0, %v655
    %v657 = vrot.slane %v257, %v656
    %v658 = vlaneseq
    %v659 = vshrl.u32 %v658, 7
    %v660 = vsub.s32 0, %v659
    %v661 = vrot.slane %v261, %v660
    %v662 = vlaneseq
    %v663 = vshrl.u32 %v662, 7
    %v664 = vsub.s32 0, %v663
    %v665 = vrot.slane %v265, %v664
    %v666 = vlaneseq
    %v667 = vshrl.u32 %v666, 7
    %v668 = vsub.s32 0, %v667
    %v669 = vrot.slane %v269, %v668
    %v670 = vlaneseq
    %v671 = vshrl.u32 %v670, 7
    %v672 = vsub.s32 0, %v671
    %v673 = vrot.slane %v273, %v672
    %v674 = vlaneseq
    %v675 = vshrl.u32 %v674, 7
    %v676 = vsub.s32 0, %v675
    %v677 = vrot.slane %v277, %v676
    %v678 = vlaneseq
    %v679 = vshrl.u32 %v678, 7
    %v680 = vsub.s32 0, %v679
    %v681 = vrot.slane %v281, %v680
    %v682 = vlaneseq
    %v683 = vshrl.u32 %v682, 7
    %v684 = vsub.s32 0, %v683
    %v685 = vrot.slane %v285, %v684
    %v686 = vlaneseq
    %v687 = vshrl.u32 %v686, 7
    %v688 = vsub.s32 0, %v687
    %v689 = vrot.slane %v289, %v688
    %v690 = vlaneseq
    %v691 = vshrl.u32 %v690, 7
    %v692 = vsub.s32 0, %v691
    %v693 = vrot.slane %v293, %v692
    %v694 = vlaneseq
    %v695 = vshrl.u32 %v694, 7
    %v696 = vsub.s32 0, %v695
    %v697 = vrot.slane %v297, %v696
    %v698 = vlaneseq
    %v699 = vshrl.u32 %v698, 7
    %v700 = vsub.s32 0, %v699
    %v701 = vrot.slane %v301, %v700
    %v702 = vlaneseq
    %v703 = vshrl.u32 %v702, 7
    %v704 = vsub.s32 0, %v703
    %v705 = vrot.slane %v305, %v704
    %v706 = vlaneseq
    %v707 = vshrl.u32 %v706, 7
    %v708 = vsub.s32 0, %v707
    %v709 = vrot.slane %v309, %v708
    %v710 = vlaneseq
    %v711 = vshrl.u32 %v710, 7
    %v712 = vsub.s32 0, %v711
    %v713 = vrot.slane %v313, %v712
    %v714 = vlaneseq
    %v715 = vshrl.u32 %v714, 7
    %v716 = vsub.s32 0, %v715
    %v717 = vrot.slane %v317, %v716
    %v718 = vlaneseq
    %v719 = vshrl.u32 %v718, 7
    %v720 = vsub.s32 0, %v719
    %v721 = vrot.slane %v321, %v720
    %v722 = vlaneseq
    %v723 = vshrl.u32 %v722, 7
    %v724 = vsub.s32 0, %v723
    %v725 = vrot.slane %v325, %v724
    %v726 = vlaneseq
    %v727 = vshrl.u32 %v726, 7
    %v728 = vsub.s32 0, %v727
    %v729 = vrot.slane %v329, %v728
    %v730 = vlaneseq
    %v731 = vshrl.u32 %v730, 7
    %v732 = vsub.s32 0, %v731
    %v733 = vrot.slane %v333, %v732
    %v734 = vlaneseq
    %v735 = vshrl.u32 %v734, 7
    %v736 = vsub.s32 0, %v735
    %v737 = vrot.slane %v337, %v736
    %v738 = vlaneseq
    %v739 = vshrl.u32 %v738, 7
    %v740 = vsub.s32 0, %v739
    %v741 = vrot.slane %v341, %v740
    %v742 = vlaneseq
    %v743 = vshrl.u32 %v742, 7
    %v744 = vsub.s32 0, %v743
    %v745 = vrot.slane %v345, %v744
    %v746 = vlaneseq
    %v747 = vshrl.u32 %v746, 7
    %v748 = vsub.s32 0, %v747
    %v749 = vrot.slane %v349, %v748
    %v750 = vlaneseq
    %v751 = vshrl.u32 %v750, 7
    %v752 = vsub.s32 0, %v751
    %v753 = vrot.slane %v353, %v752
    %v754 = vlaneseq
    %v755 = vshrl.u32 %v754, 7
    %v756 = vsub.s32 0, %v755
    %v757 = vrot.slane %v357, %v756
    %v758 = vlaneseq
    %v759 = vshrl.u32 %v758, 7
    %v760 = vsub.s32 0, %v759
    %v761 = vrot.slane %v361, %v760
    %v762 = vlaneseq
    %v763 = vshrl.u32 %v762, 7
    %v764 = vsub.s32 0, %v763
    %v765 = vrot.slane %v365, %v764
    %v766 = vlaneseq
    %v767 = vshrl.u32 %v766, 7
    %v768 = vsub.s32 0, %v767
    %v769 = vrot.slane %v369, %v768
    %v770 = vlaneseq
    %v771 = vshrl.u32 %v770, 7
    %v772 = vsub.s32 0, %v771
    %v773 = vrot.slane %v373, %v772
    %v774 = vlaneseq
    %v775 = vshrl.u32 %v774, 7
    %v776 = vsub.s32 0, %v775
    %v777 = vrot.slane %v377, %v776
    %v778 = vlaneseq
    %v779 = vshrl.u32 %v778, 7
    %v780 = vsub.s32 0, %v779
    %v781 = vrot.slane %v381, %v780
    %v782 = vlaneseq
    %v783 = vshrl.u32 %v782, 7
    %v784 = vsub.s32 0, %v783
    %v785 = vrot.slane %v385, %v784
    %v786 = vlaneseq
    %v787 = vshrl.u32 %v786, 7
    %v788 = vsub.s32 0, %v787
    %v789 = vrot.slane %v389, %v788
    %v790 = vlaneseq
    %v791 = vshrl.u32 %v790, 7
    %v792 = vsub.s32 0, %v791
    %v793 = vrot.slane %v393, %v792
    %v794 = vlaneseq
    %v795 = vshrl.u32 %v794, 7
    %v796 = vsub.s32 0, %v795
    %v797 = vrot.slane %v397, %v796
    %v798 = vlaneseq
    %v799 = vshrl.u32 %v798, 7
    %v800 = vsub.s32 0, %v799
    %v801 = vrot.slane %v401, %v800
    %v802 = vlaneseq
    %v803 = vshrl.u32 %v802, 7
    %v804 = vsub.s32 0, %v803
    %v805 = vrot.slane %v405, %v804
    %v806 = vlaneseq
    %v807 = vshrl.u32 %v806, 7
    %v808 = vsub.s32 0, %v807
    %v809 = vrot.slane %v409, %v808
    %v810 = vlaneseq
    %v811 = vshrl.u32 %v810, 7
    %v812 = vsub.s32 0, %v811
    %v813 = vrot.slane %v413, %v812
    %v814 = vlaneseq
    %v815 = vshrl.u32 %v814, 7
    %v816 = vsub.s32 0, %v815
    %v817 = vrot.slane %v417, %v816
    %v818 = vlaneseq
    %v819 = vshrl.u32 %v818, 7
    %v820 = vsub.s32 0, %v819
    %v821 = vrot.slane %v421, %v820
    %v822 = vlaneseq
    %v823 = vshrl.u32 %v822, 7
    %v824 = vsub.s32 0, %v823
    %v825 = vrot.slane %v425, %v824
    %v826 = vlaneseq
    %v827 = vshrl.u32 %v826, 7
    %v828 = vsub.s32 0, %v827
    %v829 = vrot.slane %v429, %v828
    %v830 = vlaneseq
    %v831 = vshrl.u32 %v830, 7
    %v832 = vsub.s32 0, %v831
    %v833 = vrot.slane %v433, %v832
    %v834 = vlaneseq
    %v835 = vshrl.u32 %v834, 7
    %v836 = vsub.s32 0, %v835
    %v837 = vrot.slane %v437, %v836
    %v838 = vlaneseq
    %v839 = vshrl.u32 %v838, 7
    %v840 = vsub.s32 0, %v839
    %v841 = vrot.slane %v441, %v840
    %v842 = vlaneseq
    %v843 = vshrl.u32 %v842, 7
    %v844 = vsub.s32 0, %v843
    %v845 = vrot.slane %v445, %v844
    %v846 = vlaneseq
    %v847 = vshrl.u32 %v846, 7
    %v848 = vsub.s32 0, %v847
    %v849 = vrot.slane %v449, %v848
    %v850 = vlaneseq
    %v851 = vshrl.u32 %v850, 7
    %v852 = vsub.s32 0, %v851
    %v853 = vrot.slane %v453, %v852
    %v854 = vlaneseq
    %v855 = vshrl.u32 %v854, 7
    %v856 = vsub.s32 0, %v855
    %v857 = vrot.slane %v457, %v856
    %v858 = vlaneseq
    %v859 = vshrl.u32 %v858, 7
    %v860 = vsub.s32 0, %v859
    %v861 = vrot.slane %v461, %v860
    %v862 = vlaneseq
    %v863 = vshrl.u32 %v862, 7
    %v864 = vsub.s32 0, %v863
    %v865 = vrot.slane %v465, %v864
    %v866 = vlaneseq
    %v867 = vshrl.u32 %v866, 7
    %v868 = vsub.s32 0, %v867
    %v869 = vrot.slane %v469, %v868
    %v870 = vlaneseq
    %v871 = vshrl.u32 %v870, 7
    %v872 = vsub.s32 0, %v871
    %v873 = vrot.slane %v473, %v872
    %v874 = vlaneseq
    %v875 = vshrl.u32 %v874, 7
    %v876 = vsub.s32 0, %v875
    %v877 = vrot.slane %v477, %v876
    %v878 = vlaneseq
    %v879 = vshrl.u32 %v878, 7
    %v880 = vsub.s32 0, %v879
    %v881 = vrot.slane %v481, %v880
    %v882 = vlaneseq
    %v883 = vshrl.u32 %v882, 7
    %v884 = vsub.s32 0, %v883
    %v885 = vrot.slane %v485, %v884
    %v886 = vlaneseq
    %v887 = vshrl.u32 %v886, 7
    %v888 = vsub.s32 0, %v887
    %v889 = vrot.slane %v489, %v888
    %v890 = vlaneseq
    %v891 = vshrl.u32 %v890, 7
    %v892 = vsub.s32 0, %v891
    %v893 = vrot.slane %v493, %v892
    %v894 = vlaneseq
    %v895 = vshrl.u32 %v894, 7
    %v896 = vsub.s32 0, %v895
    %v897 = vrot.slane %v497, %v896
    %v898 = vlaneseq
    %v899 = vshrl.u32 %v898, 7
    %v900 = vsub.s32 0, %v899
    %v901 = vrot.slane %v501, %v900
    %v902 = vlaneseq
    %v903 = vshrl.u32 %v902, 7
    %v904 = vsub.s32 0, %v903
    %v905 = vrot.slane %v505, %v904
    %v906 = vlaneseq
    %v907 = vshrl.u32 %v906, 7
    %v908 = vsub.s32 0, %v907
    %v909 = vrot.slane %v509, %v908
    %v910 = vlaneseq
    %v911 = vshrl.u32 %v910, 7
    %v912 = vsub.s32 0, %v911
    %v913 = vrot.slane %v513, %v912
    %v914 = vlaneseq
    %v915 = vshrl.u32 %v914, 7
    %v916 = vsub.s32 0, %v915
    %v917 = vrot.slane %v517, %v916
    %v918 = vlaneseq
    %v919 = vshrl.u32 %v918, 7
    %v920 = vsub.s32 0, %v919
    %v921 = vrot.slane %v521, %v920
    %v922 = vmul.f32 %v145, %v605
    %v923 = vmul.f32 %v145, %v609
    %v924 = vmul.f32 %v150, %v605
    %v925 = vmul.f32 %v150, %v609
    %v926 = vmul.f32 %v155, %v605
    %v927 = vmul.f32 %v155, %v609
    %v928 = vmul.f32 %v160, %v605
    %v929 = vmul.f32 %v160, %v609
    %v930 = vmul.f32 %v145, %v613
    %v931 = vmul.f32 %v145, %v617
    %v932 = vmul.f32 %v150, %v613
    %v933 = vmul.f32 %v150, %v617
    %v934 = vmul.f32 %v155, %v613
    %v935 = vmul.f32 %v155, %v617
    %v936 = vmul.f32 %v160, %v613
    %v937 = vmul.f32 %v160, %v617
    %v938 = vmul.f32 %v145, %v621
    %v939 = vmul.f32 %v145, %v625
    %v940 = vmul.f32 %v150, %v621
    %v941 = vmul.f32 %v150, %v625
    %v942 = vmul.f32 %v155, %v621
    %v943 = vmul.f32 %v155, %v625
    %v944 = vmul.f32 %v160, %v621
    %v945 = vmul.f32 %v160, %v625
    %v946 = vmul.f32 %v145, %v629
    %v947 = vmul.f32 %v145, %v633
    %v948 = vmul.f32 %v150, %v629
    %v949 = vmul.f32 %v150, %v633
    %v950 = vmul.f32 %v155, %v629
    %v951 = vmul.f32 %v155, %v633
    %v952 = vmul.f32 %v160, %v629
    %v953 = vmul.f32 %v160, %v633
    %v954 = vmul.f32 %v145, %v637
    %v955 = vmul.f32 %v145, %v641
    %v956 = vmul.f32 %v150, %v637
    %v957 = vmul.f32 %v150, %v641
    %v958 = vmul.f32 %v155, %v637
    %v959 = vmul.f32 %v155, %v641
    %v960 = vmul.f32 %v160, %v637
    %v961 = vmul.f32 %v160, %v641
    %v962 = vmul.f32 %v145, %v645
    %v963 = vmul.f32 %v145, %v649
    %v964 = vmul.f32 %v150, %v645
    %v965 = vmul.f32 %v150, %v649
    %v966 = vmul.f32 %v155, %v645
    %v967 = vmul.f32 %v155, %v649
    %v968 = vmul.f32 %v160, %v645
    %v969 = vmul.f32 %v160, %v649
    %v970 = vmul.f32 %v145, %v653
    %v971 = vmul.f32 %v145, %v657
    %v972 = vmul.f32 %v150, %v653
    %v973 = vmul.f32 %v150, %v657
    %v974 = vmul.f32 %v155, %v653
    %v975 = vmul.f32 %v155, %v657
    %v976 = vmul.f32 %v160, %v653
    %v977 = vmul.f32 %v160, %v657
    %v978 = vmul.f32 %v145, %v661
    %v979 = vmul.f32 %v145, %v665
    %v980 = vmul.f32 %v150, %v661
    %v981 = vmul.f32 %v150, %v665
    %v982 = vmul.f32 %v155, %v661
    %v983 = vmul.f32 %v155, %v665
    %v984 = vmul.f32 %v160, %v661
    %v985 = vmul.f32 %v160, %v665
    %v986 = vmul.f32 %v145, %v669
    %v987 = vmul.f32 %v145, %v673
    %v988 = vmul.f32 %v150, %v669
    %v989 = vmul.f32 %v150, %v673
    %v990 = vmul.f32 %v155, %v669
    %v991 = vmul.f32 %v155, %v673
    %v992 = vmul.f32 %v160, %v669
    %v993 = vmul.f32 %v160, %v673
    %v994 = vmul.f32 %v145, %v677
    %v995 = vmul.f32 %v145, %v681
    %v996 = vmul.f32 %v150, %v677
    %v997 = vmul.f32 %v150, %v681
    %v998 = vmul.f32 %v155, %v677
    %v999 = vmul.f32 %v155, %v681
    %v1000 = vmul.f32 %v160, %v677
    %v1001 = vmul.f32 %v160, %v681
    %v1002 = vmul.f32 %v145, %v685
    %v1003 = vmul.f32 %v145, %v689
    %v1004 = vmul.f32 %v150, %v685
    %v1005 = vmul.f32 %v150, %v689
    %v1006 = vmul.f32 %v155, %v685
    %v1007 = vmul.f32 %v155, %v689
    %v1008 = vmul.f32 %v160, %v685
    %v1009 = vmul.f32 %v160, %v689
    %v1010 = vmul.f32 %v145, %v693
    %v1011 = vmul.f32 %v145, %v697
    %v1012 = vmul.f32 %v150, %v693
    %v1013 = vmul.f32 %v150, %v697
    %v1014 = vmul.f32 %v155, %v693
    %v1015 = vmul.f32 %v155, %v697
    %v1016 = vmul.f32 %v160, %v693
    %v1017 = vmul.f32 %v160, %v697
    %v1018 = vmul.f32 %v145, %v701
    %v1019 = vmul.f32 %v145, %v705
    %v1020 = vmul.f32 %v150, %v701
    %v1021 = vmul.f32 %v150, %v705
    %v1022 = vmul.f32 %v155, %v701
    %v1023 = vmul.f32 %v155, %v705
    %v1024 = vmul.f32 %v160, %v701
    %v1025 = vmul.f32 %v160, %v705
    %v1026 = vmul.f32 %v145, %v709
    %v1027 = vmul.f32 %v145, %v713
    %v1028 = vmul.f32 %v150, %v709
    %v1029 = vmul.f32 %v150, %v713
    %v1030 = vmul.f32 %v155, %v709
    %v1031 = vmul.f32 %v155, %v713
    %v1032 = vmul.f32 %v160, %v709
    %v1033 = vmul.f32 %v160, %v713
    %v1034 = vmul.f32 %v145, %v717
    %v1035 = vmul.f32 %v145, %v721
    %v1036 = vmul.f32 %v150, %v717
    %v1037 = vmul.f32 %v150, %v721
    %v1038 = vmul.f32 %v155, %v717
    %v1039 = vmul.f32 %v155, %v721
    %v1040 = vmul.f32 %v160, %v717
    %v1041 = vmul.f32 %v160, %v721
    %v1042 = vmul.f32 %v145, %v725
    %v1043 = vmul.f32 %v145, %v729
    %v1044 = vmul.f32 %v150, %v725
    %v1045 = vmul.f32 %v150, %v729
    %v1046 = vmul.f32 %v155, %v725
    %v1047 = vmul.f32 %v155, %v729
    %v1048 = vmul.f32 %v160, %v725
    %v1049 = vmul.f32 %v160, %v729
    %v1050 = vmul.f32 %v145, %v733
    %v1051 = vmul.f32 %v145, %v737
    %v1052 = vmul.f32 %v150, %v733
    %v1053 = vmul.f32 %v150, %v737
    %v1054 = vmul.f32 %v155, %v733
    %v1055 = vmul.f32 %v155, %v737
    %v1056 = vmul.f32 %v160, %v733
    %v1057 = vmul.f32 %v160, %v737
    %v1058 = vmul.f32 %v145, %v741
    %v1059 = vmul.f32 %v145, %v745
    %v1060 = vmul.f32 %v150, %v741
    %v1061 = vmul.f32 %v150, %v745
    %v1062 = vmul.f32 %v155, %v741
    %v1063 = vmul.f32 %v155, %v745
    %v1064 = vmul.f32 %v160, %v741
    %v1065 = vmul.f32 %v160, %v745
    %v1066 = vmul.f32 %v145, %v749
    %v1067 = vmul.f32 %v145, %v753
    %v1068 = vmul.f32 %v150, %v749
    %v1069 = vmul.f32 %v150, %v753
    %v1070 = vmul.f32 %v155, %v749
    %v1071 = vmul.f32 %v155, %v753
    %v1072 = vmul.f32 %v160, %v749
    %v1073 = vmul.f32 %v160, %v753
    %v1074 = vmul.f32 %v145, %v757
    %v1075 = vmul.f32 %v145, %v761
    %v1076 = vmul.f32 %v150, %v757
    %v1077 = vmul.f32 %v150, %v761
    %v1078 = vmul.f32 %v155, %v757
    %v1079 = vmul.f32 %v155, %v761
    %v1080 = vmul.f32 %v160, %v757
    %v1081 = vmul.f32 %v160, %v761
    %v1082 = vmul.f32 %v145, %v765
    %v1083 = vmul.f32 %v145, %v769
    %v1084 = vmul.f32 %v150, %v765
    %v1085 = vmul.f32 %v150, %v769
    %v1086 = vmul.f32 %v155, %v765
    %v1087 = vmul.f32 %v155, %v769
    %v1088 = vmul.f32 %v160, %v765
    %v1089 = vmul.f32 %v160, %v769
    %v1090 = vmul.f32 %v145, %v773
    %v1091 = vmul.f32 %v145, %v777
    %v1092 = vmul.f32 %v150, %v773
    %v1093 = vmul.f32 %v150, %v777
    %v1094 = vmul.f32 %v155, %v773
    %v1095 = vmul.f32 %v155, %v777
    %v1096 = vmul.f32 %v160, %v773
    %v1097 = vmul.f32 %v160, %v777
    %v1098 = vmul.f32 %v145, %v781
    %v1099 = vmul.f32 %v145, %v785
    %v1100 = vmul.f32 %v150, %v781
    %v1101 = vmul.f32 %v150, %v785
    %v1102 = vmul.f32 %v155, %v781
    %v1103 = vmul.f32 %v155, %v785
    %v1104 = vmul.f32 %v160, %v781
    %v1105 = vmul.f32 %v160, %v785
    %v1106 = vmul.f32 %v145, %v789
    %v1107 = vmul.f32 %v145, %v793
    %v1108 = vmul.f32 %v150, %v789
    %v1109 = vmul.f32 %v150, %v793
    %v1110 = vmul.f32 %v155, %v789
    %v1111 = vmul.f32 %v155, %v793
    %v1112 = vmul.f32 %v160, %v789
    %v1113 = vmul.f32 %v160, %v793
    %v1114 = vmul.f32 %v145, %v797
    %v1115 = vmul.f32 %v145, %v801
    %v1116 = vmul.f32 %v150, %v797
    %v1117 = vmul.f32 %v150, %v801
    %v1118 = vmul.f32 %v155, %v797
    %v1119 = vmul.f32 %v155, %v801
    %v1120 = vmul.f32 %v160, %v797
    %v1121 = vmul.f32 %v160, %v801
    %v1122 = vmul.f32 %v145, %v805
    %v1123 = vmul.f32 %v145, %v809
    %v1124 = vmul.f32 %v150, %v805
    %v1125 = vmul.f32 %v150, %v809
    %v1126 = vmul.f32 %v155, %v805
    %v1127 = vmul.f32 %v155, %v809
    %v1128 = vmul.f32 %v160, %v805
    %v1129 = vmul.f32 %v160, %v809
    %v1130 = vmul.f32 %v145, %v813
    %v1131 = vmul.f32 %v145, %v817
    %v1132 = vmul.f32 %v150, %v813
    %v1133 = vmul.f32 %v150, %v817
    %v1134 = vmul.f32 %v155, %v813
    %v1135 = vmul.f32 %v155, %v817
    %v1136 = vmul.f32 %v160, %v813
    %v1137 = vmul.f32 %v160, %v817
    %v1138 = vmul.f32 %v145, %v821
    %v1139 = vmul.f32 %v145, %v825
    %v1140 = vmul.f32 %v150, %v821
    %v1141 = vmul.f32 %v150, %v825
    %v1142 = vmul.f32 %v155, %v821
    %v1143 = vmul.f32 %v155, %v825
    %v1144 = vmul.f32 %v160, %v821
    %v1145 = vmul.f32 %v160, %v825
    %v1146 = vmul.f32 %v145, %v829
    %v1147 = vmul.f32 %v145, %v833
    %v1148 = vmul.f32 %v150, %v829
    %v1149 = vmul.f32 %v150, %v833
    %v1150 = vmul.f32 %v155, %v829
    %v1151 = vmul.f32 %v155, %v833
    %v1152 = vmul.f32 %v160, %v829
    %v1153 = vmul.f32 %v160, %v833
    %v1154 = vmul.f32 %v145, %v837
    %v1155 = vmul.f32 %v145, %v841
    %v1156 = vmul.f32 %v150, %v837
    %v1157 = vmul.f32 %v150, %v841
    %v1158 = vmul.f32 %v155, %v837
    %v1159 = vmul.f32 %v155, %v841
    %v1160 = vmul.f32 %v160, %v837
    %v1161 = vmul.f32 %v160, %v841
    %v1162 = vmul.f32 %v145, %v845
    %v1163 = vmul.f32 %v145, %v849
    %v1164 = vmul.f32 %v150, %v845
    %v1165 = vmul.f32 %v150, %v849
    %v1166 = vmul.f32 %v155, %v845
    %v1167 = vmul.f32 %v155, %v849
    %v1168 = vmul.f32 %v160, %v845
    %v1169 = vmul.f32 %v160, %v849
    %v1170 = vmul.f32 %v145, %v853
    %v1171 = vmul.f32 %v145, %v857
    %v1172 = vmul.f32 %v150, %v853
    %v1173 = vmul.f32 %v150, %v857
    %v1174 = vmul.f32 %v155, %v853
    %v1175 = vmul.f32 %v155, %v857
    %v1176 = vmul.f32 %v160, %v853
    %v1177 = vmul.f32 %v160, %v857
    %v1178 = vmul.f32 %v145, %v861
    %v1179 = vmul.f32 %v145, %v865
    %v1180 = vmul.f32 %v150, %v861
    %v1181 = vmul.f32 %v150, %v865
    %v1182 = vmul.f32 %v155, %v861
    %v1183 = vmul.f32 %v155, %v865
    %v1184 = vmul.f32 %v160, %v861
    %v1185 = vmul.f32 %v160, %v865
    %v1186 = vmul.f32 %v145, %v869
    %v1187 = vmul.f32 %v145, %v873
    %v1188 = vmul.f32 %v150, %v869
    %v1189 = vmul.f32 %v150, %v873
    %v1190 = vmul.f32 %v155, %v869
    %v1191 = vmul.f32 %v155, %v873
    %v1192 = vmul.f32 %v160, %v869
    %v1193 = vmul.f32 %v160, %v873
    %v1194 = vmul.f32 %v145, %v877
    %v1195 = vmul.f32 %v145, %v881
    %v1196 = vmul.f32 %v150, %v877
    %v1197 = vmul.f32 %v150, %v881
    %v1198 = vmul.f32 %v155, %v877
    %v1199 = vmul.f32 %v155, %v881
    %v1200 = vmul.f32 %v160, %v877
    %v1201 = vmul.f32 %v160, %v881
    %v1202 = vmul.f32 %v145, %v885
    %v1203 = vmul.f32 %v145, %v889
    %v1204 = vmul.f32 %v150, %v885
    %v1205 = vmul.f32 %v150, %v889
    %v1206 = vmul.f32 %v155, %v885
    %v1207 = vmul.f32 %v155, %v889
    %v1208 = vmul.f32 %v160, %v885
    %v1209 = vmul.f32 %v160, %v889
    %v1210 = vmul.f32 %v145, %v893
    %v1211 = vmul.f32 %v145, %v897
    %v1212 = vmul.f32 %v150, %v893
    %v1213 = vmul.f32 %v150, %v897
    %v1214 = vmul.f32 %v155, %v893
    %v1215 = vmul.f32 %v155, %v897
    %v1216 = vmul.f32 %v160, %v893
    %v1217 = vmul.f32 %v160, %v897
    %v1218 = vmul.f32 %v145, %v901
    %v1219 = vmul.f32 %v145, %v905
    %v1220 = vmul.f32 %v150, %v901
    %v1221 = vmul.f32 %v150, %v905
    %v1222 = vmul.f32 %v155, %v901
    %v1223 = vmul.f32 %v155, %v905
    %v1224 = vmul.f32 %v160, %v901
    %v1225 = vmul.f32 %v160, %v905
    %v1226 = vmul.f32 %v145, %v909
    %v1227 = vmul.f32 %v145, %v913
    %v1228 = vmul.f32 %v150, %v909
    %v1229 = vmul.f32 %v150, %v913
    %v1230 = vmul.f32 %v155, %v909
    %v1231 = vmul.f32 %v155, %v913
    %v1232 = vmul.f32 %v160, %v909
    %v1233 = vmul.f32 %v160, %v913
    %v1234 = vmul.f32 %v145, %v917
    %v1235 = vmul.f32 %v145, %v921
    %v1236 = vmul.f32 %v150, %v917
    %v1237 = vmul.f32 %v150, %v921
    %v1238 = vmul.f32 %v155, %v917
    %v1239 = vmul.f32 %v155, %v921
    %v1240 = vmul.f32 %v160, %v917
    %v1241 = vmul.f32 %v160, %v921
    %v1242 = vadd.f32 %v129, %v922
    %v1243 = vadd.f32 %v129, %v923
    %v1244 = vadd.f32 %v133, %v924
    %v1245 = vadd.f32 %v133, %v925
    %v1246 = vadd.f32 %v137, %v926
    %v1247 = vadd.f32 %v137, %v927
    %v1248 = vadd.f32 %v141, %v928
    %v1249 = vadd.f32 %v141, %v929
    %v1250 = vadd.f32 %v129, %v930
    %v1251 = vadd.f32 %v129, %v931
    %v1252 = vadd.f32 %v133, %v932
    %v1253 = vadd.f32 %v133, %v933
    %v1254 = vadd.f32 %v137, %v934
    %v1255 = vadd.f32 %v137, %v935
    %v1256 = vadd.f32 %v141, %v936
    %v1257 = vadd.f32 %v141, %v937
    %v1258 = vadd.f32 %v129, %v938
    %v1259 = vadd.f32 %v129, %v939
    %v1260 = vadd.f32 %v133, %v940
    %v1261 = vadd.f32 %v133, %v941
    %v1262 = vadd.f32 %v137, %v942
    %v1263 = vadd.f32 %v137, %v943
    %v1264 = vadd.f32 %v141, %v944
    %v1265 = vadd.f32 %v141, %v945
    %v1266 = vadd.f32 %v129, %v946
    %v1267 = vadd.f32 %v129, %v947
    %v1268 = vadd.f32 %v133, %v948
    %v1269 = vadd.f32 %v133, %v949
    %v1270 = vadd.f32 %v137, %v950
    %v1271 = vadd.f32 %v137, %v951
    %v1272 = vadd.f32 %v141, %v952
    %v1273 = vadd.f32 %v141, %v953
    %v1274 = vadd.f32 %v129, %v954
    %v1275 = vadd.f32 %v129, %v955
    %v1276 = vadd.f32 %v133, %v956
    %v1277 = vadd.f32 %v133, %v957
    %v1278 = vadd.f32 %v137, %v958
    %v1279 = vadd.f32 %v137, %v959
    %v1280 = vadd.f32 %v141, %v960
    %v1281 = vadd.f32 %v141, %v961
    %v1282 = vadd.f32 %v129, %v962
    %v1283 = vadd.f32 %v129, %v963
    %v1284 = vadd.f32 %v133, %v964
    %v1285 = vadd.f32 %v133, %v965
    %v1286 = vadd.f32 %v137, %v966
    %v1287 = vadd.f32 %v137, %v967
    %v1288 = vadd.f32 %v141, %v968
    %v1289 = vadd.f32 %v141, %v969
    %v1290 = vadd.f32 %v129, %v970
    %v1291 = vadd.f32 %v129, %v971
    %v1292 = vadd.f32 %v133, %v972
    %v1293 = vadd.f32 %v133, %v973
    %v1294 = vadd.f32 %v137, %v974
    %v1295 = vadd.f32 %v137, %v975
    %v1296 = vadd.f32 %v141, %v976
    %v1297 = vadd.f32 %v141, %v977
    %v1298 = vadd.f32 %v129, %v978
    %v1299 = vadd.f32 %v129, %v979
    %v1300 = vadd.f32 %v133, %v980
    %v1301 = vadd.f32 %v133, %v981
    %v1302 = vadd.f32 %v137, %v982
    %v1303 = vadd.f32 %v137, %v983
    %v1304 = vadd.f32 %v141, %v984
    %v1305 = vadd.f32 %v141, %v985
    %v1306 = vadd.f32 %v129, %v986
    %v1307 = vadd.f32 %v129, %v987
    %v1308 = vadd.f32 %v133, %v988
    %v1309 = vadd.f32 %v133, %v989
    %v1310 = vadd.f32 %v137, %v990
    %v1311 = vadd.f32 %v137, %v991
    %v1312 = vadd.f32 %v141, %v992
    %v1313 = vadd.f32 %v141, %v993
    %v1314 = vadd.f32 %v129, %v994
    %v1315 = vadd.f32 %v129, %v995
    %v1316 = vadd.f32 %v133, %v996
    %v1317 = vadd.f32 %v133, %v997
    %v1318 = vadd.f32 %v137, %v998
    %v1319 = vadd.f32 %v137, %v999
    %v1320 = vadd.f32 %v141, %v1000
    %v1321 = vadd.f32 %v141, %v1001
    %v1322 = vadd.f32 %v129, %v1002
    %v1323 = vadd.f32 %v129, %v1003
    %v1324 = vadd.f32 %v133, %v1004
    %v1325 = vadd.f32 %v133, %v1005
    %v1326 = vadd.f32 %v137, %v1006
    %v1327 = vadd.f32 %v137, %v1007
    %v1328 = vadd.f32 %v141, %v1008
    %v1329 = vadd.f32 %v141, %v1009
    %v1330 = vadd.f32 %v129, %v1010
    %v1331 = vadd.f32 %v129, %v1011
    %v1332 = vadd.f32 %v133, %v1012
    %v1333 = vadd.f32 %v133, %v1013
    %v1334 = vadd.f32 %v137, %v1014
    %v1335 = vadd.f32 %v137, %v1015
    %v1336 = vadd.f32 %v141, %v1016
    %v1337 = vadd.f32 %v141, %v1017
    %v1338 = vadd.f32 %v129, %v1018
    %v1339 = vadd.f32 %v129, %v1019
    %v1340 = vadd.f32 %v133, %v1020
    %v1341 = vadd.f32 %v133, %v1021
    %v1342 = vadd.f32 %v137, %v1022
    %v1343 = vadd.f32 %v137, %v1023
    %v1344 = vadd.f32 %v141, %v1024
    %v1345 = vadd.f32 %v141, %v1025
    %v1346 = vadd.f32 %v129, %v1026
    %v1347 = vadd.f32 %v129, %v1027
    %v1348 = vadd.f32 %v133, %v1028
    %v1349 = vadd.f32 %v133, %v1029
    %v1350 = vadd.f32 %v137, %v1030
    %v1351 = vadd.f32 %v137, %v1031
    %v1352 = vadd.f32 %v141, %v1032
    %v1353 = vadd.f32 %v141, %v1033
    %v1354 = vadd.f32 %v129, %v1034
    %v1355 = vadd.f32 %v129, %v1035
    %v1356 = vadd.f32 %v133, %v1036
    %v1357 = vadd.f32 %v133, %v1037
    %v1358 = vadd.f32 %v137, %v1038
    %v1359 = vadd.f32 %v137, %v1039
    %v1360 = vadd.f32 %v141, %v1040
    %v1361 = vadd.f32 %v141, %v1041
    %v1362 = vadd.f32 %v129, %v1042
    %v1363 = vadd.f32 %v129, %v1043
    %v1364 = vadd.f32 %v133, %v1044
    %v1365 = vadd.f32 %v133, %v1045
    %v1366 = vadd.f32 %v137, %v1046
    %v1367 = vadd.f32 %v137, %v1047
    %v1368 = vadd.f32 %v141, %v1048
    %v1369 = vadd.f32 %v141, %v1049
    %v1370 = vadd.f32 %v129, %v1050
    %v1371 = vadd.f32 %v129, %v1051
    %v1372 = vadd.f32 %v133, %v1052
    %v1373 = vadd.f32 %v133, %v1053
    %v1374 = vadd.f32 %v137, %v1054
    %v1375 = vadd.f32 %v137, %v1055
    %v1376 = vadd.f32 %v141, %v1056
    %v1377 = vadd.f32 %v141, %v1057
    %v1378 = vadd.f32 %v129, %v1058
    %v1379 = vadd.f32 %v129, %v1059
    %v1380 = vadd.f32 %v133, %v1060
    %v1381 = vadd.f32 %v133, %v1061
    %v1382 = vadd.f32 %v137, %v1062
    %v1383 = vadd.f32 %v137, %v1063
    %v1384 = vadd.f32 %v141, %v1064
    %v1385 = vadd.f32 %v141, %v1065
    %v1386 = vadd.f32 %v129, %v1066
    %v1387 = vadd.f32 %v129, %v1067
    %v1388 = vadd.f32 %v133, %v1068
    %v1389 = vadd.f32 %v133, %v1069
    %v1390 = vadd.f32 %v137, %v1070
    %v1391 = vadd.f32 %v137, %v1071
    %v1392 = vadd.f32 %v141, %v1072
    %v1393 = vadd.f32 %v141, %v1073
    %v1394 = vadd.f32 %v129, %v1074
    %v1395 = vadd.f32 %v129, %v1075
    %v1396 = vadd.f32 %v133, %v1076
    %v1397 = vadd.f32 %v133, %v1077
    %v1398 = vadd.f32 %v137, %v1078
    %v1399 = vadd.f32 %v137, %v1079
    %v1400 = vadd.f32 %v141, %v1080
    %v1401 = vadd.f32 %v141, %v1081
    %v1402 = vadd.f32 %v129, %v1082
    %v1403 = vadd.f32 %v129, %v1083
    %v1404 = vadd.f32 %v133, %v1084
    %v1405 = vadd.f32 %v133, %v1085
    %v1406 = vadd.f32 %v137, %v1086
    %v1407 = vadd.f32 %v137, %v1087
    %v1408 = vadd.f32 %v141, %v1088
    %v1409 = vadd.f32 %v141, %v1089
    %v1410 = vadd.f32 %v129, %v1090
    %v1411 = vadd.f32 %v129, %v1091
    %v1412 = vadd.f32 %v133, %v1092
    %v1413 = vadd.f32 %v133, %v1093
    %v1414 = vadd.f32 %v137, %v1094
    %v1415 = vadd.f32 %v137, %v1095
    %v1416 = vadd.f32 %v141, %v1096
    %v1417 = vadd.f32 %v141, %v1097
    %v1418 = vadd.f32 %v129, %v1098
    %v1419 = vadd.f32 %v129, %v1099
    %v1420 = vadd.f32 %v133, %v1100
    %v1421 = vadd.f32 %v133, %v1101
    %v1422 = vadd.f32 %v137, %v1102
    %v1423 = vadd.f32 %v137, %v1103
    %v1424 = vadd.f32 %v141, %v1104
    %v1425 = vadd.f32 %v141, %v1105
    %v1426 = vadd.f32 %v129, %v1106
    %v1427 = vadd.f32 %v129, %v1107
    %v1428 = vadd.f32 %v133, %v1108
    %v1429 = vadd.f32 %v133, %v1109
    %v1430 = vadd.f32 %v137, %v1110
    %v1431 = vadd.f32 %v137, %v1111
    %v1432 = vadd.f32 %v141, %v1112
    %v1433 = vadd.f32 %v141, %v1113
    %v1434 = vadd.f32 %v129, %v1114
    %v1435 = vadd.f32 %v129, %v1115
    %v1436 = vadd.f32 %v133, %v1116
    %v1437 = vadd.f32 %v133, %v1117
    %v1438 = vadd.f32 %v137, %v1118
    %v1439 = vadd.f32 %v137, %v1119
    %v1440 = vadd.f32 %v141, %v1120
    %v1441 = vadd.f32 %v141, %v1121
    %v1442 = vadd.f32 %v129, %v1122
    %v1443 = vadd.f32 %v129, %v1123
    %v1444 = vadd.f32 %v133, %v1124
    %v1445 = vadd.f32 %v133, %v1125
    %v1446 = vadd.f32 %v137, %v1126
    %v1447 = vadd.f32 %v137, %v1127
    %v1448 = vadd.f32 %v141, %v1128
    %v1449 = vadd.f32 %v141, %v1129
    %v1450 = vadd.f32 %v129, %v1130
    %v1451 = vadd.f32 %v129, %v1131
    %v1452 = vadd.f32 %v133, %v1132
    %v1453 = vadd.f32 %v133, %v1133
    %v1454 = vadd.f32 %v137, %v1134
    %v1455 = vadd.f32 %v137, %v1135
    %v1456 = vadd.f32 %v141, %v1136
    %v1457 = vadd.f32 %v141, %v1137
    %v1458 = vadd.f32 %v129, %v1138
    %v1459 = vadd.f32 %v129, %v1139
    %v1460 = vadd.f32 %v133, %v1140
    %v1461 = vadd.f32 %v133, %v1141
    %v1462 = vadd.f32 %v137, %v1142
    %v1463 = vadd.f32 %v137, %v1143
    %v1464 = vadd.f32 %v141, %v1144
    %v1465 = vadd.f32 %v141, %v1145
    %v1466 = vadd.f32 %v129, %v1146
    %v1467 = vadd.f32 %v129, %v1147
    %v1468 = vadd.f32 %v133, %v1148
    %v1469 = vadd.f32 %v133, %v1149
    %v1470 = vadd.f32 %v137, %v1150
    %v1471 = vadd.f32 %v137, %v1151
    %v1472 = vadd.f32 %v141, %v1152
    %v1473 = vadd.f32 %v141, %v1153
    %v1474 = vadd.f32 %v129, %v1154
    %v1475 = vadd.f32 %v129, %v1155
    %v1476 = vadd.f32 %v133, %v1156
    %v1477 = vadd.f32 %v133, %v1157
    %v1478 = vadd.f32 %v137, %v1158
    %v1479 = vadd.f32 %v137, %v1159
    %v1480 = vadd.f32 %v141, %v1160
    %v1481 = vadd.f32 %v141, %v1161
    %v1482 = vadd.f32 %v129, %v1162
    %v1483 = vadd.f32 %v129, %v1163
    %v1484 = vadd.f32 %v133, %v1164
    %v1485 = vadd.f32 %v133, %v1165
    %v1486 = vadd.f32 %v137, %v1166
    %v1487 = vadd.f32 %v137, %v1167
    %v1488 = vadd.f32 %v141, %v1168
    %v1489 = vadd.f32 %v141, %v1169
    %v1490 = vadd.f32 %v129, %v1170
    %v1491 = vadd.f32 %v129, %v1171
    %v1492 = vadd.f32 %v133, %v1172
    %v1493 = vadd.f32 %v133, %v1173
    %v1494 = vadd.f32 %v137, %v1174
    %v1495 = vadd.f32 %v137, %v1175
    %v1496 = vadd.f32 %v141, %v1176
    %v1497 = vadd.f32 %v141, %v1177
    %v1498 = vadd.f32 %v129, %v1178
    %v1499 = vadd.f32 %v129, %v1179
    %v1500 = vadd.f32 %v133, %v1180
    %v1501 = vadd.f32 %v133, %v1181
    %v1502 = vadd.f32 %v137, %v1182
    %v1503 = vadd.f32 %v137, %v1183
    %v1504 = vadd.f32 %v141, %v1184
    %v1505 = vadd.f32 %v141, %v1185
    %v1506 = vadd.f32 %v129, %v1186
    %v1507 = vadd.f32 %v129, %v1187
    %v1508 = vadd.f32 %v133, %v1188
    %v1509 = vadd.f32 %v133, %v1189
    %v1510 = vadd.f32 %v137, %v1190
    %v1511 = vadd.f32 %v137, %v1191
    %v1512 = vadd.f32 %v141, %v1192
    %v1513 = vadd.f32 %v141, %v1193
    %v1514 = vadd.f32 %v129, %v1194
    %v1515 = vadd.f32 %v129, %v1195
    %v1516 = vadd.f32 %v133, %v1196
    %v1517 = vadd.f32 %v133, %v1197
    %v1518 = vadd.f32 %v137, %v1198
    %v1519 = vadd.f32 %v137, %v1199
    %v1520 = vadd.f32 %v141, %v1200
    %v1521 = vadd.f32 %v141, %v1201
    %v1522 = vadd.f32 %v129, %v1202
    %v1523 = vadd.f32 %v129, %v1203
    %v1524 = vadd.f32 %v133, %v1204
    %v1525 = vadd.f32 %v133, %v1205
    %v1526 = vadd.f32 %v137, %v1206
    %v1527 = vadd.f32 %v137, %v1207
    %v1528 = vadd.f32 %v141, %v1208
    %v1529 = vadd.f32 %v141, %v1209
    %v1530 = vadd.f32 %v129, %v1210
    %v1531 = vadd.f32 %v129, %v1211
    %v1532 = vadd.f32 %v133, %v1212
    %v1533 = vadd.f32 %v133, %v1213
    %v1534 = vadd.f32 %v137, %v1214
    %v1535 = vadd.f32 %v137, %v1215
    %v1536 = vadd.f32 %v141, %v1216
    %v1537 = vadd.f32 %v141, %v1217
    %v1538 = vadd.f32 %v129, %v1218
    %v1539 = vadd.f32 %v129, %v1219
    %v1540 = vadd.f32 %v133, %v1220
    %v1541 = vadd.f32 %v133, %v1221
    %v1542 = vadd.f32 %v137, %v1222
    %v1543 = vadd.f32 %v137, %v1223
    %v1544 = vadd.f32 %v141, %v1224
    %v1545 = vadd.f32 %v141, %v1225
    %v1546 = vadd.f32 %v129, %v1226
    %v1547 = vadd.f32 %v129, %v1227
    %v1548 = vadd.f32 %v133, %v1228
    %v1549 = vadd.f32 %v133, %v1229
    %v1550 = vadd.f32 %v137, %v1230
    %v1551 = vadd.f32 %v137, %v1231
    %v1552 = vadd.f32 %v141, %v1232
    %v1553 = vadd.f32 %v141, %v1233
    %v1554 = vadd.f32 %v129, %v1234
    %v1555 = vadd.f32 %v129, %v1235
    %v1556 = vadd.f32 %v133, %v1236
    %v1557 = vadd.f32 %v133, %v1237
    %v1558 = vadd.f32 %v137, %v1238
    %v1559 = vadd.f32 %v137, %v1239
    %v1560 = vadd.f32 %v141, %v1240
    %v1561 = vadd.f32 %v141, %v1241
    %1562 = vset.pattern.permute.xlu0 1
    %1563 = vperm.xlu0 %1562, %v118
    %v1564 = vpop.permute.xlu0 %1563
    %1566 = vset.pattern.permute.xlu0 1
    %1567 = vperm.xlu0 %1566, %v119
    %v1568 = vpop.permute.xlu0 %1567
    %1570 = vset.pattern.permute.xlu0 1
    %1571 = vperm.xlu0 %1570, %v120
    %v1572 = vpop.permute.xlu0 %1571
    %1574 = vset.pattern.permute.xlu0 1
    %1575 = vperm.xlu0 %1574, %v121
    %v1576 = vpop.permute.xlu0 %1575
    %v1578 = vlaneseq
    %v1579 = vshrl.u32 %v1578, 7
    %v1580 = vsub.s32 1, %v1579
    %v1581 = vrot.slane %v78, %v1580
    %v1582 = vlaneseq
    %v1583 = vshrl.u32 %v1582, 7
    %v1584 = vsub.s32 5, %v1583
    %v1585 = vrot.slane %v78, %v1584
    %v1586 = vlaneseq
    %v1587 = vshrl.u32 %v1586, 7
    %v1588 = vsub.s32 1, %v1587
    %v1589 = vrot.slane %v79, %v1588
    %v1590 = vlaneseq
    %v1591 = vshrl.u32 %v1590, 7
    %v1592 = vsub.s32 5, %v1591
    %v1593 = vrot.slane %v79, %v1592
    %v1594 = vlaneseq
    %v1595 = vshrl.u32 %v1594, 7
    %v1596 = vsub.s32 1, %v1595
    %v1597 = vrot.slane %v80, %v1596
    %v1598 = vlaneseq
    %v1599 = vshrl.u32 %v1598, 7
    %v1600 = vsub.s32 5, %v1599
    %v1601 = vrot.slane %v80, %v1600
    %v1602 = vlaneseq
    %v1603 = vshrl.u32 %v1602, 7
    %v1604 = vsub.s32 1, %v1603
    %v1605 = vrot.slane %v81, %v1604
    %v1606 = vlaneseq
    %v1607 = vshrl.u32 %v1606, 7
    %v1608 = vsub.s32 5, %v1607
    %v1609 = vrot.slane %v81, %v1608
    %v1610 = vlaneseq
    %v1611 = vshrl.u32 %v1610, 7
    %v1612 = vsub.s32 1, %v1611
    %v1613 = vrot.slane %v82, %v1612
    %v1614 = vlaneseq
    %v1615 = vshrl.u32 %v1614, 7
    %v1616 = vsub.s32 5, %v1615
    %v1617 = vrot.slane %v82, %v1616
    %v1618 = vlaneseq
    %v1619 = vshrl.u32 %v1618, 7
    %v1620 = vsub.s32 1, %v1619
    %v1621 = vrot.slane %v83, %v1620
    %v1622 = vlaneseq
    %v1623 = vshrl.u32 %v1622, 7
    %v1624 = vsub.s32 5, %v1623
    %v1625 = vrot.slane %v83, %v1624
    %v1626 = vlaneseq
    %v1627 = vshrl.u32 %v1626, 7
    %v1628 = vsub.s32 1, %v1627
    %v1629 = vrot.slane %v84, %v1628
    %v1630 = vlaneseq
    %v1631 = vshrl.u32 %v1630, 7
    %v1632 = vsub.s32 5, %v1631
    %v1633 = vrot.slane %v84, %v1632
    %v1634 = vlaneseq
    %v1635 = vshrl.u32 %v1634, 7
    %v1636 = vsub.s32 1, %v1635
    %v1637 = vrot.slane %v85, %v1636
    %v1638 = vlaneseq
    %v1639 = vshrl.u32 %v1638, 7
    %v1640 = vsub.s32 5, %v1639
    %v1641 = vrot.slane %v85, %v1640
    %v1642 = vlaneseq
    %v1643 = vshrl.u32 %v1642, 7
    %v1644 = vsub.s32 1, %v1643
    %v1645 = vrot.slane %v86, %v1644
    %v1646 = vlaneseq
    %v1647 = vshrl.u32 %v1646, 7
    %v1648 = vsub.s32 5, %v1647
    %v1649 = vrot.slane %v86, %v1648
    %v1650 = vlaneseq
    %v1651 = vshrl.u32 %v1650, 7
    %v1652 = vsub.s32 1, %v1651
    %v1653 = vrot.slane %v87, %v1652
    %v1654 = vlaneseq
    %v1655 = vshrl.u32 %v1654, 7
    %v1656 = vsub.s32 5, %v1655
    %v1657 = vrot.slane %v87, %v1656
    %v1658 = vlaneseq
    %v1659 = vshrl.u32 %v1658, 7
    %v1660 = vsub.s32 1, %v1659
    %v1661 = vrot.slane %v88, %v1660
    %v1662 = vlaneseq
    %v1663 = vshrl.u32 %v1662, 7
    %v1664 = vsub.s32 5, %v1663
    %v1665 = vrot.slane %v88, %v1664
    %v1666 = vlaneseq
    %v1667 = vshrl.u32 %v1666, 7
    %v1668 = vsub.s32 1, %v1667
    %v1669 = vrot.slane %v89, %v1668
    %v1670 = vlaneseq
    %v1671 = vshrl.u32 %v1670, 7
    %v1672 = vsub.s32 5, %v1671
    %v1673 = vrot.slane %v89, %v1672
    %v1674 = vlaneseq
    %v1675 = vshrl.u32 %v1674, 7
    %v1676 = vsub.s32 1, %v1675
    %v1677 = vrot.slane %v90, %v1676
    %v1678 = vlaneseq
    %v1679 = vshrl.u32 %v1678, 7
    %v1680 = vsub.s32 5, %v1679
    %v1681 = vrot.slane %v90, %v1680
    %v1682 = vlaneseq
    %v1683 = vshrl.u32 %v1682, 7
    %v1684 = vsub.s32 1, %v1683
    %v1685 = vrot.slane %v91, %v1684
    %v1686 = vlaneseq
    %v1687 = vshrl.u32 %v1686, 7
    %v1688 = vsub.s32 5, %v1687
    %v1689 = vrot.slane %v91, %v1688
    %v1690 = vlaneseq
    %v1691 = vshrl.u32 %v1690, 7
    %v1692 = vsub.s32 1, %v1691
    %v1693 = vrot.slane %v92, %v1692
    %v1694 = vlaneseq
    %v1695 = vshrl.u32 %v1694, 7
    %v1696 = vsub.s32 5, %v1695
    %v1697 = vrot.slane %v92, %v1696
    %v1698 = vlaneseq
    %v1699 = vshrl.u32 %v1698, 7
    %v1700 = vsub.s32 1, %v1699
    %v1701 = vrot.slane %v93, %v1700
    %v1702 = vlaneseq
    %v1703 = vshrl.u32 %v1702, 7
    %v1704 = vsub.s32 5, %v1703
    %v1705 = vrot.slane %v93, %v1704
    %v1706 = vlaneseq
    %v1707 = vshrl.u32 %v1706, 7
    %v1708 = vsub.s32 1, %v1707
    %v1709 = vrot.slane %v94, %v1708
    %v1710 = vlaneseq
    %v1711 = vshrl.u32 %v1710, 7
    %v1712 = vsub.s32 5, %v1711
    %v1713 = vrot.slane %v94, %v1712
    %v1714 = vlaneseq
    %v1715 = vshrl.u32 %v1714, 7
    %v1716 = vsub.s32 1, %v1715
    %v1717 = vrot.slane %v95, %v1716
    %v1718 = vlaneseq
    %v1719 = vshrl.u32 %v1718, 7
    %v1720 = vsub.s32 5, %v1719
    %v1721 = vrot.slane %v95, %v1720
    %v1722 = vlaneseq
    %v1723 = vshrl.u32 %v1722, 7
    %v1724 = vsub.s32 1, %v1723
    %v1725 = vrot.slane %v96, %v1724
    %v1726 = vlaneseq
    %v1727 = vshrl.u32 %v1726, 7
    %v1728 = vsub.s32 5, %v1727
    %v1729 = vrot.slane %v96, %v1728
    %v1730 = vlaneseq
    %v1731 = vshrl.u32 %v1730, 7
    %v1732 = vsub.s32 1, %v1731
    %v1733 = vrot.slane %v97, %v1732
    %v1734 = vlaneseq
    %v1735 = vshrl.u32 %v1734, 7
    %v1736 = vsub.s32 5, %v1735
    %v1737 = vrot.slane %v97, %v1736
    %v1738 = vlaneseq
    %v1739 = vshrl.u32 %v1738, 7
    %v1740 = vsub.s32 1, %v1739
    %v1741 = vrot.slane %v98, %v1740
    %v1742 = vlaneseq
    %v1743 = vshrl.u32 %v1742, 7
    %v1744 = vsub.s32 5, %v1743
    %v1745 = vrot.slane %v98, %v1744
    %v1746 = vlaneseq
    %v1747 = vshrl.u32 %v1746, 7
    %v1748 = vsub.s32 1, %v1747
    %v1749 = vrot.slane %v99, %v1748
    %v1750 = vlaneseq
    %v1751 = vshrl.u32 %v1750, 7
    %v1752 = vsub.s32 5, %v1751
    %v1753 = vrot.slane %v99, %v1752
    %v1754 = vlaneseq
    %v1755 = vshrl.u32 %v1754, 7
    %v1756 = vsub.s32 1, %v1755
    %v1757 = vrot.slane %v100, %v1756
    %v1758 = vlaneseq
    %v1759 = vshrl.u32 %v1758, 7
    %v1760 = vsub.s32 5, %v1759
    %v1761 = vrot.slane %v100, %v1760
    %v1762 = vlaneseq
    %v1763 = vshrl.u32 %v1762, 7
    %v1764 = vsub.s32 1, %v1763
    %v1765 = vrot.slane %v101, %v1764
    %v1766 = vlaneseq
    %v1767 = vshrl.u32 %v1766, 7
    %v1768 = vsub.s32 5, %v1767
    %v1769 = vrot.slane %v101, %v1768
    %v1770 = vlaneseq
    %v1771 = vshrl.u32 %v1770, 7
    %v1772 = vsub.s32 1, %v1771
    %v1773 = vrot.slane %v102, %v1772
    %v1774 = vlaneseq
    %v1775 = vshrl.u32 %v1774, 7
    %v1776 = vsub.s32 5, %v1775
    %v1777 = vrot.slane %v102, %v1776
    %v1778 = vlaneseq
    %v1779 = vshrl.u32 %v1778, 7
    %v1780 = vsub.s32 1, %v1779
    %v1781 = vrot.slane %v103, %v1780
    %v1782 = vlaneseq
    %v1783 = vshrl.u32 %v1782, 7
    %v1784 = vsub.s32 5, %v1783
    %v1785 = vrot.slane %v103, %v1784
    %v1786 = vlaneseq
    %v1787 = vshrl.u32 %v1786, 7
    %v1788 = vsub.s32 1, %v1787
    %v1789 = vrot.slane %v104, %v1788
    %v1790 = vlaneseq
    %v1791 = vshrl.u32 %v1790, 7
    %v1792 = vsub.s32 5, %v1791
    %v1793 = vrot.slane %v104, %v1792
    %v1794 = vlaneseq
    %v1795 = vshrl.u32 %v1794, 7
    %v1796 = vsub.s32 1, %v1795
    %v1797 = vrot.slane %v105, %v1796
    %v1798 = vlaneseq
    %v1799 = vshrl.u32 %v1798, 7
    %v1800 = vsub.s32 5, %v1799
    %v1801 = vrot.slane %v105, %v1800
    %v1802 = vlaneseq
    %v1803 = vshrl.u32 %v1802, 7
    %v1804 = vsub.s32 1, %v1803
    %v1805 = vrot.slane %v106, %v1804
    %v1806 = vlaneseq
    %v1807 = vshrl.u32 %v1806, 7
    %v1808 = vsub.s32 5, %v1807
    %v1809 = vrot.slane %v106, %v1808
    %v1810 = vlaneseq
    %v1811 = vshrl.u32 %v1810, 7
    %v1812 = vsub.s32 1, %v1811
    %v1813 = vrot.slane %v107, %v1812
    %v1814 = vlaneseq
    %v1815 = vshrl.u32 %v1814, 7
    %v1816 = vsub.s32 5, %v1815
    %v1817 = vrot.slane %v107, %v1816
    %v1818 = vlaneseq
    %v1819 = vshrl.u32 %v1818, 7
    %v1820 = vsub.s32 1, %v1819
    %v1821 = vrot.slane %v108, %v1820
    %v1822 = vlaneseq
    %v1823 = vshrl.u32 %v1822, 7
    %v1824 = vsub.s32 5, %v1823
    %v1825 = vrot.slane %v108, %v1824
    %v1826 = vlaneseq
    %v1827 = vshrl.u32 %v1826, 7
    %v1828 = vsub.s32 1, %v1827
    %v1829 = vrot.slane %v109, %v1828
    %v1830 = vlaneseq
    %v1831 = vshrl.u32 %v1830, 7
    %v1832 = vsub.s32 5, %v1831
    %v1833 = vrot.slane %v109, %v1832
    %v1834 = vlaneseq
    %v1835 = vshrl.u32 %v1834, 7
    %v1836 = vsub.s32 1, %v1835
    %v1837 = vrot.slane %v110, %v1836
    %v1838 = vlaneseq
    %v1839 = vshrl.u32 %v1838, 7
    %v1840 = vsub.s32 5, %v1839
    %v1841 = vrot.slane %v110, %v1840
    %v1842 = vlaneseq
    %v1843 = vshrl.u32 %v1842, 7
    %v1844 = vsub.s32 1, %v1843
    %v1845 = vrot.slane %v111, %v1844
    %v1846 = vlaneseq
    %v1847 = vshrl.u32 %v1846, 7
    %v1848 = vsub.s32 5, %v1847
    %v1849 = vrot.slane %v111, %v1848
    %v1850 = vlaneseq
    %v1851 = vshrl.u32 %v1850, 7
    %v1852 = vsub.s32 1, %v1851
    %v1853 = vrot.slane %v112, %v1852
    %v1854 = vlaneseq
    %v1855 = vshrl.u32 %v1854, 7
    %v1856 = vsub.s32 5, %v1855
    %v1857 = vrot.slane %v112, %v1856
    %v1858 = vlaneseq
    %v1859 = vshrl.u32 %v1858, 7
    %v1860 = vsub.s32 1, %v1859
    %v1861 = vrot.slane %v113, %v1860
    %v1862 = vlaneseq
    %v1863 = vshrl.u32 %v1862, 7
    %v1864 = vsub.s32 5, %v1863
    %v1865 = vrot.slane %v113, %v1864
    %v1866 = vlaneseq
    %v1867 = vshrl.u32 %v1866, 7
    %v1868 = vsub.s32 1, %v1867
    %v1869 = vrot.slane %v114, %v1868
    %v1870 = vlaneseq
    %v1871 = vshrl.u32 %v1870, 7
    %v1872 = vsub.s32 5, %v1871
    %v1873 = vrot.slane %v114, %v1872
    %v1874 = vlaneseq
    %v1875 = vshrl.u32 %v1874, 7
    %v1876 = vsub.s32 1, %v1875
    %v1877 = vrot.slane %v115, %v1876
    %v1878 = vlaneseq
    %v1879 = vshrl.u32 %v1878, 7
    %v1880 = vsub.s32 5, %v1879
    %v1881 = vrot.slane %v115, %v1880
    %v1882 = vlaneseq
    %v1883 = vshrl.u32 %v1882, 7
    %v1884 = vsub.s32 1, %v1883
    %v1885 = vrot.slane %v116, %v1884
    %v1886 = vlaneseq
    %v1887 = vshrl.u32 %v1886, 7
    %v1888 = vsub.s32 5, %v1887
    %v1889 = vrot.slane %v116, %v1888
    %v1890 = vlaneseq
    %v1891 = vshrl.u32 %v1890, 7
    %v1892 = vsub.s32 1, %v1891
    %v1893 = vrot.slane %v117, %v1892
    %v1894 = vlaneseq
    %v1895 = vshrl.u32 %v1894, 7
    %v1896 = vsub.s32 5, %v1895
    %v1897 = vrot.slane %v117, %v1896
    %v1978 = vlaneseq
    %v1979 = vshrl.u32 %v1978, 7
    %v1980 = vsub.s32 1, %v1979
    %v1981 = vrot.slane %v1581, %v1980
    %v1982 = vlaneseq
    %v1983 = vshrl.u32 %v1982, 7
    %v1984 = vsub.s32 1, %v1983
    %v1985 = vrot.slane %v1585, %v1984
    %v1986 = vlaneseq
    %v1987 = vshrl.u32 %v1986, 7
    %v1988 = vsub.s32 1, %v1987
    %v1989 = vrot.slane %v1589, %v1988
    %v1990 = vlaneseq
    %v1991 = vshrl.u32 %v1990, 7
    %v1992 = vsub.s32 1, %v1991
    %v1993 = vrot.slane %v1593, %v1992
    %v1994 = vlaneseq
    %v1995 = vshrl.u32 %v1994, 7
    %v1996 = vsub.s32 1, %v1995
    %v1997 = vrot.slane %v1597, %v1996
    %v1998 = vlaneseq
    %v1999 = vshrl.u32 %v1998, 7
    %v2000 = vsub.s32 1, %v1999
    %v2001 = vrot.slane %v1601, %v2000
    %v2002 = vlaneseq
    %v2003 = vshrl.u32 %v2002, 7
    %v2004 = vsub.s32 1, %v2003
    %v2005 = vrot.slane %v1605, %v2004
    %v2006 = vlaneseq
    %v2007 = vshrl.u32 %v2006, 7
    %v2008 = vsub.s32 1, %v2007
    %v2009 = vrot.slane %v1609, %v2008
    %v2010 = vlaneseq
    %v2011 = vshrl.u32 %v2010, 7
    %v2012 = vsub.s32 1, %v2011
    %v2013 = vrot.slane %v1613, %v2012
    %v2014 = vlaneseq
    %v2015 = vshrl.u32 %v2014, 7
    %v2016 = vsub.s32 1, %v2015
    %v2017 = vrot.slane %v1617, %v2016
    %v2018 = vlaneseq
    %v2019 = vshrl.u32 %v2018, 7
    %v2020 = vsub.s32 1, %v2019
    %v2021 = vrot.slane %v1621, %v2020
    %v2022 = vlaneseq
    %v2023 = vshrl.u32 %v2022, 7
    %v2024 = vsub.s32 1, %v2023
    %v2025 = vrot.slane %v1625, %v2024
    %v2026 = vlaneseq
    %v2027 = vshrl.u32 %v2026, 7
    %v2028 = vsub.s32 1, %v2027
    %v2029 = vrot.slane %v1629, %v2028
    %v2030 = vlaneseq
    %v2031 = vshrl.u32 %v2030, 7
    %v2032 = vsub.s32 1, %v2031
    %v2033 = vrot.slane %v1633, %v2032
    %v2034 = vlaneseq
    %v2035 = vshrl.u32 %v2034, 7
    %v2036 = vsub.s32 1, %v2035
    %v2037 = vrot.slane %v1637, %v2036
    %v2038 = vlaneseq
    %v2039 = vshrl.u32 %v2038, 7
    %v2040 = vsub.s32 1, %v2039
    %v2041 = vrot.slane %v1641, %v2040
    %v2042 = vlaneseq
    %v2043 = vshrl.u32 %v2042, 7
    %v2044 = vsub.s32 1, %v2043
    %v2045 = vrot.slane %v1645, %v2044
    %v2046 = vlaneseq
    %v2047 = vshrl.u32 %v2046, 7
    %v2048 = vsub.s32 1, %v2047
    %v2049 = vrot.slane %v1649, %v2048
    %v2050 = vlaneseq
    %v2051 = vshrl.u32 %v2050, 7
    %v2052 = vsub.s32 1, %v2051
    %v2053 = vrot.slane %v1653, %v2052
    %v2054 = vlaneseq
    %v2055 = vshrl.u32 %v2054, 7
    %v2056 = vsub.s32 1, %v2055
    %v2057 = vrot.slane %v1657, %v2056
    %v2058 = vlaneseq
    %v2059 = vshrl.u32 %v2058, 7
    %v2060 = vsub.s32 1, %v2059
    %v2061 = vrot.slane %v1661, %v2060
    %v2062 = vlaneseq
    %v2063 = vshrl.u32 %v2062, 7
    %v2064 = vsub.s32 1, %v2063
    %v2065 = vrot.slane %v1665, %v2064
    %v2066 = vlaneseq
    %v2067 = vshrl.u32 %v2066, 7
    %v2068 = vsub.s32 1, %v2067
    %v2069 = vrot.slane %v1669, %v2068
    %v2070 = vlaneseq
    %v2071 = vshrl.u32 %v2070, 7
    %v2072 = vsub.s32 1, %v2071
    %v2073 = vrot.slane %v1673, %v2072
    %v2074 = vlaneseq
    %v2075 = vshrl.u32 %v2074, 7
    %v2076 = vsub.s32 1, %v2075
    %v2077 = vrot.slane %v1677, %v2076
    %v2078 = vlaneseq
    %v2079 = vshrl.u32 %v2078, 7
    %v2080 = vsub.s32 1, %v2079
    %v2081 = vrot.slane %v1681, %v2080
    %v2082 = vlaneseq
    %v2083 = vshrl.u32 %v2082, 7
    %v2084 = vsub.s32 1, %v2083
    %v2085 = vrot.slane %v1685, %v2084
    %v2086 = vlaneseq
    %v2087 = vshrl.u32 %v2086, 7
    %v2088 = vsub.s32 1, %v2087
    %v2089 = vrot.slane %v1689, %v2088
    %v2090 = vlaneseq
    %v2091 = vshrl.u32 %v2090, 7
    %v2092 = vsub.s32 1, %v2091
    %v2093 = vrot.slane %v1693, %v2092
    %v2094 = vlaneseq
    %v2095 = vshrl.u32 %v2094, 7
    %v2096 = vsub.s32 1, %v2095
    %v2097 = vrot.slane %v1697, %v2096
    %v2098 = vlaneseq
    %v2099 = vshrl.u32 %v2098, 7
    %v2100 = vsub.s32 1, %v2099
    %v2101 = vrot.slane %v1701, %v2100
    %v2102 = vlaneseq
    %v2103 = vshrl.u32 %v2102, 7
    %v2104 = vsub.s32 1, %v2103
    %v2105 = vrot.slane %v1705, %v2104
    %v2106 = vlaneseq
    %v2107 = vshrl.u32 %v2106, 7
    %v2108 = vsub.s32 1, %v2107
    %v2109 = vrot.slane %v1709, %v2108
    %v2110 = vlaneseq
    %v2111 = vshrl.u32 %v2110, 7
    %v2112 = vsub.s32 1, %v2111
    %v2113 = vrot.slane %v1713, %v2112
    %v2114 = vlaneseq
    %v2115 = vshrl.u32 %v2114, 7
    %v2116 = vsub.s32 1, %v2115
    %v2117 = vrot.slane %v1717, %v2116
    %v2118 = vlaneseq
    %v2119 = vshrl.u32 %v2118, 7
    %v2120 = vsub.s32 1, %v2119
    %v2121 = vrot.slane %v1721, %v2120
    %v2122 = vlaneseq
    %v2123 = vshrl.u32 %v2122, 7
    %v2124 = vsub.s32 1, %v2123
    %v2125 = vrot.slane %v1725, %v2124
    %v2126 = vlaneseq
    %v2127 = vshrl.u32 %v2126, 7
    %v2128 = vsub.s32 1, %v2127
    %v2129 = vrot.slane %v1729, %v2128
    %v2130 = vlaneseq
    %v2131 = vshrl.u32 %v2130, 7
    %v2132 = vsub.s32 1, %v2131
    %v2133 = vrot.slane %v1733, %v2132
    %v2134 = vlaneseq
    %v2135 = vshrl.u32 %v2134, 7
    %v2136 = vsub.s32 1, %v2135
    %v2137 = vrot.slane %v1737, %v2136
    %v2138 = vlaneseq
    %v2139 = vshrl.u32 %v2138, 7
    %v2140 = vsub.s32 1, %v2139
    %v2141 = vrot.slane %v1741, %v2140
    %v2142 = vlaneseq
    %v2143 = vshrl.u32 %v2142, 7
    %v2144 = vsub.s32 1, %v2143
    %v2145 = vrot.slane %v1745, %v2144
    %v2146 = vlaneseq
    %v2147 = vshrl.u32 %v2146, 7
    %v2148 = vsub.s32 1, %v2147
    %v2149 = vrot.slane %v1749, %v2148
    %v2150 = vlaneseq
    %v2151 = vshrl.u32 %v2150, 7
    %v2152 = vsub.s32 1, %v2151
    %v2153 = vrot.slane %v1753, %v2152
    %v2154 = vlaneseq
    %v2155 = vshrl.u32 %v2154, 7
    %v2156 = vsub.s32 1, %v2155
    %v2157 = vrot.slane %v1757, %v2156
    %v2158 = vlaneseq
    %v2159 = vshrl.u32 %v2158, 7
    %v2160 = vsub.s32 1, %v2159
    %v2161 = vrot.slane %v1761, %v2160
    %v2162 = vlaneseq
    %v2163 = vshrl.u32 %v2162, 7
    %v2164 = vsub.s32 1, %v2163
    %v2165 = vrot.slane %v1765, %v2164
    %v2166 = vlaneseq
    %v2167 = vshrl.u32 %v2166, 7
    %v2168 = vsub.s32 1, %v2167
    %v2169 = vrot.slane %v1769, %v2168
    %v2170 = vlaneseq
    %v2171 = vshrl.u32 %v2170, 7
    %v2172 = vsub.s32 1, %v2171
    %v2173 = vrot.slane %v1773, %v2172
    %v2174 = vlaneseq
    %v2175 = vshrl.u32 %v2174, 7
    %v2176 = vsub.s32 1, %v2175
    %v2177 = vrot.slane %v1777, %v2176
    %v2178 = vlaneseq
    %v2179 = vshrl.u32 %v2178, 7
    %v2180 = vsub.s32 1, %v2179
    %v2181 = vrot.slane %v1781, %v2180
    %v2182 = vlaneseq
    %v2183 = vshrl.u32 %v2182, 7
    %v2184 = vsub.s32 1, %v2183
    %v2185 = vrot.slane %v1785, %v2184
    %v2186 = vlaneseq
    %v2187 = vshrl.u32 %v2186, 7
    %v2188 = vsub.s32 1, %v2187
    %v2189 = vrot.slane %v1789, %v2188
    %v2190 = vlaneseq
    %v2191 = vshrl.u32 %v2190, 7
    %v2192 = vsub.s32 1, %v2191
    %v2193 = vrot.slane %v1793, %v2192
    %v2194 = vlaneseq
    %v2195 = vshrl.u32 %v2194, 7
    %v2196 = vsub.s32 1, %v2195
    %v2197 = vrot.slane %v1797, %v2196
    %v2198 = vlaneseq
    %v2199 = vshrl.u32 %v2198, 7
    %v2200 = vsub.s32 1, %v2199
    %v2201 = vrot.slane %v1801, %v2200
    %v2202 = vlaneseq
    %v2203 = vshrl.u32 %v2202, 7
    %v2204 = vsub.s32 1, %v2203
    %v2205 = vrot.slane %v1805, %v2204
    %v2206 = vlaneseq
    %v2207 = vshrl.u32 %v2206, 7
    %v2208 = vsub.s32 1, %v2207
    %v2209 = vrot.slane %v1809, %v2208
    %v2210 = vlaneseq
    %v2211 = vshrl.u32 %v2210, 7
    %v2212 = vsub.s32 1, %v2211
    %v2213 = vrot.slane %v1813, %v2212
    %v2214 = vlaneseq
    %v2215 = vshrl.u32 %v2214, 7
    %v2216 = vsub.s32 1, %v2215
    %v2217 = vrot.slane %v1817, %v2216
    %v2218 = vlaneseq
    %v2219 = vshrl.u32 %v2218, 7
    %v2220 = vsub.s32 1, %v2219
    %v2221 = vrot.slane %v1821, %v2220
    %v2222 = vlaneseq
    %v2223 = vshrl.u32 %v2222, 7
    %v2224 = vsub.s32 1, %v2223
    %v2225 = vrot.slane %v1825, %v2224
    %v2226 = vlaneseq
    %v2227 = vshrl.u32 %v2226, 7
    %v2228 = vsub.s32 1, %v2227
    %v2229 = vrot.slane %v1829, %v2228
    %v2230 = vlaneseq
    %v2231 = vshrl.u32 %v2230, 7
    %v2232 = vsub.s32 1, %v2231
    %v2233 = vrot.slane %v1833, %v2232
    %v2234 = vlaneseq
    %v2235 = vshrl.u32 %v2234, 7
    %v2236 = vsub.s32 1, %v2235
    %v2237 = vrot.slane %v1837, %v2236
    %v2238 = vlaneseq
    %v2239 = vshrl.u32 %v2238, 7
    %v2240 = vsub.s32 1, %v2239
    %v2241 = vrot.slane %v1841, %v2240
    %v2242 = vlaneseq
    %v2243 = vshrl.u32 %v2242, 7
    %v2244 = vsub.s32 1, %v2243
    %v2245 = vrot.slane %v1845, %v2244
    %v2246 = vlaneseq
    %v2247 = vshrl.u32 %v2246, 7
    %v2248 = vsub.s32 1, %v2247
    %v2249 = vrot.slane %v1849, %v2248
    %v2250 = vlaneseq
    %v2251 = vshrl.u32 %v2250, 7
    %v2252 = vsub.s32 1, %v2251
    %v2253 = vrot.slane %v1853, %v2252
    %v2254 = vlaneseq
    %v2255 = vshrl.u32 %v2254, 7
    %v2256 = vsub.s32 1, %v2255
    %v2257 = vrot.slane %v1857, %v2256
    %v2258 = vlaneseq
    %v2259 = vshrl.u32 %v2258, 7
    %v2260 = vsub.s32 1, %v2259
    %v2261 = vrot.slane %v1861, %v2260
    %v2262 = vlaneseq
    %v2263 = vshrl.u32 %v2262, 7
    %v2264 = vsub.s32 1, %v2263
    %v2265 = vrot.slane %v1865, %v2264
    %v2266 = vlaneseq
    %v2267 = vshrl.u32 %v2266, 7
    %v2268 = vsub.s32 1, %v2267
    %v2269 = vrot.slane %v1869, %v2268
    %v2270 = vlaneseq
    %v2271 = vshrl.u32 %v2270, 7
    %v2272 = vsub.s32 1, %v2271
    %v2273 = vrot.slane %v1873, %v2272
    %v2274 = vlaneseq
    %v2275 = vshrl.u32 %v2274, 7
    %v2276 = vsub.s32 1, %v2275
    %v2277 = vrot.slane %v1877, %v2276
    %v2278 = vlaneseq
    %v2279 = vshrl.u32 %v2278, 7
    %v2280 = vsub.s32 1, %v2279
    %v2281 = vrot.slane %v1881, %v2280
    %v2282 = vlaneseq
    %v2283 = vshrl.u32 %v2282, 7
    %v2284 = vsub.s32 1, %v2283
    %v2285 = vrot.slane %v1885, %v2284
    %v2286 = vlaneseq
    %v2287 = vshrl.u32 %v2286, 7
    %v2288 = vsub.s32 1, %v2287
    %v2289 = vrot.slane %v1889, %v2288
    %v2290 = vlaneseq
    %v2291 = vshrl.u32 %v2290, 7
    %v2292 = vsub.s32 1, %v2291
    %v2293 = vrot.slane %v1893, %v2292
    %v2294 = vlaneseq
    %v2295 = vshrl.u32 %v2294, 7
    %v2296 = vsub.s32 1, %v2295
    %v2297 = vrot.slane %v1897, %v2296
    %v2298 = vmul.f32 %v1564, %v1981
    %v2299 = vmul.f32 %v1564, %v1985
    %v2300 = vmul.f32 %v1568, %v1981
    %v2301 = vmul.f32 %v1568, %v1985
    %v2302 = vmul.f32 %v1572, %v1981
    %v2303 = vmul.f32 %v1572, %v1985
    %v2304 = vmul.f32 %v1576, %v1981
    %v2305 = vmul.f32 %v1576, %v1985
    %v2306 = vmul.f32 %v1564, %v1989
    %v2307 = vmul.f32 %v1564, %v1993
    %v2308 = vmul.f32 %v1568, %v1989
    %v2309 = vmul.f32 %v1568, %v1993
    %v2310 = vmul.f32 %v1572, %v1989
    %v2311 = vmul.f32 %v1572, %v1993
    %v2312 = vmul.f32 %v1576, %v1989
    %v2313 = vmul.f32 %v1576, %v1993
    %v2314 = vmul.f32 %v1564, %v1997
    %v2315 = vmul.f32 %v1564, %v2001
    %v2316 = vmul.f32 %v1568, %v1997
    %v2317 = vmul.f32 %v1568, %v2001
    %v2318 = vmul.f32 %v1572, %v1997
    %v2319 = vmul.f32 %v1572, %v2001
    %v2320 = vmul.f32 %v1576, %v1997
    %v2321 = vmul.f32 %v1576, %v2001
    %v2322 = vmul.f32 %v1564, %v2005
    %v2323 = vmul.f32 %v1564, %v2009
    %v2324 = vmul.f32 %v1568, %v2005
    %v2325 = vmul.f32 %v1568, %v2009
    %v2326 = vmul.f32 %v1572, %v2005
    %v2327 = vmul.f32 %v1572, %v2009
    %v2328 = vmul.f32 %v1576, %v2005
    %v2329 = vmul.f32 %v1576, %v2009
    %v2330 = vmul.f32 %v1564, %v2013
    %v2331 = vmul.f32 %v1564, %v2017
    %v2332 = vmul.f32 %v1568, %v2013
    %v2333 = vmul.f32 %v1568, %v2017
    %v2334 = vmul.f32 %v1572, %v2013
    %v2335 = vmul.f32 %v1572, %v2017
    %v2336 = vmul.f32 %v1576, %v2013
    %v2337 = vmul.f32 %v1576, %v2017
    %v2338 = vmul.f32 %v1564, %v2021
    %v2339 = vmul.f32 %v1564, %v2025
    %v2340 = vmul.f32 %v1568, %v2021
    %v2341 = vmul.f32 %v1568, %v2025
    %v2342 = vmul.f32 %v1572, %v2021
    %v2343 = vmul.f32 %v1572, %v2025
    %v2344 = vmul.f32 %v1576, %v2021
    %v2345 = vmul.f32 %v1576, %v2025
    %v2346 = vmul.f32 %v1564, %v2029
    %v2347 = vmul.f32 %v1564, %v2033
    %v2348 = vmul.f32 %v1568, %v2029
    %v2349 = vmul.f32 %v1568, %v2033
    %v2350 = vmul.f32 %v1572, %v2029
    %v2351 = vmul.f32 %v1572, %v2033
    %v2352 = vmul.f32 %v1576, %v2029
    %v2353 = vmul.f32 %v1576, %v2033
    %v2354 = vmul.f32 %v1564, %v2037
    %v2355 = vmul.f32 %v1564, %v2041
    %v2356 = vmul.f32 %v1568, %v2037
    %v2357 = vmul.f32 %v1568, %v2041
    %v2358 = vmul.f32 %v1572, %v2037
    %v2359 = vmul.f32 %v1572, %v2041
    %v2360 = vmul.f32 %v1576, %v2037
    %v2361 = vmul.f32 %v1576, %v2041
    %v2362 = vmul.f32 %v1564, %v2045
    %v2363 = vmul.f32 %v1564, %v2049
    %v2364 = vmul.f32 %v1568, %v2045
    %v2365 = vmul.f32 %v1568, %v2049
    %v2366 = vmul.f32 %v1572, %v2045
    %v2367 = vmul.f32 %v1572, %v2049
    %v2368 = vmul.f32 %v1576, %v2045
    %v2369 = vmul.f32 %v1576, %v2049
    %v2370 = vmul.f32 %v1564, %v2053
    %v2371 = vmul.f32 %v1564, %v2057
    %v2372 = vmul.f32 %v1568, %v2053
    %v2373 = vmul.f32 %v1568, %v2057
    %v2374 = vmul.f32 %v1572, %v2053
    %v2375 = vmul.f32 %v1572, %v2057
    %v2376 = vmul.f32 %v1576, %v2053
    %v2377 = vmul.f32 %v1576, %v2057
    %v2378 = vmul.f32 %v1564, %v2061
    %v2379 = vmul.f32 %v1564, %v2065
    %v2380 = vmul.f32 %v1568, %v2061
    %v2381 = vmul.f32 %v1568, %v2065
    %v2382 = vmul.f32 %v1572, %v2061
    %v2383 = vmul.f32 %v1572, %v2065
    %v2384 = vmul.f32 %v1576, %v2061
    %v2385 = vmul.f32 %v1576, %v2065
    %v2386 = vmul.f32 %v1564, %v2069
    %v2387 = vmul.f32 %v1564, %v2073
    %v2388 = vmul.f32 %v1568, %v2069
    %v2389 = vmul.f32 %v1568, %v2073
    %v2390 = vmul.f32 %v1572, %v2069
    %v2391 = vmul.f32 %v1572, %v2073
    %v2392 = vmul.f32 %v1576, %v2069
    %v2393 = vmul.f32 %v1576, %v2073
    %v2394 = vmul.f32 %v1564, %v2077
    %v2395 = vmul.f32 %v1564, %v2081
    %v2396 = vmul.f32 %v1568, %v2077
    %v2397 = vmul.f32 %v1568, %v2081
    %v2398 = vmul.f32 %v1572, %v2077
    %v2399 = vmul.f32 %v1572, %v2081
    %v2400 = vmul.f32 %v1576, %v2077
    %v2401 = vmul.f32 %v1576, %v2081
    %v2402 = vmul.f32 %v1564, %v2085
    %v2403 = vmul.f32 %v1564, %v2089
    %v2404 = vmul.f32 %v1568, %v2085
    %v2405 = vmul.f32 %v1568, %v2089
    %v2406 = vmul.f32 %v1572, %v2085
    %v2407 = vmul.f32 %v1572, %v2089
    %v2408 = vmul.f32 %v1576, %v2085
    %v2409 = vmul.f32 %v1576, %v2089
    %v2410 = vmul.f32 %v1564, %v2093
    %v2411 = vmul.f32 %v1564, %v2097
    %v2412 = vmul.f32 %v1568, %v2093
    %v2413 = vmul.f32 %v1568, %v2097
    %v2414 = vmul.f32 %v1572, %v2093
    %v2415 = vmul.f32 %v1572, %v2097
    %v2416 = vmul.f32 %v1576, %v2093
    %v2417 = vmul.f32 %v1576, %v2097
    %v2418 = vmul.f32 %v1564, %v2101
    %v2419 = vmul.f32 %v1564, %v2105
    %v2420 = vmul.f32 %v1568, %v2101
    %v2421 = vmul.f32 %v1568, %v2105
    %v2422 = vmul.f32 %v1572, %v2101
    %v2423 = vmul.f32 %v1572, %v2105
    %v2424 = vmul.f32 %v1576, %v2101
    %v2425 = vmul.f32 %v1576, %v2105
    %v2426 = vmul.f32 %v1564, %v2109
    %v2427 = vmul.f32 %v1564, %v2113
    %v2428 = vmul.f32 %v1568, %v2109
    %v2429 = vmul.f32 %v1568, %v2113
    %v2430 = vmul.f32 %v1572, %v2109
    %v2431 = vmul.f32 %v1572, %v2113
    %v2432 = vmul.f32 %v1576, %v2109
    %v2433 = vmul.f32 %v1576, %v2113
    %v2434 = vmul.f32 %v1564, %v2117
    %v2435 = vmul.f32 %v1564, %v2121
    %v2436 = vmul.f32 %v1568, %v2117
    %v2437 = vmul.f32 %v1568, %v2121
    %v2438 = vmul.f32 %v1572, %v2117
    %v2439 = vmul.f32 %v1572, %v2121
    %v2440 = vmul.f32 %v1576, %v2117
    %v2441 = vmul.f32 %v1576, %v2121
    %v2442 = vmul.f32 %v1564, %v2125
    %v2443 = vmul.f32 %v1564, %v2129
    %v2444 = vmul.f32 %v1568, %v2125
    %v2445 = vmul.f32 %v1568, %v2129
    %v2446 = vmul.f32 %v1572, %v2125
    %v2447 = vmul.f32 %v1572, %v2129
    %v2448 = vmul.f32 %v1576, %v2125
    %v2449 = vmul.f32 %v1576, %v2129
    %v2450 = vmul.f32 %v1564, %v2133
    %v2451 = vmul.f32 %v1564, %v2137
    %v2452 = vmul.f32 %v1568, %v2133
    %v2453 = vmul.f32 %v1568, %v2137
    %v2454 = vmul.f32 %v1572, %v2133
    %v2455 = vmul.f32 %v1572, %v2137
    %v2456 = vmul.f32 %v1576, %v2133
    %v2457 = vmul.f32 %v1576, %v2137
    %v2458 = vmul.f32 %v1564, %v2141
    %v2459 = vmul.f32 %v1564, %v2145
    %v2460 = vmul.f32 %v1568, %v2141
    %v2461 = vmul.f32 %v1568, %v2145
    %v2462 = vmul.f32 %v1572, %v2141
    %v2463 = vmul.f32 %v1572, %v2145
    %v2464 = vmul.f32 %v1576, %v2141
    %v2465 = vmul.f32 %v1576, %v2145
    %v2466 = vmul.f32 %v1564, %v2149
    %v2467 = vmul.f32 %v1564, %v2153
    %v2468 = vmul.f32 %v1568, %v2149
    %v2469 = vmul.f32 %v1568, %v2153
    %v2470 = vmul.f32 %v1572, %v2149
    %v2471 = vmul.f32 %v1572, %v2153
    %v2472 = vmul.f32 %v1576, %v2149
    %v2473 = vmul.f32 %v1576, %v2153
    %v2474 = vmul.f32 %v1564, %v2157
    %v2475 = vmul.f32 %v1564, %v2161
    %v2476 = vmul.f32 %v1568, %v2157
    %v2477 = vmul.f32 %v1568, %v2161
    %v2478 = vmul.f32 %v1572, %v2157
    %v2479 = vmul.f32 %v1572, %v2161
    %v2480 = vmul.f32 %v1576, %v2157
    %v2481 = vmul.f32 %v1576, %v2161
    %v2482 = vmul.f32 %v1564, %v2165
    %v2483 = vmul.f32 %v1564, %v2169
    %v2484 = vmul.f32 %v1568, %v2165
    %v2485 = vmul.f32 %v1568, %v2169
    %v2486 = vmul.f32 %v1572, %v2165
    %v2487 = vmul.f32 %v1572, %v2169
    %v2488 = vmul.f32 %v1576, %v2165
    %v2489 = vmul.f32 %v1576, %v2169
    %v2490 = vmul.f32 %v1564, %v2173
    %v2491 = vmul.f32 %v1564, %v2177
    %v2492 = vmul.f32 %v1568, %v2173
    %v2493 = vmul.f32 %v1568, %v2177
    %v2494 = vmul.f32 %v1572, %v2173
    %v2495 = vmul.f32 %v1572, %v2177
    %v2496 = vmul.f32 %v1576, %v2173
    %v2497 = vmul.f32 %v1576, %v2177
    %v2498 = vmul.f32 %v1564, %v2181
    %v2499 = vmul.f32 %v1564, %v2185
    %v2500 = vmul.f32 %v1568, %v2181
    %v2501 = vmul.f32 %v1568, %v2185
    %v2502 = vmul.f32 %v1572, %v2181
    %v2503 = vmul.f32 %v1572, %v2185
    %v2504 = vmul.f32 %v1576, %v2181
    %v2505 = vmul.f32 %v1576, %v2185
    %v2506 = vmul.f32 %v1564, %v2189
    %v2507 = vmul.f32 %v1564, %v2193
    %v2508 = vmul.f32 %v1568, %v2189
    %v2509 = vmul.f32 %v1568, %v2193
    %v2510 = vmul.f32 %v1572, %v2189
    %v2511 = vmul.f32 %v1572, %v2193
    %v2512 = vmul.f32 %v1576, %v2189
    %v2513 = vmul.f32 %v1576, %v2193
    %v2514 = vmul.f32 %v1564, %v2197
    %v2515 = vmul.f32 %v1564, %v2201
    %v2516 = vmul.f32 %v1568, %v2197
    %v2517 = vmul.f32 %v1568, %v2201
    %v2518 = vmul.f32 %v1572, %v2197
    %v2519 = vmul.f32 %v1572, %v2201
    %v2520 = vmul.f32 %v1576, %v2197
    %v2521 = vmul.f32 %v1576, %v2201
    %v2522 = vmul.f32 %v1564, %v2205
    %v2523 = vmul.f32 %v1564, %v2209
    %v2524 = vmul.f32 %v1568, %v2205
    %v2525 = vmul.f32 %v1568, %v2209
    %v2526 = vmul.f32 %v1572, %v2205
    %v2527 = vmul.f32 %v1572, %v2209
    %v2528 = vmul.f32 %v1576, %v2205
    %v2529 = vmul.f32 %v1576, %v2209
    %v2530 = vmul.f32 %v1564, %v2213
    %v2531 = vmul.f32 %v1564, %v2217
    %v2532 = vmul.f32 %v1568, %v2213
    %v2533 = vmul.f32 %v1568, %v2217
    %v2534 = vmul.f32 %v1572, %v2213
    %v2535 = vmul.f32 %v1572, %v2217
    %v2536 = vmul.f32 %v1576, %v2213
    %v2537 = vmul.f32 %v1576, %v2217
    %v2538 = vmul.f32 %v1564, %v2221
    %v2539 = vmul.f32 %v1564, %v2225
    %v2540 = vmul.f32 %v1568, %v2221
    %v2541 = vmul.f32 %v1568, %v2225
    %v2542 = vmul.f32 %v1572, %v2221
    %v2543 = vmul.f32 %v1572, %v2225
    %v2544 = vmul.f32 %v1576, %v2221
    %v2545 = vmul.f32 %v1576, %v2225
    %v2546 = vmul.f32 %v1564, %v2229
    %v2547 = vmul.f32 %v1564, %v2233
    %v2548 = vmul.f32 %v1568, %v2229
    %v2549 = vmul.f32 %v1568, %v2233
    %v2550 = vmul.f32 %v1572, %v2229
    %v2551 = vmul.f32 %v1572, %v2233
    %v2552 = vmul.f32 %v1576, %v2229
    %v2553 = vmul.f32 %v1576, %v2233
    %v2554 = vmul.f32 %v1564, %v2237
    %v2555 = vmul.f32 %v1564, %v2241
    %v2556 = vmul.f32 %v1568, %v2237
    %v2557 = vmul.f32 %v1568, %v2241
    %v2558 = vmul.f32 %v1572, %v2237
    %v2559 = vmul.f32 %v1572, %v2241
    %v2560 = vmul.f32 %v1576, %v2237
    %v2561 = vmul.f32 %v1576, %v2241
    %v2562 = vmul.f32 %v1564, %v2245
    %v2563 = vmul.f32 %v1564, %v2249
    %v2564 = vmul.f32 %v1568, %v2245
    %v2565 = vmul.f32 %v1568, %v2249
    %v2566 = vmul.f32 %v1572, %v2245
    %v2567 = vmul.f32 %v1572, %v2249
    %v2568 = vmul.f32 %v1576, %v2245
    %v2569 = vmul.f32 %v1576, %v2249
    %v2570 = vmul.f32 %v1564, %v2253
    %v2571 = vmul.f32 %v1564, %v2257
    %v2572 = vmul.f32 %v1568, %v2253
    %v2573 = vmul.f32 %v1568, %v2257
    %v2574 = vmul.f32 %v1572, %v2253
    %v2575 = vmul.f32 %v1572, %v2257
    %v2576 = vmul.f32 %v1576, %v2253
    %v2577 = vmul.f32 %v1576, %v2257
    %v2578 = vmul.f32 %v1564, %v2261
    %v2579 = vmul.f32 %v1564, %v2265
    %v2580 = vmul.f32 %v1568, %v2261
    %v2581 = vmul.f32 %v1568, %v2265
    %v2582 = vmul.f32 %v1572, %v2261
    %v2583 = vmul.f32 %v1572, %v2265
    %v2584 = vmul.f32 %v1576, %v2261
    %v2585 = vmul.f32 %v1576, %v2265
    %v2586 = vmul.f32 %v1564, %v2269
    %v2587 = vmul.f32 %v1564, %v2273
    %v2588 = vmul.f32 %v1568, %v2269
    %v2589 = vmul.f32 %v1568, %v2273
    %v2590 = vmul.f32 %v1572, %v2269
    %v2591 = vmul.f32 %v1572, %v2273
    %v2592 = vmul.f32 %v1576, %v2269
    %v2593 = vmul.f32 %v1576, %v2273
    %v2594 = vmul.f32 %v1564, %v2277
    %v2595 = vmul.f32 %v1564, %v2281
    %v2596 = vmul.f32 %v1568, %v2277
    %v2597 = vmul.f32 %v1568, %v2281
    %v2598 = vmul.f32 %v1572, %v2277
    %v2599 = vmul.f32 %v1572, %v2281
    %v2600 = vmul.f32 %v1576, %v2277
    %v2601 = vmul.f32 %v1576, %v2281
    %v2602 = vmul.f32 %v1564, %v2285
    %v2603 = vmul.f32 %v1564, %v2289
    %v2604 = vmul.f32 %v1568, %v2285
    %v2605 = vmul.f32 %v1568, %v2289
    %v2606 = vmul.f32 %v1572, %v2285
    %v2607 = vmul.f32 %v1572, %v2289
    %v2608 = vmul.f32 %v1576, %v2285
    %v2609 = vmul.f32 %v1576, %v2289
    %v2610 = vmul.f32 %v1564, %v2293
    %v2611 = vmul.f32 %v1564, %v2297
    %v2612 = vmul.f32 %v1568, %v2293
    %v2613 = vmul.f32 %v1568, %v2297
    %v2614 = vmul.f32 %v1572, %v2293
    %v2615 = vmul.f32 %v1572, %v2297
    %v2616 = vmul.f32 %v1576, %v2293
    %v2617 = vmul.f32 %v1576, %v2297
    %v2618 = vadd.f32 %v1242, %v2298
    %v2619 = vadd.f32 %v1243, %v2299
    %v2620 = vadd.f32 %v1244, %v2300
    %v2621 = vadd.f32 %v1245, %v2301
    %v2622 = vadd.f32 %v1246, %v2302
    %v2623 = vadd.f32 %v1247, %v2303
    %v2624 = vadd.f32 %v1248, %v2304
    %v2625 = vadd.f32 %v1249, %v2305
    %v2626 = vadd.f32 %v1250, %v2306
    %v2627 = vadd.f32 %v1251, %v2307
    %v2628 = vadd.f32 %v1252, %v2308
    %v2629 = vadd.f32 %v1253, %v2309
    %v2630 = vadd.f32 %v1254, %v2310
    %v2631 = vadd.f32 %v1255, %v2311
    %v2632 = vadd.f32 %v1256, %v2312
    %v2633 = vadd.f32 %v1257, %v2313
    %v2634 = vadd.f32 %v1258, %v2314
    %v2635 = vadd.f32 %v1259, %v2315
    %v2636 = vadd.f32 %v1260, %v2316
    %v2637 = vadd.f32 %v1261, %v2317
    %v2638 = vadd.f32 %v1262, %v2318
    %v2639 = vadd.f32 %v1263, %v2319
    %v2640 = vadd.f32 %v1264, %v2320
    %v2641 = vadd.f32 %v1265, %v2321
    %v2642 = vadd.f32 %v1266, %v2322
    %v2643 = vadd.f32 %v1267, %v2323
    %v2644 = vadd.f32 %v1268, %v2324
    %v2645 = vadd.f32 %v1269, %v2325
    %v2646 = vadd.f32 %v1270, %v2326
    %v2647 = vadd.f32 %v1271, %v2327
    %v2648 = vadd.f32 %v1272, %v2328
    %v2649 = vadd.f32 %v1273, %v2329
    %v2650 = vadd.f32 %v1274, %v2330
    %v2651 = vadd.f32 %v1275, %v2331
    %v2652 = vadd.f32 %v1276, %v2332
    %v2653 = vadd.f32 %v1277, %v2333
    %v2654 = vadd.f32 %v1278, %v2334
    %v2655 = vadd.f32 %v1279, %v2335
    %v2656 = vadd.f32 %v1280, %v2336
    %v2657 = vadd.f32 %v1281, %v2337
    %v2658 = vadd.f32 %v1282, %v2338
    %v2659 = vadd.f32 %v1283, %v2339
    %v2660 = vadd.f32 %v1284, %v2340
    %v2661 = vadd.f32 %v1285, %v2341
    %v2662 = vadd.f32 %v1286, %v2342
    %v2663 = vadd.f32 %v1287, %v2343
    %v2664 = vadd.f32 %v1288, %v2344
    %v2665 = vadd.f32 %v1289, %v2345
    %v2666 = vadd.f32 %v1290, %v2346
    %v2667 = vadd.f32 %v1291, %v2347
    %v2668 = vadd.f32 %v1292, %v2348
    %v2669 = vadd.f32 %v1293, %v2349
    %v2670 = vadd.f32 %v1294, %v2350
    %v2671 = vadd.f32 %v1295, %v2351
    %v2672 = vadd.f32 %v1296, %v2352
    %v2673 = vadd.f32 %v1297, %v2353
    %v2674 = vadd.f32 %v1298, %v2354
    %v2675 = vadd.f32 %v1299, %v2355
    %v2676 = vadd.f32 %v1300, %v2356
    %v2677 = vadd.f32 %v1301, %v2357
    %v2678 = vadd.f32 %v1302, %v2358
    %v2679 = vadd.f32 %v1303, %v2359
    %v2680 = vadd.f32 %v1304, %v2360
    %v2681 = vadd.f32 %v1305, %v2361
    %v2682 = vadd.f32 %v1306, %v2362
    %v2683 = vadd.f32 %v1307, %v2363
    %v2684 = vadd.f32 %v1308, %v2364
    %v2685 = vadd.f32 %v1309, %v2365
    %v2686 = vadd.f32 %v1310, %v2366
    %v2687 = vadd.f32 %v1311, %v2367
    %v2688 = vadd.f32 %v1312, %v2368
    %v2689 = vadd.f32 %v1313, %v2369
    %v2690 = vadd.f32 %v1314, %v2370
    %v2691 = vadd.f32 %v1315, %v2371
    %v2692 = vadd.f32 %v1316, %v2372
    %v2693 = vadd.f32 %v1317, %v2373
    %v2694 = vadd.f32 %v1318, %v2374
    %v2695 = vadd.f32 %v1319, %v2375
    %v2696 = vadd.f32 %v1320, %v2376
    %v2697 = vadd.f32 %v1321, %v2377
    %v2698 = vadd.f32 %v1322, %v2378
    %v2699 = vadd.f32 %v1323, %v2379
    %v2700 = vadd.f32 %v1324, %v2380
    %v2701 = vadd.f32 %v1325, %v2381
    %v2702 = vadd.f32 %v1326, %v2382
    %v2703 = vadd.f32 %v1327, %v2383
    %v2704 = vadd.f32 %v1328, %v2384
    %v2705 = vadd.f32 %v1329, %v2385
    %v2706 = vadd.f32 %v1330, %v2386
    %v2707 = vadd.f32 %v1331, %v2387
    %v2708 = vadd.f32 %v1332, %v2388
    %v2709 = vadd.f32 %v1333, %v2389
    %v2710 = vadd.f32 %v1334, %v2390
    %v2711 = vadd.f32 %v1335, %v2391
    %v2712 = vadd.f32 %v1336, %v2392
    %v2713 = vadd.f32 %v1337, %v2393
    %v2714 = vadd.f32 %v1338, %v2394
    %v2715 = vadd.f32 %v1339, %v2395
    %v2716 = vadd.f32 %v1340, %v2396
    %v2717 = vadd.f32 %v1341, %v2397
    %v2718 = vadd.f32 %v1342, %v2398
    %v2719 = vadd.f32 %v1343, %v2399
    %v2720 = vadd.f32 %v1344, %v2400
    %v2721 = vadd.f32 %v1345, %v2401
    %v2722 = vadd.f32 %v1346, %v2402
    %v2723 = vadd.f32 %v1347, %v2403
    %v2724 = vadd.f32 %v1348, %v2404
    %v2725 = vadd.f32 %v1349, %v2405
    %v2726 = vadd.f32 %v1350, %v2406
    %v2727 = vadd.f32 %v1351, %v2407
    %v2728 = vadd.f32 %v1352, %v2408
    %v2729 = vadd.f32 %v1353, %v2409
    %v2730 = vadd.f32 %v1354, %v2410
    %v2731 = vadd.f32 %v1355, %v2411
    %v2732 = vadd.f32 %v1356, %v2412
    %v2733 = vadd.f32 %v1357, %v2413
    %v2734 = vadd.f32 %v1358, %v2414
    %v2735 = vadd.f32 %v1359, %v2415
    %v2736 = vadd.f32 %v1360, %v2416
    %v2737 = vadd.f32 %v1361, %v2417
    %v2738 = vadd.f32 %v1362, %v2418
    %v2739 = vadd.f32 %v1363, %v2419
    %v2740 = vadd.f32 %v1364, %v2420
    %v2741 = vadd.f32 %v1365, %v2421
    %v2742 = vadd.f32 %v1366, %v2422
    %v2743 = vadd.f32 %v1367, %v2423
    %v2744 = vadd.f32 %v1368, %v2424
    %v2745 = vadd.f32 %v1369, %v2425
    %v2746 = vadd.f32 %v1370, %v2426
    %v2747 = vadd.f32 %v1371, %v2427
    %v2748 = vadd.f32 %v1372, %v2428
    %v2749 = vadd.f32 %v1373, %v2429
    %v2750 = vadd.f32 %v1374, %v2430
    %v2751 = vadd.f32 %v1375, %v2431
    %v2752 = vadd.f32 %v1376, %v2432
    %v2753 = vadd.f32 %v1377, %v2433
    %v2754 = vadd.f32 %v1378, %v2434
    %v2755 = vadd.f32 %v1379, %v2435
    %v2756 = vadd.f32 %v1380, %v2436
    %v2757 = vadd.f32 %v1381, %v2437
    %v2758 = vadd.f32 %v1382, %v2438
    %v2759 = vadd.f32 %v1383, %v2439
    %v2760 = vadd.f32 %v1384, %v2440
    %v2761 = vadd.f32 %v1385, %v2441
    %v2762 = vadd.f32 %v1386, %v2442
    %v2763 = vadd.f32 %v1387, %v2443
    %v2764 = vadd.f32 %v1388, %v2444
    %v2765 = vadd.f32 %v1389, %v2445
    %v2766 = vadd.f32 %v1390, %v2446
    %v2767 = vadd.f32 %v1391, %v2447
    %v2768 = vadd.f32 %v1392, %v2448
    %v2769 = vadd.f32 %v1393, %v2449
    %v2770 = vadd.f32 %v1394, %v2450
    %v2771 = vadd.f32 %v1395, %v2451
    %v2772 = vadd.f32 %v1396, %v2452
    %v2773 = vadd.f32 %v1397, %v2453
    %v2774 = vadd.f32 %v1398, %v2454
    %v2775 = vadd.f32 %v1399, %v2455
    %v2776 = vadd.f32 %v1400, %v2456
    %v2777 = vadd.f32 %v1401, %v2457
    %v2778 = vadd.f32 %v1402, %v2458
    %v2779 = vadd.f32 %v1403, %v2459
    %v2780 = vadd.f32 %v1404, %v2460
    %v2781 = vadd.f32 %v1405, %v2461
    %v2782 = vadd.f32 %v1406, %v2462
    %v2783 = vadd.f32 %v1407, %v2463
    %v2784 = vadd.f32 %v1408, %v2464
    %v2785 = vadd.f32 %v1409, %v2465
    %v2786 = vadd.f32 %v1410, %v2466
    %v2787 = vadd.f32 %v1411, %v2467
    %v2788 = vadd.f32 %v1412, %v2468
    %v2789 = vadd.f32 %v1413, %v2469
    %v2790 = vadd.f32 %v1414, %v2470
    %v2791 = vadd.f32 %v1415, %v2471
    %v2792 = vadd.f32 %v1416, %v2472
    %v2793 = vadd.f32 %v1417, %v2473
    %v2794 = vadd.f32 %v1418, %v2474
    %v2795 = vadd.f32 %v1419, %v2475
    %v2796 = vadd.f32 %v1420, %v2476
    %v2797 = vadd.f32 %v1421, %v2477
    %v2798 = vadd.f32 %v1422, %v2478
    %v2799 = vadd.f32 %v1423, %v2479
    %v2800 = vadd.f32 %v1424, %v2480
    %v2801 = vadd.f32 %v1425, %v2481
    %v2802 = vadd.f32 %v1426, %v2482
    %v2803 = vadd.f32 %v1427, %v2483
    %v2804 = vadd.f32 %v1428, %v2484
    %v2805 = vadd.f32 %v1429, %v2485
    %v2806 = vadd.f32 %v1430, %v2486
    %v2807 = vadd.f32 %v1431, %v2487
    %v2808 = vadd.f32 %v1432, %v2488
    %v2809 = vadd.f32 %v1433, %v2489
    %v2810 = vadd.f32 %v1434, %v2490
    %v2811 = vadd.f32 %v1435, %v2491
    %v2812 = vadd.f32 %v1436, %v2492
    %v2813 = vadd.f32 %v1437, %v2493
    %v2814 = vadd.f32 %v1438, %v2494
    %v2815 = vadd.f32 %v1439, %v2495
    %v2816 = vadd.f32 %v1440, %v2496
    %v2817 = vadd.f32 %v1441, %v2497
    %v2818 = vadd.f32 %v1442, %v2498
    %v2819 = vadd.f32 %v1443, %v2499
    %v2820 = vadd.f32 %v1444, %v2500
    %v2821 = vadd.f32 %v1445, %v2501
    %v2822 = vadd.f32 %v1446, %v2502
    %v2823 = vadd.f32 %v1447, %v2503
    %v2824 = vadd.f32 %v1448, %v2504
    %v2825 = vadd.f32 %v1449, %v2505
    %v2826 = vadd.f32 %v1450, %v2506
    %v2827 = vadd.f32 %v1451, %v2507
    %v2828 = vadd.f32 %v1452, %v2508
    %v2829 = vadd.f32 %v1453, %v2509
    %v2830 = vadd.f32 %v1454, %v2510
    %v2831 = vadd.f32 %v1455, %v2511
    %v2832 = vadd.f32 %v1456, %v2512
    %v2833 = vadd.f32 %v1457, %v2513
    %v2834 = vadd.f32 %v1458, %v2514
    %v2835 = vadd.f32 %v1459, %v2515
    %v2836 = vadd.f32 %v1460, %v2516
    %v2837 = vadd.f32 %v1461, %v2517
    %v2838 = vadd.f32 %v1462, %v2518
    %v2839 = vadd.f32 %v1463, %v2519
    %v2840 = vadd.f32 %v1464, %v2520
    %v2841 = vadd.f32 %v1465, %v2521
    %v2842 = vadd.f32 %v1466, %v2522
    %v2843 = vadd.f32 %v1467, %v2523
    %v2844 = vadd.f32 %v1468, %v2524
    %v2845 = vadd.f32 %v1469, %v2525
    %v2846 = vadd.f32 %v1470, %v2526
    %v2847 = vadd.f32 %v1471, %v2527
    %v2848 = vadd.f32 %v1472, %v2528
    %v2849 = vadd.f32 %v1473, %v2529
    %v2850 = vadd.f32 %v1474, %v2530
    %v2851 = vadd.f32 %v1475, %v2531
    %v2852 = vadd.f32 %v1476, %v2532
    %v2853 = vadd.f32 %v1477, %v2533
    %v2854 = vadd.f32 %v1478, %v2534
    %v2855 = vadd.f32 %v1479, %v2535
    %v2856 = vadd.f32 %v1480, %v2536
    %v2857 = vadd.f32 %v1481, %v2537
    %v2858 = vadd.f32 %v1482, %v2538
    %v2859 = vadd.f32 %v1483, %v2539
    %v2860 = vadd.f32 %v1484, %v2540
    %v2861 = vadd.f32 %v1485, %v2541
    %v2862 = vadd.f32 %v1486, %v2542
    %v2863 = vadd.f32 %v1487, %v2543
    %v2864 = vadd.f32 %v1488, %v2544
    %v2865 = vadd.f32 %v1489, %v2545
    %v2866 = vadd.f32 %v1490, %v2546
    %v2867 = vadd.f32 %v1491, %v2547
    %v2868 = vadd.f32 %v1492, %v2548
    %v2869 = vadd.f32 %v1493, %v2549
    %v2870 = vadd.f32 %v1494, %v2550
    %v2871 = vadd.f32 %v1495, %v2551
    %v2872 = vadd.f32 %v1496, %v2552
    %v2873 = vadd.f32 %v1497, %v2553
    %v2874 = vadd.f32 %v1498, %v2554
    %v2875 = vadd.f32 %v1499, %v2555
    %v2876 = vadd.f32 %v1500, %v2556
    %v2877 = vadd.f32 %v1501, %v2557
    %v2878 = vadd.f32 %v1502, %v2558
    %v2879 = vadd.f32 %v1503, %v2559
    %v2880 = vadd.f32 %v1504, %v2560
    %v2881 = vadd.f32 %v1505, %v2561
    %v2882 = vadd.f32 %v1506, %v2562
    %v2883 = vadd.f32 %v1507, %v2563
    %v2884 = vadd.f32 %v1508, %v2564
    %v2885 = vadd.f32 %v1509, %v2565
    %v2886 = vadd.f32 %v1510, %v2566
    %v2887 = vadd.f32 %v1511, %v2567
    %v2888 = vadd.f32 %v1512, %v2568
    %v2889 = vadd.f32 %v1513, %v2569
    %v2890 = vadd.f32 %v1514, %v2570
    %v2891 = vadd.f32 %v1515, %v2571
    %v2892 = vadd.f32 %v1516, %v2572
    %v2893 = vadd.f32 %v1517, %v2573
    %v2894 = vadd.f32 %v1518, %v2574
    %v2895 = vadd.f32 %v1519, %v2575
    %v2896 = vadd.f32 %v1520, %v2576
    %v2897 = vadd.f32 %v1521, %v2577
    %v2898 = vadd.f32 %v1522, %v2578
    %v2899 = vadd.f32 %v1523, %v2579
    %v2900 = vadd.f32 %v1524, %v2580
    %v2901 = vadd.f32 %v1525, %v2581
    %v2902 = vadd.f32 %v1526, %v2582
    %v2903 = vadd.f32 %v1527, %v2583
    %v2904 = vadd.f32 %v1528, %v2584
    %v2905 = vadd.f32 %v1529, %v2585
    %v2906 = vadd.f32 %v1530, %v2586
    %v2907 = vadd.f32 %v1531, %v2587
    %v2908 = vadd.f32 %v1532, %v2588
    %v2909 = vadd.f32 %v1533, %v2589
    %v2910 = vadd.f32 %v1534, %v2590
    %v2911 = vadd.f32 %v1535, %v2591
    %v2912 = vadd.f32 %v1536, %v2592
    %v2913 = vadd.f32 %v1537, %v2593
    %v2914 = vadd.f32 %v1538, %v2594
    %v2915 = vadd.f32 %v1539, %v2595
    %v2916 = vadd.f32 %v1540, %v2596
    %v2917 = vadd.f32 %v1541, %v2597
    %v2918 = vadd.f32 %v1542, %v2598
    %v2919 = vadd.f32 %v1543, %v2599
    %v2920 = vadd.f32 %v1544, %v2600
    %v2921 = vadd.f32 %v1545, %v2601
    %v2922 = vadd.f32 %v1546, %v2602
    %v2923 = vadd.f32 %v1547, %v2603
    %v2924 = vadd.f32 %v1548, %v2604
    %v2925 = vadd.f32 %v1549, %v2605
    %v2926 = vadd.f32 %v1550, %v2606
    %v2927 = vadd.f32 %v1551, %v2607
    %v2928 = vadd.f32 %v1552, %v2608
    %v2929 = vadd.f32 %v1553, %v2609
    %v2930 = vadd.f32 %v1554, %v2610
    %v2931 = vadd.f32 %v1555, %v2611
    %v2932 = vadd.f32 %v1556, %v2612
    %v2933 = vadd.f32 %v1557, %v2613
    %v2934 = vadd.f32 %v1558, %v2614
    %v2935 = vadd.f32 %v1559, %v2615
    %v2936 = vadd.f32 %v1560, %v2616
    %v2937 = vadd.f32 %v1561, %v2617
    %2938 = vset.pattern.permute.xlu0 2
    %2939 = vperm.xlu0 %2938, %v118
    %v2940 = vpop.permute.xlu0 %2939
    %2942 = vset.pattern.permute.xlu0 2
    %2943 = vperm.xlu0 %2942, %v119
    %v2944 = vpop.permute.xlu0 %2943
    %2946 = vset.pattern.permute.xlu0 2
    %2947 = vperm.xlu0 %2946, %v120
    %v2948 = vpop.permute.xlu0 %2947
    %2950 = vset.pattern.permute.xlu0 2
    %2951 = vperm.xlu0 %2950, %v121
    %v2952 = vpop.permute.xlu0 %2951
    %v2954 = vlaneseq
    %v2955 = vshrl.u32 %v2954, 7
    %v2956 = vsub.s32 2, %v2955
    %v2957 = vrot.slane %v78, %v2956
    %v2958 = vlaneseq
    %v2959 = vshrl.u32 %v2958, 7
    %v2960 = vsub.s32 6, %v2959
    %v2961 = vrot.slane %v78, %v2960
    %v2962 = vlaneseq
    %v2963 = vshrl.u32 %v2962, 7
    %v2964 = vsub.s32 2, %v2963
    %v2965 = vrot.slane %v79, %v2964
    %v2966 = vlaneseq
    %v2967 = vshrl.u32 %v2966, 7
    %v2968 = vsub.s32 6, %v2967
    %v2969 = vrot.slane %v79, %v2968
    %v2970 = vlaneseq
    %v2971 = vshrl.u32 %v2970, 7
    %v2972 = vsub.s32 2, %v2971
    %v2973 = vrot.slane %v80, %v2972
    %v2974 = vlaneseq
    %v2975 = vshrl.u32 %v2974, 7
    %v2976 = vsub.s32 6, %v2975
    %v2977 = vrot.slane %v80, %v2976
    %v2978 = vlaneseq
    %v2979 = vshrl.u32 %v2978, 7
    %v2980 = vsub.s32 2, %v2979
    %v2981 = vrot.slane %v81, %v2980
    %v2982 = vlaneseq
    %v2983 = vshrl.u32 %v2982, 7
    %v2984 = vsub.s32 6, %v2983
    %v2985 = vrot.slane %v81, %v2984
    %v2986 = vlaneseq
    %v2987 = vshrl.u32 %v2986, 7
    %v2988 = vsub.s32 2, %v2987
    %v2989 = vrot.slane %v82, %v2988
    %v2990 = vlaneseq
    %v2991 = vshrl.u32 %v2990, 7
    %v2992 = vsub.s32 6, %v2991
    %v2993 = vrot.slane %v82, %v2992
    %v2994 = vlaneseq
    %v2995 = vshrl.u32 %v2994, 7
    %v2996 = vsub.s32 2, %v2995
    %v2997 = vrot.slane %v83, %v2996
    %v2998 = vlaneseq
    %v2999 = vshrl.u32 %v2998, 7
    %v3000 = vsub.s32 6, %v2999
    %v3001 = vrot.slane %v83, %v3000
    %v3002 = vlaneseq
    %v3003 = vshrl.u32 %v3002, 7
    %v3004 = vsub.s32 2, %v3003
    %v3005 = vrot.slane %v84, %v3004
    %v3006 = vlaneseq
    %v3007 = vshrl.u32 %v3006, 7
    %v3008 = vsub.s32 6, %v3007
    %v3009 = vrot.slane %v84, %v3008
    %v3010 = vlaneseq
    %v3011 = vshrl.u32 %v3010, 7
    %v3012 = vsub.s32 2, %v3011
    %v3013 = vrot.slane %v85, %v3012
    %v3014 = vlaneseq
    %v3015 = vshrl.u32 %v3014, 7
    %v3016 = vsub.s32 6, %v3015
    %v3017 = vrot.slane %v85, %v3016
    %v3018 = vlaneseq
    %v3019 = vshrl.u32 %v3018, 7
    %v3020 = vsub.s32 2, %v3019
    %v3021 = vrot.slane %v86, %v3020
    %v3022 = vlaneseq
    %v3023 = vshrl.u32 %v3022, 7
    %v3024 = vsub.s32 6, %v3023
    %v3025 = vrot.slane %v86, %v3024
    %v3026 = vlaneseq
    %v3027 = vshrl.u32 %v3026, 7
    %v3028 = vsub.s32 2, %v3027
    %v3029 = vrot.slane %v87, %v3028
    %v3030 = vlaneseq
    %v3031 = vshrl.u32 %v3030, 7
    %v3032 = vsub.s32 6, %v3031
    %v3033 = vrot.slane %v87, %v3032
    %v3034 = vlaneseq
    %v3035 = vshrl.u32 %v3034, 7
    %v3036 = vsub.s32 2, %v3035
    %v3037 = vrot.slane %v88, %v3036
    %v3038 = vlaneseq
    %v3039 = vshrl.u32 %v3038, 7
    %v3040 = vsub.s32 6, %v3039
    %v3041 = vrot.slane %v88, %v3040
    %v3042 = vlaneseq
    %v3043 = vshrl.u32 %v3042, 7
    %v3044 = vsub.s32 2, %v3043
    %v3045 = vrot.slane %v89, %v3044
    %v3046 = vlaneseq
    %v3047 = vshrl.u32 %v3046, 7
    %v3048 = vsub.s32 6, %v3047
    %v3049 = vrot.slane %v89, %v3048
    %v3050 = vlaneseq
    %v3051 = vshrl.u32 %v3050, 7
    %v3052 = vsub.s32 2, %v3051
    %v3053 = vrot.slane %v90, %v3052
    %v3054 = vlaneseq
    %v3055 = vshrl.u32 %v3054, 7
    %v3056 = vsub.s32 6, %v3055
    %v3057 = vrot.slane %v90, %v3056
    %v3058 = vlaneseq
    %v3059 = vshrl.u32 %v3058, 7
    %v3060 = vsub.s32 2, %v3059
    %v3061 = vrot.slane %v91, %v3060
    %v3062 = vlaneseq
    %v3063 = vshrl.u32 %v3062, 7
    %v3064 = vsub.s32 6, %v3063
    %v3065 = vrot.slane %v91, %v3064
    %v3066 = vlaneseq
    %v3067 = vshrl.u32 %v3066, 7
    %v3068 = vsub.s32 2, %v3067
    %v3069 = vrot.slane %v92, %v3068
    %v3070 = vlaneseq
    %v3071 = vshrl.u32 %v3070, 7
    %v3072 = vsub.s32 6, %v3071
    %v3073 = vrot.slane %v92, %v3072
    %v3074 = vlaneseq
    %v3075 = vshrl.u32 %v3074, 7
    %v3076 = vsub.s32 2, %v3075
    %v3077 = vrot.slane %v93, %v3076
    %v3078 = vlaneseq
    %v3079 = vshrl.u32 %v3078, 7
    %v3080 = vsub.s32 6, %v3079
    %v3081 = vrot.slane %v93, %v3080
    %v3082 = vlaneseq
    %v3083 = vshrl.u32 %v3082, 7
    %v3084 = vsub.s32 2, %v3083
    %v3085 = vrot.slane %v94, %v3084
    %v3086 = vlaneseq
    %v3087 = vshrl.u32 %v3086, 7
    %v3088 = vsub.s32 6, %v3087
    %v3089 = vrot.slane %v94, %v3088
    %v3090 = vlaneseq
    %v3091 = vshrl.u32 %v3090, 7
    %v3092 = vsub.s32 2, %v3091
    %v3093 = vrot.slane %v95, %v3092
    %v3094 = vlaneseq
    %v3095 = vshrl.u32 %v3094, 7
    %v3096 = vsub.s32 6, %v3095
    %v3097 = vrot.slane %v95, %v3096
    %v3098 = vlaneseq
    %v3099 = vshrl.u32 %v3098, 7
    %v3100 = vsub.s32 2, %v3099
    %v3101 = vrot.slane %v96, %v3100
    %v3102 = vlaneseq
    %v3103 = vshrl.u32 %v3102, 7
    %v3104 = vsub.s32 6, %v3103
    %v3105 = vrot.slane %v96, %v3104
    %v3106 = vlaneseq
    %v3107 = vshrl.u32 %v3106, 7
    %v3108 = vsub.s32 2, %v3107
    %v3109 = vrot.slane %v97, %v3108
    %v3110 = vlaneseq
    %v3111 = vshrl.u32 %v3110, 7
    %v3112 = vsub.s32 6, %v3111
    %v3113 = vrot.slane %v97, %v3112
    %v3114 = vlaneseq
    %v3115 = vshrl.u32 %v3114, 7
    %v3116 = vsub.s32 2, %v3115
    %v3117 = vrot.slane %v98, %v3116
    %v3118 = vlaneseq
    %v3119 = vshrl.u32 %v3118, 7
    %v3120 = vsub.s32 6, %v3119
    %v3121 = vrot.slane %v98, %v3120
    %v3122 = vlaneseq
    %v3123 = vshrl.u32 %v3122, 7
    %v3124 = vsub.s32 2, %v3123
    %v3125 = vrot.slane %v99, %v3124
    %v3126 = vlaneseq
    %v3127 = vshrl.u32 %v3126, 7
    %v3128 = vsub.s32 6, %v3127
    %v3129 = vrot.slane %v99, %v3128
    %v3130 = vlaneseq
    %v3131 = vshrl.u32 %v3130, 7
    %v3132 = vsub.s32 2, %v3131
    %v3133 = vrot.slane %v100, %v3132
    %v3134 = vlaneseq
    %v3135 = vshrl.u32 %v3134, 7
    %v3136 = vsub.s32 6, %v3135
    %v3137 = vrot.slane %v100, %v3136
    %v3138 = vlaneseq
    %v3139 = vshrl.u32 %v3138, 7
    %v3140 = vsub.s32 2, %v3139
    %v3141 = vrot.slane %v101, %v3140
    %v3142 = vlaneseq
    %v3143 = vshrl.u32 %v3142, 7
    %v3144 = vsub.s32 6, %v3143
    %v3145 = vrot.slane %v101, %v3144
    %v3146 = vlaneseq
    %v3147 = vshrl.u32 %v3146, 7
    %v3148 = vsub.s32 2, %v3147
    %v3149 = vrot.slane %v102, %v3148
    %v3150 = vlaneseq
    %v3151 = vshrl.u32 %v3150, 7
    %v3152 = vsub.s32 6, %v3151
    %v3153 = vrot.slane %v102, %v3152
    %v3154 = vlaneseq
    %v3155 = vshrl.u32 %v3154, 7
    %v3156 = vsub.s32 2, %v3155
    %v3157 = vrot.slane %v103, %v3156
    %v3158 = vlaneseq
    %v3159 = vshrl.u32 %v3158, 7
    %v3160 = vsub.s32 6, %v3159
    %v3161 = vrot.slane %v103, %v3160
    %v3162 = vlaneseq
    %v3163 = vshrl.u32 %v3162, 7
    %v3164 = vsub.s32 2, %v3163
    %v3165 = vrot.slane %v104, %v3164
    %v3166 = vlaneseq
    %v3167 = vshrl.u32 %v3166, 7
    %v3168 = vsub.s32 6, %v3167
    %v3169 = vrot.slane %v104, %v3168
    %v3170 = vlaneseq
    %v3171 = vshrl.u32 %v3170, 7
    %v3172 = vsub.s32 2, %v3171
    %v3173 = vrot.slane %v105, %v3172
    %v3174 = vlaneseq
    %v3175 = vshrl.u32 %v3174, 7
    %v3176 = vsub.s32 6, %v3175
    %v3177 = vrot.slane %v105, %v3176
    %v3178 = vlaneseq
    %v3179 = vshrl.u32 %v3178, 7
    %v3180 = vsub.s32 2, %v3179
    %v3181 = vrot.slane %v106, %v3180
    %v3182 = vlaneseq
    %v3183 = vshrl.u32 %v3182, 7
    %v3184 = vsub.s32 6, %v3183
    %v3185 = vrot.slane %v106, %v3184
    %v3186 = vlaneseq
    %v3187 = vshrl.u32 %v3186, 7
    %v3188 = vsub.s32 2, %v3187
    %v3189 = vrot.slane %v107, %v3188
    %v3190 = vlaneseq
    %v3191 = vshrl.u32 %v3190, 7
    %v3192 = vsub.s32 6, %v3191
    %v3193 = vrot.slane %v107, %v3192
    %v3194 = vlaneseq
    %v3195 = vshrl.u32 %v3194, 7
    %v3196 = vsub.s32 2, %v3195
    %v3197 = vrot.slane %v108, %v3196
    %v3198 = vlaneseq
    %v3199 = vshrl.u32 %v3198, 7
    %v3200 = vsub.s32 6, %v3199
    %v3201 = vrot.slane %v108, %v3200
    %v3202 = vlaneseq
    %v3203 = vshrl.u32 %v3202, 7
    %v3204 = vsub.s32 2, %v3203
    %v3205 = vrot.slane %v109, %v3204
    %v3206 = vlaneseq
    %v3207 = vshrl.u32 %v3206, 7
    %v3208 = vsub.s32 6, %v3207
    %v3209 = vrot.slane %v109, %v3208
    %v3210 = vlaneseq
    %v3211 = vshrl.u32 %v3210, 7
    %v3212 = vsub.s32 2, %v3211
    %v3213 = vrot.slane %v110, %v3212
    %v3214 = vlaneseq
    %v3215 = vshrl.u32 %v3214, 7
    %v3216 = vsub.s32 6, %v3215
    %v3217 = vrot.slane %v110, %v3216
    %v3218 = vlaneseq
    %v3219 = vshrl.u32 %v3218, 7
    %v3220 = vsub.s32 2, %v3219
    %v3221 = vrot.slane %v111, %v3220
    %v3222 = vlaneseq
    %v3223 = vshrl.u32 %v3222, 7
    %v3224 = vsub.s32 6, %v3223
    %v3225 = vrot.slane %v111, %v3224
    %v3226 = vlaneseq
    %v3227 = vshrl.u32 %v3226, 7
    %v3228 = vsub.s32 2, %v3227
    %v3229 = vrot.slane %v112, %v3228
    %v3230 = vlaneseq
    %v3231 = vshrl.u32 %v3230, 7
    %v3232 = vsub.s32 6, %v3231
    %v3233 = vrot.slane %v112, %v3232
    %v3234 = vlaneseq
    %v3235 = vshrl.u32 %v3234, 7
    %v3236 = vsub.s32 2, %v3235
    %v3237 = vrot.slane %v113, %v3236
    %v3238 = vlaneseq
    %v3239 = vshrl.u32 %v3238, 7
    %v3240 = vsub.s32 6, %v3239
    %v3241 = vrot.slane %v113, %v3240
    %v3242 = vlaneseq
    %v3243 = vshrl.u32 %v3242, 7
    %v3244 = vsub.s32 2, %v3243
    %v3245 = vrot.slane %v114, %v3244
    %v3246 = vlaneseq
    %v3247 = vshrl.u32 %v3246, 7
    %v3248 = vsub.s32 6, %v3247
    %v3249 = vrot.slane %v114, %v3248
    %v3250 = vlaneseq
    %v3251 = vshrl.u32 %v3250, 7
    %v3252 = vsub.s32 2, %v3251
    %v3253 = vrot.slane %v115, %v3252
    %v3254 = vlaneseq
    %v3255 = vshrl.u32 %v3254, 7
    %v3256 = vsub.s32 6, %v3255
    %v3257 = vrot.slane %v115, %v3256
    %v3258 = vlaneseq
    %v3259 = vshrl.u32 %v3258, 7
    %v3260 = vsub.s32 2, %v3259
    %v3261 = vrot.slane %v116, %v3260
    %v3262 = vlaneseq
    %v3263 = vshrl.u32 %v3262, 7
    %v3264 = vsub.s32 6, %v3263
    %v3265 = vrot.slane %v116, %v3264
    %v3266 = vlaneseq
    %v3267 = vshrl.u32 %v3266, 7
    %v3268 = vsub.s32 2, %v3267
    %v3269 = vrot.slane %v117, %v3268
    %v3270 = vlaneseq
    %v3271 = vshrl.u32 %v3270, 7
    %v3272 = vsub.s32 6, %v3271
    %v3273 = vrot.slane %v117, %v3272
    %v3354 = vlaneseq
    %v3355 = vshrl.u32 %v3354, 7
    %v3356 = vsub.s32 2, %v3355
    %v3357 = vrot.slane %v2957, %v3356
    %v3358 = vlaneseq
    %v3359 = vshrl.u32 %v3358, 7
    %v3360 = vsub.s32 2, %v3359
    %v3361 = vrot.slane %v2961, %v3360
    %v3362 = vlaneseq
    %v3363 = vshrl.u32 %v3362, 7
    %v3364 = vsub.s32 2, %v3363
    %v3365 = vrot.slane %v2965, %v3364
    %v3366 = vlaneseq
    %v3367 = vshrl.u32 %v3366, 7
    %v3368 = vsub.s32 2, %v3367
    %v3369 = vrot.slane %v2969, %v3368
    %v3370 = vlaneseq
    %v3371 = vshrl.u32 %v3370, 7
    %v3372 = vsub.s32 2, %v3371
    %v3373 = vrot.slane %v2973, %v3372
    %v3374 = vlaneseq
    %v3375 = vshrl.u32 %v3374, 7
    %v3376 = vsub.s32 2, %v3375
    %v3377 = vrot.slane %v2977, %v3376
    %v3378 = vlaneseq
    %v3379 = vshrl.u32 %v3378, 7
    %v3380 = vsub.s32 2, %v3379
    %v3381 = vrot.slane %v2981, %v3380
    %v3382 = vlaneseq
    %v3383 = vshrl.u32 %v3382, 7
    %v3384 = vsub.s32 2, %v3383
    %v3385 = vrot.slane %v2985, %v3384
    %v3386 = vlaneseq
    %v3387 = vshrl.u32 %v3386, 7
    %v3388 = vsub.s32 2, %v3387
    %v3389 = vrot.slane %v2989, %v3388
    %v3390 = vlaneseq
    %v3391 = vshrl.u32 %v3390, 7
    %v3392 = vsub.s32 2, %v3391
    %v3393 = vrot.slane %v2993, %v3392
    %v3394 = vlaneseq
    %v3395 = vshrl.u32 %v3394, 7
    %v3396 = vsub.s32 2, %v3395
    %v3397 = vrot.slane %v2997, %v3396
    %v3398 = vlaneseq
    %v3399 = vshrl.u32 %v3398, 7
    %v3400 = vsub.s32 2, %v3399
    %v3401 = vrot.slane %v3001, %v3400
    %v3402 = vlaneseq
    %v3403 = vshrl.u32 %v3402, 7
    %v3404 = vsub.s32 2, %v3403
    %v3405 = vrot.slane %v3005, %v3404
    %v3406 = vlaneseq
    %v3407 = vshrl.u32 %v3406, 7
    %v3408 = vsub.s32 2, %v3407
    %v3409 = vrot.slane %v3009, %v3408
    %v3410 = vlaneseq
    %v3411 = vshrl.u32 %v3410, 7
    %v3412 = vsub.s32 2, %v3411
    %v3413 = vrot.slane %v3013, %v3412
    %v3414 = vlaneseq
    %v3415 = vshrl.u32 %v3414, 7
    %v3416 = vsub.s32 2, %v3415
    %v3417 = vrot.slane %v3017, %v3416
    %v3418 = vlaneseq
    %v3419 = vshrl.u32 %v3418, 7
    %v3420 = vsub.s32 2, %v3419
    %v3421 = vrot.slane %v3021, %v3420
    %v3422 = vlaneseq
    %v3423 = vshrl.u32 %v3422, 7
    %v3424 = vsub.s32 2, %v3423
    %v3425 = vrot.slane %v3025, %v3424
    %v3426 = vlaneseq
    %v3427 = vshrl.u32 %v3426, 7
    %v3428 = vsub.s32 2, %v3427
    %v3429 = vrot.slane %v3029, %v3428
    %v3430 = vlaneseq
    %v3431 = vshrl.u32 %v3430, 7
    %v3432 = vsub.s32 2, %v3431
    %v3433 = vrot.slane %v3033, %v3432
    %v3434 = vlaneseq
    %v3435 = vshrl.u32 %v3434, 7
    %v3436 = vsub.s32 2, %v3435
    %v3437 = vrot.slane %v3037, %v3436
    %v3438 = vlaneseq
    %v3439 = vshrl.u32 %v3438, 7
    %v3440 = vsub.s32 2, %v3439
    %v3441 = vrot.slane %v3041, %v3440
    %v3442 = vlaneseq
    %v3443 = vshrl.u32 %v3442, 7
    %v3444 = vsub.s32 2, %v3443
    %v3445 = vrot.slane %v3045, %v3444
    %v3446 = vlaneseq
    %v3447 = vshrl.u32 %v3446, 7
    %v3448 = vsub.s32 2, %v3447
    %v3449 = vrot.slane %v3049, %v3448
    %v3450 = vlaneseq
    %v3451 = vshrl.u32 %v3450, 7
    %v3452 = vsub.s32 2, %v3451
    %v3453 = vrot.slane %v3053, %v3452
    %v3454 = vlaneseq
    %v3455 = vshrl.u32 %v3454, 7
    %v3456 = vsub.s32 2, %v3455
    %v3457 = vrot.slane %v3057, %v3456
    %v3458 = vlaneseq
    %v3459 = vshrl.u32 %v3458, 7
    %v3460 = vsub.s32 2, %v3459
    %v3461 = vrot.slane %v3061, %v3460
    %v3462 = vlaneseq
    %v3463 = vshrl.u32 %v3462, 7
    %v3464 = vsub.s32 2, %v3463
    %v3465 = vrot.slane %v3065, %v3464
    %v3466 = vlaneseq
    %v3467 = vshrl.u32 %v3466, 7
    %v3468 = vsub.s32 2, %v3467
    %v3469 = vrot.slane %v3069, %v3468
    %v3470 = vlaneseq
    %v3471 = vshrl.u32 %v3470, 7
    %v3472 = vsub.s32 2, %v3471
    %v3473 = vrot.slane %v3073, %v3472
    %v3474 = vlaneseq
    %v3475 = vshrl.u32 %v3474, 7
    %v3476 = vsub.s32 2, %v3475
    %v3477 = vrot.slane %v3077, %v3476
    %v3478 = vlaneseq
    %v3479 = vshrl.u32 %v3478, 7
    %v3480 = vsub.s32 2, %v3479
    %v3481 = vrot.slane %v3081, %v3480
    %v3482 = vlaneseq
    %v3483 = vshrl.u32 %v3482, 7
    %v3484 = vsub.s32 2, %v3483
    %v3485 = vrot.slane %v3085, %v3484
    %v3486 = vlaneseq
    %v3487 = vshrl.u32 %v3486, 7
    %v3488 = vsub.s32 2, %v3487
    %v3489 = vrot.slane %v3089, %v3488
    %v3490 = vlaneseq
    %v3491 = vshrl.u32 %v3490, 7
    %v3492 = vsub.s32 2, %v3491
    %v3493 = vrot.slane %v3093, %v3492
    %v3494 = vlaneseq
    %v3495 = vshrl.u32 %v3494, 7
    %v3496 = vsub.s32 2, %v3495
    %v3497 = vrot.slane %v3097, %v3496
    %v3498 = vlaneseq
    %v3499 = vshrl.u32 %v3498, 7
    %v3500 = vsub.s32 2, %v3499
    %v3501 = vrot.slane %v3101, %v3500
    %v3502 = vlaneseq
    %v3503 = vshrl.u32 %v3502, 7
    %v3504 = vsub.s32 2, %v3503
    %v3505 = vrot.slane %v3105, %v3504
    %v3506 = vlaneseq
    %v3507 = vshrl.u32 %v3506, 7
    %v3508 = vsub.s32 2, %v3507
    %v3509 = vrot.slane %v3109, %v3508
    %v3510 = vlaneseq
    %v3511 = vshrl.u32 %v3510, 7
    %v3512 = vsub.s32 2, %v3511
    %v3513 = vrot.slane %v3113, %v3512
    %v3514 = vlaneseq
    %v3515 = vshrl.u32 %v3514, 7
    %v3516 = vsub.s32 2, %v3515
    %v3517 = vrot.slane %v3117, %v3516
    %v3518 = vlaneseq
    %v3519 = vshrl.u32 %v3518, 7
    %v3520 = vsub.s32 2, %v3519
    %v3521 = vrot.slane %v3121, %v3520
    %v3522 = vlaneseq
    %v3523 = vshrl.u32 %v3522, 7
    %v3524 = vsub.s32 2, %v3523
    %v3525 = vrot.slane %v3125, %v3524
    %v3526 = vlaneseq
    %v3527 = vshrl.u32 %v3526, 7
    %v3528 = vsub.s32 2, %v3527
    %v3529 = vrot.slane %v3129, %v3528
    %v3530 = vlaneseq
    %v3531 = vshrl.u32 %v3530, 7
    %v3532 = vsub.s32 2, %v3531
    %v3533 = vrot.slane %v3133, %v3532
    %v3534 = vlaneseq
    %v3535 = vshrl.u32 %v3534, 7
    %v3536 = vsub.s32 2, %v3535
    %v3537 = vrot.slane %v3137, %v3536
    %v3538 = vlaneseq
    %v3539 = vshrl.u32 %v3538, 7
    %v3540 = vsub.s32 2, %v3539
    %v3541 = vrot.slane %v3141, %v3540
    %v3542 = vlaneseq
    %v3543 = vshrl.u32 %v3542, 7
    %v3544 = vsub.s32 2, %v3543
    %v3545 = vrot.slane %v3145, %v3544
    %v3546 = vlaneseq
    %v3547 = vshrl.u32 %v3546, 7
    %v3548 = vsub.s32 2, %v3547
    %v3549 = vrot.slane %v3149, %v3548
    %v3550 = vlaneseq
    %v3551 = vshrl.u32 %v3550, 7
    %v3552 = vsub.s32 2, %v3551
    %v3553 = vrot.slane %v3153, %v3552
    %v3554 = vlaneseq
    %v3555 = vshrl.u32 %v3554, 7
    %v3556 = vsub.s32 2, %v3555
    %v3557 = vrot.slane %v3157, %v3556
    %v3558 = vlaneseq
    %v3559 = vshrl.u32 %v3558, 7
    %v3560 = vsub.s32 2, %v3559
    %v3561 = vrot.slane %v3161, %v3560
    %v3562 = vlaneseq
    %v3563 = vshrl.u32 %v3562, 7
    %v3564 = vsub.s32 2, %v3563
    %v3565 = vrot.slane %v3165, %v3564
    %v3566 = vlaneseq
    %v3567 = vshrl.u32 %v3566, 7
    %v3568 = vsub.s32 2, %v3567
    %v3569 = vrot.slane %v3169, %v3568
    %v3570 = vlaneseq
    %v3571 = vshrl.u32 %v3570, 7
    %v3572 = vsub.s32 2, %v3571
    %v3573 = vrot.slane %v3173, %v3572
    %v3574 = vlaneseq
    %v3575 = vshrl.u32 %v3574, 7
    %v3576 = vsub.s32 2, %v3575
    %v3577 = vrot.slane %v3177, %v3576
    %v3578 = vlaneseq
    %v3579 = vshrl.u32 %v3578, 7
    %v3580 = vsub.s32 2, %v3579
    %v3581 = vrot.slane %v3181, %v3580
    %v3582 = vlaneseq
    %v3583 = vshrl.u32 %v3582, 7
    %v3584 = vsub.s32 2, %v3583
    %v3585 = vrot.slane %v3185, %v3584
    %v3586 = vlaneseq
    %v3587 = vshrl.u32 %v3586, 7
    %v3588 = vsub.s32 2, %v3587
    %v3589 = vrot.slane %v3189, %v3588
    %v3590 = vlaneseq
    %v3591 = vshrl.u32 %v3590, 7
    %v3592 = vsub.s32 2, %v3591
    %v3593 = vrot.slane %v3193, %v3592
    %v3594 = vlaneseq
    %v3595 = vshrl.u32 %v3594, 7
    %v3596 = vsub.s32 2, %v3595
    %v3597 = vrot.slane %v3197, %v3596
    %v3598 = vlaneseq
    %v3599 = vshrl.u32 %v3598, 7
    %v3600 = vsub.s32 2, %v3599
    %v3601 = vrot.slane %v3201, %v3600
    %v3602 = vlaneseq
    %v3603 = vshrl.u32 %v3602, 7
    %v3604 = vsub.s32 2, %v3603
    %v3605 = vrot.slane %v3205, %v3604
    %v3606 = vlaneseq
    %v3607 = vshrl.u32 %v3606, 7
    %v3608 = vsub.s32 2, %v3607
    %v3609 = vrot.slane %v3209, %v3608
    %v3610 = vlaneseq
    %v3611 = vshrl.u32 %v3610, 7
    %v3612 = vsub.s32 2, %v3611
    %v3613 = vrot.slane %v3213, %v3612
    %v3614 = vlaneseq
    %v3615 = vshrl.u32 %v3614, 7
    %v3616 = vsub.s32 2, %v3615
    %v3617 = vrot.slane %v3217, %v3616
    %v3618 = vlaneseq
    %v3619 = vshrl.u32 %v3618, 7
    %v3620 = vsub.s32 2, %v3619
    %v3621 = vrot.slane %v3221, %v3620
    %v3622 = vlaneseq
    %v3623 = vshrl.u32 %v3622, 7
    %v3624 = vsub.s32 2, %v3623
    %v3625 = vrot.slane %v3225, %v3624
    %v3626 = vlaneseq
    %v3627 = vshrl.u32 %v3626, 7
    %v3628 = vsub.s32 2, %v3627
    %v3629 = vrot.slane %v3229, %v3628
    %v3630 = vlaneseq
    %v3631 = vshrl.u32 %v3630, 7
    %v3632 = vsub.s32 2, %v3631
    %v3633 = vrot.slane %v3233, %v3632
    %v3634 = vlaneseq
    %v3635 = vshrl.u32 %v3634, 7
    %v3636 = vsub.s32 2, %v3635
    %v3637 = vrot.slane %v3237, %v3636
    %v3638 = vlaneseq
    %v3639 = vshrl.u32 %v3638, 7
    %v3640 = vsub.s32 2, %v3639
    %v3641 = vrot.slane %v3241, %v3640
    %v3642 = vlaneseq
    %v3643 = vshrl.u32 %v3642, 7
    %v3644 = vsub.s32 2, %v3643
    %v3645 = vrot.slane %v3245, %v3644
    %v3646 = vlaneseq
    %v3647 = vshrl.u32 %v3646, 7
    %v3648 = vsub.s32 2, %v3647
    %v3649 = vrot.slane %v3249, %v3648
    %v3650 = vlaneseq
    %v3651 = vshrl.u32 %v3650, 7
    %v3652 = vsub.s32 2, %v3651
    %v3653 = vrot.slane %v3253, %v3652
    %v3654 = vlaneseq
    %v3655 = vshrl.u32 %v3654, 7
    %v3656 = vsub.s32 2, %v3655
    %v3657 = vrot.slane %v3257, %v3656
    %v3658 = vlaneseq
    %v3659 = vshrl.u32 %v3658, 7
    %v3660 = vsub.s32 2, %v3659
    %v3661 = vrot.slane %v3261, %v3660
    %v3662 = vlaneseq
    %v3663 = vshrl.u32 %v3662, 7
    %v3664 = vsub.s32 2, %v3663
    %v3665 = vrot.slane %v3265, %v3664
    %v3666 = vlaneseq
    %v3667 = vshrl.u32 %v3666, 7
    %v3668 = vsub.s32 2, %v3667
    %v3669 = vrot.slane %v3269, %v3668
    %v3670 = vlaneseq
    %v3671 = vshrl.u32 %v3670, 7
    %v3672 = vsub.s32 2, %v3671
    %v3673 = vrot.slane %v3273, %v3672
    %v3674 = vmul.f32 %v2940, %v3357
    %v3675 = vmul.f32 %v2940, %v3361
    %v3676 = vmul.f32 %v2944, %v3357
    %v3677 = vmul.f32 %v2944, %v3361
    %v3678 = vmul.f32 %v2948, %v3357
    %v3679 = vmul.f32 %v2948, %v3361
    %v3680 = vmul.f32 %v2952, %v3357
    %v3681 = vmul.f32 %v2952, %v3361
    %v3682 = vmul.f32 %v2940, %v3365
    %v3683 = vmul.f32 %v2940, %v3369
    %v3684 = vmul.f32 %v2944, %v3365
    %v3685 = vmul.f32 %v2944, %v3369
    %v3686 = vmul.f32 %v2948, %v3365
    %v3687 = vmul.f32 %v2948, %v3369
    %v3688 = vmul.f32 %v2952, %v3365
    %v3689 = vmul.f32 %v2952, %v3369
    %v3690 = vmul.f32 %v2940, %v3373
    %v3691 = vmul.f32 %v2940, %v3377
    %v3692 = vmul.f32 %v2944, %v3373
    %v3693 = vmul.f32 %v2944, %v3377
    %v3694 = vmul.f32 %v2948, %v3373
    %v3695 = vmul.f32 %v2948, %v3377
    %v3696 = vmul.f32 %v2952, %v3373
    %v3697 = vmul.f32 %v2952, %v3377
    %v3698 = vmul.f32 %v2940, %v3381
    %v3699 = vmul.f32 %v2940, %v3385
    %v3700 = vmul.f32 %v2944, %v3381
    %v3701 = vmul.f32 %v2944, %v3385
    %v3702 = vmul.f32 %v2948, %v3381
    %v3703 = vmul.f32 %v2948, %v3385
    %v3704 = vmul.f32 %v2952, %v3381
    %v3705 = vmul.f32 %v2952, %v3385
    %v3706 = vmul.f32 %v2940, %v3389
    %v3707 = vmul.f32 %v2940, %v3393
    %v3708 = vmul.f32 %v2944, %v3389
    %v3709 = vmul.f32 %v2944, %v3393
    %v3710 = vmul.f32 %v2948, %v3389
    %v3711 = vmul.f32 %v2948, %v3393
    %v3712 = vmul.f32 %v2952, %v3389
    %v3713 = vmul.f32 %v2952, %v3393
    %v3714 = vmul.f32 %v2940, %v3397
    %v3715 = vmul.f32 %v2940, %v3401
    %v3716 = vmul.f32 %v2944, %v3397
    %v3717 = vmul.f32 %v2944, %v3401
    %v3718 = vmul.f32 %v2948, %v3397
    %v3719 = vmul.f32 %v2948, %v3401
    %v3720 = vmul.f32 %v2952, %v3397
    %v3721 = vmul.f32 %v2952, %v3401
    %v3722 = vmul.f32 %v2940, %v3405
    %v3723 = vmul.f32 %v2940, %v3409
    %v3724 = vmul.f32 %v2944, %v3405
    %v3725 = vmul.f32 %v2944, %v3409
    %v3726 = vmul.f32 %v2948, %v3405
    %v3727 = vmul.f32 %v2948, %v3409
    %v3728 = vmul.f32 %v2952, %v3405
    %v3729 = vmul.f32 %v2952, %v3409
    %v3730 = vmul.f32 %v2940, %v3413
    %v3731 = vmul.f32 %v2940, %v3417
    %v3732 = vmul.f32 %v2944, %v3413
    %v3733 = vmul.f32 %v2944, %v3417
    %v3734 = vmul.f32 %v2948, %v3413
    %v3735 = vmul.f32 %v2948, %v3417
    %v3736 = vmul.f32 %v2952, %v3413
    %v3737 = vmul.f32 %v2952, %v3417
    %v3738 = vmul.f32 %v2940, %v3421
    %v3739 = vmul.f32 %v2940, %v3425
    %v3740 = vmul.f32 %v2944, %v3421
    %v3741 = vmul.f32 %v2944, %v3425
    %v3742 = vmul.f32 %v2948, %v3421
    %v3743 = vmul.f32 %v2948, %v3425
    %v3744 = vmul.f32 %v2952, %v3421
    %v3745 = vmul.f32 %v2952, %v3425
    %v3746 = vmul.f32 %v2940, %v3429
    %v3747 = vmul.f32 %v2940, %v3433
    %v3748 = vmul.f32 %v2944, %v3429
    %v3749 = vmul.f32 %v2944, %v3433
    %v3750 = vmul.f32 %v2948, %v3429
    %v3751 = vmul.f32 %v2948, %v3433
    %v3752 = vmul.f32 %v2952, %v3429
    %v3753 = vmul.f32 %v2952, %v3433
    %v3754 = vmul.f32 %v2940, %v3437
    %v3755 = vmul.f32 %v2940, %v3441
    %v3756 = vmul.f32 %v2944, %v3437
    %v3757 = vmul.f32 %v2944, %v3441
    %v3758 = vmul.f32 %v2948, %v3437
    %v3759 = vmul.f32 %v2948, %v3441
    %v3760 = vmul.f32 %v2952, %v3437
    %v3761 = vmul.f32 %v2952, %v3441
    %v3762 = vmul.f32 %v2940, %v3445
    %v3763 = vmul.f32 %v2940, %v3449
    %v3764 = vmul.f32 %v2944, %v3445
    %v3765 = vmul.f32 %v2944, %v3449
    %v3766 = vmul.f32 %v2948, %v3445
    %v3767 = vmul.f32 %v2948, %v3449
    %v3768 = vmul.f32 %v2952, %v3445
    %v3769 = vmul.f32 %v2952, %v3449
    %v3770 = vmul.f32 %v2940, %v3453
    %v3771 = vmul.f32 %v2940, %v3457
    %v3772 = vmul.f32 %v2944, %v3453
    %v3773 = vmul.f32 %v2944, %v3457
    %v3774 = vmul.f32 %v2948, %v3453
    %v3775 = vmul.f32 %v2948, %v3457
    %v3776 = vmul.f32 %v2952, %v3453
    %v3777 = vmul.f32 %v2952, %v3457
    %v3778 = vmul.f32 %v2940, %v3461
    %v3779 = vmul.f32 %v2940, %v3465
    %v3780 = vmul.f32 %v2944, %v3461
    %v3781 = vmul.f32 %v2944, %v3465
    %v3782 = vmul.f32 %v2948, %v3461
    %v3783 = vmul.f32 %v2948, %v3465
    %v3784 = vmul.f32 %v2952, %v3461
    %v3785 = vmul.f32 %v2952, %v3465
    %v3786 = vmul.f32 %v2940, %v3469
    %v3787 = vmul.f32 %v2940, %v3473
    %v3788 = vmul.f32 %v2944, %v3469
    %v3789 = vmul.f32 %v2944, %v3473
    %v3790 = vmul.f32 %v2948, %v3469
    %v3791 = vmul.f32 %v2948, %v3473
    %v3792 = vmul.f32 %v2952, %v3469
    %v3793 = vmul.f32 %v2952, %v3473
    %v3794 = vmul.f32 %v2940, %v3477
    %v3795 = vmul.f32 %v2940, %v3481
    %v3796 = vmul.f32 %v2944, %v3477
    %v3797 = vmul.f32 %v2944, %v3481
    %v3798 = vmul.f32 %v2948, %v3477
    %v3799 = vmul.f32 %v2948, %v3481
    %v3800 = vmul.f32 %v2952, %v3477
    %v3801 = vmul.f32 %v2952, %v3481
    %v3802 = vmul.f32 %v2940, %v3485
    %v3803 = vmul.f32 %v2940, %v3489
    %v3804 = vmul.f32 %v2944, %v3485
    %v3805 = vmul.f32 %v2944, %v3489
    %v3806 = vmul.f32 %v2948, %v3485
    %v3807 = vmul.f32 %v2948, %v3489
    %v3808 = vmul.f32 %v2952, %v3485
    %v3809 = vmul.f32 %v2952, %v3489
    %v3810 = vmul.f32 %v2940, %v3493
    %v3811 = vmul.f32 %v2940, %v3497
    %v3812 = vmul.f32 %v2944, %v3493
    %v3813 = vmul.f32 %v2944, %v3497
    %v3814 = vmul.f32 %v2948, %v3493
    %v3815 = vmul.f32 %v2948, %v3497
    %v3816 = vmul.f32 %v2952, %v3493
    %v3817 = vmul.f32 %v2952, %v3497
    %v3818 = vmul.f32 %v2940, %v3501
    %v3819 = vmul.f32 %v2940, %v3505
    %v3820 = vmul.f32 %v2944, %v3501
    %v3821 = vmul.f32 %v2944, %v3505
    %v3822 = vmul.f32 %v2948, %v3501
    %v3823 = vmul.f32 %v2948, %v3505
    %v3824 = vmul.f32 %v2952, %v3501
    %v3825 = vmul.f32 %v2952, %v3505
    %v3826 = vmul.f32 %v2940, %v3509
    %v3827 = vmul.f32 %v2940, %v3513
    %v3828 = vmul.f32 %v2944, %v3509
    %v3829 = vmul.f32 %v2944, %v3513
    %v3830 = vmul.f32 %v2948, %v3509
    %v3831 = vmul.f32 %v2948, %v3513
    %v3832 = vmul.f32 %v2952, %v3509
    %v3833 = vmul.f32 %v2952, %v3513
    %v3834 = vmul.f32 %v2940, %v3517
    %v3835 = vmul.f32 %v2940, %v3521
    %v3836 = vmul.f32 %v2944, %v3517
    %v3837 = vmul.f32 %v2944, %v3521
    %v3838 = vmul.f32 %v2948, %v3517
    %v3839 = vmul.f32 %v2948, %v3521
    %v3840 = vmul.f32 %v2952, %v3517
    %v3841 = vmul.f32 %v2952, %v3521
    %v3842 = vmul.f32 %v2940, %v3525
    %v3843 = vmul.f32 %v2940, %v3529
    %v3844 = vmul.f32 %v2944, %v3525
    %v3845 = vmul.f32 %v2944, %v3529
    %v3846 = vmul.f32 %v2948, %v3525
    %v3847 = vmul.f32 %v2948, %v3529
    %v3848 = vmul.f32 %v2952, %v3525
    %v3849 = vmul.f32 %v2952, %v3529
    %v3850 = vmul.f32 %v2940, %v3533
    %v3851 = vmul.f32 %v2940, %v3537
    %v3852 = vmul.f32 %v2944, %v3533
    %v3853 = vmul.f32 %v2944, %v3537
    %v3854 = vmul.f32 %v2948, %v3533
    %v3855 = vmul.f32 %v2948, %v3537
    %v3856 = vmul.f32 %v2952, %v3533
    %v3857 = vmul.f32 %v2952, %v3537
    %v3858 = vmul.f32 %v2940, %v3541
    %v3859 = vmul.f32 %v2940, %v3545
    %v3860 = vmul.f32 %v2944, %v3541
    %v3861 = vmul.f32 %v2944, %v3545
    %v3862 = vmul.f32 %v2948, %v3541
    %v3863 = vmul.f32 %v2948, %v3545
    %v3864 = vmul.f32 %v2952, %v3541
    %v3865 = vmul.f32 %v2952, %v3545
    %v3866 = vmul.f32 %v2940, %v3549
    %v3867 = vmul.f32 %v2940, %v3553
    %v3868 = vmul.f32 %v2944, %v3549
    %v3869 = vmul.f32 %v2944, %v3553
    %v3870 = vmul.f32 %v2948, %v3549
    %v3871 = vmul.f32 %v2948, %v3553
    %v3872 = vmul.f32 %v2952, %v3549
    %v3873 = vmul.f32 %v2952, %v3553
    %v3874 = vmul.f32 %v2940, %v3557
    %v3875 = vmul.f32 %v2940, %v3561
    %v3876 = vmul.f32 %v2944, %v3557
    %v3877 = vmul.f32 %v2944, %v3561
    %v3878 = vmul.f32 %v2948, %v3557
    %v3879 = vmul.f32 %v2948, %v3561
    %v3880 = vmul.f32 %v2952, %v3557
    %v3881 = vmul.f32 %v2952, %v3561
    %v3882 = vmul.f32 %v2940, %v3565
    %v3883 = vmul.f32 %v2940, %v3569
    %v3884 = vmul.f32 %v2944, %v3565
    %v3885 = vmul.f32 %v2944, %v3569
    %v3886 = vmul.f32 %v2948, %v3565
    %v3887 = vmul.f32 %v2948, %v3569
    %v3888 = vmul.f32 %v2952, %v3565
    %v3889 = vmul.f32 %v2952, %v3569
    %v3890 = vmul.f32 %v2940, %v3573
    %v3891 = vmul.f32 %v2940, %v3577
    %v3892 = vmul.f32 %v2944, %v3573
    %v3893 = vmul.f32 %v2944, %v3577
    %v3894 = vmul.f32 %v2948, %v3573
    %v3895 = vmul.f32 %v2948, %v3577
    %v3896 = vmul.f32 %v2952, %v3573
    %v3897 = vmul.f32 %v2952, %v3577
    %v3898 = vmul.f32 %v2940, %v3581
    %v3899 = vmul.f32 %v2940, %v3585
    %v3900 = vmul.f32 %v2944, %v3581
    %v3901 = vmul.f32 %v2944, %v3585
    %v3902 = vmul.f32 %v2948, %v3581
    %v3903 = vmul.f32 %v2948, %v3585
    %v3904 = vmul.f32 %v2952, %v3581
    %v3905 = vmul.f32 %v2952, %v3585
    %v3906 = vmul.f32 %v2940, %v3589
    %v3907 = vmul.f32 %v2940, %v3593
    %v3908 = vmul.f32 %v2944, %v3589
    %v3909 = vmul.f32 %v2944, %v3593
    %v3910 = vmul.f32 %v2948, %v3589
    %v3911 = vmul.f32 %v2948, %v3593
    %v3912 = vmul.f32 %v2952, %v3589
    %v3913 = vmul.f32 %v2952, %v3593
    %v3914 = vmul.f32 %v2940, %v3597
    %v3915 = vmul.f32 %v2940, %v3601
    %v3916 = vmul.f32 %v2944, %v3597
    %v3917 = vmul.f32 %v2944, %v3601
    %v3918 = vmul.f32 %v2948, %v3597
    %v3919 = vmul.f32 %v2948, %v3601
    %v3920 = vmul.f32 %v2952, %v3597
    %v3921 = vmul.f32 %v2952, %v3601
    %v3922 = vmul.f32 %v2940, %v3605
    %v3923 = vmul.f32 %v2940, %v3609
    %v3924 = vmul.f32 %v2944, %v3605
    %v3925 = vmul.f32 %v2944, %v3609
    %v3926 = vmul.f32 %v2948, %v3605
    %v3927 = vmul.f32 %v2948, %v3609
    %v3928 = vmul.f32 %v2952, %v3605
    %v3929 = vmul.f32 %v2952, %v3609
    %v3930 = vmul.f32 %v2940, %v3613
    %v3931 = vmul.f32 %v2940, %v3617
    %v3932 = vmul.f32 %v2944, %v3613
    %v3933 = vmul.f32 %v2944, %v3617
    %v3934 = vmul.f32 %v2948, %v3613
    %v3935 = vmul.f32 %v2948, %v3617
    %v3936 = vmul.f32 %v2952, %v3613
    %v3937 = vmul.f32 %v2952, %v3617
    %v3938 = vmul.f32 %v2940, %v3621
    %v3939 = vmul.f32 %v2940, %v3625
    %v3940 = vmul.f32 %v2944, %v3621
    %v3941 = vmul.f32 %v2944, %v3625
    %v3942 = vmul.f32 %v2948, %v3621
    %v3943 = vmul.f32 %v2948, %v3625
    %v3944 = vmul.f32 %v2952, %v3621
    %v3945 = vmul.f32 %v2952, %v3625
    %v3946 = vmul.f32 %v2940, %v3629
    %v3947 = vmul.f32 %v2940, %v3633
    %v3948 = vmul.f32 %v2944, %v3629
    %v3949 = vmul.f32 %v2944, %v3633
    %v3950 = vmul.f32 %v2948, %v3629
    %v3951 = vmul.f32 %v2948, %v3633
    %v3952 = vmul.f32 %v2952, %v3629
    %v3953 = vmul.f32 %v2952, %v3633
    %v3954 = vmul.f32 %v2940, %v3637
    %v3955 = vmul.f32 %v2940, %v3641
    %v3956 = vmul.f32 %v2944, %v3637
    %v3957 = vmul.f32 %v2944, %v3641
    %v3958 = vmul.f32 %v2948, %v3637
    %v3959 = vmul.f32 %v2948, %v3641
    %v3960 = vmul.f32 %v2952, %v3637
    %v3961 = vmul.f32 %v2952, %v3641
    %v3962 = vmul.f32 %v2940, %v3645
    %v3963 = vmul.f32 %v2940, %v3649
    %v3964 = vmul.f32 %v2944, %v3645
    %v3965 = vmul.f32 %v2944, %v3649
    %v3966 = vmul.f32 %v2948, %v3645
    %v3967 = vmul.f32 %v2948, %v3649
    %v3968 = vmul.f32 %v2952, %v3645
    %v3969 = vmul.f32 %v2952, %v3649
    %v3970 = vmul.f32 %v2940, %v3653
    %v3971 = vmul.f32 %v2940, %v3657
    %v3972 = vmul.f32 %v2944, %v3653
    %v3973 = vmul.f32 %v2944, %v3657
    %v3974 = vmul.f32 %v2948, %v3653
    %v3975 = vmul.f32 %v2948, %v3657
    %v3976 = vmul.f32 %v2952, %v3653
    %v3977 = vmul.f32 %v2952, %v3657
    %v3978 = vmul.f32 %v2940, %v3661
    %v3979 = vmul.f32 %v2940, %v3665
    %v3980 = vmul.f32 %v2944, %v3661
    %v3981 = vmul.f32 %v2944, %v3665
    %v3982 = vmul.f32 %v2948, %v3661
    %v3983 = vmul.f32 %v2948, %v3665
    %v3984 = vmul.f32 %v2952, %v3661
    %v3985 = vmul.f32 %v2952, %v3665
    %v3986 = vmul.f32 %v2940, %v3669
    %v3987 = vmul.f32 %v2940, %v3673
    %v3988 = vmul.f32 %v2944, %v3669
    %v3989 = vmul.f32 %v2944, %v3673
    %v3990 = vmul.f32 %v2948, %v3669
    %v3991 = vmul.f32 %v2948, %v3673
    %v3992 = vmul.f32 %v2952, %v3669
    %v3993 = vmul.f32 %v2952, %v3673
    %v3994 = vadd.f32 %v2618, %v3674
    %v3995 = vadd.f32 %v2619, %v3675
    %v3996 = vadd.f32 %v2620, %v3676
    %v3997 = vadd.f32 %v2621, %v3677
    %v3998 = vadd.f32 %v2622, %v3678
    %v3999 = vadd.f32 %v2623, %v3679
    %v4000 = vadd.f32 %v2624, %v3680
    %v4001 = vadd.f32 %v2625, %v3681
    %v4002 = vadd.f32 %v2626, %v3682
    %v4003 = vadd.f32 %v2627, %v3683
    %v4004 = vadd.f32 %v2628, %v3684
    %v4005 = vadd.f32 %v2629, %v3685
    %v4006 = vadd.f32 %v2630, %v3686
    %v4007 = vadd.f32 %v2631, %v3687
    %v4008 = vadd.f32 %v2632, %v3688
    %v4009 = vadd.f32 %v2633, %v3689
    %v4010 = vadd.f32 %v2634, %v3690
    %v4011 = vadd.f32 %v2635, %v3691
    %v4012 = vadd.f32 %v2636, %v3692
    %v4013 = vadd.f32 %v2637, %v3693
    %v4014 = vadd.f32 %v2638, %v3694
    %v4015 = vadd.f32 %v2639, %v3695
    %v4016 = vadd.f32 %v2640, %v3696
    %v4017 = vadd.f32 %v2641, %v3697
    %v4018 = vadd.f32 %v2642, %v3698
    %v4019 = vadd.f32 %v2643, %v3699
    %v4020 = vadd.f32 %v2644, %v3700
    %v4021 = vadd.f32 %v2645, %v3701
    %v4022 = vadd.f32 %v2646, %v3702
    %v4023 = vadd.f32 %v2647, %v3703
    %v4024 = vadd.f32 %v2648, %v3704
    %v4025 = vadd.f32 %v2649, %v3705
    %v4026 = vadd.f32 %v2650, %v3706
    %v4027 = vadd.f32 %v2651, %v3707
    %v4028 = vadd.f32 %v2652, %v3708
    %v4029 = vadd.f32 %v2653, %v3709
    %v4030 = vadd.f32 %v2654, %v3710
    %v4031 = vadd.f32 %v2655, %v3711
    %v4032 = vadd.f32 %v2656, %v3712
    %v4033 = vadd.f32 %v2657, %v3713
    %v4034 = vadd.f32 %v2658, %v3714
    %v4035 = vadd.f32 %v2659, %v3715
    %v4036 = vadd.f32 %v2660, %v3716
    %v4037 = vadd.f32 %v2661, %v3717
    %v4038 = vadd.f32 %v2662, %v3718
    %v4039 = vadd.f32 %v2663, %v3719
    %v4040 = vadd.f32 %v2664, %v3720
    %v4041 = vadd.f32 %v2665, %v3721
    %v4042 = vadd.f32 %v2666, %v3722
    %v4043 = vadd.f32 %v2667, %v3723
    %v4044 = vadd.f32 %v2668, %v3724
    %v4045 = vadd.f32 %v2669, %v3725
    %v4046 = vadd.f32 %v2670, %v3726
    %v4047 = vadd.f32 %v2671, %v3727
    %v4048 = vadd.f32 %v2672, %v3728
    %v4049 = vadd.f32 %v2673, %v3729
    %v4050 = vadd.f32 %v2674, %v3730
    %v4051 = vadd.f32 %v2675, %v3731
    %v4052 = vadd.f32 %v2676, %v3732
    %v4053 = vadd.f32 %v2677, %v3733
    %v4054 = vadd.f32 %v2678, %v3734
    %v4055 = vadd.f32 %v2679, %v3735
    %v4056 = vadd.f32 %v2680, %v3736
    %v4057 = vadd.f32 %v2681, %v3737
    %v4058 = vadd.f32 %v2682, %v3738
    %v4059 = vadd.f32 %v2683, %v3739
    %v4060 = vadd.f32 %v2684, %v3740
    %v4061 = vadd.f32 %v2685, %v3741
    %v4062 = vadd.f32 %v2686, %v3742
    %v4063 = vadd.f32 %v2687, %v3743
    %v4064 = vadd.f32 %v2688, %v3744
    %v4065 = vadd.f32 %v2689, %v3745
    %v4066 = vadd.f32 %v2690, %v3746
    %v4067 = vadd.f32 %v2691, %v3747
    %v4068 = vadd.f32 %v2692, %v3748
    %v4069 = vadd.f32 %v2693, %v3749
    %v4070 = vadd.f32 %v2694, %v3750
    %v4071 = vadd.f32 %v2695, %v3751
    %v4072 = vadd.f32 %v2696, %v3752
    %v4073 = vadd.f32 %v2697, %v3753
    %v4074 = vadd.f32 %v2698, %v3754
    %v4075 = vadd.f32 %v2699, %v3755
    %v4076 = vadd.f32 %v2700, %v3756
    %v4077 = vadd.f32 %v2701, %v3757
    %v4078 = vadd.f32 %v2702, %v3758
    %v4079 = vadd.f32 %v2703, %v3759
    %v4080 = vadd.f32 %v2704, %v3760
    %v4081 = vadd.f32 %v2705, %v3761
    %v4082 = vadd.f32 %v2706, %v3762
    %v4083 = vadd.f32 %v2707, %v3763
    %v4084 = vadd.f32 %v2708, %v3764
    %v4085 = vadd.f32 %v2709, %v3765
    %v4086 = vadd.f32 %v2710, %v3766
    %v4087 = vadd.f32 %v2711, %v3767
    %v4088 = vadd.f32 %v2712, %v3768
    %v4089 = vadd.f32 %v2713, %v3769
    %v4090 = vadd.f32 %v2714, %v3770
    %v4091 = vadd.f32 %v2715, %v3771
    %v4092 = vadd.f32 %v2716, %v3772
    %v4093 = vadd.f32 %v2717, %v3773
    %v4094 = vadd.f32 %v2718, %v3774
    %v4095 = vadd.f32 %v2719, %v3775
    %v4096 = vadd.f32 %v2720, %v3776
    %v4097 = vadd.f32 %v2721, %v3777
    %v4098 = vadd.f32 %v2722, %v3778
    %v4099 = vadd.f32 %v2723, %v3779
    %v4100 = vadd.f32 %v2724, %v3780
    %v4101 = vadd.f32 %v2725, %v3781
    %v4102 = vadd.f32 %v2726, %v3782
    %v4103 = vadd.f32 %v2727, %v3783
    %v4104 = vadd.f32 %v2728, %v3784
    %v4105 = vadd.f32 %v2729, %v3785
    %v4106 = vadd.f32 %v2730, %v3786
    %v4107 = vadd.f32 %v2731, %v3787
    %v4108 = vadd.f32 %v2732, %v3788
    %v4109 = vadd.f32 %v2733, %v3789
    %v4110 = vadd.f32 %v2734, %v3790
    %v4111 = vadd.f32 %v2735, %v3791
    %v4112 = vadd.f32 %v2736, %v3792
    %v4113 = vadd.f32 %v2737, %v3793
    %v4114 = vadd.f32 %v2738, %v3794
    %v4115 = vadd.f32 %v2739, %v3795
    %v4116 = vadd.f32 %v2740, %v3796
    %v4117 = vadd.f32 %v2741, %v3797
    %v4118 = vadd.f32 %v2742, %v3798
    %v4119 = vadd.f32 %v2743, %v3799
    %v4120 = vadd.f32 %v2744, %v3800
    %v4121 = vadd.f32 %v2745, %v3801
    %v4122 = vadd.f32 %v2746, %v3802
    %v4123 = vadd.f32 %v2747, %v3803
    %v4124 = vadd.f32 %v2748, %v3804
    %v4125 = vadd.f32 %v2749, %v3805
    %v4126 = vadd.f32 %v2750, %v3806
    %v4127 = vadd.f32 %v2751, %v3807
    %v4128 = vadd.f32 %v2752, %v3808
    %v4129 = vadd.f32 %v2753, %v3809
    %v4130 = vadd.f32 %v2754, %v3810
    %v4131 = vadd.f32 %v2755, %v3811
    %v4132 = vadd.f32 %v2756, %v3812
    %v4133 = vadd.f32 %v2757, %v3813
    %v4134 = vadd.f32 %v2758, %v3814
    %v4135 = vadd.f32 %v2759, %v3815
    %v4136 = vadd.f32 %v2760, %v3816
    %v4137 = vadd.f32 %v2761, %v3817
    %v4138 = vadd.f32 %v2762, %v3818
    %v4139 = vadd.f32 %v2763, %v3819
    %v4140 = vadd.f32 %v2764, %v3820
    %v4141 = vadd.f32 %v2765, %v3821
    %v4142 = vadd.f32 %v2766, %v3822
    %v4143 = vadd.f32 %v2767, %v3823
    %v4144 = vadd.f32 %v2768, %v3824
    %v4145 = vadd.f32 %v2769, %v3825
    %v4146 = vadd.f32 %v2770, %v3826
    %v4147 = vadd.f32 %v2771, %v3827
    %v4148 = vadd.f32 %v2772, %v3828
    %v4149 = vadd.f32 %v2773, %v3829
    %v4150 = vadd.f32 %v2774, %v3830
    %v4151 = vadd.f32 %v2775, %v3831
    %v4152 = vadd.f32 %v2776, %v3832
    %v4153 = vadd.f32 %v2777, %v3833
    %v4154 = vadd.f32 %v2778, %v3834
    %v4155 = vadd.f32 %v2779, %v3835
    %v4156 = vadd.f32 %v2780, %v3836
    %v4157 = vadd.f32 %v2781, %v3837
    %v4158 = vadd.f32 %v2782, %v3838
    %v4159 = vadd.f32 %v2783, %v3839
    %v4160 = vadd.f32 %v2784, %v3840
    %v4161 = vadd.f32 %v2785, %v3841
    %v4162 = vadd.f32 %v2786, %v3842
    %v4163 = vadd.f32 %v2787, %v3843
    %v4164 = vadd.f32 %v2788, %v3844
    %v4165 = vadd.f32 %v2789, %v3845
    %v4166 = vadd.f32 %v2790, %v3846
    %v4167 = vadd.f32 %v2791, %v3847
    %v4168 = vadd.f32 %v2792, %v3848
    %v4169 = vadd.f32 %v2793, %v3849
    %v4170 = vadd.f32 %v2794, %v3850
    %v4171 = vadd.f32 %v2795, %v3851
    %v4172 = vadd.f32 %v2796, %v3852
    %v4173 = vadd.f32 %v2797, %v3853
    %v4174 = vadd.f32 %v2798, %v3854
    %v4175 = vadd.f32 %v2799, %v3855
    %v4176 = vadd.f32 %v2800, %v3856
    %v4177 = vadd.f32 %v2801, %v3857
    %v4178 = vadd.f32 %v2802, %v3858
    %v4179 = vadd.f32 %v2803, %v3859
    %v4180 = vadd.f32 %v2804, %v3860
    %v4181 = vadd.f32 %v2805, %v3861
    %v4182 = vadd.f32 %v2806, %v3862
    %v4183 = vadd.f32 %v2807, %v3863
    %v4184 = vadd.f32 %v2808, %v3864
    %v4185 = vadd.f32 %v2809, %v3865
    %v4186 = vadd.f32 %v2810, %v3866
    %v4187 = vadd.f32 %v2811, %v3867
    %v4188 = vadd.f32 %v2812, %v3868
    %v4189 = vadd.f32 %v2813, %v3869
    %v4190 = vadd.f32 %v2814, %v3870
    %v4191 = vadd.f32 %v2815, %v3871
    %v4192 = vadd.f32 %v2816, %v3872
    %v4193 = vadd.f32 %v2817, %v3873
    %v4194 = vadd.f32 %v2818, %v3874
    %v4195 = vadd.f32 %v2819, %v3875
    %v4196 = vadd.f32 %v2820, %v3876
    %v4197 = vadd.f32 %v2821, %v3877
    %v4198 = vadd.f32 %v2822, %v3878
    %v4199 = vadd.f32 %v2823, %v3879
    %v4200 = vadd.f32 %v2824, %v3880
    %v4201 = vadd.f32 %v2825, %v3881
    %v4202 = vadd.f32 %v2826, %v3882
    %v4203 = vadd.f32 %v2827, %v3883
    %v4204 = vadd.f32 %v2828, %v3884
    %v4205 = vadd.f32 %v2829, %v3885
    %v4206 = vadd.f32 %v2830, %v3886
    %v4207 = vadd.f32 %v2831, %v3887
    %v4208 = vadd.f32 %v2832, %v3888
    %v4209 = vadd.f32 %v2833, %v3889
    %v4210 = vadd.f32 %v2834, %v3890
    %v4211 = vadd.f32 %v2835, %v3891
    %v4212 = vadd.f32 %v2836, %v3892
    %v4213 = vadd.f32 %v2837, %v3893
    %v4214 = vadd.f32 %v2838, %v3894
    %v4215 = vadd.f32 %v2839, %v3895
    %v4216 = vadd.f32 %v2840, %v3896
    %v4217 = vadd.f32 %v2841, %v3897
    %v4218 = vadd.f32 %v2842, %v3898
    %v4219 = vadd.f32 %v2843, %v3899
    %v4220 = vadd.f32 %v2844, %v3900
    %v4221 = vadd.f32 %v2845, %v3901
    %v4222 = vadd.f32 %v2846, %v3902
    %v4223 = vadd.f32 %v2847, %v3903
    %v4224 = vadd.f32 %v2848, %v3904
    %v4225 = vadd.f32 %v2849, %v3905
    %v4226 = vadd.f32 %v2850, %v3906
    %v4227 = vadd.f32 %v2851, %v3907
    %v4228 = vadd.f32 %v2852, %v3908
    %v4229 = vadd.f32 %v2853, %v3909
    %v4230 = vadd.f32 %v2854, %v3910
    %v4231 = vadd.f32 %v2855, %v3911
    %v4232 = vadd.f32 %v2856, %v3912
    %v4233 = vadd.f32 %v2857, %v3913
    %v4234 = vadd.f32 %v2858, %v3914
    %v4235 = vadd.f32 %v2859, %v3915
    %v4236 = vadd.f32 %v2860, %v3916
    %v4237 = vadd.f32 %v2861, %v3917
    %v4238 = vadd.f32 %v2862, %v3918
    %v4239 = vadd.f32 %v2863, %v3919
    %v4240 = vadd.f32 %v2864, %v3920
    %v4241 = vadd.f32 %v2865, %v3921
    %v4242 = vadd.f32 %v2866, %v3922
    %v4243 = vadd.f32 %v2867, %v3923
    %v4244 = vadd.f32 %v2868, %v3924
    %v4245 = vadd.f32 %v2869, %v3925
    %v4246 = vadd.f32 %v2870, %v3926
    %v4247 = vadd.f32 %v2871, %v3927
    %v4248 = vadd.f32 %v2872, %v3928
    %v4249 = vadd.f32 %v2873, %v3929
    %v4250 = vadd.f32 %v2874, %v3930
    %v4251 = vadd.f32 %v2875, %v3931
    %v4252 = vadd.f32 %v2876, %v3932
    %v4253 = vadd.f32 %v2877, %v3933
    %v4254 = vadd.f32 %v2878, %v3934
    %v4255 = vadd.f32 %v2879, %v3935
    %v4256 = vadd.f32 %v2880, %v3936
    %v4257 = vadd.f32 %v2881, %v3937
    %v4258 = vadd.f32 %v2882, %v3938
    %v4259 = vadd.f32 %v2883, %v3939
    %v4260 = vadd.f32 %v2884, %v3940
    %v4261 = vadd.f32 %v2885, %v3941
    %v4262 = vadd.f32 %v2886, %v3942
    %v4263 = vadd.f32 %v2887, %v3943
    %v4264 = vadd.f32 %v2888, %v3944
    %v4265 = vadd.f32 %v2889, %v3945
    %v4266 = vadd.f32 %v2890, %v3946
    %v4267 = vadd.f32 %v2891, %v3947
    %v4268 = vadd.f32 %v2892, %v3948
    %v4269 = vadd.f32 %v2893, %v3949
    %v4270 = vadd.f32 %v2894, %v3950
    %v4271 = vadd.f32 %v2895, %v3951
    %v4272 = vadd.f32 %v2896, %v3952
    %v4273 = vadd.f32 %v2897, %v3953
    %v4274 = vadd.f32 %v2898, %v3954
    %v4275 = vadd.f32 %v2899, %v3955
    %v4276 = vadd.f32 %v2900, %v3956
    %v4277 = vadd.f32 %v2901, %v3957
    %v4278 = vadd.f32 %v2902, %v3958
    %v4279 = vadd.f32 %v2903, %v3959
    %v4280 = vadd.f32 %v2904, %v3960
    %v4281 = vadd.f32 %v2905, %v3961
    %v4282 = vadd.f32 %v2906, %v3962
    %v4283 = vadd.f32 %v2907, %v3963
    %v4284 = vadd.f32 %v2908, %v3964
    %v4285 = vadd.f32 %v2909, %v3965
    %v4286 = vadd.f32 %v2910, %v3966
    %v4287 = vadd.f32 %v2911, %v3967
    %v4288 = vadd.f32 %v2912, %v3968
    %v4289 = vadd.f32 %v2913, %v3969
    %v4290 = vadd.f32 %v2914, %v3970
    %v4291 = vadd.f32 %v2915, %v3971
    %v4292 = vadd.f32 %v2916, %v3972
    %v4293 = vadd.f32 %v2917, %v3973
    %v4294 = vadd.f32 %v2918, %v3974
    %v4295 = vadd.f32 %v2919, %v3975
    %v4296 = vadd.f32 %v2920, %v3976
    %v4297 = vadd.f32 %v2921, %v3977
    %v4298 = vadd.f32 %v2922, %v3978
    %v4299 = vadd.f32 %v2923, %v3979
    %v4300 = vadd.f32 %v2924, %v3980
    %v4301 = vadd.f32 %v2925, %v3981
    %v4302 = vadd.f32 %v2926, %v3982
    %v4303 = vadd.f32 %v2927, %v3983
    %v4304 = vadd.f32 %v2928, %v3984
    %v4305 = vadd.f32 %v2929, %v3985
    %v4306 = vadd.f32 %v2930, %v3986
    %v4307 = vadd.f32 %v2931, %v3987
    %v4308 = vadd.f32 %v2932, %v3988
    %v4309 = vadd.f32 %v2933, %v3989
    %v4310 = vadd.f32 %v2934, %v3990
    %v4311 = vadd.f32 %v2935, %v3991
    %v4312 = vadd.f32 %v2936, %v3992
    %v4313 = vadd.f32 %v2937, %v3993
    %4314 = vset.pattern.permute.xlu0 3
    %4315 = vperm.xlu0 %4314, %v118
    %v4316 = vpop.permute.xlu0 %4315
    %4318 = vset.pattern.permute.xlu0 3
    %4319 = vperm.xlu0 %4318, %v119
    %v4320 = vpop.permute.xlu0 %4319
    %4322 = vset.pattern.permute.xlu0 3
    %4323 = vperm.xlu0 %4322, %v120
    %v4324 = vpop.permute.xlu0 %4323
    %4326 = vset.pattern.permute.xlu0 3
    %4327 = vperm.xlu0 %4326, %v121
    %v4328 = vpop.permute.xlu0 %4327
    %v4330 = vlaneseq
    %v4331 = vshrl.u32 %v4330, 7
    %v4332 = vsub.s32 3, %v4331
    %v4333 = vrot.slane %v78, %v4332
    %v4334 = vlaneseq
    %v4335 = vshrl.u32 %v4334, 7
    %v4336 = vsub.s32 7, %v4335
    %v4337 = vrot.slane %v78, %v4336
    %v4338 = vlaneseq
    %v4339 = vshrl.u32 %v4338, 7
    %v4340 = vsub.s32 3, %v4339
    %v4341 = vrot.slane %v79, %v4340
    %v4342 = vlaneseq
    %v4343 = vshrl.u32 %v4342, 7
    %v4344 = vsub.s32 7, %v4343
    %v4345 = vrot.slane %v79, %v4344
    %v4346 = vlaneseq
    %v4347 = vshrl.u32 %v4346, 7
    %v4348 = vsub.s32 3, %v4347
    %v4349 = vrot.slane %v80, %v4348
    %v4350 = vlaneseq
    %v4351 = vshrl.u32 %v4350, 7
    %v4352 = vsub.s32 7, %v4351
    %v4353 = vrot.slane %v80, %v4352
    %v4354 = vlaneseq
    %v4355 = vshrl.u32 %v4354, 7
    %v4356 = vsub.s32 3, %v4355
    %v4357 = vrot.slane %v81, %v4356
    %v4358 = vlaneseq
    %v4359 = vshrl.u32 %v4358, 7
    %v4360 = vsub.s32 7, %v4359
    %v4361 = vrot.slane %v81, %v4360
    %v4362 = vlaneseq
    %v4363 = vshrl.u32 %v4362, 7
    %v4364 = vsub.s32 3, %v4363
    %v4365 = vrot.slane %v82, %v4364
    %v4366 = vlaneseq
    %v4367 = vshrl.u32 %v4366, 7
    %v4368 = vsub.s32 7, %v4367
    %v4369 = vrot.slane %v82, %v4368
    %v4370 = vlaneseq
    %v4371 = vshrl.u32 %v4370, 7
    %v4372 = vsub.s32 3, %v4371
    %v4373 = vrot.slane %v83, %v4372
    %v4374 = vlaneseq
    %v4375 = vshrl.u32 %v4374, 7
    %v4376 = vsub.s32 7, %v4375
    %v4377 = vrot.slane %v83, %v4376
    %v4378 = vlaneseq
    %v4379 = vshrl.u32 %v4378, 7
    %v4380 = vsub.s32 3, %v4379
    %v4381 = vrot.slane %v84, %v4380
    %v4382 = vlaneseq
    %v4383 = vshrl.u32 %v4382, 7
    %v4384 = vsub.s32 7, %v4383
    %v4385 = vrot.slane %v84, %v4384
    %v4386 = vlaneseq
    %v4387 = vshrl.u32 %v4386, 7
    %v4388 = vsub.s32 3, %v4387
    %v4389 = vrot.slane %v85, %v4388
    %v4390 = vlaneseq
    %v4391 = vshrl.u32 %v4390, 7
    %v4392 = vsub.s32 7, %v4391
    %v4393 = vrot.slane %v85, %v4392
    %v4394 = vlaneseq
    %v4395 = vshrl.u32 %v4394, 7
    %v4396 = vsub.s32 3, %v4395
    %v4397 = vrot.slane %v86, %v4396
    %v4398 = vlaneseq
    %v4399 = vshrl.u32 %v4398, 7
    %v4400 = vsub.s32 7, %v4399
    %v4401 = vrot.slane %v86, %v4400
    %v4402 = vlaneseq
    %v4403 = vshrl.u32 %v4402, 7
    %v4404 = vsub.s32 3, %v4403
    %v4405 = vrot.slane %v87, %v4404
    %v4406 = vlaneseq
    %v4407 = vshrl.u32 %v4406, 7
    %v4408 = vsub.s32 7, %v4407
    %v4409 = vrot.slane %v87, %v4408
    %v4410 = vlaneseq
    %v4411 = vshrl.u32 %v4410, 7
    %v4412 = vsub.s32 3, %v4411
    %v4413 = vrot.slane %v88, %v4412
    %v4414 = vlaneseq
    %v4415 = vshrl.u32 %v4414, 7
    %v4416 = vsub.s32 7, %v4415
    %v4417 = vrot.slane %v88, %v4416
    %v4418 = vlaneseq
    %v4419 = vshrl.u32 %v4418, 7
    %v4420 = vsub.s32 3, %v4419
    %v4421 = vrot.slane %v89, %v4420
    %v4422 = vlaneseq
    %v4423 = vshrl.u32 %v4422, 7
    %v4424 = vsub.s32 7, %v4423
    %v4425 = vrot.slane %v89, %v4424
    %v4426 = vlaneseq
    %v4427 = vshrl.u32 %v4426, 7
    %v4428 = vsub.s32 3, %v4427
    %v4429 = vrot.slane %v90, %v4428
    %v4430 = vlaneseq
    %v4431 = vshrl.u32 %v4430, 7
    %v4432 = vsub.s32 7, %v4431
    %v4433 = vrot.slane %v90, %v4432
    %v4434 = vlaneseq
    %v4435 = vshrl.u32 %v4434, 7
    %v4436 = vsub.s32 3, %v4435
    %v4437 = vrot.slane %v91, %v4436
    %v4438 = vlaneseq
    %v4439 = vshrl.u32 %v4438, 7
    %v4440 = vsub.s32 7, %v4439
    %v4441 = vrot.slane %v91, %v4440
    %v4442 = vlaneseq
    %v4443 = vshrl.u32 %v4442, 7
    %v4444 = vsub.s32 3, %v4443
    %v4445 = vrot.slane %v92, %v4444
    %v4446 = vlaneseq
    %v4447 = vshrl.u32 %v4446, 7
    %v4448 = vsub.s32 7, %v4447
    %v4449 = vrot.slane %v92, %v4448
    %v4450 = vlaneseq
    %v4451 = vshrl.u32 %v4450, 7
    %v4452 = vsub.s32 3, %v4451
    %v4453 = vrot.slane %v93, %v4452
    %v4454 = vlaneseq
    %v4455 = vshrl.u32 %v4454, 7
    %v4456 = vsub.s32 7, %v4455
    %v4457 = vrot.slane %v93, %v4456
    %v4458 = vlaneseq
    %v4459 = vshrl.u32 %v4458, 7
    %v4460 = vsub.s32 3, %v4459
    %v4461 = vrot.slane %v94, %v4460
    %v4462 = vlaneseq
    %v4463 = vshrl.u32 %v4462, 7
    %v4464 = vsub.s32 7, %v4463
    %v4465 = vrot.slane %v94, %v4464
    %v4466 = vlaneseq
    %v4467 = vshrl.u32 %v4466, 7
    %v4468 = vsub.s32 3, %v4467
    %v4469 = vrot.slane %v95, %v4468
    %v4470 = vlaneseq
    %v4471 = vshrl.u32 %v4470, 7
    %v4472 = vsub.s32 7, %v4471
    %v4473 = vrot.slane %v95, %v4472
    %v4474 = vlaneseq
    %v4475 = vshrl.u32 %v4474, 7
    %v4476 = vsub.s32 3, %v4475
    %v4477 = vrot.slane %v96, %v4476
    %v4478 = vlaneseq
    %v4479 = vshrl.u32 %v4478, 7
    %v4480 = vsub.s32 7, %v4479
    %v4481 = vrot.slane %v96, %v4480
    %v4482 = vlaneseq
    %v4483 = vshrl.u32 %v4482, 7
    %v4484 = vsub.s32 3, %v4483
    %v4485 = vrot.slane %v97, %v4484
    %v4486 = vlaneseq
    %v4487 = vshrl.u32 %v4486, 7
    %v4488 = vsub.s32 7, %v4487
    %v4489 = vrot.slane %v97, %v4488
    %v4490 = vlaneseq
    %v4491 = vshrl.u32 %v4490, 7
    %v4492 = vsub.s32 3, %v4491
    %v4493 = vrot.slane %v98, %v4492
    %v4494 = vlaneseq
    %v4495 = vshrl.u32 %v4494, 7
    %v4496 = vsub.s32 7, %v4495
    %v4497 = vrot.slane %v98, %v4496
    %v4498 = vlaneseq
    %v4499 = vshrl.u32 %v4498, 7
    %v4500 = vsub.s32 3, %v4499
    %v4501 = vrot.slane %v99, %v4500
    %v4502 = vlaneseq
    %v4503 = vshrl.u32 %v4502, 7
    %v4504 = vsub.s32 7, %v4503
    %v4505 = vrot.slane %v99, %v4504
    %v4506 = vlaneseq
    %v4507 = vshrl.u32 %v4506, 7
    %v4508 = vsub.s32 3, %v4507
    %v4509 = vrot.slane %v100, %v4508
    %v4510 = vlaneseq
    %v4511 = vshrl.u32 %v4510, 7
    %v4512 = vsub.s32 7, %v4511
    %v4513 = vrot.slane %v100, %v4512
    %v4514 = vlaneseq
    %v4515 = vshrl.u32 %v4514, 7
    %v4516 = vsub.s32 3, %v4515
    %v4517 = vrot.slane %v101, %v4516
    %v4518 = vlaneseq
    %v4519 = vshrl.u32 %v4518, 7
    %v4520 = vsub.s32 7, %v4519
    %v4521 = vrot.slane %v101, %v4520
    %v4522 = vlaneseq
    %v4523 = vshrl.u32 %v4522, 7
    %v4524 = vsub.s32 3, %v4523
    %v4525 = vrot.slane %v102, %v4524
    %v4526 = vlaneseq
    %v4527 = vshrl.u32 %v4526, 7
    %v4528 = vsub.s32 7, %v4527
    %v4529 = vrot.slane %v102, %v4528
    %v4530 = vlaneseq
    %v4531 = vshrl.u32 %v4530, 7
    %v4532 = vsub.s32 3, %v4531
    %v4533 = vrot.slane %v103, %v4532
    %v4534 = vlaneseq
    %v4535 = vshrl.u32 %v4534, 7
    %v4536 = vsub.s32 7, %v4535
    %v4537 = vrot.slane %v103, %v4536
    %v4538 = vlaneseq
    %v4539 = vshrl.u32 %v4538, 7
    %v4540 = vsub.s32 3, %v4539
    %v4541 = vrot.slane %v104, %v4540
    %v4542 = vlaneseq
    %v4543 = vshrl.u32 %v4542, 7
    %v4544 = vsub.s32 7, %v4543
    %v4545 = vrot.slane %v104, %v4544
    %v4546 = vlaneseq
    %v4547 = vshrl.u32 %v4546, 7
    %v4548 = vsub.s32 3, %v4547
    %v4549 = vrot.slane %v105, %v4548
    %v4550 = vlaneseq
    %v4551 = vshrl.u32 %v4550, 7
    %v4552 = vsub.s32 7, %v4551
    %v4553 = vrot.slane %v105, %v4552
    %v4554 = vlaneseq
    %v4555 = vshrl.u32 %v4554, 7
    %v4556 = vsub.s32 3, %v4555
    %v4557 = vrot.slane %v106, %v4556
    %v4558 = vlaneseq
    %v4559 = vshrl.u32 %v4558, 7
    %v4560 = vsub.s32 7, %v4559
    %v4561 = vrot.slane %v106, %v4560
    %v4562 = vlaneseq
    %v4563 = vshrl.u32 %v4562, 7
    %v4564 = vsub.s32 3, %v4563
    %v4565 = vrot.slane %v107, %v4564
    %v4566 = vlaneseq
    %v4567 = vshrl.u32 %v4566, 7
    %v4568 = vsub.s32 7, %v4567
    %v4569 = vrot.slane %v107, %v4568
    %v4570 = vlaneseq
    %v4571 = vshrl.u32 %v4570, 7
    %v4572 = vsub.s32 3, %v4571
    %v4573 = vrot.slane %v108, %v4572
    %v4574 = vlaneseq
    %v4575 = vshrl.u32 %v4574, 7
    %v4576 = vsub.s32 7, %v4575
    %v4577 = vrot.slane %v108, %v4576
    %v4578 = vlaneseq
    %v4579 = vshrl.u32 %v4578, 7
    %v4580 = vsub.s32 3, %v4579
    %v4581 = vrot.slane %v109, %v4580
    %v4582 = vlaneseq
    %v4583 = vshrl.u32 %v4582, 7
    %v4584 = vsub.s32 7, %v4583
    %v4585 = vrot.slane %v109, %v4584
    %v4586 = vlaneseq
    %v4587 = vshrl.u32 %v4586, 7
    %v4588 = vsub.s32 3, %v4587
    %v4589 = vrot.slane %v110, %v4588
    %v4590 = vlaneseq
    %v4591 = vshrl.u32 %v4590, 7
    %v4592 = vsub.s32 7, %v4591
    %v4593 = vrot.slane %v110, %v4592
    %v4594 = vlaneseq
    %v4595 = vshrl.u32 %v4594, 7
    %v4596 = vsub.s32 3, %v4595
    %v4597 = vrot.slane %v111, %v4596
    %v4598 = vlaneseq
    %v4599 = vshrl.u32 %v4598, 7
    %v4600 = vsub.s32 7, %v4599
    %v4601 = vrot.slane %v111, %v4600
    %v4602 = vlaneseq
    %v4603 = vshrl.u32 %v4602, 7
    %v4604 = vsub.s32 3, %v4603
    %v4605 = vrot.slane %v112, %v4604
    %v4606 = vlaneseq
    %v4607 = vshrl.u32 %v4606, 7
    %v4608 = vsub.s32 7, %v4607
    %v4609 = vrot.slane %v112, %v4608
    %v4610 = vlaneseq
    %v4611 = vshrl.u32 %v4610, 7
    %v4612 = vsub.s32 3, %v4611
    %v4613 = vrot.slane %v113, %v4612
    %v4614 = vlaneseq
    %v4615 = vshrl.u32 %v4614, 7
    %v4616 = vsub.s32 7, %v4615
    %v4617 = vrot.slane %v113, %v4616
    %v4618 = vlaneseq
    %v4619 = vshrl.u32 %v4618, 7
    %v4620 = vsub.s32 3, %v4619
    %v4621 = vrot.slane %v114, %v4620
    %v4622 = vlaneseq
    %v4623 = vshrl.u32 %v4622, 7
    %v4624 = vsub.s32 7, %v4623
    %v4625 = vrot.slane %v114, %v4624
    %v4626 = vlaneseq
    %v4627 = vshrl.u32 %v4626, 7
    %v4628 = vsub.s32 3, %v4627
    %v4629 = vrot.slane %v115, %v4628
    %v4630 = vlaneseq
    %v4631 = vshrl.u32 %v4630, 7
    %v4632 = vsub.s32 7, %v4631
    %v4633 = vrot.slane %v115, %v4632
    %v4634 = vlaneseq
    %v4635 = vshrl.u32 %v4634, 7
    %v4636 = vsub.s32 3, %v4635
    %v4637 = vrot.slane %v116, %v4636
    %v4638 = vlaneseq
    %v4639 = vshrl.u32 %v4638, 7
    %v4640 = vsub.s32 7, %v4639
    %v4641 = vrot.slane %v116, %v4640
    %v4642 = vlaneseq
    %v4643 = vshrl.u32 %v4642, 7
    %v4644 = vsub.s32 3, %v4643
    %v4645 = vrot.slane %v117, %v4644
    %v4646 = vlaneseq
    %v4647 = vshrl.u32 %v4646, 7
    %v4648 = vsub.s32 7, %v4647
    %v4649 = vrot.slane %v117, %v4648
    %v4730 = vlaneseq
    %v4731 = vshrl.u32 %v4730, 7
    %v4732 = vsub.s32 3, %v4731
    %v4733 = vrot.slane %v4333, %v4732
    %v4734 = vlaneseq
    %v4735 = vshrl.u32 %v4734, 7
    %v4736 = vsub.s32 3, %v4735
    %v4737 = vrot.slane %v4337, %v4736
    %v4738 = vlaneseq
    %v4739 = vshrl.u32 %v4738, 7
    %v4740 = vsub.s32 3, %v4739
    %v4741 = vrot.slane %v4341, %v4740
    %v4742 = vlaneseq
    %v4743 = vshrl.u32 %v4742, 7
    %v4744 = vsub.s32 3, %v4743
    %v4745 = vrot.slane %v4345, %v4744
    %v4746 = vlaneseq
    %v4747 = vshrl.u32 %v4746, 7
    %v4748 = vsub.s32 3, %v4747
    %v4749 = vrot.slane %v4349, %v4748
    %v4750 = vlaneseq
    %v4751 = vshrl.u32 %v4750, 7
    %v4752 = vsub.s32 3, %v4751
    %v4753 = vrot.slane %v4353, %v4752
    %v4754 = vlaneseq
    %v4755 = vshrl.u32 %v4754, 7
    %v4756 = vsub.s32 3, %v4755
    %v4757 = vrot.slane %v4357, %v4756
    %v4758 = vlaneseq
    %v4759 = vshrl.u32 %v4758, 7
    %v4760 = vsub.s32 3, %v4759
    %v4761 = vrot.slane %v4361, %v4760
    %v4762 = vlaneseq
    %v4763 = vshrl.u32 %v4762, 7
    %v4764 = vsub.s32 3, %v4763
    %v4765 = vrot.slane %v4365, %v4764
    %v4766 = vlaneseq
    %v4767 = vshrl.u32 %v4766, 7
    %v4768 = vsub.s32 3, %v4767
    %v4769 = vrot.slane %v4369, %v4768
    %v4770 = vlaneseq
    %v4771 = vshrl.u32 %v4770, 7
    %v4772 = vsub.s32 3, %v4771
    %v4773 = vrot.slane %v4373, %v4772
    %v4774 = vlaneseq
    %v4775 = vshrl.u32 %v4774, 7
    %v4776 = vsub.s32 3, %v4775
    %v4777 = vrot.slane %v4377, %v4776
    %v4778 = vlaneseq
    %v4779 = vshrl.u32 %v4778, 7
    %v4780 = vsub.s32 3, %v4779
    %v4781 = vrot.slane %v4381, %v4780
    %v4782 = vlaneseq
    %v4783 = vshrl.u32 %v4782, 7
    %v4784 = vsub.s32 3, %v4783
    %v4785 = vrot.slane %v4385, %v4784
    %v4786 = vlaneseq
    %v4787 = vshrl.u32 %v4786, 7
    %v4788 = vsub.s32 3, %v4787
    %v4789 = vrot.slane %v4389, %v4788
    %v4790 = vlaneseq
    %v4791 = vshrl.u32 %v4790, 7
    %v4792 = vsub.s32 3, %v4791
    %v4793 = vrot.slane %v4393, %v4792
    %v4794 = vlaneseq
    %v4795 = vshrl.u32 %v4794, 7
    %v4796 = vsub.s32 3, %v4795
    %v4797 = vrot.slane %v4397, %v4796
    %v4798 = vlaneseq
    %v4799 = vshrl.u32 %v4798, 7
    %v4800 = vsub.s32 3, %v4799
    %v4801 = vrot.slane %v4401, %v4800
    %v4802 = vlaneseq
    %v4803 = vshrl.u32 %v4802, 7
    %v4804 = vsub.s32 3, %v4803
    %v4805 = vrot.slane %v4405, %v4804
    %v4806 = vlaneseq
    %v4807 = vshrl.u32 %v4806, 7
    %v4808 = vsub.s32 3, %v4807
    %v4809 = vrot.slane %v4409, %v4808
    %v4810 = vlaneseq
    %v4811 = vshrl.u32 %v4810, 7
    %v4812 = vsub.s32 3, %v4811
    %v4813 = vrot.slane %v4413, %v4812
    %v4814 = vlaneseq
    %v4815 = vshrl.u32 %v4814, 7
    %v4816 = vsub.s32 3, %v4815
    %v4817 = vrot.slane %v4417, %v4816
    %v4818 = vlaneseq
    %v4819 = vshrl.u32 %v4818, 7
    %v4820 = vsub.s32 3, %v4819
    %v4821 = vrot.slane %v4421, %v4820
    %v4822 = vlaneseq
    %v4823 = vshrl.u32 %v4822, 7
    %v4824 = vsub.s32 3, %v4823
    %v4825 = vrot.slane %v4425, %v4824
    %v4826 = vlaneseq
    %v4827 = vshrl.u32 %v4826, 7
    %v4828 = vsub.s32 3, %v4827
    %v4829 = vrot.slane %v4429, %v4828
    %v4830 = vlaneseq
    %v4831 = vshrl.u32 %v4830, 7
    %v4832 = vsub.s32 3, %v4831
    %v4833 = vrot.slane %v4433, %v4832
    %v4834 = vlaneseq
    %v4835 = vshrl.u32 %v4834, 7
    %v4836 = vsub.s32 3, %v4835
    %v4837 = vrot.slane %v4437, %v4836
    %v4838 = vlaneseq
    %v4839 = vshrl.u32 %v4838, 7
    %v4840 = vsub.s32 3, %v4839
    %v4841 = vrot.slane %v4441, %v4840
    %v4842 = vlaneseq
    %v4843 = vshrl.u32 %v4842, 7
    %v4844 = vsub.s32 3, %v4843
    %v4845 = vrot.slane %v4445, %v4844
    %v4846 = vlaneseq
    %v4847 = vshrl.u32 %v4846, 7
    %v4848 = vsub.s32 3, %v4847
    %v4849 = vrot.slane %v4449, %v4848
    %v4850 = vlaneseq
    %v4851 = vshrl.u32 %v4850, 7
    %v4852 = vsub.s32 3, %v4851
    %v4853 = vrot.slane %v4453, %v4852
    %v4854 = vlaneseq
    %v4855 = vshrl.u32 %v4854, 7
    %v4856 = vsub.s32 3, %v4855
    %v4857 = vrot.slane %v4457, %v4856
    %v4858 = vlaneseq
    %v4859 = vshrl.u32 %v4858, 7
    %v4860 = vsub.s32 3, %v4859
    %v4861 = vrot.slane %v4461, %v4860
    %v4862 = vlaneseq
    %v4863 = vshrl.u32 %v4862, 7
    %v4864 = vsub.s32 3, %v4863
    %v4865 = vrot.slane %v4465, %v4864
    %v4866 = vlaneseq
    %v4867 = vshrl.u32 %v4866, 7
    %v4868 = vsub.s32 3, %v4867
    %v4869 = vrot.slane %v4469, %v4868
    %v4870 = vlaneseq
    %v4871 = vshrl.u32 %v4870, 7
    %v4872 = vsub.s32 3, %v4871
    %v4873 = vrot.slane %v4473, %v4872
    %v4874 = vlaneseq
    %v4875 = vshrl.u32 %v4874, 7
    %v4876 = vsub.s32 3, %v4875
    %v4877 = vrot.slane %v4477, %v4876
    %v4878 = vlaneseq
    %v4879 = vshrl.u32 %v4878, 7
    %v4880 = vsub.s32 3, %v4879
    %v4881 = vrot.slane %v4481, %v4880
    %v4882 = vlaneseq
    %v4883 = vshrl.u32 %v4882, 7
    %v4884 = vsub.s32 3, %v4883
    %v4885 = vrot.slane %v4485, %v4884
    %v4886 = vlaneseq
    %v4887 = vshrl.u32 %v4886, 7
    %v4888 = vsub.s32 3, %v4887
    %v4889 = vrot.slane %v4489, %v4888
    %v4890 = vlaneseq
    %v4891 = vshrl.u32 %v4890, 7
    %v4892 = vsub.s32 3, %v4891
    %v4893 = vrot.slane %v4493, %v4892
    %v4894 = vlaneseq
    %v4895 = vshrl.u32 %v4894, 7
    %v4896 = vsub.s32 3, %v4895
    %v4897 = vrot.slane %v4497, %v4896
    %v4898 = vlaneseq
    %v4899 = vshrl.u32 %v4898, 7
    %v4900 = vsub.s32 3, %v4899
    %v4901 = vrot.slane %v4501, %v4900
    %v4902 = vlaneseq
    %v4903 = vshrl.u32 %v4902, 7
    %v4904 = vsub.s32 3, %v4903
    %v4905 = vrot.slane %v4505, %v4904
    %v4906 = vlaneseq
    %v4907 = vshrl.u32 %v4906, 7
    %v4908 = vsub.s32 3, %v4907
    %v4909 = vrot.slane %v4509, %v4908
    %v4910 = vlaneseq
    %v4911 = vshrl.u32 %v4910, 7
    %v4912 = vsub.s32 3, %v4911
    %v4913 = vrot.slane %v4513, %v4912
    %v4914 = vlaneseq
    %v4915 = vshrl.u32 %v4914, 7
    %v4916 = vsub.s32 3, %v4915
    %v4917 = vrot.slane %v4517, %v4916
    %v4918 = vlaneseq
    %v4919 = vshrl.u32 %v4918, 7
    %v4920 = vsub.s32 3, %v4919
    %v4921 = vrot.slane %v4521, %v4920
    %v4922 = vlaneseq
    %v4923 = vshrl.u32 %v4922, 7
    %v4924 = vsub.s32 3, %v4923
    %v4925 = vrot.slane %v4525, %v4924
    %v4926 = vlaneseq
    %v4927 = vshrl.u32 %v4926, 7
    %v4928 = vsub.s32 3, %v4927
    %v4929 = vrot.slane %v4529, %v4928
    %v4930 = vlaneseq
    %v4931 = vshrl.u32 %v4930, 7
    %v4932 = vsub.s32 3, %v4931
    %v4933 = vrot.slane %v4533, %v4932
    %v4934 = vlaneseq
    %v4935 = vshrl.u32 %v4934, 7
    %v4936 = vsub.s32 3, %v4935
    %v4937 = vrot.slane %v4537, %v4936
    %v4938 = vlaneseq
    %v4939 = vshrl.u32 %v4938, 7
    %v4940 = vsub.s32 3, %v4939
    %v4941 = vrot.slane %v4541, %v4940
    %v4942 = vlaneseq
    %v4943 = vshrl.u32 %v4942, 7
    %v4944 = vsub.s32 3, %v4943
    %v4945 = vrot.slane %v4545, %v4944
    %v4946 = vlaneseq
    %v4947 = vshrl.u32 %v4946, 7
    %v4948 = vsub.s32 3, %v4947
    %v4949 = vrot.slane %v4549, %v4948
    %v4950 = vlaneseq
    %v4951 = vshrl.u32 %v4950, 7
    %v4952 = vsub.s32 3, %v4951
    %v4953 = vrot.slane %v4553, %v4952
    %v4954 = vlaneseq
    %v4955 = vshrl.u32 %v4954, 7
    %v4956 = vsub.s32 3, %v4955
    %v4957 = vrot.slane %v4557, %v4956
    %v4958 = vlaneseq
    %v4959 = vshrl.u32 %v4958, 7
    %v4960 = vsub.s32 3, %v4959
    %v4961 = vrot.slane %v4561, %v4960
    %v4962 = vlaneseq
    %v4963 = vshrl.u32 %v4962, 7
    %v4964 = vsub.s32 3, %v4963
    %v4965 = vrot.slane %v4565, %v4964
    %v4966 = vlaneseq
    %v4967 = vshrl.u32 %v4966, 7
    %v4968 = vsub.s32 3, %v4967
    %v4969 = vrot.slane %v4569, %v4968
    %v4970 = vlaneseq
    %v4971 = vshrl.u32 %v4970, 7
    %v4972 = vsub.s32 3, %v4971
    %v4973 = vrot.slane %v4573, %v4972
    %v4974 = vlaneseq
    %v4975 = vshrl.u32 %v4974, 7
    %v4976 = vsub.s32 3, %v4975
    %v4977 = vrot.slane %v4577, %v4976
    %v4978 = vlaneseq
    %v4979 = vshrl.u32 %v4978, 7
    %v4980 = vsub.s32 3, %v4979
    %v4981 = vrot.slane %v4581, %v4980
    %v4982 = vlaneseq
    %v4983 = vshrl.u32 %v4982, 7
    %v4984 = vsub.s32 3, %v4983
    %v4985 = vrot.slane %v4585, %v4984
    %v4986 = vlaneseq
    %v4987 = vshrl.u32 %v4986, 7
    %v4988 = vsub.s32 3, %v4987
    %v4989 = vrot.slane %v4589, %v4988
    %v4990 = vlaneseq
    %v4991 = vshrl.u32 %v4990, 7
    %v4992 = vsub.s32 3, %v4991
    %v4993 = vrot.slane %v4593, %v4992
    %v4994 = vlaneseq
    %v4995 = vshrl.u32 %v4994, 7
    %v4996 = vsub.s32 3, %v4995
    %v4997 = vrot.slane %v4597, %v4996
    %v4998 = vlaneseq
    %v4999 = vshrl.u32 %v4998, 7
    %v5000 = vsub.s32 3, %v4999
    %v5001 = vrot.slane %v4601, %v5000
    %v5002 = vlaneseq
    %v5003 = vshrl.u32 %v5002, 7
    %v5004 = vsub.s32 3, %v5003
    %v5005 = vrot.slane %v4605, %v5004
    %v5006 = vlaneseq
    %v5007 = vshrl.u32 %v5006, 7
    %v5008 = vsub.s32 3, %v5007
    %v5009 = vrot.slane %v4609, %v5008
    %v5010 = vlaneseq
    %v5011 = vshrl.u32 %v5010, 7
    %v5012 = vsub.s32 3, %v5011
    %v5013 = vrot.slane %v4613, %v5012
    %v5014 = vlaneseq
    %v5015 = vshrl.u32 %v5014, 7
    %v5016 = vsub.s32 3, %v5015
    %v5017 = vrot.slane %v4617, %v5016
    %v5018 = vlaneseq
    %v5019 = vshrl.u32 %v5018, 7
    %v5020 = vsub.s32 3, %v5019
    %v5021 = vrot.slane %v4621, %v5020
    %v5022 = vlaneseq
    %v5023 = vshrl.u32 %v5022, 7
    %v5024 = vsub.s32 3, %v5023
    %v5025 = vrot.slane %v4625, %v5024
    %v5026 = vlaneseq
    %v5027 = vshrl.u32 %v5026, 7
    %v5028 = vsub.s32 3, %v5027
    %v5029 = vrot.slane %v4629, %v5028
    %v5030 = vlaneseq
    %v5031 = vshrl.u32 %v5030, 7
    %v5032 = vsub.s32 3, %v5031
    %v5033 = vrot.slane %v4633, %v5032
    %v5034 = vlaneseq
    %v5035 = vshrl.u32 %v5034, 7
    %v5036 = vsub.s32 3, %v5035
    %v5037 = vrot.slane %v4637, %v5036
    %v5038 = vlaneseq
    %v5039 = vshrl.u32 %v5038, 7
    %v5040 = vsub.s32 3, %v5039
    %v5041 = vrot.slane %v4641, %v5040
    %v5042 = vlaneseq
    %v5043 = vshrl.u32 %v5042, 7
    %v5044 = vsub.s32 3, %v5043
    %v5045 = vrot.slane %v4645, %v5044
    %v5046 = vlaneseq
    %v5047 = vshrl.u32 %v5046, 7
    %v5048 = vsub.s32 3, %v5047
    %v5049 = vrot.slane %v4649, %v5048
    %v5050 = vmul.f32 %v4316, %v4733
    %v5051 = vmul.f32 %v4316, %v4737
    %v5052 = vmul.f32 %v4320, %v4733
    %v5053 = vmul.f32 %v4320, %v4737
    %v5054 = vmul.f32 %v4324, %v4733
    %v5055 = vmul.f32 %v4324, %v4737
    %v5056 = vmul.f32 %v4328, %v4733
    %v5057 = vmul.f32 %v4328, %v4737
    %v5058 = vmul.f32 %v4316, %v4741
    %v5059 = vmul.f32 %v4316, %v4745
    %v5060 = vmul.f32 %v4320, %v4741
    %v5061 = vmul.f32 %v4320, %v4745
    %v5062 = vmul.f32 %v4324, %v4741
    %v5063 = vmul.f32 %v4324, %v4745
    %v5064 = vmul.f32 %v4328, %v4741
    %v5065 = vmul.f32 %v4328, %v4745
    %v5066 = vmul.f32 %v4316, %v4749
    %v5067 = vmul.f32 %v4316, %v4753
    %v5068 = vmul.f32 %v4320, %v4749
    %v5069 = vmul.f32 %v4320, %v4753
    %v5070 = vmul.f32 %v4324, %v4749
    %v5071 = vmul.f32 %v4324, %v4753
    %v5072 = vmul.f32 %v4328, %v4749
    %v5073 = vmul.f32 %v4328, %v4753
    %v5074 = vmul.f32 %v4316, %v4757
    %v5075 = vmul.f32 %v4316, %v4761
    %v5076 = vmul.f32 %v4320, %v4757
    %v5077 = vmul.f32 %v4320, %v4761
    %v5078 = vmul.f32 %v4324, %v4757
    %v5079 = vmul.f32 %v4324, %v4761
    %v5080 = vmul.f32 %v4328, %v4757
    %v5081 = vmul.f32 %v4328, %v4761
    %v5082 = vmul.f32 %v4316, %v4765
    %v5083 = vmul.f32 %v4316, %v4769
    %v5084 = vmul.f32 %v4320, %v4765
    %v5085 = vmul.f32 %v4320, %v4769
    %v5086 = vmul.f32 %v4324, %v4765
    %v5087 = vmul.f32 %v4324, %v4769
    %v5088 = vmul.f32 %v4328, %v4765
    %v5089 = vmul.f32 %v4328, %v4769
    %v5090 = vmul.f32 %v4316, %v4773
    %v5091 = vmul.f32 %v4316, %v4777
    %v5092 = vmul.f32 %v4320, %v4773
    %v5093 = vmul.f32 %v4320, %v4777
    %v5094 = vmul.f32 %v4324, %v4773
    %v5095 = vmul.f32 %v4324, %v4777
    %v5096 = vmul.f32 %v4328, %v4773
    %v5097 = vmul.f32 %v4328, %v4777
    %v5098 = vmul.f32 %v4316, %v4781
    %v5099 = vmul.f32 %v4316, %v4785
    %v5100 = vmul.f32 %v4320, %v4781
    %v5101 = vmul.f32 %v4320, %v4785
    %v5102 = vmul.f32 %v4324, %v4781
    %v5103 = vmul.f32 %v4324, %v4785
    %v5104 = vmul.f32 %v4328, %v4781
    %v5105 = vmul.f32 %v4328, %v4785
    %v5106 = vmul.f32 %v4316, %v4789
    %v5107 = vmul.f32 %v4316, %v4793
    %v5108 = vmul.f32 %v4320, %v4789
    %v5109 = vmul.f32 %v4320, %v4793
    %v5110 = vmul.f32 %v4324, %v4789
    %v5111 = vmul.f32 %v4324, %v4793
    %v5112 = vmul.f32 %v4328, %v4789
    %v5113 = vmul.f32 %v4328, %v4793
    %v5114 = vmul.f32 %v4316, %v4797
    %v5115 = vmul.f32 %v4316, %v4801
    %v5116 = vmul.f32 %v4320, %v4797
    %v5117 = vmul.f32 %v4320, %v4801
    %v5118 = vmul.f32 %v4324, %v4797
    %v5119 = vmul.f32 %v4324, %v4801
    %v5120 = vmul.f32 %v4328, %v4797
    %v5121 = vmul.f32 %v4328, %v4801
    %v5122 = vmul.f32 %v4316, %v4805
    %v5123 = vmul.f32 %v4316, %v4809
    %v5124 = vmul.f32 %v4320, %v4805
    %v5125 = vmul.f32 %v4320, %v4809
    %v5126 = vmul.f32 %v4324, %v4805
    %v5127 = vmul.f32 %v4324, %v4809
    %v5128 = vmul.f32 %v4328, %v4805
    %v5129 = vmul.f32 %v4328, %v4809
    %v5130 = vmul.f32 %v4316, %v4813
    %v5131 = vmul.f32 %v4316, %v4817
    %v5132 = vmul.f32 %v4320, %v4813
    %v5133 = vmul.f32 %v4320, %v4817
    %v5134 = vmul.f32 %v4324, %v4813
    %v5135 = vmul.f32 %v4324, %v4817
    %v5136 = vmul.f32 %v4328, %v4813
    %v5137 = vmul.f32 %v4328, %v4817
    %v5138 = vmul.f32 %v4316, %v4821
    %v5139 = vmul.f32 %v4316, %v4825
    %v5140 = vmul.f32 %v4320, %v4821
    %v5141 = vmul.f32 %v4320, %v4825
    %v5142 = vmul.f32 %v4324, %v4821
    %v5143 = vmul.f32 %v4324, %v4825
    %v5144 = vmul.f32 %v4328, %v4821
    %v5145 = vmul.f32 %v4328, %v4825
    %v5146 = vmul.f32 %v4316, %v4829
    %v5147 = vmul.f32 %v4316, %v4833
    %v5148 = vmul.f32 %v4320, %v4829
    %v5149 = vmul.f32 %v4320, %v4833
    %v5150 = vmul.f32 %v4324, %v4829
    %v5151 = vmul.f32 %v4324, %v4833
    %v5152 = vmul.f32 %v4328, %v4829
    %v5153 = vmul.f32 %v4328, %v4833
    %v5154 = vmul.f32 %v4316, %v4837
    %v5155 = vmul.f32 %v4316, %v4841
    %v5156 = vmul.f32 %v4320, %v4837
    %v5157 = vmul.f32 %v4320, %v4841
    %v5158 = vmul.f32 %v4324, %v4837
    %v5159 = vmul.f32 %v4324, %v4841
    %v5160 = vmul.f32 %v4328, %v4837
    %v5161 = vmul.f32 %v4328, %v4841
    %v5162 = vmul.f32 %v4316, %v4845
    %v5163 = vmul.f32 %v4316, %v4849
    %v5164 = vmul.f32 %v4320, %v4845
    %v5165 = vmul.f32 %v4320, %v4849
    %v5166 = vmul.f32 %v4324, %v4845
    %v5167 = vmul.f32 %v4324, %v4849
    %v5168 = vmul.f32 %v4328, %v4845
    %v5169 = vmul.f32 %v4328, %v4849
    %v5170 = vmul.f32 %v4316, %v4853
    %v5171 = vmul.f32 %v4316, %v4857
    %v5172 = vmul.f32 %v4320, %v4853
    %v5173 = vmul.f32 %v4320, %v4857
    %v5174 = vmul.f32 %v4324, %v4853
    %v5175 = vmul.f32 %v4324, %v4857
    %v5176 = vmul.f32 %v4328, %v4853
    %v5177 = vmul.f32 %v4328, %v4857
    %v5178 = vmul.f32 %v4316, %v4861
    %v5179 = vmul.f32 %v4316, %v4865
    %v5180 = vmul.f32 %v4320, %v4861
    %v5181 = vmul.f32 %v4320, %v4865
    %v5182 = vmul.f32 %v4324, %v4861
    %v5183 = vmul.f32 %v4324, %v4865
    %v5184 = vmul.f32 %v4328, %v4861
    %v5185 = vmul.f32 %v4328, %v4865
    %v5186 = vmul.f32 %v4316, %v4869
    %v5187 = vmul.f32 %v4316, %v4873
    %v5188 = vmul.f32 %v4320, %v4869
    %v5189 = vmul.f32 %v4320, %v4873
    %v5190 = vmul.f32 %v4324, %v4869
    %v5191 = vmul.f32 %v4324, %v4873
    %v5192 = vmul.f32 %v4328, %v4869
    %v5193 = vmul.f32 %v4328, %v4873
    %v5194 = vmul.f32 %v4316, %v4877
    %v5195 = vmul.f32 %v4316, %v4881
    %v5196 = vmul.f32 %v4320, %v4877
    %v5197 = vmul.f32 %v4320, %v4881
    %v5198 = vmul.f32 %v4324, %v4877
    %v5199 = vmul.f32 %v4324, %v4881
    %v5200 = vmul.f32 %v4328, %v4877
    %v5201 = vmul.f32 %v4328, %v4881
    %v5202 = vmul.f32 %v4316, %v4885
    %v5203 = vmul.f32 %v4316, %v4889
    %v5204 = vmul.f32 %v4320, %v4885
    %v5205 = vmul.f32 %v4320, %v4889
    %v5206 = vmul.f32 %v4324, %v4885
    %v5207 = vmul.f32 %v4324, %v4889
    %v5208 = vmul.f32 %v4328, %v4885
    %v5209 = vmul.f32 %v4328, %v4889
    %v5210 = vmul.f32 %v4316, %v4893
    %v5211 = vmul.f32 %v4316, %v4897
    %v5212 = vmul.f32 %v4320, %v4893
    %v5213 = vmul.f32 %v4320, %v4897
    %v5214 = vmul.f32 %v4324, %v4893
    %v5215 = vmul.f32 %v4324, %v4897
    %v5216 = vmul.f32 %v4328, %v4893
    %v5217 = vmul.f32 %v4328, %v4897
    %v5218 = vmul.f32 %v4316, %v4901
    %v5219 = vmul.f32 %v4316, %v4905
    %v5220 = vmul.f32 %v4320, %v4901
    %v5221 = vmul.f32 %v4320, %v4905
    %v5222 = vmul.f32 %v4324, %v4901
    %v5223 = vmul.f32 %v4324, %v4905
    %v5224 = vmul.f32 %v4328, %v4901
    %v5225 = vmul.f32 %v4328, %v4905
    %v5226 = vmul.f32 %v4316, %v4909
    %v5227 = vmul.f32 %v4316, %v4913
    %v5228 = vmul.f32 %v4320, %v4909
    %v5229 = vmul.f32 %v4320, %v4913
    %v5230 = vmul.f32 %v4324, %v4909
    %v5231 = vmul.f32 %v4324, %v4913
    %v5232 = vmul.f32 %v4328, %v4909
    %v5233 = vmul.f32 %v4328, %v4913
    %v5234 = vmul.f32 %v4316, %v4917
    %v5235 = vmul.f32 %v4316, %v4921
    %v5236 = vmul.f32 %v4320, %v4917
    %v5237 = vmul.f32 %v4320, %v4921
    %v5238 = vmul.f32 %v4324, %v4917
    %v5239 = vmul.f32 %v4324, %v4921
    %v5240 = vmul.f32 %v4328, %v4917
    %v5241 = vmul.f32 %v4328, %v4921
    %v5242 = vmul.f32 %v4316, %v4925
    %v5243 = vmul.f32 %v4316, %v4929
    %v5244 = vmul.f32 %v4320, %v4925
    %v5245 = vmul.f32 %v4320, %v4929
    %v5246 = vmul.f32 %v4324, %v4925
    %v5247 = vmul.f32 %v4324, %v4929
    %v5248 = vmul.f32 %v4328, %v4925
    %v5249 = vmul.f32 %v4328, %v4929
    %v5250 = vmul.f32 %v4316, %v4933
    %v5251 = vmul.f32 %v4316, %v4937
    %v5252 = vmul.f32 %v4320, %v4933
    %v5253 = vmul.f32 %v4320, %v4937
    %v5254 = vmul.f32 %v4324, %v4933
    %v5255 = vmul.f32 %v4324, %v4937
    %v5256 = vmul.f32 %v4328, %v4933
    %v5257 = vmul.f32 %v4328, %v4937
    %v5258 = vmul.f32 %v4316, %v4941
    %v5259 = vmul.f32 %v4316, %v4945
    %v5260 = vmul.f32 %v4320, %v4941
    %v5261 = vmul.f32 %v4320, %v4945
    %v5262 = vmul.f32 %v4324, %v4941
    %v5263 = vmul.f32 %v4324, %v4945
    %v5264 = vmul.f32 %v4328, %v4941
    %v5265 = vmul.f32 %v4328, %v4945
    %v5266 = vmul.f32 %v4316, %v4949
    %v5267 = vmul.f32 %v4316, %v4953
    %v5268 = vmul.f32 %v4320, %v4949
    %v5269 = vmul.f32 %v4320, %v4953
    %v5270 = vmul.f32 %v4324, %v4949
    %v5271 = vmul.f32 %v4324, %v4953
    %v5272 = vmul.f32 %v4328, %v4949
    %v5273 = vmul.f32 %v4328, %v4953
    %v5274 = vmul.f32 %v4316, %v4957
    %v5275 = vmul.f32 %v4316, %v4961
    %v5276 = vmul.f32 %v4320, %v4957
    %v5277 = vmul.f32 %v4320, %v4961
    %v5278 = vmul.f32 %v4324, %v4957
    %v5279 = vmul.f32 %v4324, %v4961
    %v5280 = vmul.f32 %v4328, %v4957
    %v5281 = vmul.f32 %v4328, %v4961
    %v5282 = vmul.f32 %v4316, %v4965
    %v5283 = vmul.f32 %v4316, %v4969
    %v5284 = vmul.f32 %v4320, %v4965
    %v5285 = vmul.f32 %v4320, %v4969
    %v5286 = vmul.f32 %v4324, %v4965
    %v5287 = vmul.f32 %v4324, %v4969
    %v5288 = vmul.f32 %v4328, %v4965
    %v5289 = vmul.f32 %v4328, %v4969
    %v5290 = vmul.f32 %v4316, %v4973
    %v5291 = vmul.f32 %v4316, %v4977
    %v5292 = vmul.f32 %v4320, %v4973
    %v5293 = vmul.f32 %v4320, %v4977
    %v5294 = vmul.f32 %v4324, %v4973
    %v5295 = vmul.f32 %v4324, %v4977
    %v5296 = vmul.f32 %v4328, %v4973
    %v5297 = vmul.f32 %v4328, %v4977
    %v5298 = vmul.f32 %v4316, %v4981
    %v5299 = vmul.f32 %v4316, %v4985
    %v5300 = vmul.f32 %v4320, %v4981
    %v5301 = vmul.f32 %v4320, %v4985
    %v5302 = vmul.f32 %v4324, %v4981
    %v5303 = vmul.f32 %v4324, %v4985
    %v5304 = vmul.f32 %v4328, %v4981
    %v5305 = vmul.f32 %v4328, %v4985
    %v5306 = vmul.f32 %v4316, %v4989
    %v5307 = vmul.f32 %v4316, %v4993
    %v5308 = vmul.f32 %v4320, %v4989
    %v5309 = vmul.f32 %v4320, %v4993
    %v5310 = vmul.f32 %v4324, %v4989
    %v5311 = vmul.f32 %v4324, %v4993
    %v5312 = vmul.f32 %v4328, %v4989
    %v5313 = vmul.f32 %v4328, %v4993
    %v5314 = vmul.f32 %v4316, %v4997
    %v5315 = vmul.f32 %v4316, %v5001
    %v5316 = vmul.f32 %v4320, %v4997
    %v5317 = vmul.f32 %v4320, %v5001
    %v5318 = vmul.f32 %v4324, %v4997
    %v5319 = vmul.f32 %v4324, %v5001
    %v5320 = vmul.f32 %v4328, %v4997
    %v5321 = vmul.f32 %v4328, %v5001
    %v5322 = vmul.f32 %v4316, %v5005
    %v5323 = vmul.f32 %v4316, %v5009
    %v5324 = vmul.f32 %v4320, %v5005
    %v5325 = vmul.f32 %v4320, %v5009
    %v5326 = vmul.f32 %v4324, %v5005
    %v5327 = vmul.f32 %v4324, %v5009
    %v5328 = vmul.f32 %v4328, %v5005
    %v5329 = vmul.f32 %v4328, %v5009
    %v5330 = vmul.f32 %v4316, %v5013
    %v5331 = vmul.f32 %v4316, %v5017
    %v5332 = vmul.f32 %v4320, %v5013
    %v5333 = vmul.f32 %v4320, %v5017
    %v5334 = vmul.f32 %v4324, %v5013
    %v5335 = vmul.f32 %v4324, %v5017
    %v5336 = vmul.f32 %v4328, %v5013
    %v5337 = vmul.f32 %v4328, %v5017
    %v5338 = vmul.f32 %v4316, %v5021
    %v5339 = vmul.f32 %v4316, %v5025
    %v5340 = vmul.f32 %v4320, %v5021
    %v5341 = vmul.f32 %v4320, %v5025
    %v5342 = vmul.f32 %v4324, %v5021
    %v5343 = vmul.f32 %v4324, %v5025
    %v5344 = vmul.f32 %v4328, %v5021
    %v5345 = vmul.f32 %v4328, %v5025
    %v5346 = vmul.f32 %v4316, %v5029
    %v5347 = vmul.f32 %v4316, %v5033
    %v5348 = vmul.f32 %v4320, %v5029
    %v5349 = vmul.f32 %v4320, %v5033
    %v5350 = vmul.f32 %v4324, %v5029
    %v5351 = vmul.f32 %v4324, %v5033
    %v5352 = vmul.f32 %v4328, %v5029
    %v5353 = vmul.f32 %v4328, %v5033
    %v5354 = vmul.f32 %v4316, %v5037
    %v5355 = vmul.f32 %v4316, %v5041
    %v5356 = vmul.f32 %v4320, %v5037
    %v5357 = vmul.f32 %v4320, %v5041
    %v5358 = vmul.f32 %v4324, %v5037
    %v5359 = vmul.f32 %v4324, %v5041
    %v5360 = vmul.f32 %v4328, %v5037
    %v5361 = vmul.f32 %v4328, %v5041
    %v5362 = vmul.f32 %v4316, %v5045
    %v5363 = vmul.f32 %v4316, %v5049
    %v5364 = vmul.f32 %v4320, %v5045
    %v5365 = vmul.f32 %v4320, %v5049
    %v5366 = vmul.f32 %v4324, %v5045
    %v5367 = vmul.f32 %v4324, %v5049
    %v5368 = vmul.f32 %v4328, %v5045
    %v5369 = vmul.f32 %v4328, %v5049
    %v5370 = vadd.f32 %v3994, %v5050
    %v5371 = vadd.f32 %v3995, %v5051
    %v5372 = vadd.f32 %v3996, %v5052
    %v5373 = vadd.f32 %v3997, %v5053
    %v5374 = vadd.f32 %v3998, %v5054
    %v5375 = vadd.f32 %v3999, %v5055
    %v5376 = vadd.f32 %v4000, %v5056
    %v5377 = vadd.f32 %v4001, %v5057
    %v5378 = vadd.f32 %v4002, %v5058
    %v5379 = vadd.f32 %v4003, %v5059
    %v5380 = vadd.f32 %v4004, %v5060
    %v5381 = vadd.f32 %v4005, %v5061
    %v5382 = vadd.f32 %v4006, %v5062
    %v5383 = vadd.f32 %v4007, %v5063
    %v5384 = vadd.f32 %v4008, %v5064
    %v5385 = vadd.f32 %v4009, %v5065
    %v5386 = vadd.f32 %v4010, %v5066
    %v5387 = vadd.f32 %v4011, %v5067
    %v5388 = vadd.f32 %v4012, %v5068
    %v5389 = vadd.f32 %v4013, %v5069
    %v5390 = vadd.f32 %v4014, %v5070
    %v5391 = vadd.f32 %v4015, %v5071
    %v5392 = vadd.f32 %v4016, %v5072
    %v5393 = vadd.f32 %v4017, %v5073
    %v5394 = vadd.f32 %v4018, %v5074
    %v5395 = vadd.f32 %v4019, %v5075
    %v5396 = vadd.f32 %v4020, %v5076
    %v5397 = vadd.f32 %v4021, %v5077
    %v5398 = vadd.f32 %v4022, %v5078
    %v5399 = vadd.f32 %v4023, %v5079
    %v5400 = vadd.f32 %v4024, %v5080
    %v5401 = vadd.f32 %v4025, %v5081
    %v5402 = vadd.f32 %v4026, %v5082
    %v5403 = vadd.f32 %v4027, %v5083
    %v5404 = vadd.f32 %v4028, %v5084
    %v5405 = vadd.f32 %v4029, %v5085
    %v5406 = vadd.f32 %v4030, %v5086
    %v5407 = vadd.f32 %v4031, %v5087
    %v5408 = vadd.f32 %v4032, %v5088
    %v5409 = vadd.f32 %v4033, %v5089
    %v5410 = vadd.f32 %v4034, %v5090
    %v5411 = vadd.f32 %v4035, %v5091
    %v5412 = vadd.f32 %v4036, %v5092
    %v5413 = vadd.f32 %v4037, %v5093
    %v5414 = vadd.f32 %v4038, %v5094
    %v5415 = vadd.f32 %v4039, %v5095
    %v5416 = vadd.f32 %v4040, %v5096
    %v5417 = vadd.f32 %v4041, %v5097
    %v5418 = vadd.f32 %v4042, %v5098
    %v5419 = vadd.f32 %v4043, %v5099
    %v5420 = vadd.f32 %v4044, %v5100
    %v5421 = vadd.f32 %v4045, %v5101
    %v5422 = vadd.f32 %v4046, %v5102
    %v5423 = vadd.f32 %v4047, %v5103
    %v5424 = vadd.f32 %v4048, %v5104
    %v5425 = vadd.f32 %v4049, %v5105
    %v5426 = vadd.f32 %v4050, %v5106
    %v5427 = vadd.f32 %v4051, %v5107
    %v5428 = vadd.f32 %v4052, %v5108
    %v5429 = vadd.f32 %v4053, %v5109
    %v5430 = vadd.f32 %v4054, %v5110
    %v5431 = vadd.f32 %v4055, %v5111
    %v5432 = vadd.f32 %v4056, %v5112
    %v5433 = vadd.f32 %v4057, %v5113
    %v5434 = vadd.f32 %v4058, %v5114
    %v5435 = vadd.f32 %v4059, %v5115
    %v5436 = vadd.f32 %v4060, %v5116
    %v5437 = vadd.f32 %v4061, %v5117
    %v5438 = vadd.f32 %v4062, %v5118
    %v5439 = vadd.f32 %v4063, %v5119
    %v5440 = vadd.f32 %v4064, %v5120
    %v5441 = vadd.f32 %v4065, %v5121
    %v5442 = vadd.f32 %v4066, %v5122
    %v5443 = vadd.f32 %v4067, %v5123
    %v5444 = vadd.f32 %v4068, %v5124
    %v5445 = vadd.f32 %v4069, %v5125
    %v5446 = vadd.f32 %v4070, %v5126
    %v5447 = vadd.f32 %v4071, %v5127
    %v5448 = vadd.f32 %v4072, %v5128
    %v5449 = vadd.f32 %v4073, %v5129
    %v5450 = vadd.f32 %v4074, %v5130
    %v5451 = vadd.f32 %v4075, %v5131
    %v5452 = vadd.f32 %v4076, %v5132
    %v5453 = vadd.f32 %v4077, %v5133
    %v5454 = vadd.f32 %v4078, %v5134
    %v5455 = vadd.f32 %v4079, %v5135
    %v5456 = vadd.f32 %v4080, %v5136
    %v5457 = vadd.f32 %v4081, %v5137
    %v5458 = vadd.f32 %v4082, %v5138
    %v5459 = vadd.f32 %v4083, %v5139
    %v5460 = vadd.f32 %v4084, %v5140
    %v5461 = vadd.f32 %v4085, %v5141
    %v5462 = vadd.f32 %v4086, %v5142
    %v5463 = vadd.f32 %v4087, %v5143
    %v5464 = vadd.f32 %v4088, %v5144
    %v5465 = vadd.f32 %v4089, %v5145
    %v5466 = vadd.f32 %v4090, %v5146
    %v5467 = vadd.f32 %v4091, %v5147
    %v5468 = vadd.f32 %v4092, %v5148
    %v5469 = vadd.f32 %v4093, %v5149
    %v5470 = vadd.f32 %v4094, %v5150
    %v5471 = vadd.f32 %v4095, %v5151
    %v5472 = vadd.f32 %v4096, %v5152
    %v5473 = vadd.f32 %v4097, %v5153
    %v5474 = vadd.f32 %v4098, %v5154
    %v5475 = vadd.f32 %v4099, %v5155
    %v5476 = vadd.f32 %v4100, %v5156
    %v5477 = vadd.f32 %v4101, %v5157
    %v5478 = vadd.f32 %v4102, %v5158
    %v5479 = vadd.f32 %v4103, %v5159
    %v5480 = vadd.f32 %v4104, %v5160
    %v5481 = vadd.f32 %v4105, %v5161
    %v5482 = vadd.f32 %v4106, %v5162
    %v5483 = vadd.f32 %v4107, %v5163
    %v5484 = vadd.f32 %v4108, %v5164
    %v5485 = vadd.f32 %v4109, %v5165
    %v5486 = vadd.f32 %v4110, %v5166
    %v5487 = vadd.f32 %v4111, %v5167
    %v5488 = vadd.f32 %v4112, %v5168
    %v5489 = vadd.f32 %v4113, %v5169
    %v5490 = vadd.f32 %v4114, %v5170
    %v5491 = vadd.f32 %v4115, %v5171
    %v5492 = vadd.f32 %v4116, %v5172
    %v5493 = vadd.f32 %v4117, %v5173
    %v5494 = vadd.f32 %v4118, %v5174
    %v5495 = vadd.f32 %v4119, %v5175
    %v5496 = vadd.f32 %v4120, %v5176
    %v5497 = vadd.f32 %v4121, %v5177
    %v5498 = vadd.f32 %v4122, %v5178
    %v5499 = vadd.f32 %v4123, %v5179
    %v5500 = vadd.f32 %v4124, %v5180
    %v5501 = vadd.f32 %v4125, %v5181
    %v5502 = vadd.f32 %v4126, %v5182
    %v5503 = vadd.f32 %v4127, %v5183
    %v5504 = vadd.f32 %v4128, %v5184
    %v5505 = vadd.f32 %v4129, %v5185
    %v5506 = vadd.f32 %v4130, %v5186
    %v5507 = vadd.f32 %v4131, %v5187
    %v5508 = vadd.f32 %v4132, %v5188
    %v5509 = vadd.f32 %v4133, %v5189
    %v5510 = vadd.f32 %v4134, %v5190
    %v5511 = vadd.f32 %v4135, %v5191
    %v5512 = vadd.f32 %v4136, %v5192
    %v5513 = vadd.f32 %v4137, %v5193
    %v5514 = vadd.f32 %v4138, %v5194
    %v5515 = vadd.f32 %v4139, %v5195
    %v5516 = vadd.f32 %v4140, %v5196
    %v5517 = vadd.f32 %v4141, %v5197
    %v5518 = vadd.f32 %v4142, %v5198
    %v5519 = vadd.f32 %v4143, %v5199
    %v5520 = vadd.f32 %v4144, %v5200
    %v5521 = vadd.f32 %v4145, %v5201
    %v5522 = vadd.f32 %v4146, %v5202
    %v5523 = vadd.f32 %v4147, %v5203
    %v5524 = vadd.f32 %v4148, %v5204
    %v5525 = vadd.f32 %v4149, %v5205
    %v5526 = vadd.f32 %v4150, %v5206
    %v5527 = vadd.f32 %v4151, %v5207
    %v5528 = vadd.f32 %v4152, %v5208
    %v5529 = vadd.f32 %v4153, %v5209
    %v5530 = vadd.f32 %v4154, %v5210
    %v5531 = vadd.f32 %v4155, %v5211
    %v5532 = vadd.f32 %v4156, %v5212
    %v5533 = vadd.f32 %v4157, %v5213
    %v5534 = vadd.f32 %v4158, %v5214
    %v5535 = vadd.f32 %v4159, %v5215
    %v5536 = vadd.f32 %v4160, %v5216
    %v5537 = vadd.f32 %v4161, %v5217
    %v5538 = vadd.f32 %v4162, %v5218
    %v5539 = vadd.f32 %v4163, %v5219
    %v5540 = vadd.f32 %v4164, %v5220
    %v5541 = vadd.f32 %v4165, %v5221
    %v5542 = vadd.f32 %v4166, %v5222
    %v5543 = vadd.f32 %v4167, %v5223
    %v5544 = vadd.f32 %v4168, %v5224
    %v5545 = vadd.f32 %v4169, %v5225
    %v5546 = vadd.f32 %v4170, %v5226
    %v5547 = vadd.f32 %v4171, %v5227
    %v5548 = vadd.f32 %v4172, %v5228
    %v5549 = vadd.f32 %v4173, %v5229
    %v5550 = vadd.f32 %v4174, %v5230
    %v5551 = vadd.f32 %v4175, %v5231
    %v5552 = vadd.f32 %v4176, %v5232
    %v5553 = vadd.f32 %v4177, %v5233
    %v5554 = vadd.f32 %v4178, %v5234
    %v5555 = vadd.f32 %v4179, %v5235
    %v5556 = vadd.f32 %v4180, %v5236
    %v5557 = vadd.f32 %v4181, %v5237
    %v5558 = vadd.f32 %v4182, %v5238
    %v5559 = vadd.f32 %v4183, %v5239
    %v5560 = vadd.f32 %v4184, %v5240
    %v5561 = vadd.f32 %v4185, %v5241
    %v5562 = vadd.f32 %v4186, %v5242
    %v5563 = vadd.f32 %v4187, %v5243
    %v5564 = vadd.f32 %v4188, %v5244
    %v5565 = vadd.f32 %v4189, %v5245
    %v5566 = vadd.f32 %v4190, %v5246
    %v5567 = vadd.f32 %v4191, %v5247
    %v5568 = vadd.f32 %v4192, %v5248
    %v5569 = vadd.f32 %v4193, %v5249
    %v5570 = vadd.f32 %v4194, %v5250
    %v5571 = vadd.f32 %v4195, %v5251
    %v5572 = vadd.f32 %v4196, %v5252
    %v5573 = vadd.f32 %v4197, %v5253
    %v5574 = vadd.f32 %v4198, %v5254
    %v5575 = vadd.f32 %v4199, %v5255
    %v5576 = vadd.f32 %v4200, %v5256
    %v5577 = vadd.f32 %v4201, %v5257
    %v5578 = vadd.f32 %v4202, %v5258
    %v5579 = vadd.f32 %v4203, %v5259
    %v5580 = vadd.f32 %v4204, %v5260
    %v5581 = vadd.f32 %v4205, %v5261
    %v5582 = vadd.f32 %v4206, %v5262
    %v5583 = vadd.f32 %v4207, %v5263
    %v5584 = vadd.f32 %v4208, %v5264
    %v5585 = vadd.f32 %v4209, %v5265
    %v5586 = vadd.f32 %v4210, %v5266
    %v5587 = vadd.f32 %v4211, %v5267
    %v5588 = vadd.f32 %v4212, %v5268
    %v5589 = vadd.f32 %v4213, %v5269
    %v5590 = vadd.f32 %v4214, %v5270
    %v5591 = vadd.f32 %v4215, %v5271
    %v5592 = vadd.f32 %v4216, %v5272
    %v5593 = vadd.f32 %v4217, %v5273
    %v5594 = vadd.f32 %v4218, %v5274
    %v5595 = vadd.f32 %v4219, %v5275
    %v5596 = vadd.f32 %v4220, %v5276
    %v5597 = vadd.f32 %v4221, %v5277
    %v5598 = vadd.f32 %v4222, %v5278
    %v5599 = vadd.f32 %v4223, %v5279
    %v5600 = vadd.f32 %v4224, %v5280
    %v5601 = vadd.f32 %v4225, %v5281
    %v5602 = vadd.f32 %v4226, %v5282
    %v5603 = vadd.f32 %v4227, %v5283
    %v5604 = vadd.f32 %v4228, %v5284
    %v5605 = vadd.f32 %v4229, %v5285
    %v5606 = vadd.f32 %v4230, %v5286
    %v5607 = vadd.f32 %v4231, %v5287
    %v5608 = vadd.f32 %v4232, %v5288
    %v5609 = vadd.f32 %v4233, %v5289
    %v5610 = vadd.f32 %v4234, %v5290
    %v5611 = vadd.f32 %v4235, %v5291
    %v5612 = vadd.f32 %v4236, %v5292
    %v5613 = vadd.f32 %v4237, %v5293
    %v5614 = vadd.f32 %v4238, %v5294
    %v5615 = vadd.f32 %v4239, %v5295
    %v5616 = vadd.f32 %v4240, %v5296
    %v5617 = vadd.f32 %v4241, %v5297
    %v5618 = vadd.f32 %v4242, %v5298
    %v5619 = vadd.f32 %v4243, %v5299
    %v5620 = vadd.f32 %v4244, %v5300
    %v5621 = vadd.f32 %v4245, %v5301
    %v5622 = vadd.f32 %v4246, %v5302
    %v5623 = vadd.f32 %v4247, %v5303
    %v5624 = vadd.f32 %v4248, %v5304
    %v5625 = vadd.f32 %v4249, %v5305
    %v5626 = vadd.f32 %v4250, %v5306
    %v5627 = vadd.f32 %v4251, %v5307
    %v5628 = vadd.f32 %v4252, %v5308
    %v5629 = vadd.f32 %v4253, %v5309
    %v5630 = vadd.f32 %v4254, %v5310
    %v5631 = vadd.f32 %v4255, %v5311
    %v5632 = vadd.f32 %v4256, %v5312
    %v5633 = vadd.f32 %v4257, %v5313
    %v5634 = vadd.f32 %v4258, %v5314
    %v5635 = vadd.f32 %v4259, %v5315
    %v5636 = vadd.f32 %v4260, %v5316
    %v5637 = vadd.f32 %v4261, %v5317
    %v5638 = vadd.f32 %v4262, %v5318
    %v5639 = vadd.f32 %v4263, %v5319
    %v5640 = vadd.f32 %v4264, %v5320
    %v5641 = vadd.f32 %v4265, %v5321
    %v5642 = vadd.f32 %v4266, %v5322
    %v5643 = vadd.f32 %v4267, %v5323
    %v5644 = vadd.f32 %v4268, %v5324
    %v5645 = vadd.f32 %v4269, %v5325
    %v5646 = vadd.f32 %v4270, %v5326
    %v5647 = vadd.f32 %v4271, %v5327
    %v5648 = vadd.f32 %v4272, %v5328
    %v5649 = vadd.f32 %v4273, %v5329
    %v5650 = vadd.f32 %v4274, %v5330
    %v5651 = vadd.f32 %v4275, %v5331
    %v5652 = vadd.f32 %v4276, %v5332
    %v5653 = vadd.f32 %v4277, %v5333
    %v5654 = vadd.f32 %v4278, %v5334
    %v5655 = vadd.f32 %v4279, %v5335
    %v5656 = vadd.f32 %v4280, %v5336
    %v5657 = vadd.f32 %v4281, %v5337
    %v5658 = vadd.f32 %v4282, %v5338
    %v5659 = vadd.f32 %v4283, %v5339
    %v5660 = vadd.f32 %v4284, %v5340
    %v5661 = vadd.f32 %v4285, %v5341
    %v5662 = vadd.f32 %v4286, %v5342
    %v5663 = vadd.f32 %v4287, %v5343
    %v5664 = vadd.f32 %v4288, %v5344
    %v5665 = vadd.f32 %v4289, %v5345
    %v5666 = vadd.f32 %v4290, %v5346
    %v5667 = vadd.f32 %v4291, %v5347
    %v5668 = vadd.f32 %v4292, %v5348
    %v5669 = vadd.f32 %v4293, %v5349
    %v5670 = vadd.f32 %v4294, %v5350
    %v5671 = vadd.f32 %v4295, %v5351
    %v5672 = vadd.f32 %v4296, %v5352
    %v5673 = vadd.f32 %v4297, %v5353
    %v5674 = vadd.f32 %v4298, %v5354
    %v5675 = vadd.f32 %v4299, %v5355
    %v5676 = vadd.f32 %v4300, %v5356
    %v5677 = vadd.f32 %v4301, %v5357
    %v5678 = vadd.f32 %v4302, %v5358
    %v5679 = vadd.f32 %v4303, %v5359
    %v5680 = vadd.f32 %v4304, %v5360
    %v5681 = vadd.f32 %v4305, %v5361
    %v5682 = vadd.f32 %v4306, %v5362
    %v5683 = vadd.f32 %v4307, %v5363
    %v5684 = vadd.f32 %v4308, %v5364
    %v5685 = vadd.f32 %v4309, %v5365
    %v5686 = vadd.f32 %v4310, %v5366
    %v5687 = vadd.f32 %v4311, %v5367
    %v5688 = vadd.f32 %v4312, %v5368
    %v5689 = vadd.f32 %v4313, %v5369
    %v5690 = vmax.f32 %v5370, 0.0
    %v5691 = vmax.f32 %v5371, 0.0
    %v5692 = vmax.f32 %v5372, 0.0
    %v5693 = vmax.f32 %v5373, 0.0
    %v5694 = vmax.f32 %v5374, 0.0
    %v5695 = vmax.f32 %v5375, 0.0
    %v5696 = vmax.f32 %v5376, 0.0
    %v5697 = vmax.f32 %v5377, 0.0
    %v5698 = vmax.f32 %v5378, 0.0
    %v5699 = vmax.f32 %v5379, 0.0
    %v5700 = vmax.f32 %v5380, 0.0
    %v5701 = vmax.f32 %v5381, 0.0
    %v5702 = vmax.f32 %v5382, 0.0
    %v5703 = vmax.f32 %v5383, 0.0
    %v5704 = vmax.f32 %v5384, 0.0
    %v5705 = vmax.f32 %v5385, 0.0
    %v5706 = vmax.f32 %v5386, 0.0
    %v5707 = vmax.f32 %v5387, 0.0
    %v5708 = vmax.f32 %v5388, 0.0
    %v5709 = vmax.f32 %v5389, 0.0
    %v5710 = vmax.f32 %v5390, 0.0
    %v5711 = vmax.f32 %v5391, 0.0
    %v5712 = vmax.f32 %v5392, 0.0
    %v5713 = vmax.f32 %v5393, 0.0
    %v5714 = vmax.f32 %v5394, 0.0
    %v5715 = vmax.f32 %v5395, 0.0
    %v5716 = vmax.f32 %v5396, 0.0
    %v5717 = vmax.f32 %v5397, 0.0
    %v5718 = vmax.f32 %v5398, 0.0
    %v5719 = vmax.f32 %v5399, 0.0
    %v5720 = vmax.f32 %v5400, 0.0
    %v5721 = vmax.f32 %v5401, 0.0
    %v5722 = vmax.f32 %v5402, 0.0
    %v5723 = vmax.f32 %v5403, 0.0
    %v5724 = vmax.f32 %v5404, 0.0
    %v5725 = vmax.f32 %v5405, 0.0
    %v5726 = vmax.f32 %v5406, 0.0
    %v5727 = vmax.f32 %v5407, 0.0
    %v5728 = vmax.f32 %v5408, 0.0
    %v5729 = vmax.f32 %v5409, 0.0
    %v5730 = vmax.f32 %v5410, 0.0
    %v5731 = vmax.f32 %v5411, 0.0
    %v5732 = vmax.f32 %v5412, 0.0
    %v5733 = vmax.f32 %v5413, 0.0
    %v5734 = vmax.f32 %v5414, 0.0
    %v5735 = vmax.f32 %v5415, 0.0
    %v5736 = vmax.f32 %v5416, 0.0
    %v5737 = vmax.f32 %v5417, 0.0
    %v5738 = vmax.f32 %v5418, 0.0
    %v5739 = vmax.f32 %v5419, 0.0
    %v5740 = vmax.f32 %v5420, 0.0
    %v5741 = vmax.f32 %v5421, 0.0
    %v5742 = vmax.f32 %v5422, 0.0
    %v5743 = vmax.f32 %v5423, 0.0
    %v5744 = vmax.f32 %v5424, 0.0
    %v5745 = vmax.f32 %v5425, 0.0
    %v5746 = vmax.f32 %v5426, 0.0
    %v5747 = vmax.f32 %v5427, 0.0
    %v5748 = vmax.f32 %v5428, 0.0
    %v5749 = vmax.f32 %v5429, 0.0
    %v5750 = vmax.f32 %v5430, 0.0
    %v5751 = vmax.f32 %v5431, 0.0
    %v5752 = vmax.f32 %v5432, 0.0
    %v5753 = vmax.f32 %v5433, 0.0
    %v5754 = vmax.f32 %v5434, 0.0
    %v5755 = vmax.f32 %v5435, 0.0
    %v5756 = vmax.f32 %v5436, 0.0
    %v5757 = vmax.f32 %v5437, 0.0
    %v5758 = vmax.f32 %v5438, 0.0
    %v5759 = vmax.f32 %v5439, 0.0
    %v5760 = vmax.f32 %v5440, 0.0
    %v5761 = vmax.f32 %v5441, 0.0
    %v5762 = vmax.f32 %v5442, 0.0
    %v5763 = vmax.f32 %v5443, 0.0
    %v5764 = vmax.f32 %v5444, 0.0
    %v5765 = vmax.f32 %v5445, 0.0
    %v5766 = vmax.f32 %v5446, 0.0
    %v5767 = vmax.f32 %v5447, 0.0
    %v5768 = vmax.f32 %v5448, 0.0
    %v5769 = vmax.f32 %v5449, 0.0
    %v5770 = vmax.f32 %v5450, 0.0
    %v5771 = vmax.f32 %v5451, 0.0
    %v5772 = vmax.f32 %v5452, 0.0
    %v5773 = vmax.f32 %v5453, 0.0
    %v5774 = vmax.f32 %v5454, 0.0
    %v5775 = vmax.f32 %v5455, 0.0
    %v5776 = vmax.f32 %v5456, 0.0
    %v5777 = vmax.f32 %v5457, 0.0
    %v5778 = vmax.f32 %v5458, 0.0
    %v5779 = vmax.f32 %v5459, 0.0
    %v5780 = vmax.f32 %v5460, 0.0
    %v5781 = vmax.f32 %v5461, 0.0
    %v5782 = vmax.f32 %v5462, 0.0
    %v5783 = vmax.f32 %v5463, 0.0
    %v5784 = vmax.f32 %v5464, 0.0
    %v5785 = vmax.f32 %v5465, 0.0
    %v5786 = vmax.f32 %v5466, 0.0
    %v5787 = vmax.f32 %v5467, 0.0
    %v5788 = vmax.f32 %v5468, 0.0
    %v5789 = vmax.f32 %v5469, 0.0
    %v5790 = vmax.f32 %v5470, 0.0
    %v5791 = vmax.f32 %v5471, 0.0
    %v5792 = vmax.f32 %v5472, 0.0
    %v5793 = vmax.f32 %v5473, 0.0
    %v5794 = vmax.f32 %v5474, 0.0
    %v5795 = vmax.f32 %v5475, 0.0
    %v5796 = vmax.f32 %v5476, 0.0
    %v5797 = vmax.f32 %v5477, 0.0
    %v5798 = vmax.f32 %v5478, 0.0
    %v5799 = vmax.f32 %v5479, 0.0
    %v5800 = vmax.f32 %v5480, 0.0
    %v5801 = vmax.f32 %v5481, 0.0
    %v5802 = vmax.f32 %v5482, 0.0
    %v5803 = vmax.f32 %v5483, 0.0
    %v5804 = vmax.f32 %v5484, 0.0
    %v5805 = vmax.f32 %v5485, 0.0
    %v5806 = vmax.f32 %v5486, 0.0
    %v5807 = vmax.f32 %v5487, 0.0
    %v5808 = vmax.f32 %v5488, 0.0
    %v5809 = vmax.f32 %v5489, 0.0
    %v5810 = vmax.f32 %v5490, 0.0
    %v5811 = vmax.f32 %v5491, 0.0
    %v5812 = vmax.f32 %v5492, 0.0
    %v5813 = vmax.f32 %v5493, 0.0
    %v5814 = vmax.f32 %v5494, 0.0
    %v5815 = vmax.f32 %v5495, 0.0
    %v5816 = vmax.f32 %v5496, 0.0
    %v5817 = vmax.f32 %v5497, 0.0
    %v5818 = vmax.f32 %v5498, 0.0
    %v5819 = vmax.f32 %v5499, 0.0
    %v5820 = vmax.f32 %v5500, 0.0
    %v5821 = vmax.f32 %v5501, 0.0
    %v5822 = vmax.f32 %v5502, 0.0
    %v5823 = vmax.f32 %v5503, 0.0
    %v5824 = vmax.f32 %v5504, 0.0
    %v5825 = vmax.f32 %v5505, 0.0
    %v5826 = vmax.f32 %v5506, 0.0
    %v5827 = vmax.f32 %v5507, 0.0
    %v5828 = vmax.f32 %v5508, 0.0
    %v5829 = vmax.f32 %v5509, 0.0
    %v5830 = vmax.f32 %v5510, 0.0
    %v5831 = vmax.f32 %v5511, 0.0
    %v5832 = vmax.f32 %v5512, 0.0
    %v5833 = vmax.f32 %v5513, 0.0
    %v5834 = vmax.f32 %v5514, 0.0
    %v5835 = vmax.f32 %v5515, 0.0
    %v5836 = vmax.f32 %v5516, 0.0
    %v5837 = vmax.f32 %v5517, 0.0
    %v5838 = vmax.f32 %v5518, 0.0
    %v5839 = vmax.f32 %v5519, 0.0
    %v5840 = vmax.f32 %v5520, 0.0
    %v5841 = vmax.f32 %v5521, 0.0
    %v5842 = vmax.f32 %v5522, 0.0
    %v5843 = vmax.f32 %v5523, 0.0
    %v5844 = vmax.f32 %v5524, 0.0
    %v5845 = vmax.f32 %v5525, 0.0
    %v5846 = vmax.f32 %v5526, 0.0
    %v5847 = vmax.f32 %v5527, 0.0
    %v5848 = vmax.f32 %v5528, 0.0
    %v5849 = vmax.f32 %v5529, 0.0
    %v5850 = vmax.f32 %v5530, 0.0
    %v5851 = vmax.f32 %v5531, 0.0
    %v5852 = vmax.f32 %v5532, 0.0
    %v5853 = vmax.f32 %v5533, 0.0
    %v5854 = vmax.f32 %v5534, 0.0
    %v5855 = vmax.f32 %v5535, 0.0
    %v5856 = vmax.f32 %v5536, 0.0
    %v5857 = vmax.f32 %v5537, 0.0
    %v5858 = vmax.f32 %v5538, 0.0
    %v5859 = vmax.f32 %v5539, 0.0
    %v5860 = vmax.f32 %v5540, 0.0
    %v5861 = vmax.f32 %v5541, 0.0
    %v5862 = vmax.f32 %v5542, 0.0
    %v5863 = vmax.f32 %v5543, 0.0
    %v5864 = vmax.f32 %v5544, 0.0
    %v5865 = vmax.f32 %v5545, 0.0
    %v5866 = vmax.f32 %v5546, 0.0
    %v5867 = vmax.f32 %v5547, 0.0
    %v5868 = vmax.f32 %v5548, 0.0
    %v5869 = vmax.f32 %v5549, 0.0
    %v5870 = vmax.f32 %v5550, 0.0
    %v5871 = vmax.f32 %v5551, 0.0
    %v5872 = vmax.f32 %v5552, 0.0
    %v5873 = vmax.f32 %v5553, 0.0
    %v5874 = vmax.f32 %v5554, 0.0
    %v5875 = vmax.f32 %v5555, 0.0
    %v5876 = vmax.f32 %v5556, 0.0
    %v5877 = vmax.f32 %v5557, 0.0
    %v5878 = vmax.f32 %v5558, 0.0
    %v5879 = vmax.f32 %v5559, 0.0
    %v5880 = vmax.f32 %v5560, 0.0
    %v5881 = vmax.f32 %v5561, 0.0
    %v5882 = vmax.f32 %v5562, 0.0
    %v5883 = vmax.f32 %v5563, 0.0
    %v5884 = vmax.f32 %v5564, 0.0
    %v5885 = vmax.f32 %v5565, 0.0
    %v5886 = vmax.f32 %v5566, 0.0
    %v5887 = vmax.f32 %v5567, 0.0
    %v5888 = vmax.f32 %v5568, 0.0
    %v5889 = vmax.f32 %v5569, 0.0
    %v5890 = vmax.f32 %v5570, 0.0
    %v5891 = vmax.f32 %v5571, 0.0
    %v5892 = vmax.f32 %v5572, 0.0
    %v5893 = vmax.f32 %v5573, 0.0
    %v5894 = vmax.f32 %v5574, 0.0
    %v5895 = vmax.f32 %v5575, 0.0
    %v5896 = vmax.f32 %v5576, 0.0
    %v5897 = vmax.f32 %v5577, 0.0
    %v5898 = vmax.f32 %v5578, 0.0
    %v5899 = vmax.f32 %v5579, 0.0
    %v5900 = vmax.f32 %v5580, 0.0
    %v5901 = vmax.f32 %v5581, 0.0
    %v5902 = vmax.f32 %v5582, 0.0
    %v5903 = vmax.f32 %v5583, 0.0
    %v5904 = vmax.f32 %v5584, 0.0
    %v5905 = vmax.f32 %v5585, 0.0
    %v5906 = vmax.f32 %v5586, 0.0
    %v5907 = vmax.f32 %v5587, 0.0
    %v5908 = vmax.f32 %v5588, 0.0
    %v5909 = vmax.f32 %v5589, 0.0
    %v5910 = vmax.f32 %v5590, 0.0
    %v5911 = vmax.f32 %v5591, 0.0
    %v5912 = vmax.f32 %v5592, 0.0
    %v5913 = vmax.f32 %v5593, 0.0
    %v5914 = vmax.f32 %v5594, 0.0
    %v5915 = vmax.f32 %v5595, 0.0
    %v5916 = vmax.f32 %v5596, 0.0
    %v5917 = vmax.f32 %v5597, 0.0
    %v5918 = vmax.f32 %v5598, 0.0
    %v5919 = vmax.f32 %v5599, 0.0
    %v5920 = vmax.f32 %v5600, 0.0
    %v5921 = vmax.f32 %v5601, 0.0
    %v5922 = vmax.f32 %v5602, 0.0
    %v5923 = vmax.f32 %v5603, 0.0
    %v5924 = vmax.f32 %v5604, 0.0
    %v5925 = vmax.f32 %v5605, 0.0
    %v5926 = vmax.f32 %v5606, 0.0
    %v5927 = vmax.f32 %v5607, 0.0
    %v5928 = vmax.f32 %v5608, 0.0
    %v5929 = vmax.f32 %v5609, 0.0
    %v5930 = vmax.f32 %v5610, 0.0
    %v5931 = vmax.f32 %v5611, 0.0
    %v5932 = vmax.f32 %v5612, 0.0
    %v5933 = vmax.f32 %v5613, 0.0
    %v5934 = vmax.f32 %v5614, 0.0
    %v5935 = vmax.f32 %v5615, 0.0
    %v5936 = vmax.f32 %v5616, 0.0
    %v5937 = vmax.f32 %v5617, 0.0
    %v5938 = vmax.f32 %v5618, 0.0
    %v5939 = vmax.f32 %v5619, 0.0
    %v5940 = vmax.f32 %v5620, 0.0
    %v5941 = vmax.f32 %v5621, 0.0
    %v5942 = vmax.f32 %v5622, 0.0
    %v5943 = vmax.f32 %v5623, 0.0
    %v5944 = vmax.f32 %v5624, 0.0
    %v5945 = vmax.f32 %v5625, 0.0
    %v5946 = vmax.f32 %v5626, 0.0
    %v5947 = vmax.f32 %v5627, 0.0
    %v5948 = vmax.f32 %v5628, 0.0
    %v5949 = vmax.f32 %v5629, 0.0
    %v5950 = vmax.f32 %v5630, 0.0
    %v5951 = vmax.f32 %v5631, 0.0
    %v5952 = vmax.f32 %v5632, 0.0
    %v5953 = vmax.f32 %v5633, 0.0
    %v5954 = vmax.f32 %v5634, 0.0
    %v5955 = vmax.f32 %v5635, 0.0
    %v5956 = vmax.f32 %v5636, 0.0
    %v5957 = vmax.f32 %v5637, 0.0
    %v5958 = vmax.f32 %v5638, 0.0
    %v5959 = vmax.f32 %v5639, 0.0
    %v5960 = vmax.f32 %v5640, 0.0
    %v5961 = vmax.f32 %v5641, 0.0
    %v5962 = vmax.f32 %v5642, 0.0
    %v5963 = vmax.f32 %v5643, 0.0
    %v5964 = vmax.f32 %v5644, 0.0
    %v5965 = vmax.f32 %v5645, 0.0
    %v5966 = vmax.f32 %v5646, 0.0
    %v5967 = vmax.f32 %v5647, 0.0
    %v5968 = vmax.f32 %v5648, 0.0
    %v5969 = vmax.f32 %v5649, 0.0
    %v5970 = vmax.f32 %v5650, 0.0
    %v5971 = vmax.f32 %v5651, 0.0
    %v5972 = vmax.f32 %v5652, 0.0
    %v5973 = vmax.f32 %v5653, 0.0
    %v5974 = vmax.f32 %v5654, 0.0
    %v5975 = vmax.f32 %v5655, 0.0
    %v5976 = vmax.f32 %v5656, 0.0
    %v5977 = vmax.f32 %v5657, 0.0
    %v5978 = vmax.f32 %v5658, 0.0
    %v5979 = vmax.f32 %v5659, 0.0
    %v5980 = vmax.f32 %v5660, 0.0
    %v5981 = vmax.f32 %v5661, 0.0
    %v5982 = vmax.f32 %v5662, 0.0
    %v5983 = vmax.f32 %v5663, 0.0
    %v5984 = vmax.f32 %v5664, 0.0
    %v5985 = vmax.f32 %v5665, 0.0
    %v5986 = vmax.f32 %v5666, 0.0
    %v5987 = vmax.f32 %v5667, 0.0
    %v5988 = vmax.f32 %v5668, 0.0
    %v5989 = vmax.f32 %v5669, 0.0
    %v5990 = vmax.f32 %v5670, 0.0
    %v5991 = vmax.f32 %v5671, 0.0
    %v5992 = vmax.f32 %v5672, 0.0
    %v5993 = vmax.f32 %v5673, 0.0
    %v5994 = vmax.f32 %v5674, 0.0
    %v5995 = vmax.f32 %v5675, 0.0
    %v5996 = vmax.f32 %v5676, 0.0
    %v5997 = vmax.f32 %v5677, 0.0
    %v5998 = vmax.f32 %v5678, 0.0
    %v5999 = vmax.f32 %v5679, 0.0
    %v6000 = vmax.f32 %v5680, 0.0
    %v6001 = vmax.f32 %v5681, 0.0
    %v6002 = vmax.f32 %v5682, 0.0
    %v6003 = vmax.f32 %v5683, 0.0
    %v6004 = vmax.f32 %v5684, 0.0
    %v6005 = vmax.f32 %v5685, 0.0
    %v6006 = vmax.f32 %v5686, 0.0
    %v6007 = vmax.f32 %v5687, 0.0
    %v6008 = vmax.f32 %v5688, 0.0
    %v6009 = vmax.f32 %v5689, 0.0
    %v6010 = vadd.f32 %v5690, %v5691
    %6011 = vadd.xlane.f32.xlu0 %v6010
    %v6012 = vpop.xlane.xlu0 %6011
    %v6013 = vadd.f32 %v5692, %v5693
    %6014 = vadd.xlane.f32.xlu0 %v6013
    %v6015 = vpop.xlane.xlu0 %6014
    %v6016 = vadd.f32 %v5694, %v5695
    %6017 = vadd.xlane.f32.xlu0 %v6016
    %v6018 = vpop.xlane.xlu0 %6017
    %v6019 = vadd.f32 %v5696, %v5697
    %6020 = vadd.xlane.f32.xlu0 %v6019
    %v6021 = vpop.xlane.xlu0 %6020
    %v6022 = vadd.f32 %v5698, %v5699
    %6023 = vadd.xlane.f32.xlu0 %v6022
    %v6024 = vpop.xlane.xlu0 %6023
    %v6025 = vadd.f32 %v5700, %v5701
    %6026 = vadd.xlane.f32.xlu0 %v6025
    %v6027 = vpop.xlane.xlu0 %6026
    %v6028 = vadd.f32 %v5702, %v5703
    %6029 = vadd.xlane.f32.xlu0 %v6028
    %v6030 = vpop.xlane.xlu0 %6029
    %v6031 = vadd.f32 %v5704, %v5705
    %6032 = vadd.xlane.f32.xlu0 %v6031
    %v6033 = vpop.xlane.xlu0 %6032
    %v6034 = vadd.f32 %v5706, %v5707
    %6035 = vadd.xlane.f32.xlu0 %v6034
    %v6036 = vpop.xlane.xlu0 %6035
    %v6037 = vadd.f32 %v5708, %v5709
    %6038 = vadd.xlane.f32.xlu0 %v6037
    %v6039 = vpop.xlane.xlu0 %6038
    %v6040 = vadd.f32 %v5710, %v5711
    %6041 = vadd.xlane.f32.xlu0 %v6040
    %v6042 = vpop.xlane.xlu0 %6041
    %v6043 = vadd.f32 %v5712, %v5713
    %6044 = vadd.xlane.f32.xlu0 %v6043
    %v6045 = vpop.xlane.xlu0 %6044
    %v6046 = vadd.f32 %v5714, %v5715
    %6047 = vadd.xlane.f32.xlu0 %v6046
    %v6048 = vpop.xlane.xlu0 %6047
    %v6049 = vadd.f32 %v5716, %v5717
    %6050 = vadd.xlane.f32.xlu0 %v6049
    %v6051 = vpop.xlane.xlu0 %6050
    %v6052 = vadd.f32 %v5718, %v5719
    %6053 = vadd.xlane.f32.xlu0 %v6052
    %v6054 = vpop.xlane.xlu0 %6053
    %v6055 = vadd.f32 %v5720, %v5721
    %6056 = vadd.xlane.f32.xlu0 %v6055
    %v6057 = vpop.xlane.xlu0 %6056
    %v6058 = vadd.f32 %v5722, %v5723
    %6059 = vadd.xlane.f32.xlu0 %v6058
    %v6060 = vpop.xlane.xlu0 %6059
    %v6061 = vadd.f32 %v5724, %v5725
    %6062 = vadd.xlane.f32.xlu0 %v6061
    %v6063 = vpop.xlane.xlu0 %6062
    %v6064 = vadd.f32 %v5726, %v5727
    %6065 = vadd.xlane.f32.xlu0 %v6064
    %v6066 = vpop.xlane.xlu0 %6065
    %v6067 = vadd.f32 %v5728, %v5729
    %6068 = vadd.xlane.f32.xlu0 %v6067
    %v6069 = vpop.xlane.xlu0 %6068
    %v6070 = vadd.f32 %v5730, %v5731
    %6071 = vadd.xlane.f32.xlu0 %v6070
    %v6072 = vpop.xlane.xlu0 %6071
    %v6073 = vadd.f32 %v5732, %v5733
    %6074 = vadd.xlane.f32.xlu0 %v6073
    %v6075 = vpop.xlane.xlu0 %6074
    %v6076 = vadd.f32 %v5734, %v5735
    %6077 = vadd.xlane.f32.xlu0 %v6076
    %v6078 = vpop.xlane.xlu0 %6077
    %v6079 = vadd.f32 %v5736, %v5737
    %6080 = vadd.xlane.f32.xlu0 %v6079
    %v6081 = vpop.xlane.xlu0 %6080
    %v6082 = vadd.f32 %v5738, %v5739
    %6083 = vadd.xlane.f32.xlu0 %v6082
    %v6084 = vpop.xlane.xlu0 %6083
    %v6085 = vadd.f32 %v5740, %v5741
    %6086 = vadd.xlane.f32.xlu0 %v6085
    %v6087 = vpop.xlane.xlu0 %6086
    %v6088 = vadd.f32 %v5742, %v5743
    %6089 = vadd.xlane.f32.xlu0 %v6088
    %v6090 = vpop.xlane.xlu0 %6089
    %v6091 = vadd.f32 %v5744, %v5745
    %6092 = vadd.xlane.f32.xlu0 %v6091
    %v6093 = vpop.xlane.xlu0 %6092
    %v6094 = vadd.f32 %v5746, %v5747
    %6095 = vadd.xlane.f32.xlu0 %v6094
    %v6096 = vpop.xlane.xlu0 %6095
    %v6097 = vadd.f32 %v5748, %v5749
    %6098 = vadd.xlane.f32.xlu0 %v6097
    %v6099 = vpop.xlane.xlu0 %6098
    %v6100 = vadd.f32 %v5750, %v5751
    %6101 = vadd.xlane.f32.xlu0 %v6100
    %v6102 = vpop.xlane.xlu0 %6101
    %v6103 = vadd.f32 %v5752, %v5753
    %6104 = vadd.xlane.f32.xlu0 %v6103
    %v6105 = vpop.xlane.xlu0 %6104
    %v6106 = vadd.f32 %v5754, %v5755
    %6107 = vadd.xlane.f32.xlu0 %v6106
    %v6108 = vpop.xlane.xlu0 %6107
    %v6109 = vadd.f32 %v5756, %v5757
    %6110 = vadd.xlane.f32.xlu0 %v6109
    %v6111 = vpop.xlane.xlu0 %6110
    %v6112 = vadd.f32 %v5758, %v5759
    %6113 = vadd.xlane.f32.xlu0 %v6112
    %v6114 = vpop.xlane.xlu0 %6113
    %v6115 = vadd.f32 %v5760, %v5761
    %6116 = vadd.xlane.f32.xlu0 %v6115
    %v6117 = vpop.xlane.xlu0 %6116
    %v6118 = vadd.f32 %v5762, %v5763
    %6119 = vadd.xlane.f32.xlu0 %v6118
    %v6120 = vpop.xlane.xlu0 %6119
    %v6121 = vadd.f32 %v5764, %v5765
    %6122 = vadd.xlane.f32.xlu0 %v6121
    %v6123 = vpop.xlane.xlu0 %6122
    %v6124 = vadd.f32 %v5766, %v5767
    %6125 = vadd.xlane.f32.xlu0 %v6124
    %v6126 = vpop.xlane.xlu0 %6125
    %v6127 = vadd.f32 %v5768, %v5769
    %6128 = vadd.xlane.f32.xlu0 %v6127
    %v6129 = vpop.xlane.xlu0 %6128
    %v6130 = vadd.f32 %v5770, %v5771
    %6131 = vadd.xlane.f32.xlu0 %v6130
    %v6132 = vpop.xlane.xlu0 %6131
    %v6133 = vadd.f32 %v5772, %v5773
    %6134 = vadd.xlane.f32.xlu0 %v6133
    %v6135 = vpop.xlane.xlu0 %6134
    %v6136 = vadd.f32 %v5774, %v5775
    %6137 = vadd.xlane.f32.xlu0 %v6136
    %v6138 = vpop.xlane.xlu0 %6137
    %v6139 = vadd.f32 %v5776, %v5777
    %6140 = vadd.xlane.f32.xlu0 %v6139
    %v6141 = vpop.xlane.xlu0 %6140
    %v6142 = vadd.f32 %v5778, %v5779
    %6143 = vadd.xlane.f32.xlu0 %v6142
    %v6144 = vpop.xlane.xlu0 %6143
    %v6145 = vadd.f32 %v5780, %v5781
    %6146 = vadd.xlane.f32.xlu0 %v6145
    %v6147 = vpop.xlane.xlu0 %6146
    %v6148 = vadd.f32 %v5782, %v5783
    %6149 = vadd.xlane.f32.xlu0 %v6148
    %v6150 = vpop.xlane.xlu0 %6149
    %v6151 = vadd.f32 %v5784, %v5785
    %6152 = vadd.xlane.f32.xlu0 %v6151
    %v6153 = vpop.xlane.xlu0 %6152
    %v6154 = vadd.f32 %v5786, %v5787
    %6155 = vadd.xlane.f32.xlu0 %v6154
    %v6156 = vpop.xlane.xlu0 %6155
    %v6157 = vadd.f32 %v5788, %v5789
    %6158 = vadd.xlane.f32.xlu0 %v6157
    %v6159 = vpop.xlane.xlu0 %6158
    %v6160 = vadd.f32 %v5790, %v5791
    %6161 = vadd.xlane.f32.xlu0 %v6160
    %v6162 = vpop.xlane.xlu0 %6161
    %v6163 = vadd.f32 %v5792, %v5793
    %6164 = vadd.xlane.f32.xlu0 %v6163
    %v6165 = vpop.xlane.xlu0 %6164
    %v6166 = vadd.f32 %v5794, %v5795
    %6167 = vadd.xlane.f32.xlu0 %v6166
    %v6168 = vpop.xlane.xlu0 %6167
    %v6169 = vadd.f32 %v5796, %v5797
    %6170 = vadd.xlane.f32.xlu0 %v6169
    %v6171 = vpop.xlane.xlu0 %6170
    %v6172 = vadd.f32 %v5798, %v5799
    %6173 = vadd.xlane.f32.xlu0 %v6172
    %v6174 = vpop.xlane.xlu0 %6173
    %v6175 = vadd.f32 %v5800, %v5801
    %6176 = vadd.xlane.f32.xlu0 %v6175
    %v6177 = vpop.xlane.xlu0 %6176
    %v6178 = vadd.f32 %v5802, %v5803
    %6179 = vadd.xlane.f32.xlu0 %v6178
    %v6180 = vpop.xlane.xlu0 %6179
    %v6181 = vadd.f32 %v5804, %v5805
    %6182 = vadd.xlane.f32.xlu0 %v6181
    %v6183 = vpop.xlane.xlu0 %6182
    %v6184 = vadd.f32 %v5806, %v5807
    %6185 = vadd.xlane.f32.xlu0 %v6184
    %v6186 = vpop.xlane.xlu0 %6185
    %v6187 = vadd.f32 %v5808, %v5809
    %6188 = vadd.xlane.f32.xlu0 %v6187
    %v6189 = vpop.xlane.xlu0 %6188
    %v6190 = vadd.f32 %v5810, %v5811
    %6191 = vadd.xlane.f32.xlu0 %v6190
    %v6192 = vpop.xlane.xlu0 %6191
    %v6193 = vadd.f32 %v5812, %v5813
    %6194 = vadd.xlane.f32.xlu0 %v6193
    %v6195 = vpop.xlane.xlu0 %6194
    %v6196 = vadd.f32 %v5814, %v5815
    %6197 = vadd.xlane.f32.xlu0 %v6196
    %v6198 = vpop.xlane.xlu0 %6197
    %v6199 = vadd.f32 %v5816, %v5817
    %6200 = vadd.xlane.f32.xlu0 %v6199
    %v6201 = vpop.xlane.xlu0 %6200
    %v6202 = vadd.f32 %v5818, %v5819
    %6203 = vadd.xlane.f32.xlu0 %v6202
    %v6204 = vpop.xlane.xlu0 %6203
    %v6205 = vadd.f32 %v5820, %v5821
    %6206 = vadd.xlane.f32.xlu0 %v6205
    %v6207 = vpop.xlane.xlu0 %6206
    %v6208 = vadd.f32 %v5822, %v5823
    %6209 = vadd.xlane.f32.xlu0 %v6208
    %v6210 = vpop.xlane.xlu0 %6209
    %v6211 = vadd.f32 %v5824, %v5825
    %6212 = vadd.xlane.f32.xlu0 %v6211
    %v6213 = vpop.xlane.xlu0 %6212
    %v6214 = vadd.f32 %v5826, %v5827
    %6215 = vadd.xlane.f32.xlu0 %v6214
    %v6216 = vpop.xlane.xlu0 %6215
    %v6217 = vadd.f32 %v5828, %v5829
    %6218 = vadd.xlane.f32.xlu0 %v6217
    %v6219 = vpop.xlane.xlu0 %6218
    %v6220 = vadd.f32 %v5830, %v5831
    %6221 = vadd.xlane.f32.xlu0 %v6220
    %v6222 = vpop.xlane.xlu0 %6221
    %v6223 = vadd.f32 %v5832, %v5833
    %6224 = vadd.xlane.f32.xlu0 %v6223
    %v6225 = vpop.xlane.xlu0 %6224
    %v6226 = vadd.f32 %v5834, %v5835
    %6227 = vadd.xlane.f32.xlu0 %v6226
    %v6228 = vpop.xlane.xlu0 %6227
    %v6229 = vadd.f32 %v5836, %v5837
    %6230 = vadd.xlane.f32.xlu0 %v6229
    %v6231 = vpop.xlane.xlu0 %6230
    %v6232 = vadd.f32 %v5838, %v5839
    %6233 = vadd.xlane.f32.xlu0 %v6232
    %v6234 = vpop.xlane.xlu0 %6233
    %v6235 = vadd.f32 %v5840, %v5841
    %6236 = vadd.xlane.f32.xlu0 %v6235
    %v6237 = vpop.xlane.xlu0 %6236
    %v6238 = vadd.f32 %v5842, %v5843
    %6239 = vadd.xlane.f32.xlu0 %v6238
    %v6240 = vpop.xlane.xlu0 %6239
    %v6241 = vadd.f32 %v5844, %v5845
    %6242 = vadd.xlane.f32.xlu0 %v6241
    %v6243 = vpop.xlane.xlu0 %6242
    %v6244 = vadd.f32 %v5846, %v5847
    %6245 = vadd.xlane.f32.xlu0 %v6244
    %v6246 = vpop.xlane.xlu0 %6245
    %v6247 = vadd.f32 %v5848, %v5849
    %6248 = vadd.xlane.f32.xlu0 %v6247
    %v6249 = vpop.xlane.xlu0 %6248
    %v6250 = vadd.f32 %v5850, %v5851
    %6251 = vadd.xlane.f32.xlu0 %v6250
    %v6252 = vpop.xlane.xlu0 %6251
    %v6253 = vadd.f32 %v5852, %v5853
    %6254 = vadd.xlane.f32.xlu0 %v6253
    %v6255 = vpop.xlane.xlu0 %6254
    %v6256 = vadd.f32 %v5854, %v5855
    %6257 = vadd.xlane.f32.xlu0 %v6256
    %v6258 = vpop.xlane.xlu0 %6257
    %v6259 = vadd.f32 %v5856, %v5857
    %6260 = vadd.xlane.f32.xlu0 %v6259
    %v6261 = vpop.xlane.xlu0 %6260
    %v6262 = vadd.f32 %v5858, %v5859
    %6263 = vadd.xlane.f32.xlu0 %v6262
    %v6264 = vpop.xlane.xlu0 %6263
    %v6265 = vadd.f32 %v5860, %v5861
    %6266 = vadd.xlane.f32.xlu0 %v6265
    %v6267 = vpop.xlane.xlu0 %6266
    %v6268 = vadd.f32 %v5862, %v5863
    %6269 = vadd.xlane.f32.xlu0 %v6268
    %v6270 = vpop.xlane.xlu0 %6269
    %v6271 = vadd.f32 %v5864, %v5865
    %6272 = vadd.xlane.f32.xlu0 %v6271
    %v6273 = vpop.xlane.xlu0 %6272
    %v6274 = vadd.f32 %v5866, %v5867
    %6275 = vadd.xlane.f32.xlu0 %v6274
    %v6276 = vpop.xlane.xlu0 %6275
    %v6277 = vadd.f32 %v5868, %v5869
    %6278 = vadd.xlane.f32.xlu0 %v6277
    %v6279 = vpop.xlane.xlu0 %6278
    %v6280 = vadd.f32 %v5870, %v5871
    %6281 = vadd.xlane.f32.xlu0 %v6280
    %v6282 = vpop.xlane.xlu0 %6281
    %v6283 = vadd.f32 %v5872, %v5873
    %6284 = vadd.xlane.f32.xlu0 %v6283
    %v6285 = vpop.xlane.xlu0 %6284
    %v6286 = vadd.f32 %v5874, %v5875
    %6287 = vadd.xlane.f32.xlu0 %v6286
    %v6288 = vpop.xlane.xlu0 %6287
    %v6289 = vadd.f32 %v5876, %v5877
    %6290 = vadd.xlane.f32.xlu0 %v6289
    %v6291 = vpop.xlane.xlu0 %6290
    %v6292 = vadd.f32 %v5878, %v5879
    %6293 = vadd.xlane.f32.xlu0 %v6292
    %v6294 = vpop.xlane.xlu0 %6293
    %v6295 = vadd.f32 %v5880, %v5881
    %6296 = vadd.xlane.f32.xlu0 %v6295
    %v6297 = vpop.xlane.xlu0 %6296
    %v6298 = vadd.f32 %v5882, %v5883
    %6299 = vadd.xlane.f32.xlu0 %v6298
    %v6300 = vpop.xlane.xlu0 %6299
    %v6301 = vadd.f32 %v5884, %v5885
    %6302 = vadd.xlane.f32.xlu0 %v6301
    %v6303 = vpop.xlane.xlu0 %6302
    %v6304 = vadd.f32 %v5886, %v5887
    %6305 = vadd.xlane.f32.xlu0 %v6304
    %v6306 = vpop.xlane.xlu0 %6305
    %v6307 = vadd.f32 %v5888, %v5889
    %6308 = vadd.xlane.f32.xlu0 %v6307
    %v6309 = vpop.xlane.xlu0 %6308
    %v6310 = vadd.f32 %v5890, %v5891
    %6311 = vadd.xlane.f32.xlu0 %v6310
    %v6312 = vpop.xlane.xlu0 %6311
    %v6313 = vadd.f32 %v5892, %v5893
    %6314 = vadd.xlane.f32.xlu0 %v6313
    %v6315 = vpop.xlane.xlu0 %6314
    %v6316 = vadd.f32 %v5894, %v5895
    %6317 = vadd.xlane.f32.xlu0 %v6316
    %v6318 = vpop.xlane.xlu0 %6317
    %v6319 = vadd.f32 %v5896, %v5897
    %6320 = vadd.xlane.f32.xlu0 %v6319
    %v6321 = vpop.xlane.xlu0 %6320
    %v6322 = vadd.f32 %v5898, %v5899
    %6323 = vadd.xlane.f32.xlu0 %v6322
    %v6324 = vpop.xlane.xlu0 %6323
    %v6325 = vadd.f32 %v5900, %v5901
    %6326 = vadd.xlane.f32.xlu0 %v6325
    %v6327 = vpop.xlane.xlu0 %6326
    %v6328 = vadd.f32 %v5902, %v5903
    %6329 = vadd.xlane.f32.xlu0 %v6328
    %v6330 = vpop.xlane.xlu0 %6329
    %v6331 = vadd.f32 %v5904, %v5905
    %6332 = vadd.xlane.f32.xlu0 %v6331
    %v6333 = vpop.xlane.xlu0 %6332
    %v6334 = vadd.f32 %v5906, %v5907
    %6335 = vadd.xlane.f32.xlu0 %v6334
    %v6336 = vpop.xlane.xlu0 %6335
    %v6337 = vadd.f32 %v5908, %v5909
    %6338 = vadd.xlane.f32.xlu0 %v6337
    %v6339 = vpop.xlane.xlu0 %6338
    %v6340 = vadd.f32 %v5910, %v5911
    %6341 = vadd.xlane.f32.xlu0 %v6340
    %v6342 = vpop.xlane.xlu0 %6341
    %v6343 = vadd.f32 %v5912, %v5913
    %6344 = vadd.xlane.f32.xlu0 %v6343
    %v6345 = vpop.xlane.xlu0 %6344
    %v6346 = vadd.f32 %v5914, %v5915
    %6347 = vadd.xlane.f32.xlu0 %v6346
    %v6348 = vpop.xlane.xlu0 %6347
    %v6349 = vadd.f32 %v5916, %v5917
    %6350 = vadd.xlane.f32.xlu0 %v6349
    %v6351 = vpop.xlane.xlu0 %6350
    %v6352 = vadd.f32 %v5918, %v5919
    %6353 = vadd.xlane.f32.xlu0 %v6352
    %v6354 = vpop.xlane.xlu0 %6353
    %v6355 = vadd.f32 %v5920, %v5921
    %6356 = vadd.xlane.f32.xlu0 %v6355
    %v6357 = vpop.xlane.xlu0 %6356
    %v6358 = vadd.f32 %v5922, %v5923
    %6359 = vadd.xlane.f32.xlu0 %v6358
    %v6360 = vpop.xlane.xlu0 %6359
    %v6361 = vadd.f32 %v5924, %v5925
    %6362 = vadd.xlane.f32.xlu0 %v6361
    %v6363 = vpop.xlane.xlu0 %6362
    %v6364 = vadd.f32 %v5926, %v5927
    %6365 = vadd.xlane.f32.xlu0 %v6364
    %v6366 = vpop.xlane.xlu0 %6365
    %v6367 = vadd.f32 %v5928, %v5929
    %6368 = vadd.xlane.f32.xlu0 %v6367
    %v6369 = vpop.xlane.xlu0 %6368
    %v6370 = vadd.f32 %v5930, %v5931
    %6371 = vadd.xlane.f32.xlu0 %v6370
    %v6372 = vpop.xlane.xlu0 %6371
    %v6373 = vadd.f32 %v5932, %v5933
    %6374 = vadd.xlane.f32.xlu0 %v6373
    %v6375 = vpop.xlane.xlu0 %6374
    %v6376 = vadd.f32 %v5934, %v5935
    %6377 = vadd.xlane.f32.xlu0 %v6376
    %v6378 = vpop.xlane.xlu0 %6377
    %v6379 = vadd.f32 %v5936, %v5937
    %6380 = vadd.xlane.f32.xlu0 %v6379
    %v6381 = vpop.xlane.xlu0 %6380
    %v6382 = vadd.f32 %v5938, %v5939
    %6383 = vadd.xlane.f32.xlu0 %v6382
    %v6384 = vpop.xlane.xlu0 %6383
    %v6385 = vadd.f32 %v5940, %v5941
    %6386 = vadd.xlane.f32.xlu0 %v6385
    %v6387 = vpop.xlane.xlu0 %6386
    %v6388 = vadd.f32 %v5942, %v5943
    %6389 = vadd.xlane.f32.xlu0 %v6388
    %v6390 = vpop.xlane.xlu0 %6389
    %v6391 = vadd.f32 %v5944, %v5945
    %6392 = vadd.xlane.f32.xlu0 %v6391
    %v6393 = vpop.xlane.xlu0 %6392
    %v6394 = vadd.f32 %v5946, %v5947
    %6395 = vadd.xlane.f32.xlu0 %v6394
    %v6396 = vpop.xlane.xlu0 %6395
    %v6397 = vadd.f32 %v5948, %v5949
    %6398 = vadd.xlane.f32.xlu0 %v6397
    %v6399 = vpop.xlane.xlu0 %6398
    %v6400 = vadd.f32 %v5950, %v5951
    %6401 = vadd.xlane.f32.xlu0 %v6400
    %v6402 = vpop.xlane.xlu0 %6401
    %v6403 = vadd.f32 %v5952, %v5953
    %6404 = vadd.xlane.f32.xlu0 %v6403
    %v6405 = vpop.xlane.xlu0 %6404
    %v6406 = vadd.f32 %v5954, %v5955
    %6407 = vadd.xlane.f32.xlu0 %v6406
    %v6408 = vpop.xlane.xlu0 %6407
    %v6409 = vadd.f32 %v5956, %v5957
    %6410 = vadd.xlane.f32.xlu0 %v6409
    %v6411 = vpop.xlane.xlu0 %6410
    %v6412 = vadd.f32 %v5958, %v5959
    %6413 = vadd.xlane.f32.xlu0 %v6412
    %v6414 = vpop.xlane.xlu0 %6413
    %v6415 = vadd.f32 %v5960, %v5961
    %6416 = vadd.xlane.f32.xlu0 %v6415
    %v6417 = vpop.xlane.xlu0 %6416
    %v6418 = vadd.f32 %v5962, %v5963
    %6419 = vadd.xlane.f32.xlu0 %v6418
    %v6420 = vpop.xlane.xlu0 %6419
    %v6421 = vadd.f32 %v5964, %v5965
    %6422 = vadd.xlane.f32.xlu0 %v6421
    %v6423 = vpop.xlane.xlu0 %6422
    %v6424 = vadd.f32 %v5966, %v5967
    %6425 = vadd.xlane.f32.xlu0 %v6424
    %v6426 = vpop.xlane.xlu0 %6425
    %v6427 = vadd.f32 %v5968, %v5969
    %6428 = vadd.xlane.f32.xlu0 %v6427
    %v6429 = vpop.xlane.xlu0 %6428
    %v6430 = vadd.f32 %v5970, %v5971
    %6431 = vadd.xlane.f32.xlu0 %v6430
    %v6432 = vpop.xlane.xlu0 %6431
    %v6433 = vadd.f32 %v5972, %v5973
    %6434 = vadd.xlane.f32.xlu0 %v6433
    %v6435 = vpop.xlane.xlu0 %6434
    %v6436 = vadd.f32 %v5974, %v5975
    %6437 = vadd.xlane.f32.xlu0 %v6436
    %v6438 = vpop.xlane.xlu0 %6437
    %v6439 = vadd.f32 %v5976, %v5977
    %6440 = vadd.xlane.f32.xlu0 %v6439
    %v6441 = vpop.xlane.xlu0 %6440
    %v6442 = vadd.f32 %v5978, %v5979
    %6443 = vadd.xlane.f32.xlu0 %v6442
    %v6444 = vpop.xlane.xlu0 %6443
    %v6445 = vadd.f32 %v5980, %v5981
    %6446 = vadd.xlane.f32.xlu0 %v6445
    %v6447 = vpop.xlane.xlu0 %6446
    %v6448 = vadd.f32 %v5982, %v5983
    %6449 = vadd.xlane.f32.xlu0 %v6448
    %v6450 = vpop.xlane.xlu0 %6449
    %v6451 = vadd.f32 %v5984, %v5985
    %6452 = vadd.xlane.f32.xlu0 %v6451
    %v6453 = vpop.xlane.xlu0 %6452
    %v6454 = vadd.f32 %v5986, %v5987
    %6455 = vadd.xlane.f32.xlu0 %v6454
    %v6456 = vpop.xlane.xlu0 %6455
    %v6457 = vadd.f32 %v5988, %v5989
    %6458 = vadd.xlane.f32.xlu0 %v6457
    %v6459 = vpop.xlane.xlu0 %6458
    %v6460 = vadd.f32 %v5990, %v5991
    %6461 = vadd.xlane.f32.xlu0 %v6460
    %v6462 = vpop.xlane.xlu0 %6461
    %v6463 = vadd.f32 %v5992, %v5993
    %6464 = vadd.xlane.f32.xlu0 %v6463
    %v6465 = vpop.xlane.xlu0 %6464
    %v6466 = vadd.f32 %v5994, %v5995
    %6467 = vadd.xlane.f32.xlu0 %v6466
    %v6468 = vpop.xlane.xlu0 %6467
    %v6469 = vadd.f32 %v5996, %v5997
    %6470 = vadd.xlane.f32.xlu0 %v6469
    %v6471 = vpop.xlane.xlu0 %6470
    %v6472 = vadd.f32 %v5998, %v5999
    %6473 = vadd.xlane.f32.xlu0 %v6472
    %v6474 = vpop.xlane.xlu0 %6473
    %v6475 = vadd.f32 %v6000, %v6001
    %6476 = vadd.xlane.f32.xlu0 %v6475
    %v6477 = vpop.xlane.xlu0 %6476
    %v6478 = vadd.f32 %v6002, %v6003
    %6479 = vadd.xlane.f32.xlu0 %v6478
    %v6480 = vpop.xlane.xlu0 %6479
    %v6481 = vadd.f32 %v6004, %v6005
    %6482 = vadd.xlane.f32.xlu0 %v6481
    %v6483 = vpop.xlane.xlu0 %6482
    %v6484 = vadd.f32 %v6006, %v6007
    %6485 = vadd.xlane.f32.xlu0 %v6484
    %v6486 = vpop.xlane.xlu0 %6485
    %v6487 = vadd.f32 %v6008, %v6009
    %6488 = vadd.xlane.f32.xlu0 %v6487
    %v6489 = vpop.xlane.xlu0 %6488
    %v6490 = vrcp.pop 256.0
    %v6491 = vmul.f32 %v6012, %v6490
    %v6492 = vmul.f32 %v6015, %v6490
    %v6493 = vmul.f32 %v6018, %v6490
    %v6494 = vmul.f32 %v6021, %v6490
    %v6495 = vmul.f32 %v6024, %v6490
    %v6496 = vmul.f32 %v6027, %v6490
    %v6497 = vmul.f32 %v6030, %v6490
    %v6498 = vmul.f32 %v6033, %v6490
    %v6499 = vmul.f32 %v6036, %v6490
    %v6500 = vmul.f32 %v6039, %v6490
    %v6501 = vmul.f32 %v6042, %v6490
    %v6502 = vmul.f32 %v6045, %v6490
    %v6503 = vmul.f32 %v6048, %v6490
    %v6504 = vmul.f32 %v6051, %v6490
    %v6505 = vmul.f32 %v6054, %v6490
    %v6506 = vmul.f32 %v6057, %v6490
    %v6507 = vmul.f32 %v6060, %v6490
    %v6508 = vmul.f32 %v6063, %v6490
    %v6509 = vmul.f32 %v6066, %v6490
    %v6510 = vmul.f32 %v6069, %v6490
    %v6511 = vmul.f32 %v6072, %v6490
    %v6512 = vmul.f32 %v6075, %v6490
    %v6513 = vmul.f32 %v6078, %v6490
    %v6514 = vmul.f32 %v6081, %v6490
    %v6515 = vmul.f32 %v6084, %v6490
    %v6516 = vmul.f32 %v6087, %v6490
    %v6517 = vmul.f32 %v6090, %v6490
    %v6518 = vmul.f32 %v6093, %v6490
    %v6519 = vmul.f32 %v6096, %v6490
    %v6520 = vmul.f32 %v6099, %v6490
    %v6521 = vmul.f32 %v6102, %v6490
    %v6522 = vmul.f32 %v6105, %v6490
    %v6523 = vmul.f32 %v6108, %v6490
    %v6524 = vmul.f32 %v6111, %v6490
    %v6525 = vmul.f32 %v6114, %v6490
    %v6526 = vmul.f32 %v6117, %v6490
    %v6527 = vmul.f32 %v6120, %v6490
    %v6528 = vmul.f32 %v6123, %v6490
    %v6529 = vmul.f32 %v6126, %v6490
    %v6530 = vmul.f32 %v6129, %v6490
    %v6531 = vmul.f32 %v6132, %v6490
    %v6532 = vmul.f32 %v6135, %v6490
    %v6533 = vmul.f32 %v6138, %v6490
    %v6534 = vmul.f32 %v6141, %v6490
    %v6535 = vmul.f32 %v6144, %v6490
    %v6536 = vmul.f32 %v6147, %v6490
    %v6537 = vmul.f32 %v6150, %v6490
    %v6538 = vmul.f32 %v6153, %v6490
    %v6539 = vmul.f32 %v6156, %v6490
    %v6540 = vmul.f32 %v6159, %v6490
    %v6541 = vmul.f32 %v6162, %v6490
    %v6542 = vmul.f32 %v6165, %v6490
    %v6543 = vmul.f32 %v6168, %v6490
    %v6544 = vmul.f32 %v6171, %v6490
    %v6545 = vmul.f32 %v6174, %v6490
    %v6546 = vmul.f32 %v6177, %v6490
    %v6547 = vmul.f32 %v6180, %v6490
    %v6548 = vmul.f32 %v6183, %v6490
    %v6549 = vmul.f32 %v6186, %v6490
    %v6550 = vmul.f32 %v6189, %v6490
    %v6551 = vmul.f32 %v6192, %v6490
    %v6552 = vmul.f32 %v6195, %v6490
    %v6553 = vmul.f32 %v6198, %v6490
    %v6554 = vmul.f32 %v6201, %v6490
    %v6555 = vmul.f32 %v6204, %v6490
    %v6556 = vmul.f32 %v6207, %v6490
    %v6557 = vmul.f32 %v6210, %v6490
    %v6558 = vmul.f32 %v6213, %v6490
    %v6559 = vmul.f32 %v6216, %v6490
    %v6560 = vmul.f32 %v6219, %v6490
    %v6561 = vmul.f32 %v6222, %v6490
    %v6562 = vmul.f32 %v6225, %v6490
    %v6563 = vmul.f32 %v6228, %v6490
    %v6564 = vmul.f32 %v6231, %v6490
    %v6565 = vmul.f32 %v6234, %v6490
    %v6566 = vmul.f32 %v6237, %v6490
    %v6567 = vmul.f32 %v6240, %v6490
    %v6568 = vmul.f32 %v6243, %v6490
    %v6569 = vmul.f32 %v6246, %v6490
    %v6570 = vmul.f32 %v6249, %v6490
    %v6571 = vmul.f32 %v6252, %v6490
    %v6572 = vmul.f32 %v6255, %v6490
    %v6573 = vmul.f32 %v6258, %v6490
    %v6574 = vmul.f32 %v6261, %v6490
    %v6575 = vmul.f32 %v6264, %v6490
    %v6576 = vmul.f32 %v6267, %v6490
    %v6577 = vmul.f32 %v6270, %v6490
    %v6578 = vmul.f32 %v6273, %v6490
    %v6579 = vmul.f32 %v6276, %v6490
    %v6580 = vmul.f32 %v6279, %v6490
    %v6581 = vmul.f32 %v6282, %v6490
    %v6582 = vmul.f32 %v6285, %v6490
    %v6583 = vmul.f32 %v6288, %v6490
    %v6584 = vmul.f32 %v6291, %v6490
    %v6585 = vmul.f32 %v6294, %v6490
    %v6586 = vmul.f32 %v6297, %v6490
    %v6587 = vmul.f32 %v6300, %v6490
    %v6588 = vmul.f32 %v6303, %v6490
    %v6589 = vmul.f32 %v6306, %v6490
    %v6590 = vmul.f32 %v6309, %v6490
    %v6591 = vmul.f32 %v6312, %v6490
    %v6592 = vmul.f32 %v6315, %v6490
    %v6593 = vmul.f32 %v6318, %v6490
    %v6594 = vmul.f32 %v6321, %v6490
    %v6595 = vmul.f32 %v6324, %v6490
    %v6596 = vmul.f32 %v6327, %v6490
    %v6597 = vmul.f32 %v6330, %v6490
    %v6598 = vmul.f32 %v6333, %v6490
    %v6599 = vmul.f32 %v6336, %v6490
    %v6600 = vmul.f32 %v6339, %v6490
    %v6601 = vmul.f32 %v6342, %v6490
    %v6602 = vmul.f32 %v6345, %v6490
    %v6603 = vmul.f32 %v6348, %v6490
    %v6604 = vmul.f32 %v6351, %v6490
    %v6605 = vmul.f32 %v6354, %v6490
    %v6606 = vmul.f32 %v6357, %v6490
    %v6607 = vmul.f32 %v6360, %v6490
    %v6608 = vmul.f32 %v6363, %v6490
    %v6609 = vmul.f32 %v6366, %v6490
    %v6610 = vmul.f32 %v6369, %v6490
    %v6611 = vmul.f32 %v6372, %v6490
    %v6612 = vmul.f32 %v6375, %v6490
    %v6613 = vmul.f32 %v6378, %v6490
    %v6614 = vmul.f32 %v6381, %v6490
    %v6615 = vmul.f32 %v6384, %v6490
    %v6616 = vmul.f32 %v6387, %v6490
    %v6617 = vmul.f32 %v6390, %v6490
    %v6618 = vmul.f32 %v6393, %v6490
    %v6619 = vmul.f32 %v6396, %v6490
    %v6620 = vmul.f32 %v6399, %v6490
    %v6621 = vmul.f32 %v6402, %v6490
    %v6622 = vmul.f32 %v6405, %v6490
    %v6623 = vmul.f32 %v6408, %v6490
    %v6624 = vmul.f32 %v6411, %v6490
    %v6625 = vmul.f32 %v6414, %v6490
    %v6626 = vmul.f32 %v6417, %v6490
    %v6627 = vmul.f32 %v6420, %v6490
    %v6628 = vmul.f32 %v6423, %v6490
    %v6629 = vmul.f32 %v6426, %v6490
    %v6630 = vmul.f32 %v6429, %v6490
    %v6631 = vmul.f32 %v6432, %v6490
    %v6632 = vmul.f32 %v6435, %v6490
    %v6633 = vmul.f32 %v6438, %v6490
    %v6634 = vmul.f32 %v6441, %v6490
    %v6635 = vmul.f32 %v6444, %v6490
    %v6636 = vmul.f32 %v6447, %v6490
    %v6637 = vmul.f32 %v6450, %v6490
    %v6638 = vmul.f32 %v6453, %v6490
    %v6639 = vmul.f32 %v6456, %v6490
    %v6640 = vmul.f32 %v6459, %v6490
    %v6641 = vmul.f32 %v6462, %v6490
    %v6642 = vmul.f32 %v6465, %v6490
    %v6643 = vmul.f32 %v6468, %v6490
    %v6644 = vmul.f32 %v6471, %v6490
    %v6645 = vmul.f32 %v6474, %v6490
    %v6646 = vmul.f32 %v6477, %v6490
    %v6647 = vmul.f32 %v6480, %v6490
    %v6648 = vmul.f32 %v6483, %v6490
    %v6649 = vmul.f32 %v6486, %v6490
    %v6650 = vmul.f32 %v6489, %v6490
    %v6651 = vld [vmem:[#allocation5] sm:$0xff]
    %v6652 = vld [vmem:[#allocation5 + $0x8] sm:$0xff]
    %v6653 = vld [vmem:[#allocation5 + $0x10] sm:$0xff]
    %v6654 = vld [vmem:[#allocation5 + $0x18] sm:$0xff]
    %v6655 = vld [vmem:[%s5] sm:$0x1]
    %v6657 = vlaneseq
    %v6658 = vshrl.u32 %v6657, 7
    %v6659 = vsub.s32 0, %v6658
    %v6660 = vrot.slane %v6655, %v6659
    %v6822 = vlaneseq
    %v6823 = vand.u32 %v6822, 127
    %v6824 = vlaneseq
    %v6825 = vshrl.u32 %v6824, 7
    %v6826 = vsub.s32 %v6823, %v6825
    %v6827 = vrot.slane %v6491, %v6826
    %v6828 = vadd.s32 %v6823, 4294967288
    %v6829 = vlaneseq
    %v6830 = vshrl.u32 %v6829, 7
    %v6831 = vsub.s32 %v6828, %v6830
    %v6832 = vrot.slane %v6492, %v6831
    %vm6833 = vcmask 130112
    %v6834 = vsel %vm6833, %v6832, %v6827
    %v6835 = vadd.s32 %v6823, 4294967280
    %v6836 = vlaneseq
    %v6837 = vshrl.u32 %v6836, 7
    %v6838 = vsub.s32 %v6835, %v6837
    %v6839 = vrot.slane %v6493, %v6838
    %vm6840 = vcmask 195712
    %v6841 = vsel %vm6840, %v6839, %v6834
    %v6842 = vadd.s32 %v6823, 4294967272
    %v6843 = vlaneseq
    %v6844 = vshrl.u32 %v6843, 7
    %v6845 = vsub.s32 %v6842, %v6844
    %v6846 = vrot.slane %v6494, %v6845
    %vm6847 = vcmask 261312
    %v6848 = vsel %vm6847, %v6846, %v6841
    %v6849 = vlaneseq
    %v6850 = vshrl.u32 %v6849, 7
    %v6851 = vsub.s32 %v6823, %v6850
    %v6852 = vrot.slane %v6495, %v6851
    %v6853 = vlaneseq
    %v6854 = vshrl.u32 %v6853, 7
    %v6855 = vsub.s32 %v6828, %v6854
    %v6856 = vrot.slane %v6496, %v6855
    %v6857 = vsel %vm6833, %v6856, %v6852
    %v6858 = vlaneseq
    %v6859 = vshrl.u32 %v6858, 7
    %v6860 = vsub.s32 %v6835, %v6859
    %v6861 = vrot.slane %v6497, %v6860
    %v6862 = vsel %vm6840, %v6861, %v6857
    %v6863 = vlaneseq
    %v6864 = vshrl.u32 %v6863, 7
    %v6865 = vsub.s32 %v6842, %v6864
    %v6866 = vrot.slane %v6498, %v6865
    %v6867 = vsel %vm6847, %v6866, %v6862
    %v6868 = vlaneseq
    %v6869 = vshrl.u32 %v6868, 7
    %v6870 = vsub.s32 %v6823, %v6869
    %v6871 = vrot.slane %v6499, %v6870
    %v6872 = vlaneseq
    %v6873 = vshrl.u32 %v6872, 7
    %v6874 = vsub.s32 %v6828, %v6873
    %v6875 = vrot.slane %v6500, %v6874
    %v6876 = vsel %vm6833, %v6875, %v6871
    %v6877 = vlaneseq
    %v6878 = vshrl.u32 %v6877, 7
    %v6879 = vsub.s32 %v6835, %v6878
    %v6880 = vrot.slane %v6501, %v6879
    %v6881 = vsel %vm6840, %v6880, %v6876
    %v6882 = vlaneseq
    %v6883 = vshrl.u32 %v6882, 7
    %v6884 = vsub.s32 %v6842, %v6883
    %v6885 = vrot.slane %v6502, %v6884
    %v6886 = vsel %vm6847, %v6885, %v6881
    %v6887 = vlaneseq
    %v6888 = vshrl.u32 %v6887, 7
    %v6889 = vsub.s32 %v6823, %v6888
    %v6890 = vrot.slane %v6503, %v6889
    %v6891 = vlaneseq
    %v6892 = vshrl.u32 %v6891, 7
    %v6893 = vsub.s32 %v6828, %v6892
    %v6894 = vrot.slane %v6504, %v6893
    %v6895 = vsel %vm6833, %v6894, %v6890
    %v6896 = vlaneseq
    %v6897 = vshrl.u32 %v6896, 7
    %v6898 = vsub.s32 %v6835, %v6897
    %v6899 = vrot.slane %v6505, %v6898
    %v6900 = vsel %vm6840, %v6899, %v6895
    %v6901 = vlaneseq
    %v6902 = vshrl.u32 %v6901, 7
    %v6903 = vsub.s32 %v6842, %v6902
    %v6904 = vrot.slane %v6506, %v6903
    %v6905 = vsel %vm6847, %v6904, %v6900
    %v6906 = vlaneseq
    %v6907 = vshrl.u32 %v6906, 7
    %v6908 = vsub.s32 %v6823, %v6907
    %v6909 = vrot.slane %v6507, %v6908
    %v6910 = vlaneseq
    %v6911 = vshrl.u32 %v6910, 7
    %v6912 = vsub.s32 %v6828, %v6911
    %v6913 = vrot.slane %v6508, %v6912
    %v6914 = vsel %vm6833, %v6913, %v6909
    %v6915 = vlaneseq
    %v6916 = vshrl.u32 %v6915, 7
    %v6917 = vsub.s32 %v6835, %v6916
    %v6918 = vrot.slane %v6509, %v6917
    %v6919 = vsel %vm6840, %v6918, %v6914
    %v6920 = vlaneseq
    %v6921 = vshrl.u32 %v6920, 7
    %v6922 = vsub.s32 %v6842, %v6921
    %v6923 = vrot.slane %v6510, %v6922
    %v6924 = vsel %vm6847, %v6923, %v6919
    %v6925 = vlaneseq
    %v6926 = vshrl.u32 %v6925, 7
    %v6927 = vsub.s32 %v6823, %v6926
    %v6928 = vrot.slane %v6511, %v6927
    %v6929 = vlaneseq
    %v6930 = vshrl.u32 %v6929, 7
    %v6931 = vsub.s32 %v6828, %v6930
    %v6932 = vrot.slane %v6512, %v6931
    %v6933 = vsel %vm6833, %v6932, %v6928
    %v6934 = vlaneseq
    %v6935 = vshrl.u32 %v6934, 7
    %v6936 = vsub.s32 %v6835, %v6935
    %v6937 = vrot.slane %v6513, %v6936
    %v6938 = vsel %vm6840, %v6937, %v6933
    %v6939 = vlaneseq
    %v6940 = vshrl.u32 %v6939, 7
    %v6941 = vsub.s32 %v6842, %v6940
    %v6942 = vrot.slane %v6514, %v6941
    %v6943 = vsel %vm6847, %v6942, %v6938
    %v6944 = vlaneseq
    %v6945 = vshrl.u32 %v6944, 7
    %v6946 = vsub.s32 %v6823, %v6945
    %v6947 = vrot.slane %v6515, %v6946
    %v6948 = vlaneseq
    %v6949 = vshrl.u32 %v6948, 7
    %v6950 = vsub.s32 %v6828, %v6949
    %v6951 = vrot.slane %v6516, %v6950
    %v6952 = vsel %vm6833, %v6951, %v6947
    %v6953 = vlaneseq
    %v6954 = vshrl.u32 %v6953, 7
    %v6955 = vsub.s32 %v6835, %v6954
    %v6956 = vrot.slane %v6517, %v6955
    %v6957 = vsel %vm6840, %v6956, %v6952
    %v6958 = vlaneseq
    %v6959 = vshrl.u32 %v6958, 7
    %v6960 = vsub.s32 %v6842, %v6959
    %v6961 = vrot.slane %v6518, %v6960
    %v6962 = vsel %vm6847, %v6961, %v6957
    %v6963 = vlaneseq
    %v6964 = vshrl.u32 %v6963, 7
    %v6965 = vsub.s32 %v6823, %v6964
    %v6966 = vrot.slane %v6519, %v6965
    %v6967 = vlaneseq
    %v6968 = vshrl.u32 %v6967, 7
    %v6969 = vsub.s32 %v6828, %v6968
    %v6970 = vrot.slane %v6520, %v6969
    %v6971 = vsel %vm6833, %v6970, %v6966
    %v6972 = vlaneseq
    %v6973 = vshrl.u32 %v6972, 7
    %v6974 = vsub.s32 %v6835, %v6973
    %v6975 = vrot.slane %v6521, %v6974
    %v6976 = vsel %vm6840, %v6975, %v6971
    %v6977 = vlaneseq
    %v6978 = vshrl.u32 %v6977, 7
    %v6979 = vsub.s32 %v6842, %v6978
    %v6980 = vrot.slane %v6522, %v6979
    %v6981 = vsel %vm6847, %v6980, %v6976
    %v6982 = vlaneseq
    %v6983 = vshrl.u32 %v6982, 7
    %v6984 = vsub.s32 %v6823, %v6983
    %v6985 = vrot.slane %v6523, %v6984
    %v6986 = vlaneseq
    %v6987 = vshrl.u32 %v6986, 7
    %v6988 = vsub.s32 %v6828, %v6987
    %v6989 = vrot.slane %v6524, %v6988
    %v6990 = vsel %vm6833, %v6989, %v6985
    %v6991 = vlaneseq
    %v6992 = vshrl.u32 %v6991, 7
    %v6993 = vsub.s32 %v6835, %v6992
    %v6994 = vrot.slane %v6525, %v6993
    %v6995 = vsel %vm6840, %v6994, %v6990
    %v6996 = vlaneseq
    %v6997 = vshrl.u32 %v6996, 7
    %v6998 = vsub.s32 %v6842, %v6997
    %v6999 = vrot.slane %v6526, %v6998
    %v7000 = vsel %vm6847, %v6999, %v6995
    %v7001 = vlaneseq
    %v7002 = vshrl.u32 %v7001, 7
    %v7003 = vsub.s32 %v6823, %v7002
    %v7004 = vrot.slane %v6527, %v7003
    %v7005 = vlaneseq
    %v7006 = vshrl.u32 %v7005, 7
    %v7007 = vsub.s32 %v6828, %v7006
    %v7008 = vrot.slane %v6528, %v7007
    %v7009 = vsel %vm6833, %v7008, %v7004
    %v7010 = vlaneseq
    %v7011 = vshrl.u32 %v7010, 7
    %v7012 = vsub.s32 %v6835, %v7011
    %v7013 = vrot.slane %v6529, %v7012
    %v7014 = vsel %vm6840, %v7013, %v7009
    %v7015 = vlaneseq
    %v7016 = vshrl.u32 %v7015, 7
    %v7017 = vsub.s32 %v6842, %v7016
    %v7018 = vrot.slane %v6530, %v7017
    %v7019 = vsel %vm6847, %v7018, %v7014
    %v7020 = vlaneseq
    %v7021 = vshrl.u32 %v7020, 7
    %v7022 = vsub.s32 %v6823, %v7021
    %v7023 = vrot.slane %v6531, %v7022
    %v7024 = vlaneseq
    %v7025 = vshrl.u32 %v7024, 7
    %v7026 = vsub.s32 %v6828, %v7025
    %v7027 = vrot.slane %v6532, %v7026
    %v7028 = vsel %vm6833, %v7027, %v7023
    %v7029 = vlaneseq
    %v7030 = vshrl.u32 %v7029, 7
    %v7031 = vsub.s32 %v6835, %v7030
    %v7032 = vrot.slane %v6533, %v7031
    %v7033 = vsel %vm6840, %v7032, %v7028
    %v7034 = vlaneseq
    %v7035 = vshrl.u32 %v7034, 7
    %v7036 = vsub.s32 %v6842, %v7035
    %v7037 = vrot.slane %v6534, %v7036
    %v7038 = vsel %vm6847, %v7037, %v7033
    %v7039 = vlaneseq
    %v7040 = vshrl.u32 %v7039, 7
    %v7041 = vsub.s32 %v6823, %v7040
    %v7042 = vrot.slane %v6535, %v7041
    %v7043 = vlaneseq
    %v7044 = vshrl.u32 %v7043, 7
    %v7045 = vsub.s32 %v6828, %v7044
    %v7046 = vrot.slane %v6536, %v7045
    %v7047 = vsel %vm6833, %v7046, %v7042
    %v7048 = vlaneseq
    %v7049 = vshrl.u32 %v7048, 7
    %v7050 = vsub.s32 %v6835, %v7049
    %v7051 = vrot.slane %v6537, %v7050
    %v7052 = vsel %vm6840, %v7051, %v7047
    %v7053 = vlaneseq
    %v7054 = vshrl.u32 %v7053, 7
    %v7055 = vsub.s32 %v6842, %v7054
    %v7056 = vrot.slane %v6538, %v7055
    %v7057 = vsel %vm6847, %v7056, %v7052
    %v7058 = vlaneseq
    %v7059 = vshrl.u32 %v7058, 7
    %v7060 = vsub.s32 %v6823, %v7059
    %v7061 = vrot.slane %v6539, %v7060
    %v7062 = vlaneseq
    %v7063 = vshrl.u32 %v7062, 7
    %v7064 = vsub.s32 %v6828, %v7063
    %v7065 = vrot.slane %v6540, %v7064
    %v7066 = vsel %vm6833, %v7065, %v7061
    %v7067 = vlaneseq
    %v7068 = vshrl.u32 %v7067, 7
    %v7069 = vsub.s32 %v6835, %v7068
    %v7070 = vrot.slane %v6541, %v7069
    %v7071 = vsel %vm6840, %v7070, %v7066
    %v7072 = vlaneseq
    %v7073 = vshrl.u32 %v7072, 7
    %v7074 = vsub.s32 %v6842, %v7073
    %v7075 = vrot.slane %v6542, %v7074
    %v7076 = vsel %vm6847, %v7075, %v7071
    %v7077 = vlaneseq
    %v7078 = vshrl.u32 %v7077, 7
    %v7079 = vsub.s32 %v6823, %v7078
    %v7080 = vrot.slane %v6543, %v7079
    %v7081 = vlaneseq
    %v7082 = vshrl.u32 %v7081, 7
    %v7083 = vsub.s32 %v6828, %v7082
    %v7084 = vrot.slane %v6544, %v7083
    %v7085 = vsel %vm6833, %v7084, %v7080
    %v7086 = vlaneseq
    %v7087 = vshrl.u32 %v7086, 7
    %v7088 = vsub.s32 %v6835, %v7087
    %v7089 = vrot.slane %v6545, %v7088
    %v7090 = vsel %vm6840, %v7089, %v7085
    %v7091 = vlaneseq
    %v7092 = vshrl.u32 %v7091, 7
    %v7093 = vsub.s32 %v6842, %v7092
    %v7094 = vrot.slane %v6546, %v7093
    %v7095 = vsel %vm6847, %v7094, %v7090
    %v7096 = vlaneseq
    %v7097 = vshrl.u32 %v7096, 7
    %v7098 = vsub.s32 %v6823, %v7097
    %v7099 = vrot.slane %v6547, %v7098
    %v7100 = vlaneseq
    %v7101 = vshrl.u32 %v7100, 7
    %v7102 = vsub.s32 %v6828, %v7101
    %v7103 = vrot.slane %v6548, %v7102
    %v7104 = vsel %vm6833, %v7103, %v7099
    %v7105 = vlaneseq
    %v7106 = vshrl.u32 %v7105, 7
    %v7107 = vsub.s32 %v6835, %v7106
    %v7108 = vrot.slane %v6549, %v7107
    %v7109 = vsel %vm6840, %v7108, %v7104
    %v7110 = vlaneseq
    %v7111 = vshrl.u32 %v7110, 7
    %v7112 = vsub.s32 %v6842, %v7111
    %v7113 = vrot.slane %v6550, %v7112
    %v7114 = vsel %vm6847, %v7113, %v7109
    %v7115 = vlaneseq
    %v7116 = vshrl.u32 %v7115, 7
    %v7117 = vsub.s32 %v6823, %v7116
    %v7118 = vrot.slane %v6551, %v7117
    %v7119 = vlaneseq
    %v7120 = vshrl.u32 %v7119, 7
    %v7121 = vsub.s32 %v6828, %v7120
    %v7122 = vrot.slane %v6552, %v7121
    %v7123 = vsel %vm6833, %v7122, %v7118
    %v7124 = vlaneseq
    %v7125 = vshrl.u32 %v7124, 7
    %v7126 = vsub.s32 %v6835, %v7125
    %v7127 = vrot.slane %v6553, %v7126
    %v7128 = vsel %vm6840, %v7127, %v7123
    %v7129 = vlaneseq
    %v7130 = vshrl.u32 %v7129, 7
    %v7131 = vsub.s32 %v6842, %v7130
    %v7132 = vrot.slane %v6554, %v7131
    %v7133 = vsel %vm6847, %v7132, %v7128
    %v7134 = vlaneseq
    %v7135 = vshrl.u32 %v7134, 7
    %v7136 = vsub.s32 %v6823, %v7135
    %v7137 = vrot.slane %v6555, %v7136
    %v7138 = vlaneseq
    %v7139 = vshrl.u32 %v7138, 7
    %v7140 = vsub.s32 %v6828, %v7139
    %v7141 = vrot.slane %v6556, %v7140
    %v7142 = vsel %vm6833, %v7141, %v7137
    %v7143 = vlaneseq
    %v7144 = vshrl.u32 %v7143, 7
    %v7145 = vsub.s32 %v6835, %v7144
    %v7146 = vrot.slane %v6557, %v7145
    %v7147 = vsel %vm6840, %v7146, %v7142
    %v7148 = vlaneseq
    %v7149 = vshrl.u32 %v7148, 7
    %v7150 = vsub.s32 %v6842, %v7149
    %v7151 = vrot.slane %v6558, %v7150
    %v7152 = vsel %vm6847, %v7151, %v7147
    %v7153 = vlaneseq
    %v7154 = vshrl.u32 %v7153, 7
    %v7155 = vsub.s32 %v6823, %v7154
    %v7156 = vrot.slane %v6559, %v7155
    %v7157 = vlaneseq
    %v7158 = vshrl.u32 %v7157, 7
    %v7159 = vsub.s32 %v6828, %v7158
    %v7160 = vrot.slane %v6560, %v7159
    %v7161 = vsel %vm6833, %v7160, %v7156
    %v7162 = vlaneseq
    %v7163 = vshrl.u32 %v7162, 7
    %v7164 = vsub.s32 %v6835, %v7163
    %v7165 = vrot.slane %v6561, %v7164
    %v7166 = vsel %vm6840, %v7165, %v7161
    %v7167 = vlaneseq
    %v7168 = vshrl.u32 %v7167, 7
    %v7169 = vsub.s32 %v6842, %v7168
    %v7170 = vrot.slane %v6562, %v7169
    %v7171 = vsel %vm6847, %v7170, %v7166
    %v7172 = vlaneseq
    %v7173 = vshrl.u32 %v7172, 7
    %v7174 = vsub.s32 %v6823, %v7173
    %v7175 = vrot.slane %v6563, %v7174
    %v7176 = vlaneseq
    %v7177 = vshrl.u32 %v7176, 7
    %v7178 = vsub.s32 %v6828, %v7177
    %v7179 = vrot.slane %v6564, %v7178
    %v7180 = vsel %vm6833, %v7179, %v7175
    %v7181 = vlaneseq
    %v7182 = vshrl.u32 %v7181, 7
    %v7183 = vsub.s32 %v6835, %v7182
    %v7184 = vrot.slane %v6565, %v7183
    %v7185 = vsel %vm6840, %v7184, %v7180
    %v7186 = vlaneseq
    %v7187 = vshrl.u32 %v7186, 7
    %v7188 = vsub.s32 %v6842, %v7187
    %v7189 = vrot.slane %v6566, %v7188
    %v7190 = vsel %vm6847, %v7189, %v7185
    %v7191 = vlaneseq
    %v7192 = vshrl.u32 %v7191, 7
    %v7193 = vsub.s32 %v6823, %v7192
    %v7194 = vrot.slane %v6567, %v7193
    %v7195 = vlaneseq
    %v7196 = vshrl.u32 %v7195, 7
    %v7197 = vsub.s32 %v6828, %v7196
    %v7198 = vrot.slane %v6568, %v7197
    %v7199 = vsel %vm6833, %v7198, %v7194
    %v7200 = vlaneseq
    %v7201 = vshrl.u32 %v7200, 7
    %v7202 = vsub.s32 %v6835, %v7201
    %v7203 = vrot.slane %v6569, %v7202
    %v7204 = vsel %vm6840, %v7203, %v7199
    %v7205 = vlaneseq
    %v7206 = vshrl.u32 %v7205, 7
    %v7207 = vsub.s32 %v6842, %v7206
    %v7208 = vrot.slane %v6570, %v7207
    %v7209 = vsel %vm6847, %v7208, %v7204
    %v7210 = vlaneseq
    %v7211 = vshrl.u32 %v7210, 7
    %v7212 = vsub.s32 %v6823, %v7211
    %v7213 = vrot.slane %v6571, %v7212
    %v7214 = vlaneseq
    %v7215 = vshrl.u32 %v7214, 7
    %v7216 = vsub.s32 %v6828, %v7215
    %v7217 = vrot.slane %v6572, %v7216
    %v7218 = vsel %vm6833, %v7217, %v7213
    %v7219 = vlaneseq
    %v7220 = vshrl.u32 %v7219, 7
    %v7221 = vsub.s32 %v6835, %v7220
    %v7222 = vrot.slane %v6573, %v7221
    %v7223 = vsel %vm6840, %v7222, %v7218
    %v7224 = vlaneseq
    %v7225 = vshrl.u32 %v7224, 7
    %v7226 = vsub.s32 %v6842, %v7225
    %v7227 = vrot.slane %v6574, %v7226
    %v7228 = vsel %vm6847, %v7227, %v7223
    %v7229 = vlaneseq
    %v7230 = vshrl.u32 %v7229, 7
    %v7231 = vsub.s32 %v6823, %v7230
    %v7232 = vrot.slane %v6575, %v7231
    %v7233 = vlaneseq
    %v7234 = vshrl.u32 %v7233, 7
    %v7235 = vsub.s32 %v6828, %v7234
    %v7236 = vrot.slane %v6576, %v7235
    %v7237 = vsel %vm6833, %v7236, %v7232
    %v7238 = vlaneseq
    %v7239 = vshrl.u32 %v7238, 7
    %v7240 = vsub.s32 %v6835, %v7239
    %v7241 = vrot.slane %v6577, %v7240
    %v7242 = vsel %vm6840, %v7241, %v7237
    %v7243 = vlaneseq
    %v7244 = vshrl.u32 %v7243, 7
    %v7245 = vsub.s32 %v6842, %v7244
    %v7246 = vrot.slane %v6578, %v7245
    %v7247 = vsel %vm6847, %v7246, %v7242
    %v7248 = vlaneseq
    %v7249 = vshrl.u32 %v7248, 7
    %v7250 = vsub.s32 %v6823, %v7249
    %v7251 = vrot.slane %v6579, %v7250
    %v7252 = vlaneseq
    %v7253 = vshrl.u32 %v7252, 7
    %v7254 = vsub.s32 %v6828, %v7253
    %v7255 = vrot.slane %v6580, %v7254
    %v7256 = vsel %vm6833, %v7255, %v7251
    %v7257 = vlaneseq
    %v7258 = vshrl.u32 %v7257, 7
    %v7259 = vsub.s32 %v6835, %v7258
    %v7260 = vrot.slane %v6581, %v7259
    %v7261 = vsel %vm6840, %v7260, %v7256
    %v7262 = vlaneseq
    %v7263 = vshrl.u32 %v7262, 7
    %v7264 = vsub.s32 %v6842, %v7263
    %v7265 = vrot.slane %v6582, %v7264
    %v7266 = vsel %vm6847, %v7265, %v7261
    %v7267 = vlaneseq
    %v7268 = vshrl.u32 %v7267, 7
    %v7269 = vsub.s32 %v6823, %v7268
    %v7270 = vrot.slane %v6583, %v7269
    %v7271 = vlaneseq
    %v7272 = vshrl.u32 %v7271, 7
    %v7273 = vsub.s32 %v6828, %v7272
    %v7274 = vrot.slane %v6584, %v7273
    %v7275 = vsel %vm6833, %v7274, %v7270
    %v7276 = vlaneseq
    %v7277 = vshrl.u32 %v7276, 7
    %v7278 = vsub.s32 %v6835, %v7277
    %v7279 = vrot.slane %v6585, %v7278
    %v7280 = vsel %vm6840, %v7279, %v7275
    %v7281 = vlaneseq
    %v7282 = vshrl.u32 %v7281, 7
    %v7283 = vsub.s32 %v6842, %v7282
    %v7284 = vrot.slane %v6586, %v7283
    %v7285 = vsel %vm6847, %v7284, %v7280
    %v7286 = vlaneseq
    %v7287 = vshrl.u32 %v7286, 7
    %v7288 = vsub.s32 %v6823, %v7287
    %v7289 = vrot.slane %v6587, %v7288
    %v7290 = vlaneseq
    %v7291 = vshrl.u32 %v7290, 7
    %v7292 = vsub.s32 %v6828, %v7291
    %v7293 = vrot.slane %v6588, %v7292
    %v7294 = vsel %vm6833, %v7293, %v7289
    %v7295 = vlaneseq
    %v7296 = vshrl.u32 %v7295, 7
    %v7297 = vsub.s32 %v6835, %v7296
    %v7298 = vrot.slane %v6589, %v7297
    %v7299 = vsel %vm6840, %v7298, %v7294
    %v7300 = vlaneseq
    %v7301 = vshrl.u32 %v7300, 7
    %v7302 = vsub.s32 %v6842, %v7301
    %v7303 = vrot.slane %v6590, %v7302
    %v7304 = vsel %vm6847, %v7303, %v7299
    %v7305 = vlaneseq
    %v7306 = vshrl.u32 %v7305, 7
    %v7307 = vsub.s32 %v6823, %v7306
    %v7308 = vrot.slane %v6591, %v7307
    %v7309 = vlaneseq
    %v7310 = vshrl.u32 %v7309, 7
    %v7311 = vsub.s32 %v6828, %v7310
    %v7312 = vrot.slane %v6592, %v7311
    %v7313 = vsel %vm6833, %v7312, %v7308
    %v7314 = vlaneseq
    %v7315 = vshrl.u32 %v7314, 7
    %v7316 = vsub.s32 %v6835, %v7315
    %v7317 = vrot.slane %v6593, %v7316
    %v7318 = vsel %vm6840, %v7317, %v7313
    %v7319 = vlaneseq
    %v7320 = vshrl.u32 %v7319, 7
    %v7321 = vsub.s32 %v6842, %v7320
    %v7322 = vrot.slane %v6594, %v7321
    %v7323 = vsel %vm6847, %v7322, %v7318
    %v7324 = vlaneseq
    %v7325 = vshrl.u32 %v7324, 7
    %v7326 = vsub.s32 %v6823, %v7325
    %v7327 = vrot.slane %v6595, %v7326
    %v7328 = vlaneseq
    %v7329 = vshrl.u32 %v7328, 7
    %v7330 = vsub.s32 %v6828, %v7329
    %v7331 = vrot.slane %v6596, %v7330
    %v7332 = vsel %vm6833, %v7331, %v7327
    %v7333 = vlaneseq
    %v7334 = vshrl.u32 %v7333, 7
    %v7335 = vsub.s32 %v6835, %v7334
    %v7336 = vrot.slane %v6597, %v7335
    %v7337 = vsel %vm6840, %v7336, %v7332
    %v7338 = vlaneseq
    %v7339 = vshrl.u32 %v7338, 7
    %v7340 = vsub.s32 %v6842, %v7339
    %v7341 = vrot.slane %v6598, %v7340
    %v7342 = vsel %vm6847, %v7341, %v7337
    %v7343 = vlaneseq
    %v7344 = vshrl.u32 %v7343, 7
    %v7345 = vsub.s32 %v6823, %v7344
    %v7346 = vrot.slane %v6599, %v7345
    %v7347 = vlaneseq
    %v7348 = vshrl.u32 %v7347, 7
    %v7349 = vsub.s32 %v6828, %v7348
    %v7350 = vrot.slane %v6600, %v7349
    %v7351 = vsel %vm6833, %v7350, %v7346
    %v7352 = vlaneseq
    %v7353 = vshrl.u32 %v7352, 7
    %v7354 = vsub.s32 %v6835, %v7353
    %v7355 = vrot.slane %v6601, %v7354
    %v7356 = vsel %vm6840, %v7355, %v7351
    %v7357 = vlaneseq
    %v7358 = vshrl.u32 %v7357, 7
    %v7359 = vsub.s32 %v6842, %v7358
    %v7360 = vrot.slane %v6602, %v7359
    %v7361 = vsel %vm6847, %v7360, %v7356
    %v7362 = vlaneseq
    %v7363 = vshrl.u32 %v7362, 7
    %v7364 = vsub.s32 %v6823, %v7363
    %v7365 = vrot.slane %v6603, %v7364
    %v7366 = vlaneseq
    %v7367 = vshrl.u32 %v7366, 7
    %v7368 = vsub.s32 %v6828, %v7367
    %v7369 = vrot.slane %v6604, %v7368
    %v7370 = vsel %vm6833, %v7369, %v7365
    %v7371 = vlaneseq
    %v7372 = vshrl.u32 %v7371, 7
    %v7373 = vsub.s32 %v6835, %v7372
    %v7374 = vrot.slane %v6605, %v7373
    %v7375 = vsel %vm6840, %v7374, %v7370
    %v7376 = vlaneseq
    %v7377 = vshrl.u32 %v7376, 7
    %v7378 = vsub.s32 %v6842, %v7377
    %v7379 = vrot.slane %v6606, %v7378
    %v7380 = vsel %vm6847, %v7379, %v7375
    %v7381 = vlaneseq
    %v7382 = vshrl.u32 %v7381, 7
    %v7383 = vsub.s32 %v6823, %v7382
    %v7384 = vrot.slane %v6607, %v7383
    %v7385 = vlaneseq
    %v7386 = vshrl.u32 %v7385, 7
    %v7387 = vsub.s32 %v6828, %v7386
    %v7388 = vrot.slane %v6608, %v7387
    %v7389 = vsel %vm6833, %v7388, %v7384
    %v7390 = vlaneseq
    %v7391 = vshrl.u32 %v7390, 7
    %v7392 = vsub.s32 %v6835, %v7391
    %v7393 = vrot.slane %v6609, %v7392
    %v7394 = vsel %vm6840, %v7393, %v7389
    %v7395 = vlaneseq
    %v7396 = vshrl.u32 %v7395, 7
    %v7397 = vsub.s32 %v6842, %v7396
    %v7398 = vrot.slane %v6610, %v7397
    %v7399 = vsel %vm6847, %v7398, %v7394
    %v7400 = vlaneseq
    %v7401 = vshrl.u32 %v7400, 7
    %v7402 = vsub.s32 %v6823, %v7401
    %v7403 = vrot.slane %v6611, %v7402
    %v7404 = vlaneseq
    %v7405 = vshrl.u32 %v7404, 7
    %v7406 = vsub.s32 %v6828, %v7405
    %v7407 = vrot.slane %v6612, %v7406
    %v7408 = vsel %vm6833, %v7407, %v7403
    %v7409 = vlaneseq
    %v7410 = vshrl.u32 %v7409, 7
    %v7411 = vsub.s32 %v6835, %v7410
    %v7412 = vrot.slane %v6613, %v7411
    %v7413 = vsel %vm6840, %v7412, %v7408
    %v7414 = vlaneseq
    %v7415 = vshrl.u32 %v7414, 7
    %v7416 = vsub.s32 %v6842, %v7415
    %v7417 = vrot.slane %v6614, %v7416
    %v7418 = vsel %vm6847, %v7417, %v7413
    %v7419 = vlaneseq
    %v7420 = vshrl.u32 %v7419, 7
    %v7421 = vsub.s32 %v6823, %v7420
    %v7422 = vrot.slane %v6615, %v7421
    %v7423 = vlaneseq
    %v7424 = vshrl.u32 %v7423, 7
    %v7425 = vsub.s32 %v6828, %v7424
    %v7426 = vrot.slane %v6616, %v7425
    %v7427 = vsel %vm6833, %v7426, %v7422
    %v7428 = vlaneseq
    %v7429 = vshrl.u32 %v7428, 7
    %v7430 = vsub.s32 %v6835, %v7429
    %v7431 = vrot.slane %v6617, %v7430
    %v7432 = vsel %vm6840, %v7431, %v7427
    %v7433 = vlaneseq
    %v7434 = vshrl.u32 %v7433, 7
    %v7435 = vsub.s32 %v6842, %v7434
    %v7436 = vrot.slane %v6618, %v7435
    %v7437 = vsel %vm6847, %v7436, %v7432
    %v7438 = vlaneseq
    %v7439 = vshrl.u32 %v7438, 7
    %v7440 = vsub.s32 %v6823, %v7439
    %v7441 = vrot.slane %v6619, %v7440
    %v7442 = vlaneseq
    %v7443 = vshrl.u32 %v7442, 7
    %v7444 = vsub.s32 %v6828, %v7443
    %v7445 = vrot.slane %v6620, %v7444
    %v7446 = vsel %vm6833, %v7445, %v7441
    %v7447 = vlaneseq
    %v7448 = vshrl.u32 %v7447, 7
    %v7449 = vsub.s32 %v6835, %v7448
    %v7450 = vrot.slane %v6621, %v7449
    %v7451 = vsel %vm6840, %v7450, %v7446
    %v7452 = vlaneseq
    %v7453 = vshrl.u32 %v7452, 7
    %v7454 = vsub.s32 %v6842, %v7453
    %v7455 = vrot.slane %v6622, %v7454
    %v7456 = vsel %vm6847, %v7455, %v7451
    %v7457 = vlaneseq
    %v7458 = vshrl.u32 %v7457, 7
    %v7459 = vsub.s32 %v6823, %v7458
    %v7460 = vrot.slane %v6623, %v7459
    %v7461 = vlaneseq
    %v7462 = vshrl.u32 %v7461, 7
    %v7463 = vsub.s32 %v6828, %v7462
    %v7464 = vrot.slane %v6624, %v7463
    %v7465 = vsel %vm6833, %v7464, %v7460
    %v7466 = vlaneseq
    %v7467 = vshrl.u32 %v7466, 7
    %v7468 = vsub.s32 %v6835, %v7467
    %v7469 = vrot.slane %v6625, %v7468
    %v7470 = vsel %vm6840, %v7469, %v7465
    %v7471 = vlaneseq
    %v7472 = vshrl.u32 %v7471, 7
    %v7473 = vsub.s32 %v6842, %v7472
    %v7474 = vrot.slane %v6626, %v7473
    %v7475 = vsel %vm6847, %v7474, %v7470
    %v7476 = vlaneseq
    %v7477 = vshrl.u32 %v7476, 7
    %v7478 = vsub.s32 %v6823, %v7477
    %v7479 = vrot.slane %v6627, %v7478
    %v7480 = vlaneseq
    %v7481 = vshrl.u32 %v7480, 7
    %v7482 = vsub.s32 %v6828, %v7481
    %v7483 = vrot.slane %v6628, %v7482
    %v7484 = vsel %vm6833, %v7483, %v7479
    %v7485 = vlaneseq
    %v7486 = vshrl.u32 %v7485, 7
    %v7487 = vsub.s32 %v6835, %v7486
    %v7488 = vrot.slane %v6629, %v7487
    %v7489 = vsel %vm6840, %v7488, %v7484
    %v7490 = vlaneseq
    %v7491 = vshrl.u32 %v7490, 7
    %v7492 = vsub.s32 %v6842, %v7491
    %v7493 = vrot.slane %v6630, %v7492
    %v7494 = vsel %vm6847, %v7493, %v7489
    %v7495 = vlaneseq
    %v7496 = vshrl.u32 %v7495, 7
    %v7497 = vsub.s32 %v6823, %v7496
    %v7498 = vrot.slane %v6631, %v7497
    %v7499 = vlaneseq
    %v7500 = vshrl.u32 %v7499, 7
    %v7501 = vsub.s32 %v6828, %v7500
    %v7502 = vrot.slane %v6632, %v7501
    %v7503 = vsel %vm6833, %v7502, %v7498
    %v7504 = vlaneseq
    %v7505 = vshrl.u32 %v7504, 7
    %v7506 = vsub.s32 %v6835, %v7505
    %v7507 = vrot.slane %v6633, %v7506
    %v7508 = vsel %vm6840, %v7507, %v7503
    %v7509 = vlaneseq
    %v7510 = vshrl.u32 %v7509, 7
    %v7511 = vsub.s32 %v6842, %v7510
    %v7512 = vrot.slane %v6634, %v7511
    %v7513 = vsel %vm6847, %v7512, %v7508
    %v7514 = vlaneseq
    %v7515 = vshrl.u32 %v7514, 7
    %v7516 = vsub.s32 %v6823, %v7515
    %v7517 = vrot.slane %v6635, %v7516
    %v7518 = vlaneseq
    %v7519 = vshrl.u32 %v7518, 7
    %v7520 = vsub.s32 %v6828, %v7519
    %v7521 = vrot.slane %v6636, %v7520
    %v7522 = vsel %vm6833, %v7521, %v7517
    %v7523 = vlaneseq
    %v7524 = vshrl.u32 %v7523, 7
    %v7525 = vsub.s32 %v6835, %v7524
    %v7526 = vrot.slane %v6637, %v7525
    %v7527 = vsel %vm6840, %v7526, %v7522
    %v7528 = vlaneseq
    %v7529 = vshrl.u32 %v7528, 7
    %v7530 = vsub.s32 %v6842, %v7529
    %v7531 = vrot.slane %v6638, %v7530
    %v7532 = vsel %vm6847, %v7531, %v7527
    %v7533 = vlaneseq
    %v7534 = vshrl.u32 %v7533, 7
    %v7535 = vsub.s32 %v6823, %v7534
    %v7536 = vrot.slane %v6639, %v7535
    %v7537 = vlaneseq
    %v7538 = vshrl.u32 %v7537, 7
    %v7539 = vsub.s32 %v6828, %v7538
    %v7540 = vrot.slane %v6640, %v7539
    %v7541 = vsel %vm6833, %v7540, %v7536
    %v7542 = vlaneseq
    %v7543 = vshrl.u32 %v7542, 7
    %v7544 = vsub.s32 %v6835, %v7543
    %v7545 = vrot.slane %v6641, %v7544
    %v7546 = vsel %vm6840, %v7545, %v7541
    %v7547 = vlaneseq
    %v7548 = vshrl.u32 %v7547, 7
    %v7549 = vsub.s32 %v6842, %v7548
    %v7550 = vrot.slane %v6642, %v7549
    %v7551 = vsel %vm6847, %v7550, %v7546
    %v7552 = vlaneseq
    %v7553 = vshrl.u32 %v7552, 7
    %v7554 = vsub.s32 %v6823, %v7553
    %v7555 = vrot.slane %v6643, %v7554
    %v7556 = vlaneseq
    %v7557 = vshrl.u32 %v7556, 7
    %v7558 = vsub.s32 %v6828, %v7557
    %v7559 = vrot.slane %v6644, %v7558
    %v7560 = vsel %vm6833, %v7559, %v7555
    %v7561 = vlaneseq
    %v7562 = vshrl.u32 %v7561, 7
    %v7563 = vsub.s32 %v6835, %v7562
    %v7564 = vrot.slane %v6645, %v7563
    %v7565 = vsel %vm6840, %v7564, %v7560
    %v7566 = vlaneseq
    %v7567 = vshrl.u32 %v7566, 7
    %v7568 = vsub.s32 %v6842, %v7567
    %v7569 = vrot.slane %v6646, %v7568
    %v7570 = vsel %vm6847, %v7569, %v7565
    %v7571 = vlaneseq
    %v7572 = vshrl.u32 %v7571, 7
    %v7573 = vsub.s32 %v6823, %v7572
    %v7574 = vrot.slane %v6647, %v7573
    %v7575 = vlaneseq
    %v7576 = vshrl.u32 %v7575, 7
    %v7577 = vsub.s32 %v6828, %v7576
    %v7578 = vrot.slane %v6648, %v7577
    %v7579 = vsel %vm6833, %v7578, %v7574
    %v7580 = vlaneseq
    %v7581 = vshrl.u32 %v7580, 7
    %v7582 = vsub.s32 %v6835, %v7581
    %v7583 = vrot.slane %v6649, %v7582
    %v7584 = vsel %vm6840, %v7583, %v7579
    %v7585 = vlaneseq
    %v7586 = vshrl.u32 %v7585, 7
    %v7587 = vsub.s32 %v6842, %v7586
    %v7588 = vrot.slane %v6650, %v7587
    %v7589 = vsel %vm6847, %v7588, %v7584
    %vm7590 = vcmask 1041409
    %v7591 = vsel %vm7590, %v6867, %v6848
    %vm7592 = vcmask 1042434
    %v7593 = vsel %vm7592, %v6886, %v7591
    %vm7594 = vcmask 1043459
    %v7595 = vsel %vm7594, %v6905, %v7593
    %vm7596 = vcmask 1044484
    %v7597 = vsel %vm7596, %v6924, %v7595
    %vm7598 = vcmask 1045509
    %v7599 = vsel %vm7598, %v6943, %v7597
    %vm7600 = vcmask 1046534
    %v7601 = vsel %vm7600, %v6962, %v7599
    %vm7602 = vcmask 1047559
    %v7603 = vsel %vm7602, %v6981, %v7601
    %v7604 = vsel %vm7590, %v7019, %v7000
    %v7605 = vsel %vm7592, %v7038, %v7604
    %v7606 = vsel %vm7594, %v7057, %v7605
    %v7607 = vsel %vm7596, %v7076, %v7606
    %v7608 = vsel %vm7598, %v7095, %v7607
    %v7609 = vsel %vm7600, %v7114, %v7608
    %v7610 = vsel %vm7602, %v7133, %v7609
    %v7611 = vsel %vm7590, %v7171, %v7152
    %v7612 = vsel %vm7592, %v7190, %v7611
    %v7613 = vsel %vm7594, %v7209, %v7612
    %v7614 = vsel %vm7596, %v7228, %v7613
    %v7615 = vsel %vm7598, %v7247, %v7614
    %v7616 = vsel %vm7600, %v7266, %v7615
    %v7617 = vsel %vm7602, %v7285, %v7616
    %v7618 = vsel %vm7590, %v7323, %v7304
    %v7619 = vsel %vm7592, %v7342, %v7618
    %v7620 = vsel %vm7594, %v7361, %v7619
    %v7621 = vsel %vm7596, %v7380, %v7620
    %v7622 = vsel %vm7598, %v7399, %v7621
    %v7623 = vsel %vm7600, %v7418, %v7622
    %v7624 = vsel %vm7602, %v7437, %v7623
    %v7625 = vsel %vm7590, %v7475, %v7456
    %v7626 = vsel %vm7592, %v7494, %v7625
    %v7627 = vsel %vm7594, %v7513, %v7626
    %v7628 = vsel %vm7596, %v7532, %v7627
    %v7629 = vsel %vm7598, %v7551, %v7628
    %v7630 = vsel %vm7600, %v7570, %v7629
    %v7631 = vsel %vm7602, %v7589, %v7630
    %vm7632 = vcmask 261120
    %v7633 = vsel %vm7632, %v7603, 0
    %v7635 = vsel %vm7632, %v7610, 0
    %v7637 = vsel %vm7632, %v7617, 0
    %v7639 = vsel %vm7632, %v7624, 0
    %v7641 = vsel %vm7632, %v7631, 0
    %7643 = vmatprep.subr.mxu0 0.0
    %7644 = vmatpush1.msra.mxu0 %v6651
    %7645 = vmatprep.subr.mxu0 0.0
    %7646 = vmatpush1.msra.mxu0 %v6652
    %7647 = vmatprep.subr.mxu0 0.0
    %7648 = vmatpush1.msra.mxu0 %v6653
    %7649 = vmatprep.subr.mxu0 0.0
    %7650 = vmatpush1.msra.mxu0 %v6654
    %7651 = vmatprep.subr.mxu0 0.0
    %7652 = vmatpush1.msra.mxu0 0.0
    %7653 = vmatprep.subr.mxu0 0.0
    %7654 = vmatpush1.msra.mxu0 0.0
    %7655 = vmatprep.subr.mxu0 0.0
    %7656 = vmatpush1.msra.mxu0 0.0
    %7657 = vmatprep.subr.mxu0 0.0
    %7658 = vmatpush1.msra.mxu0 0.0
    %7659 = vmatprep.subr.mxu0 0.0
    %7660 = vmatpush1.msra.mxu0 0.0
    %7661 = vmatprep.subr.mxu0 0.0
    %7662 = vmatpush1.msra.mxu0 0.0
    %7663 = vmatprep.subr.mxu0 0.0
    %7664 = vmatpush1.msra.mxu0 0.0
    %7665 = vmatprep.subr.mxu0 0.0
    %7666 = vmatpush1.msra.mxu0 0.0
    %7667 = vmatprep.subr.mxu0 0.0
    %7668 = vmatpush1.msra.mxu0 0.0
    %7669 = vmatprep.subr.mxu0 0.0
    %7670 = vmatpush1.msra.mxu0 0.0
    %7671 = vmatprep.subr.mxu0 0.0
    %7672 = vmatpush1.msra.mxu0 0.0
    %7673 = vmatprep.subr.mxu0 0.0
    %7674 = vmatpush1.msra.mxu0 0.0
    %7675 = vmatprep.subr.mxu0 0.0
    %7676 = vmatpush1.msra.mxu0 0.0
    %7677 = vmatprep.subr.mxu0 0.0
    %7678 = vmatpush1.msra.mxu0 0.0
    %7679 = vmatprep.subr.mxu0 0.0
    %7680 = vmatpush1.msra.mxu0 0.0
    %7681 = vmatprep.subr.mxu0 0.0
    %7682 = vmatpush1.msra.mxu0 0.0
    %7683 = vmatprep.subr.mxu0 0.0
    %7684 = vmatpush1.msra.mxu0 0.0
    %7685 = vmatprep.subr.mxu0 0.0
    %7686 = vmatpush1.msra.mxu0 0.0
    %7687 = vmatprep.subr.mxu0 0.0
    %7688 = vmatpush1.msra.mxu0 0.0
    %7689 = vmatprep.subr.mxu0 0.0
    %7690 = vmatpush1.msra.mxu0 0.0
    %7691 = vmatprep.subr.mxu0 0.0
    %7692 = vmatpush1.msra.mxu0 0.0
    %7693 = vmatprep.subr.mxu0 0.0
    %7694 = vmatpush1.msra.mxu0 0.0
    %7695 = vmatprep.subr.mxu0 0.0
    %7696 = vmatpush1.msra.mxu0 0.0
    %7697 = vmatprep.subr.mxu0 0.0
    %7698 = vmatpush1.msra.mxu0 0.0
    %7699 = vmatprep.subr.mxu0 0.0
    %7700 = vmatpush1.msra.mxu0 0.0
    %7701 = vmatprep.subr.mxu0 0.0
    %7702 = vmatpush1.msra.mxu0 0.0
    %7703 = vmatprep.subr.mxu0 0.0
    %7704 = vmatpush1.msra.mxu0 0.0
    %7705 = vmatprep.subr.mxu0 0.0
    %7706 = vmatpush1.msra.mxu0 0.0
    %7707 = vmatprep.mubr.f32.mxu0 0.0
    %7708 = vmatmul.mubr.f32.gmra.mrb[0].mxu0 %v7633
    %v7709 = vpop.f32.mrb[0].mxu0
    %v7710 = vadd.f32 %v6660, %v7709
    %v7711 = vpop.f32.mrb[0].mxu0
    %7712 = vmatprep.mubr.f32.mxu0 0.0
    %7713 = vmatmul.mubr.f32.gmra.mrb[0].mxu0 %v7635
    %v7714 = vpop.f32.mrb[0].mxu0
    %v7715 = vadd.f32 %v6660, %v7714
    %v7716 = vpop.f32.mrb[0].mxu0
    %7717 = vmatprep.mubr.f32.mxu0 0.0
    %7718 = vmatmul.mubr.f32.gmra.mrb[0].mxu0 %v7637
    %v7719 = vpop.f32.mrb[0].mxu0
    %v7720 = vadd.f32 %v6660, %v7719
    %v7721 = vpop.f32.mrb[0].mxu0
    %7722 = vmatprep.mubr.f32.mxu0 0.0
    %7723 = vmatmul.mubr.f32.gmra.mrb[0].mxu0 %v7639
    %v7724 = vpop.f32.mrb[0].mxu0
    %v7725 = vadd.f32 %v6660, %v7724
    %v7726 = vpop.f32.mrb[0].mxu0
    %7727 = vmatprep.mubr.f32.mxu0 0.0
    %7728 = vmatmul.mubr.f32.gmra.mrb[0].mxu0 %v7641
    %v7729 = vpop.f32.mrb[0].mxu0
    %v7730 = vadd.f32 %v6660, %v7729
    %v7731 = vpop.f32.mrb[0].mxu0
    %7732 = vdwg.mxu0
    %v7733 = vld [vmem:[#allocation7] sm:$0xff]
    %v7734 = vld [vmem:[#allocation7 + $0x8] sm:$0xff]
    %v7735 = vld [vmem:[#allocation7 + $0x10] sm:$0xff]
    %v7736 = vld [vmem:[#allocation7 + $0x18] sm:$0xff]
    %v7738 = vsel %vm7632, 0.0, 0
    %7740 = vmatprep.subr.mxu0 0.0
    %7741 = vmatpush1.msra.mxu0 %v7733
    %7742 = vmatprep.subr.mxu0 0.0
    %7743 = vmatpush1.msra.mxu0 %v7734
    %7744 = vmatprep.subr.mxu0 0.0
    %7745 = vmatpush1.msra.mxu0 %v7735
    %7746 = vmatprep.subr.mxu0 0.0
    %7747 = vmatpush1.msra.mxu0 %v7736
    %7748 = vmatprep.subr.mxu0 0.0
    %7749 = vmatpush1.msra.mxu0 0.0
    %7750 = vmatprep.subr.mxu0 0.0
    %7751 = vmatpush1.msra.mxu0 0.0
    %7752 = vmatprep.subr.mxu0 0.0
    %7753 = vmatpush1.msra.mxu0 0.0
    %7754 = vmatprep.subr.mxu0 0.0
    %7755 = vmatpush1.msra.mxu0 0.0
    %7756 = vmatprep.subr.mxu0 0.0
    %7757 = vmatpush1.msra.mxu0 0.0
    %7758 = vmatprep.subr.mxu0 0.0
    %7759 = vmatpush1.msra.mxu0 0.0
    %7760 = vmatprep.subr.mxu0 0.0
    %7761 = vmatpush1.msra.mxu0 0.0
    %7762 = vmatprep.subr.mxu0 0.0
    %7763 = vmatpush1.msra.mxu0 0.0
    %7764 = vmatprep.subr.mxu0 0.0
    %7765 = vmatpush1.msra.mxu0 0.0
    %7766 = vmatprep.subr.mxu0 0.0
    %7767 = vmatpush1.msra.mxu0 0.0
    %7768 = vmatprep.subr.mxu0 0.0
    %7769 = vmatpush1.msra.mxu0 0.0
    %7770 = vmatprep.subr.mxu0 0.0
    %7771 = vmatpush1.msra.mxu0 0.0
    %7772 = vmatprep.subr.mxu0 0.0
    %7773 = vmatpush1.msra.mxu0 0.0
    %7774 = vmatprep.subr.mxu0 0.0
    %7775 = vmatpush1.msra.mxu0 0.0
    %7776 = vmatprep.subr.mxu0 0.0
    %7777 = vmatpush1.msra.mxu0 0.0
    %7778 = vmatprep.subr.mxu0 0.0
    %7779 = vmatpush1.msra.mxu0 0.0
    %7780 = vmatprep.subr.mxu0 0.0
    %7781 = vmatpush1.msra.mxu0 0.0
    %7782 = vmatprep.subr.mxu0 0.0
    %7783 = vmatpush1.msra.mxu0 0.0
    %7784 = vmatprep.subr.mxu0 0.0
    %7785 = vmatpush1.msra.mxu0 0.0
    %7786 = vmatprep.subr.mxu0 0.0
    %7787 = vmatpush1.msra.mxu0 0.0
    %7788 = vmatprep.subr.mxu0 0.0
    %7789 = vmatpush1.msra.mxu0 0.0
    %7790 = vmatprep.subr.mxu0 0.0
    %7791 = vmatpush1.msra.mxu0 0.0
    %7792 = vmatprep.subr.mxu0 0.0
    %7793 = vmatpush1.msra.mxu0 0.0
    %7794 = vmatprep.subr.mxu0 0.0
    %7795 = vmatpush1.msra.mxu0 0.0
    %7796 = vmatprep.subr.mxu0 0.0
    %7797 = vmatpush1.msra.mxu0 0.0
    %7798 = vmatprep.subr.mxu0 0.0
    %7799 = vmatpush1.msra.mxu0 0.0
    %7800 = vmatprep.subr.mxu0 0.0
    %7801 = vmatpush1.msra.mxu0 0.0
    %7802 = vmatprep.subr.mxu0 0.0
    %7803 = vmatpush1.msra.mxu0 0.0
    %7804 = vmatprep.mubr.f32.mxu0 0.0
    %7805 = vmatmul.mubr.f32.gmra.mrb[0].mxu0 %v7738
    %v7806 = vpop.f32.mrb[0].mxu0
    %v7807 = vadd.f32 0.0, %v7806
    %v7808 = vpop.f32.mrb[0].mxu0
    %7809 = vdwg.mxu0
    %v7810 = vadd.f32 %v7710, %v7807
    %v7811 = vxor.u32 %v7810, 2147483648
    %v7812 = vmul.f32 %v7811, 1.442695
    %v7813 = vpow.pop %v7812
    %v7814 = vadd.f32 %v7813, 1.0
    %v7815 = vrcp.pop %v7814
    %v7816 = vmul.f32 1.0, %v7815
    %v7817 = vmul.f32 %v7816, 2.0
    %v7818 = vsub.f32 %v7817, 1.0
    %v7819 = vmul.f32 %v7816, 0.0
    %7821 = vrot.lane.b32.xlu0 %v7818, 64
    %v7822 = vpop.permute.xlu0 %7821
    %v7824 = vmul.f32 %v7816, %v7822
    %7826 = vrot.lane.b32.xlu0 %v7824, 32
    %v7827 = vpop.permute.xlu0 %7826
    %v7829 = vadd.f32 %v7819, %v7827
    %v7830 = vtanh.pop %v7829
    %7832 = vrot.lane.b32.xlu0 %v7830, 64
    %v7833 = vpop.permute.xlu0 %7832
    %v7835 = vmul.f32 %v7816, %v7833
    %v7836 = vld [vmem:[%s6] sm:$0xff]
    %v7837 = vld [vmem:[%s6 + $0x8] sm:$0xff]
    %v7838 = vld [vmem:[%s6 + $0x10] sm:$0xff]
    %v7839 = vld [vmem:[%s6 + $0x18] sm:$0xff]
    %7841 = vrot.lane.b32.xlu0 %v7835, 32
    %v7842 = vpop.permute.xlu0 %7841
    %v7843 = vsel %vm7632, %v7842, 0
    %7845 = vmatprep.subr.mxu0 0.0
    %7846 = vmatpush1.msra.mxu0 %v7733
    %7847 = vmatprep.subr.mxu0 0.0
    %7848 = vmatpush1.msra.mxu0 %v7734
    %7849 = vmatprep.subr.mxu0 0.0
    %7850 = vmatpush1.msra.mxu0 %v7735
    %7851 = vmatprep.subr.mxu0 0.0
    %7852 = vmatpush1.msra.mxu0 %v7736
    %7853 = vmatprep.subr.mxu0 0.0
    %7854 = vmatpush1.msra.mxu0 0.0
    %7855 = vmatprep.subr.mxu0 0.0
    %7856 = vmatpush1.msra.mxu0 0.0
    %7857 = vmatprep.subr.mxu0 0.0
    %7858 = vmatpush1.msra.mxu0 0.0
    %7859 = vmatprep.subr.mxu0 0.0
    %7860 = vmatpush1.msra.mxu0 0.0
    %7861 = vmatprep.subr.mxu0 0.0
    %7862 = vmatpush1.msra.mxu0 0.0
    %7863 = vmatprep.subr.mxu0 0.0
    %7864 = vmatpush1.msra.mxu0 0.0
    %7865 = vmatprep.subr.mxu0 0.0
    %7866 = vmatpush1.msra.mxu0 0.0
    %7867 = vmatprep.subr.mxu0 0.0
    %7868 = vmatpush1.msra.mxu0 0.0
    %7869 = vmatprep.subr.mxu0 0.0
    %7870 = vmatpush1.msra.mxu0 0.0
    %7871 = vmatprep.subr.mxu0 0.0
    %7872 = vmatpush1.msra.mxu0 0.0
    %7873 = vmatprep.subr.mxu0 0.0
    %7874 = vmatpush1.msra.mxu0 0.0
    %7875 = vmatprep.subr.mxu0 0.0
    %7876 = vmatpush1.msra.mxu0 0.0
    %7877 = vmatprep.subr.mxu0 0.0
    %7878 = vmatpush1.msra.mxu0 0.0
    %7879 = vmatprep.subr.mxu0 0.0
    %7880 = vmatpush1.msra.mxu0 0.0
    %7881 = vmatprep.subr.mxu0 0.0
    %7882 = vmatpush1.msra.mxu0 0.0
    %7883 = vmatprep.subr.mxu0 0.0
    %7884 = vmatpush1.msra.mxu0 0.0
    %7885 = vmatprep.subr.mxu0 0.0
    %7886 = vmatpush1.msra.mxu0 0.0
    %7887 = vmatprep.subr.mxu0 0.0
    %7888 = vmatpush1.msra.mxu0 0.0
    %7889 = vmatprep.subr.mxu0 0.0
    %7890 = vmatpush1.msra.mxu0 0.0
    %7891 = vmatprep.subr.mxu0 0.0
    %7892 = vmatpush1.msra.mxu0 0.0
    %7893 = vmatprep.subr.mxu0 0.0
    %7894 = vmatpush1.msra.mxu0 0.0
    %7895 = vmatprep.subr.mxu0 0.0
    %7896 = vmatpush1.msra.mxu0 0.0
    %7897 = vmatprep.subr.mxu0 0.0
    %7898 = vmatpush1.msra.mxu0 0.0
    %7899 = vmatprep.subr.mxu0 0.0
    %7900 = vmatpush1.msra.mxu0 0.0
    %7901 = vmatprep.subr.mxu0 0.0
    %7902 = vmatpush1.msra.mxu0 0.0
    %7903 = vmatprep.subr.mxu0 0.0
    %7904 = vmatpush1.msra.mxu0 0.0
    %7905 = vmatprep.subr.mxu0 0.0
    %7906 = vmatpush1.msra.mxu0 0.0
    %7907 = vmatprep.subr.mxu0 0.0
    %7908 = vmatpush1.msra.mxu0 0.0
    %7909 = vmatprep.mubr.f32.mxu0 0.0
    %7910 = vmatmul.mubr.f32.gmra.mrb[0].mxu0 %v7843
    %v7911 = vpop.f32.mrb[0].mxu0
    %v7912 = vadd.f32 0.0, %v7911
    %v7913 = vpop.f32.mrb[0].mxu0
    %7914 = vdwg.mxu0
    %v7915 = vadd.f32 %v7715, %v7912
    %v7916 = vxor.u32 %v7915, 2147483648
    %v7917 = vmul.f32 %v7916, 1.442695
    %v7918 = vpow.pop %v7917
    %v7919 = vadd.f32 %v7918, 1.0
    %v7920 = vrcp.pop %v7919
    %v7921 = vmul.f32 1.0, %v7920
    %v7922 = vmul.f32 %v7921, 2.0
    %v7923 = vsub.f32 %v7922, 1.0
    %v7924 = vmul.f32 %v7921, %v7829
    %7926 = vrot.lane.b32.xlu0 %v7923, 64
    %v7927 = vpop.permute.xlu0 %7926
    %v7929 = vmul.f32 %v7921, %v7927
    %7931 = vrot.lane.b32.xlu0 %v7929, 32
    %v7932 = vpop.permute.xlu0 %7931
    %v7934 = vadd.f32 %v7924, %v7932
    %v7935 = vtanh.pop %v7934
    %7937 = vrot.lane.b32.xlu0 %v7935, 64
    %v7938 = vpop.permute.xlu0 %7937
    %v7940 = vmul.f32 %v7921, %v7938
    %s7941 = scalar_lea.vmem %s6, 32
    %v7942 = vld [vmem:[%s7941] sm:$0xff]
    %v7943 = vld [vmem:[%s7941 + $0x8] sm:$0xff]
    %v7944 = vld [vmem:[%s7941 + $0x10] sm:$0xff]
    %v7945 = vld [vmem:[%s7941 + $0x18] sm:$0xff]
    %7947 = vrot.lane.b32.xlu0 %v7940, 32
    %v7948 = vpop.permute.xlu0 %7947
    %v7949 = vsel %vm7632, %v7948, 0
    %7951 = vmatprep.subr.mxu0 0.0
    %7952 = vmatpush1.msra.mxu0 %v7942
    %7953 = vmatprep.subr.mxu0 0.0
    %7954 = vmatpush1.msra.mxu0 %v7943
    %7955 = vmatprep.subr.mxu0 0.0
    %7956 = vmatpush1.msra.mxu0 %v7944
    %7957 = vmatprep.subr.mxu0 0.0
    %7958 = vmatpush1.msra.mxu0 %v7945
    %7959 = vmatprep.subr.mxu0 0.0
    %7960 = vmatpush1.msra.mxu0 0.0
    %7961 = vmatprep.subr.mxu0 0.0
    %7962 = vmatpush1.msra.mxu0 0.0
    %7963 = vmatprep.subr.mxu0 0.0
    %7964 = vmatpush1.msra.mxu0 0.0
    %7965 = vmatprep.subr.mxu0 0.0
    %7966 = vmatpush1.msra.mxu0 0.0
    %7967 = vmatprep.subr.mxu0 0.0
    %7968 = vmatpush1.msra.mxu0 0.0
    %7969 = vmatprep.subr.mxu0 0.0
    %7970 = vmatpush1.msra.mxu0 0.0
    %7971 = vmatprep.subr.mxu0 0.0
    %7972 = vmatpush1.msra.mxu0 0.0
    %7973 = vmatprep.subr.mxu0 0.0
    %7974 = vmatpush1.msra.mxu0 0.0
    %7975 = vmatprep.subr.mxu0 0.0
    %7976 = vmatpush1.msra.mxu0 0.0
    %7977 = vmatprep.subr.mxu0 0.0
    %7978 = vmatpush1.msra.mxu0 0.0
    %7979 = vmatprep.subr.mxu0 0.0
    %7980 = vmatpush1.msra.mxu0 0.0
    %7981 = vmatprep.subr.mxu0 0.0
    %7982 = vmatpush1.msra.mxu0 0.0
    %7983 = vmatprep.subr.mxu0 0.0
    %7984 = vmatpush1.msra.mxu0 0.0
    %7985 = vmatprep.subr.mxu0 0.0
    %7986 = vmatpush1.msra.mxu0 0.0
    %7987 = vmatprep.subr.mxu0 0.0
    %7988 = vmatpush1.msra.mxu0 0.0
    %7989 = vmatprep.subr.mxu0 0.0
    %7990 = vmatpush1.msra.mxu0 0.0
    %7991 = vmatprep.subr.mxu0 0.0
    %7992 = vmatpush1.msra.mxu0 0.0
    %7993 = vmatprep.subr.mxu0 0.0
    %7994 = vmatpush1.msra.mxu0 0.0
    %7995 = vmatprep.subr.mxu0 0.0
    %7996 = vmatpush1.msra.mxu0 0.0
    %7997 = vmatprep.subr.mxu0 0.0
    %7998 = vmatpush1.msra.mxu0 0.0
    %7999 = vmatprep.subr.mxu0 0.0
    %8000 = vmatpush1.msra.mxu0 0.0
    %8001 = vmatprep.subr.mxu0 0.0
    %8002 = vmatpush1.msra.mxu0 0.0
    %8003 = vmatprep.subr.mxu0 0.0
    %8004 = vmatpush1.msra.mxu0 0.0
    %8005 = vmatprep.subr.mxu0 0.0
    %8006 = vmatpush1.msra.mxu0 0.0
    %8007 = vmatprep.subr.mxu0 0.0
    %8008 = vmatpush1.msra.mxu0 0.0
    %8009 = vmatprep.subr.mxu0 0.0
    %8010 = vmatpush1.msra.mxu0 0.0
    %8011 = vmatprep.subr.mxu0 0.0
    %8012 = vmatpush1.msra.mxu0 0.0
    %8013 = vmatprep.subr.mxu0 0.0
    %8014 = vmatpush1.msra.mxu0 0.0
    %8015 = vmatprep.mubr.f32.mxu0 0.0
    %8016 = vmatmul.mubr.f32.gmra.mrb[0].mxu0 %v7949
    %v8017 = vpop.f32.mrb[0].mxu0
    %v8018 = vadd.f32 0.0, %v8017
    %v8019 = vpop.f32.mrb[0].mxu0
    %8020 = vdwg.mxu0
    %8021 = vmatprep.subr.mxu0 0.0
    %8022 = vmatpush1.msra.mxu0 %v7836
    %8023 = vmatprep.subr.mxu0 0.0
    %8024 = vmatpush1.msra.mxu0 %v7837
    %8025 = vmatprep.subr.mxu0 0.0
    %8026 = vmatpush1.msra.mxu0 %v7838
    %8027 = vmatprep.subr.mxu0 0.0
    %8028 = vmatpush1.msra.mxu0 %v7839
    %8029 = vmatprep.subr.mxu0 0.0
    %8030 = vmatpush1.msra.mxu0 0.0
    %8031 = vmatprep.subr.mxu0 0.0
    %8032 = vmatpush1.msra.mxu0 0.0
    %8033 = vmatprep.subr.mxu0 0.0
    %8034 = vmatpush1.msra.mxu0 0.0
    %8035 = vmatprep.subr.mxu0 0.0
    %8036 = vmatpush1.msra.mxu0 0.0
    %8037 = vmatprep.subr.mxu0 0.0
    %8038 = vmatpush1.msra.mxu0 0.0
    %8039 = vmatprep.subr.mxu0 0.0
    %8040 = vmatpush1.msra.mxu0 0.0
    %8041 = vmatprep.subr.mxu0 0.0
    %8042 = vmatpush1.msra.mxu0 0.0
    %8043 = vmatprep.subr.mxu0 0.0
    %8044 = vmatpush1.msra.mxu0 0.0
    %8045 = vmatprep.subr.mxu0 0.0
    %8046 = vmatpush1.msra.mxu0 0.0
    %8047 = vmatprep.subr.mxu0 0.0
    %8048 = vmatpush1.msra.mxu0 0.0
    %8049 = vmatprep.subr.mxu0 0.0
    %8050 = vmatpush1.msra.mxu0 0.0
    %8051 = vmatprep.subr.mxu0 0.0
    %8052 = vmatpush1.msra.mxu0 0.0
    %8053 = vmatprep.subr.mxu0 0.0
    %8054 = vmatpush1.msra.mxu0 0.0
    %8055 = vmatprep.subr.mxu0 0.0
    %8056 = vmatpush1.msra.mxu0 0.0
    %8057 = vmatprep.subr.mxu0 0.0
    %8058 = vmatpush1.msra.mxu0 0.0
    %8059 = vmatprep.subr.mxu0 0.0
    %8060 = vmatpush1.msra.mxu0 0.0
    %8061 = vmatprep.subr.mxu0 0.0
    %8062 = vmatpush1.msra.mxu0 0.0
    %8063 = vmatprep.subr.mxu0 0.0
    %8064 = vmatpush1.msra.mxu0 0.0
    %8065 = vmatprep.subr.mxu0 0.0
    %8066 = vmatpush1.msra.mxu0 0.0
    %8067 = vmatprep.subr.mxu0 0.0
    %8068 = vmatpush1.msra.mxu0 0.0
    %8069 = vmatprep.subr.mxu0 0.0
    %8070 = vmatpush1.msra.mxu0 0.0
    %8071 = vmatprep.subr.mxu0 0.0
    %8072 = vmatpush1.msra.mxu0 0.0
    %8073 = vmatprep.subr.mxu0 0.0
    %8074 = vmatpush1.msra.mxu0 0.0
    %8075 = vmatprep.subr.mxu0 0.0
    %8076 = vmatpush1.msra.mxu0 0.0
    %8077 = vmatprep.subr.mxu0 0.0
    %8078 = vmatpush1.msra.mxu0 0.0
    %8079 = vmatprep.subr.mxu0 0.0
    %8080 = vmatpush1.msra.mxu0 0.0
    %8081 = vmatprep.subr.mxu0 0.0
    %8082 = vmatpush1.msra.mxu0 0.0
    %8083 = vmatprep.subr.mxu0 0.0
    %8084 = vmatpush1.msra.mxu0 0.0
    %8085 = vmatprep.mubr.f32.mxu0 0.0
    %8086 = vmatmul.mubr.f32.gmra.mrb[0].mxu0 %v7843
    %v8087 = vpop.f32.mrb[0].mxu0
    %v8088 = vadd.f32 %v8018, %v8087
    %v8089 = vpop.f32.mrb[0].mxu0
    %8090 = vdwg.mxu0
    %8091 = vmatprep.subr.mxu0 0.0
    %8092 = vmatpush1.msra.mxu0 %v7733
    %8093 = vmatprep.subr.mxu0 0.0
    %8094 = vmatpush1.msra.mxu0 %v7734
    %8095 = vmatprep.subr.mxu0 0.0
    %8096 = vmatpush1.msra.mxu0 %v7735
    %8097 = vmatprep.subr.mxu0 0.0
    %8098 = vmatpush1.msra.mxu0 %v7736
    %8099 = vmatprep.subr.mxu0 0.0
    %8100 = vmatpush1.msra.mxu0 0.0
    %8101 = vmatprep.subr.mxu0 0.0
    %8102 = vmatpush1.msra.mxu0 0.0
    %8103 = vmatprep.subr.mxu0 0.0
    %8104 = vmatpush1.msra.mxu0 0.0
    %8105 = vmatprep.subr.mxu0 0.0
    %8106 = vmatpush1.msra.mxu0 0.0
    %8107 = vmatprep.subr.mxu0 0.0
    %8108 = vmatpush1.msra.mxu0 0.0
    %8109 = vmatprep.subr.mxu0 0.0
    %8110 = vmatpush1.msra.mxu0 0.0
    %8111 = vmatprep.subr.mxu0 0.0
    %8112 = vmatpush1.msra.mxu0 0.0
    %8113 = vmatprep.subr.mxu0 0.0
    %8114 = vmatpush1.msra.mxu0 0.0
    %8115 = vmatprep.subr.mxu0 0.0
    %8116 = vmatpush1.msra.mxu0 0.0
    %8117 = vmatprep.subr.mxu0 0.0
    %8118 = vmatpush1.msra.mxu0 0.0
    %8119 = vmatprep.subr.mxu0 0.0
    %8120 = vmatpush1.msra.mxu0 0.0
    %8121 = vmatprep.subr.mxu0 0.0
    %8122 = vmatpush1.msra.mxu0 0.0
    %8123 = vmatprep.subr.mxu0 0.0
    %8124 = vmatpush1.msra.mxu0 0.0
    %8125 = vmatprep.subr.mxu0 0.0
    %8126 = vmatpush1.msra.mxu0 0.0
    %8127 = vmatprep.subr.mxu0 0.0
    %8128 = vmatpush1.msra.mxu0 0.0
    %8129 = vmatprep.subr.mxu0 0.0
    %8130 = vmatpush1.msra.mxu0 0.0
    %8131 = vmatprep.subr.mxu0 0.0
    %8132 = vmatpush1.msra.mxu0 0.0
    %8133 = vmatprep.subr.mxu0 0.0
    %8134 = vmatpush1.msra.mxu0 0.0
    %8135 = vmatprep.subr.mxu0 0.0
    %8136 = vmatpush1.msra.mxu0 0.0
    %8137 = vmatprep.subr.mxu0 0.0
    %8138 = vmatpush1.msra.mxu0 0.0
    %8139 = vmatprep.subr.mxu0 0.0
    %8140 = vmatpush1.msra.mxu0 0.0
    %8141 = vmatprep.subr.mxu0 0.0
    %8142 = vmatpush1.msra.mxu0 0.0
    %8143 = vmatprep.subr.mxu0 0.0
    %8144 = vmatpush1.msra.mxu0 0.0
    %8145 = vmatprep.subr.mxu0 0.0
    %8146 = vmatpush1.msra.mxu0 0.0
    %8147 = vmatprep.subr.mxu0 0.0
    %8148 = vmatpush1.msra.mxu0 0.0
    %8149 = vmatprep.subr.mxu0 0.0
    %8150 = vmatpush1.msra.mxu0 0.0
    %8151 = vmatprep.subr.mxu0 0.0
    %8152 = vmatpush1.msra.mxu0 0.0
    %8153 = vmatprep.subr.mxu0 0.0
    %8154 = vmatpush1.msra.mxu0 0.0
    %8155 = vmatprep.mubr.f32.mxu0 0.0
    %8156 = vmatmul.mubr.f32.gmra.mrb[0].mxu0 %v7949
    %v8157 = vpop.f32.mrb[0].mxu0
    %v8158 = vadd.f32 0.0, %v8157
    %v8159 = vpop.f32.mrb[0].mxu0
    %8160 = vdwg.mxu0
    %v8161 = vadd.f32 %v7720, %v8158
    %v8162 = vxor.u32 %v8161, 2147483648
    %v8163 = vmul.f32 %v8162, 1.442695
    %v8164 = vpow.pop %v8163
    %v8165 = vadd.f32 %v8164, 1.0
    %v8166 = vrcp.pop %v8165
    %v8167 = vmul.f32 1.0, %v8166
    %v8168 = vmul.f32 %v8167, 2.0
    %v8169 = vsub.f32 %v8168, 1.0
    %v8170 = vmul.f32 %v8167, %v7934
    %8172 = vrot.lane.b32.xlu0 %v8169, 64
    %v8173 = vpop.permute.xlu0 %8172
    %v8175 = vmul.f32 %v8167, %v8173
    %8177 = vrot.lane.b32.xlu0 %v8175, 32
    %v8178 = vpop.permute.xlu0 %8177
    %v8180 = vadd.f32 %v8170, %v8178
    %v8181 = vtanh.pop %v8180
    %8183 = vrot.lane.b32.xlu0 %v8181, 64
    %v8184 = vpop.permute.xlu0 %8183
    %v8186 = vmul.f32 %v8167, %v8184
    %s8187 = scalar_lea.vmem %s6, 64
    %v8188 = vld [vmem:[%s8187] sm:$0xff]
    %v8189 = vld [vmem:[%s8187 + $0x8] sm:$0xff]
    %v8190 = vld [vmem:[%s8187 + $0x10] sm:$0xff]
    %v8191 = vld [vmem:[%s8187 + $0x18] sm:$0xff]
    %8193 = vrot.lane.b32.xlu0 %v8186, 32
    %v8194 = vpop.permute.xlu0 %8193
    %v8195 = vsel %vm7632, %v8194, 0
    %8197 = vmatprep.subr.mxu0 0.0
    %8198 = vmatpush1.msra.mxu0 %v8188
    %8199 = vmatprep.subr.mxu0 0.0
    %8200 = vmatpush1.msra.mxu0 %v8189
    %8201 = vmatprep.subr.mxu0 0.0
    %8202 = vmatpush1.msra.mxu0 %v8190
    %8203 = vmatprep.subr.mxu0 0.0
    %8204 = vmatpush1.msra.mxu0 %v8191
    %8205 = vmatprep.subr.mxu0 0.0
    %8206 = vmatpush1.msra.mxu0 0.0
    %8207 = vmatprep.subr.mxu0 0.0
    %8208 = vmatpush1.msra.mxu0 0.0
    %8209 = vmatprep.subr.mxu0 0.0
    %8210 = vmatpush1.msra.mxu0 0.0
    %8211 = vmatprep.subr.mxu0 0.0
    %8212 = vmatpush1.msra.mxu0 0.0
    %8213 = vmatprep.subr.mxu0 0.0
    %8214 = vmatpush1.msra.mxu0 0.0
    %8215 = vmatprep.subr.mxu0 0.0
    %8216 = vmatpush1.msra.mxu0 0.0
    %8217 = vmatprep.subr.mxu0 0.0
    %8218 = vmatpush1.msra.mxu0 0.0
    %8219 = vmatprep.subr.mxu0 0.0
    %8220 = vmatpush1.msra.mxu0 0.0
    %8221 = vmatprep.subr.mxu0 0.0
    %8222 = vmatpush1.msra.mxu0 0.0
    %8223 = vmatprep.subr.mxu0 0.0
    %8224 = vmatpush1.msra.mxu0 0.0
    %8225 = vmatprep.subr.mxu0 0.0
    %8226 = vmatpush1.msra.mxu0 0.0
    %8227 = vmatprep.subr.mxu0 0.0
    %8228 = vmatpush1.msra.mxu0 0.0
    %8229 = vmatprep.subr.mxu0 0.0
    %8230 = vmatpush1.msra.mxu0 0.0
    %8231 = vmatprep.subr.mxu0 0.0
    %8232 = vmatpush1.msra.mxu0 0.0
    %8233 = vmatprep.subr.mxu0 0.0
    %8234 = vmatpush1.msra.mxu0 0.0
    %8235 = vmatprep.subr.mxu0 0.0
    %8236 = vmatpush1.msra.mxu0 0.0
    %8237 = vmatprep.subr.mxu0 0.0
    %8238 = vmatpush1.msra.mxu0 0.0
    %8239 = vmatprep.subr.mxu0 0.0
    %8240 = vmatpush1.msra.mxu0 0.0
    %8241 = vmatprep.subr.mxu0 0.0
    %8242 = vmatpush1.msra.mxu0 0.0
    %8243 = vmatprep.subr.mxu0 0.0
    %8244 = vmatpush1.msra.mxu0 0.0
    %8245 = vmatprep.subr.mxu0 0.0
    %8246 = vmatpush1.msra.mxu0 0.0
    %8247 = vmatprep.subr.mxu0 0.0
    %8248 = vmatpush1.msra.mxu0 0.0
    %8249 = vmatprep.subr.mxu0 0.0
    %8250 = vmatpush1.msra.mxu0 0.0
    %8251 = vmatprep.subr.mxu0 0.0
    %8252 = vmatpush1.msra.mxu0 0.0
    %8253 = vmatprep.subr.mxu0 0.0
    %8254 = vmatpush1.msra.mxu0 0.0
    %8255 = vmatprep.subr.mxu0 0.0
    %8256 = vmatpush1.msra.mxu0 0.0
    %8257 = vmatprep.subr.mxu0 0.0
    %8258 = vmatpush1.msra.mxu0 0.0
    %8259 = vmatprep.subr.mxu0 0.0
    %8260 = vmatpush1.msra.mxu0 0.0
    %8261 = vmatprep.mubr.f32.mxu0 0.0
    %8262 = vmatmul.mubr.f32.gmra.mrb[0].mxu0 %v8195
    %v8263 = vpop.f32.mrb[0].mxu0
    %v8264 = vadd.f32 0.0, %v8263
    %v8265 = vpop.f32.mrb[0].mxu0
    %8266 = vdwg.mxu0
    %v8267 = vadd.f32 %v8088, %v8264
    %8268 = vmatprep.subr.mxu0 0.0
    %8269 = vmatpush1.msra.mxu0 %v7733
    %8270 = vmatprep.subr.mxu0 0.0
    %8271 = vmatpush1.msra.mxu0 %v7734
    %8272 = vmatprep.subr.mxu0 0.0
    %8273 = vmatpush1.msra.mxu0 %v7735
    %8274 = vmatprep.subr.mxu0 0.0
    %8275 = vmatpush1.msra.mxu0 %v7736
    %8276 = vmatprep.subr.mxu0 0.0
    %8277 = vmatpush1.msra.mxu0 0.0
    %8278 = vmatprep.subr.mxu0 0.0
    %8279 = vmatpush1.msra.mxu0 0.0
    %8280 = vmatprep.subr.mxu0 0.0
    %8281 = vmatpush1.msra.mxu0 0.0
    %8282 = vmatprep.subr.mxu0 0.0
    %8283 = vmatpush1.msra.mxu0 0.0
    %8284 = vmatprep.subr.mxu0 0.0
    %8285 = vmatpush1.msra.mxu0 0.0
    %8286 = vmatprep.subr.mxu0 0.0
    %8287 = vmatpush1.msra.mxu0 0.0
    %8288 = vmatprep.subr.mxu0 0.0
    %8289 = vmatpush1.msra.mxu0 0.0
    %8290 = vmatprep.subr.mxu0 0.0
    %8291 = vmatpush1.msra.mxu0 0.0
    %8292 = vmatprep.subr.mxu0 0.0
    %8293 = vmatpush1.msra.mxu0 0.0
    %8294 = vmatprep.subr.mxu0 0.0
    %8295 = vmatpush1.msra.mxu0 0.0
    %8296 = vmatprep.subr.mxu0 0.0
    %8297 = vmatpush1.msra.mxu0 0.0
    %8298 = vmatprep.subr.mxu0 0.0
    %8299 = vmatpush1.msra.mxu0 0.0
    %8300 = vmatprep.subr.mxu0 0.0
    %8301 = vmatpush1.msra.mxu0 0.0
    %8302 = vmatprep.subr.mxu0 0.0
    %8303 = vmatpush1.msra.mxu0 0.0
    %8304 = vmatprep.subr.mxu0 0.0
    %8305 = vmatpush1.msra.mxu0 0.0
    %8306 = vmatprep.subr.mxu0 0.0
    %8307 = vmatpush1.msra.mxu0 0.0
    %8308 = vmatprep.subr.mxu0 0.0
    %8309 = vmatpush1.msra.mxu0 0.0
    %8310 = vmatprep.subr.mxu0 0.0
    %8311 = vmatpush1.msra.mxu0 0.0
    %8312 = vmatprep.subr.mxu0 0.0
    %8313 = vmatpush1.msra.mxu0 0.0
    %8314 = vmatprep.subr.mxu0 0.0
    %8315 = vmatpush1.msra.mxu0 0.0
    %8316 = vmatprep.subr.mxu0 0.0
    %8317 = vmatpush1.msra.mxu0 0.0
    %8318 = vmatprep.subr.mxu0 0.0
    %8319 = vmatpush1.msra.mxu0 0.0
    %8320 = vmatprep.subr.mxu0 0.0
    %8321 = vmatpush1.msra.mxu0 0.0
    %8322 = vmatprep.subr.mxu0 0.0
    %8323 = vmatpush1.msra.mxu0 0.0
    %8324 = vmatprep.subr.mxu0 0.0
    %8325 = vmatpush1.msra.mxu0 0.0
    %8326 = vmatprep.subr.mxu0 0.0
    %8327 = vmatpush1.msra.mxu0 0.0
    %8328 = vmatprep.subr.mxu0 0.0
    %8329 = vmatpush1.msra.mxu0 0.0
    %8330 = vmatprep.subr.mxu0 0.0
    %8331 = vmatpush1.msra.mxu0 0.0
    %8332 = vmatprep.mubr.f32.mxu0 0.0
    %8333 = vmatmul.mubr.f32.gmra.mrb[0].mxu0 %v8195
    %v8334 = vpop.f32.mrb[0].mxu0
    %v8335 = vadd.f32 0.0, %v8334
    %v8336 = vpop.f32.mrb[0].mxu0
    %8337 = vdwg.mxu0
    %v8338 = vadd.f32 %v7725, %v8335
    %v8339 = vxor.u32 %v8338, 2147483648
    %v8340 = vmul.f32 %v8339, 1.442695
    %v8341 = vpow.pop %v8340
    %v8342 = vadd.f32 %v8341, 1.0
    %v8343 = vrcp.pop %v8342
    %v8344 = vmul.f32 1.0, %v8343
    %v8345 = vmul.f32 %v8344, 2.0
    %v8346 = vsub.f32 %v8345, 1.0
    %v8347 = vmul.f32 %v8344, %v8180
    %8349 = vrot.lane.b32.xlu0 %v8346, 64
    %v8350 = vpop.permute.xlu0 %8349
    %v8352 = vmul.f32 %v8344, %v8350
    %8354 = vrot.lane.b32.xlu0 %v8352, 32
    %v8355 = vpop.permute.xlu0 %8354
    %v8357 = vadd.f32 %v8347, %v8355
    %v8358 = vtanh.pop %v8357
    %8360 = vrot.lane.b32.xlu0 %v8358, 64
    %v8361 = vpop.permute.xlu0 %8360
    %v8363 = vmul.f32 %v8344, %v8361
    %s8364 = scalar_lea.vmem %s6, 96
    %v8365 = vld [vmem:[%s8364] sm:$0xff]
    %v8366 = vld [vmem:[%s8364 + $0x8] sm:$0xff]
    %v8367 = vld [vmem:[%s8364 + $0x10] sm:$0xff]
    %v8368 = vld [vmem:[%s8364 + $0x18] sm:$0xff]
    %8370 = vrot.lane.b32.xlu0 %v8363, 32
    %v8371 = vpop.permute.xlu0 %8370
    %v8372 = vsel %vm7632, %v8371, 0
    %8374 = vmatprep.subr.mxu0 0.0
    %8375 = vmatpush1.msra.mxu0 %v8365
    %8376 = vmatprep.subr.mxu0 0.0
    %8377 = vmatpush1.msra.mxu0 %v8366
    %8378 = vmatprep.subr.mxu0 0.0
    %8379 = vmatpush1.msra.mxu0 %v8367
    %8380 = vmatprep.subr.mxu0 0.0
    %8381 = vmatpush1.msra.mxu0 %v8368
    %8382 = vmatprep.subr.mxu0 0.0
    %8383 = vmatpush1.msra.mxu0 0.0
    %8384 = vmatprep.subr.mxu0 0.0
    %8385 = vmatpush1.msra.mxu0 0.0
    %8386 = vmatprep.subr.mxu0 0.0
    %8387 = vmatpush1.msra.mxu0 0.0
    %8388 = vmatprep.subr.mxu0 0.0
    %8389 = vmatpush1.msra.mxu0 0.0
    %8390 = vmatprep.subr.mxu0 0.0
    %8391 = vmatpush1.msra.mxu0 0.0
    %8392 = vmatprep.subr.mxu0 0.0
    %8393 = vmatpush1.msra.mxu0 0.0
    %8394 = vmatprep.subr.mxu0 0.0
    %8395 = vmatpush1.msra.mxu0 0.0
    %8396 = vmatprep.subr.mxu0 0.0
    %8397 = vmatpush1.msra.mxu0 0.0
    %8398 = vmatprep.subr.mxu0 0.0
    %8399 = vmatpush1.msra.mxu0 0.0
    %8400 = vmatprep.subr.mxu0 0.0
    %8401 = vmatpush1.msra.mxu0 0.0
    %8402 = vmatprep.subr.mxu0 0.0
    %8403 = vmatpush1.msra.mxu0 0.0
    %8404 = vmatprep.subr.mxu0 0.0
    %8405 = vmatpush1.msra.mxu0 0.0
    %8406 = vmatprep.subr.mxu0 0.0
    %8407 = vmatpush1.msra.mxu0 0.0
    %8408 = vmatprep.subr.mxu0 0.0
    %8409 = vmatpush1.msra.mxu0 0.0
    %8410 = vmatprep.subr.mxu0 0.0
    %8411 = vmatpush1.msra.mxu0 0.0
    %8412 = vmatprep.subr.mxu0 0.0
    %8413 = vmatpush1.msra.mxu0 0.0
    %8414 = vmatprep.subr.mxu0 0.0
    %8415 = vmatpush1.msra.mxu0 0.0
    %8416 = vmatprep.subr.mxu0 0.0
    %8417 = vmatpush1.msra.mxu0 0.0
    %8418 = vmatprep.subr.mxu0 0.0
    %8419 = vmatpush1.msra.mxu0 0.0
    %8420 = vmatprep.subr.mxu0 0.0
    %8421 = vmatpush1.msra.mxu0 0.0
    %8422 = vmatprep.subr.mxu0 0.0
    %8423 = vmatpush1.msra.mxu0 0.0
    %8424 = vmatprep.subr.mxu0 0.0
    %8425 = vmatpush1.msra.mxu0 0.0
    %8426 = vmatprep.subr.mxu0 0.0
    %8427 = vmatpush1.msra.mxu0 0.0
    %8428 = vmatprep.subr.mxu0 0.0
    %8429 = vmatpush1.msra.mxu0 0.0
    %8430 = vmatprep.subr.mxu0 0.0
    %8431 = vmatpush1.msra.mxu0 0.0
    %8432 = vmatprep.subr.mxu0 0.0
    %8433 = vmatpush1.msra.mxu0 0.0
    %8434 = vmatprep.subr.mxu0 0.0
    %8435 = vmatpush1.msra.mxu0 0.0
    %8436 = vmatprep.subr.mxu0 0.0
    %8437 = vmatpush1.msra.mxu0 0.0
    %8438 = vmatprep.mubr.f32.mxu0 0.0
    %8439 = vmatmul.mubr.f32.gmra.mrb[0].mxu0 %v8372
    %v8440 = vpop.f32.mrb[0].mxu0
    %v8441 = vadd.f32 0.0, %v8440
    %v8442 = vpop.f32.mrb[0].mxu0
    %8443 = vdwg.mxu0
    %v8444 = vadd.f32 %v8267, %v8441
    %8445 = vmatprep.subr.mxu0 0.0
    %8446 = vmatpush1.msra.mxu0 %v7733
    %8447 = vmatprep.subr.mxu0 0.0
    %8448 = vmatpush1.msra.mxu0 %v7734
    %8449 = vmatprep.subr.mxu0 0.0
    %8450 = vmatpush1.msra.mxu0 %v7735
    %8451 = vmatprep.subr.mxu0 0.0
    %8452 = vmatpush1.msra.mxu0 %v7736
    %8453 = vmatprep.subr.mxu0 0.0
    %8454 = vmatpush1.msra.mxu0 0.0
    %8455 = vmatprep.subr.mxu0 0.0
    %8456 = vmatpush1.msra.mxu0 0.0
    %8457 = vmatprep.subr.mxu0 0.0
    %8458 = vmatpush1.msra.mxu0 0.0
    %8459 = vmatprep.subr.mxu0 0.0
    %8460 = vmatpush1.msra.mxu0 0.0
    %8461 = vmatprep.subr.mxu0 0.0
    %8462 = vmatpush1.msra.mxu0 0.0
    %8463 = vmatprep.subr.mxu0 0.0
    %8464 = vmatpush1.msra.mxu0 0.0
    %8465 = vmatprep.subr.mxu0 0.0
    %8466 = vmatpush1.msra.mxu0 0.0
    %8467 = vmatprep.subr.mxu0 0.0
    %8468 = vmatpush1.msra.mxu0 0.0
    %8469 = vmatprep.subr.mxu0 0.0
    %8470 = vmatpush1.msra.mxu0 0.0
    %8471 = vmatprep.subr.mxu0 0.0
    %8472 = vmatpush1.msra.mxu0 0.0
    %8473 = vmatprep.subr.mxu0 0.0
    %8474 = vmatpush1.msra.mxu0 0.0
    %8475 = vmatprep.subr.mxu0 0.0
    %8476 = vmatpush1.msra.mxu0 0.0
    %8477 = vmatprep.subr.mxu0 0.0
    %8478 = vmatpush1.msra.mxu0 0.0
    %8479 = vmatprep.subr.mxu0 0.0
    %8480 = vmatpush1.msra.mxu0 0.0
    %8481 = vmatprep.subr.mxu0 0.0
    %8482 = vmatpush1.msra.mxu0 0.0
    %8483 = vmatprep.subr.mxu0 0.0
    %8484 = vmatpush1.msra.mxu0 0.0
    %8485 = vmatprep.subr.mxu0 0.0
    %8486 = vmatpush1.msra.mxu0 0.0
    %8487 = vmatprep.subr.mxu0 0.0
    %8488 = vmatpush1.msra.mxu0 0.0
    %8489 = vmatprep.subr.mxu0 0.0
    %8490 = vmatpush1.msra.mxu0 0.0
    %8491 = vmatprep.subr.mxu0 0.0
    %8492 = vmatpush1.msra.mxu0 0.0
    %8493 = vmatprep.subr.mxu0 0.0
    %8494 = vmatpush1.msra.mxu0 0.0
    %8495 = vmatprep.subr.mxu0 0.0
    %8496 = vmatpush1.msra.mxu0 0.0
    %8497 = vmatprep.subr.mxu0 0.0
    %8498 = vmatpush1.msra.mxu0 0.0
    %8499 = vmatprep.subr.mxu0 0.0
    %8500 = vmatpush1.msra.mxu0 0.0
    %8501 = vmatprep.subr.mxu0 0.0
    %8502 = vmatpush1.msra.mxu0 0.0
    %8503 = vmatprep.subr.mxu0 0.0
    %8504 = vmatpush1.msra.mxu0 0.0
    %8505 = vmatprep.subr.mxu0 0.0
    %8506 = vmatpush1.msra.mxu0 0.0
    %8507 = vmatprep.subr.mxu0 0.0
    %8508 = vmatpush1.msra.mxu0 0.0
    %8509 = vmatprep.mubr.f32.mxu0 0.0
    %8510 = vmatmul.mubr.f32.gmra.mrb[0].mxu0 %v8372
    %v8511 = vpop.f32.mrb[0].mxu0
    %v8512 = vadd.f32 0.0, %v8511
    %v8513 = vpop.f32.mrb[0].mxu0
    %8514 = vdwg.mxu0
    %v8515 = vadd.f32 %v7730, %v8512
    %v8516 = vxor.u32 %v8515, 2147483648
    %v8517 = vmul.f32 %v8516, 1.442695
    %v8518 = vpow.pop %v8517
    %v8519 = vadd.f32 %v8518, 1.0
    %v8520 = vrcp.pop %v8519
    %v8521 = vmul.f32 1.0, %v8520
    %v8522 = vmul.f32 %v8521, 2.0
    %v8523 = vsub.f32 %v8522, 1.0
    %v8524 = vmul.f32 %v8521, %v8357
    %8526 = vrot.lane.b32.xlu0 %v8523, 64
    %v8527 = vpop.permute.xlu0 %8526
    %v8529 = vmul.f32 %v8521, %v8527
    %8531 = vrot.lane.b32.xlu0 %v8529, 32
    %v8532 = vpop.permute.xlu0 %8531
    %v8534 = vadd.f32 %v8524, %v8532
    %v8535 = vtanh.pop %v8534
    %8537 = vrot.lane.b32.xlu0 %v8535, 64
    %v8538 = vpop.permute.xlu0 %8537
    %v8540 = vmul.f32 %v8521, %v8538
    %s8541 = scalar_lea.vmem %s6, 128
    %v8542 = vld [vmem:[%s8541] sm:$0xff]
    %v8543 = vld [vmem:[%s8541 + $0x8] sm:$0xff]
    %v8544 = vld [vmem:[%s8541 + $0x10] sm:$0xff]
    %v8545 = vld [vmem:[%s8541 + $0x18] sm:$0xff]
    %8547 = vrot.lane.b32.xlu0 %v8540, 32
    %v8548 = vpop.permute.xlu0 %8547
    %v8549 = vsel %vm7632, %v8548, 0
    %8551 = vmatprep.subr.mxu0 0.0
    %8552 = vmatpush1.msra.mxu0 %v8542
    %8553 = vmatprep.subr.mxu0 0.0
    %8554 = vmatpush1.msra.mxu0 %v8543
    %8555 = vmatprep.subr.mxu0 0.0
    %8556 = vmatpush1.msra.mxu0 %v8544
    %8557 = vmatprep.subr.mxu0 0.0
    %8558 = vmatpush1.msra.mxu0 %v8545
    %8559 = vmatprep.subr.mxu0 0.0
    %8560 = vmatpush1.msra.mxu0 0.0
    %8561 = vmatprep.subr.mxu0 0.0
    %8562 = vmatpush1.msra.mxu0 0.0
    %8563 = vmatprep.subr.mxu0 0.0
    %8564 = vmatpush1.msra.mxu0 0.0
    %8565 = vmatprep.subr.mxu0 0.0
    %8566 = vmatpush1.msra.mxu0 0.0
    %8567 = vmatprep.subr.mxu0 0.0
    %8568 = vmatpush1.msra.mxu0 0.0
    %8569 = vmatprep.subr.mxu0 0.0
    %8570 = vmatpush1.msra.mxu0 0.0
    %8571 = vmatprep.subr.mxu0 0.0
    %8572 = vmatpush1.msra.mxu0 0.0
    %8573 = vmatprep.subr.mxu0 0.0
    %8574 = vmatpush1.msra.mxu0 0.0
    %8575 = vmatprep.subr.mxu0 0.0
    %8576 = vmatpush1.msra.mxu0 0.0
    %8577 = vmatprep.subr.mxu0 0.0
    %8578 = vmatpush1.msra.mxu0 0.0
    %8579 = vmatprep.subr.mxu0 0.0
    %8580 = vmatpush1.msra.mxu0 0.0
    %8581 = vmatprep.subr.mxu0 0.0
    %8582 = vmatpush1.msra.mxu0 0.0
    %8583 = vmatprep.subr.mxu0 0.0
    %8584 = vmatpush1.msra.mxu0 0.0
    %8585 = vmatprep.subr.mxu0 0.0
    %8586 = vmatpush1.msra.mxu0 0.0
    %8587 = vmatprep.subr.mxu0 0.0
    %8588 = vmatpush1.msra.mxu0 0.0
    %8589 = vmatprep.subr.mxu0 0.0
    %8590 = vmatpush1.msra.mxu0 0.0
    %8591 = vmatprep.subr.mxu0 0.0
    %8592 = vmatpush1.msra.mxu0 0.0
    %8593 = vmatprep.subr.mxu0 0.0
    %8594 = vmatpush1.msra.mxu0 0.0
    %8595 = vmatprep.subr.mxu0 0.0
    %8596 = vmatpush1.msra.mxu0 0.0
    %8597 = vmatprep.subr.mxu0 0.0
    %8598 = vmatpush1.msra.mxu0 0.0
    %8599 = vmatprep.subr.mxu0 0.0
    %8600 = vmatpush1.msra.mxu0 0.0
    %8601 = vmatprep.subr.mxu0 0.0
    %8602 = vmatpush1.msra.mxu0 0.0
    %8603 = vmatprep.subr.mxu0 0.0
    %8604 = vmatpush1.msra.mxu0 0.0
    %8605 = vmatprep.subr.mxu0 0.0
    %8606 = vmatpush1.msra.mxu0 0.0
    %8607 = vmatprep.subr.mxu0 0.0
    %8608 = vmatpush1.msra.mxu0 0.0
    %8609 = vmatprep.subr.mxu0 0.0
    %8610 = vmatpush1.msra.mxu0 0.0
    %8611 = vmatprep.subr.mxu0 0.0
    %8612 = vmatpush1.msra.mxu0 0.0
    %8613 = vmatprep.subr.mxu0 0.0
    %8614 = vmatpush1.msra.mxu0 0.0
    %8615 = vmatprep.mubr.f32.mxu0 0.0
    %8616 = vmatmul.mubr.f32.gmra.mrb[0].mxu0 %v8549
    %v8617 = vpop.f32.mrb[0].mxu0
    %v8618 = vadd.f32 0.0, %v8617
    %v8619 = vpop.f32.mrb[0].mxu0
    %8620 = vdwg.mxu0
    %v8621 = vadd.f32 %v8444, %v8618
    %v8622 = vld [vmem:[%s7] sm:$0x1]
    %v8624 = vlaneseq
    %v8625 = vshrl.u32 %v8624, 7
    %v8626 = vsub.s32 0, %v8625
    %v8627 = vrot.slane %v8622, %v8626
    %v8629 = vadd.f32 %v8621, %v8627
    %v8630 = vmax.f32 %v8629, 0.0
    %v8631 = vld [vmem:[%s8] sm:$0xff]
    %v8632 = vld [vmem:[%s8 + $0x8] sm:$0xff]
    %v8633 = vld [vmem:[%s8 + $0x10] sm:$0xff]
    %v8634 = vld [vmem:[%s8 + $0x18] sm:$0xff]
    %v8635 = vld [vmem:[%s8 + $0x20] sm:$0xff]
    %v8636 = vld [vmem:[%s8 + $0x28] sm:$0xff]
    %v8637 = vld [vmem:[%s8 + $0x30] sm:$0xff]
    %v8638 = vld [vmem:[%s8 + $0x38] sm:$0xff]
    %v8639 = vld [vmem:[%s8 + $0x40] sm:$0xff]
    %v8640 = vld [vmem:[%s8 + $0x48] sm:$0xff]
    %v8641 = vld [vmem:[%s8 + $0x50] sm:$0xff]
    %v8642 = vld [vmem:[%s8 + $0x58] sm:$0xff]
    %v8643 = vld [vmem:[%s8 + $0x60] sm:$0xff]
    %v8644 = vld [vmem:[%s8 + $0x68] sm:$0xff]
    %v8645 = vld [vmem:[%s8 + $0x70] sm:$0xff]
    %v8646 = vld [vmem:[%s8 + $0x78] sm:$0xff]
    %v8647 = vld [vmem:[#allocation2] sm:$0x1]
    %v8649 = vlaneseq
    %v8650 = vshrl.u32 %v8649, 7
    %v8651 = vsub.s32 0, %v8650
    %v8652 = vrot.slane %v8647, %v8651
    %8654 = vmatprep.subr.mxu0 0.0
    %8655 = vmatpush1.msra.mxu0 %v8631
    %8656 = vmatprep.subr.mxu0 0.0
    %8657 = vmatpush1.msra.mxu0 %v8632
    %8658 = vmatprep.subr.mxu0 0.0
    %8659 = vmatpush1.msra.mxu0 %v8633
    %8660 = vmatprep.subr.mxu0 0.0
    %8661 = vmatpush1.msra.mxu0 %v8634
    %8662 = vmatprep.subr.mxu0 0.0
    %8663 = vmatpush1.msra.mxu0 %v8635
    %8664 = vmatprep.subr.mxu0 0.0
    %8665 = vmatpush1.msra.mxu0 %v8636
    %8666 = vmatprep.subr.mxu0 0.0
    %8667 = vmatpush1.msra.mxu0 %v8637
    %8668 = vmatprep.subr.mxu0 0.0
    %8669 = vmatpush1.msra.mxu0 %v8638
    %8670 = vmatprep.subr.mxu0 0.0
    %8671 = vmatpush1.msra.mxu0 %v8639
    %8672 = vmatprep.subr.mxu0 0.0
    %8673 = vmatpush1.msra.mxu0 %v8640
    %8674 = vmatprep.subr.mxu0 0.0
    %8675 = vmatpush1.msra.mxu0 %v8641
    %8676 = vmatprep.subr.mxu0 0.0
    %8677 = vmatpush1.msra.mxu0 %v8642
    %8678 = vmatprep.subr.mxu0 0.0
    %8679 = vmatpush1.msra.mxu0 %v8643
    %8680 = vmatprep.subr.mxu0 0.0
    %8681 = vmatpush1.msra.mxu0 %v8644
    %8682 = vmatprep.subr.mxu0 0.0
    %8683 = vmatpush1.msra.mxu0 %v8645
    %8684 = vmatprep.subr.mxu0 0.0
    %8685 = vmatpush1.msra.mxu0 %v8646
    %8686 = vmatprep.subr.mxu0 0.0
    %8687 = vmatpush1.msra.mxu0 0.0
    %8688 = vmatprep.subr.mxu0 0.0
    %8689 = vmatpush1.msra.mxu0 0.0
    %8690 = vmatprep.subr.mxu0 0.0
    %8691 = vmatpush1.msra.mxu0 0.0
    %8692 = vmatprep.subr.mxu0 0.0
    %8693 = vmatpush1.msra.mxu0 0.0
    %8694 = vmatprep.subr.mxu0 0.0
    %8695 = vmatpush1.msra.mxu0 0.0
    %8696 = vmatprep.subr.mxu0 0.0
    %8697 = vmatpush1.msra.mxu0 0.0
    %8698 = vmatprep.subr.mxu0 0.0
    %8699 = vmatpush1.msra.mxu0 0.0
    %8700 = vmatprep.subr.mxu0 0.0
    %8701 = vmatpush1.msra.mxu0 0.0
    %8702 = vmatprep.subr.mxu0 0.0
    %8703 = vmatpush1.msra.mxu0 0.0
    %8704 = vmatprep.subr.mxu0 0.0
    %8705 = vmatpush1.msra.mxu0 0.0
    %8706 = vmatprep.subr.mxu0 0.0
    %8707 = vmatpush1.msra.mxu0 0.0
    %8708 = vmatprep.subr.mxu0 0.0
    %8709 = vmatpush1.msra.mxu0 0.0
    %8710 = vmatprep.subr.mxu0 0.0
    %8711 = vmatpush1.msra.mxu0 0.0
    %8712 = vmatprep.subr.mxu0 0.0
    %8713 = vmatpush1.msra.mxu0 0.0
    %8714 = vmatprep.subr.mxu0 0.0
    %8715 = vmatpush1.msra.mxu0 0.0
    %8716 = vmatprep.subr.mxu0 0.0
    %8717 = vmatpush1.msra.mxu0 0.0
    %8718 = vmatprep.mubr.f32.mxu0 0.0
    %8719 = vmatmul.mubr.f32.gmra.mrb[0].mxu0 %v8630
    %v8720 = vpop.f32.mrb[0].mxu0
    %v8721 = vadd.f32 %v8652, %v8720
    %v8722 = vpop.f32.mrb[0].mxu0
    %8723 = vdwg.mxu0
    %vm8724 = vcmask 7168
    %8725 = vst.msk [vmem:[%s10] sm:$0xff] %vm8724, %v8721
    // Predicated region
    $region54: #{tpu_custom_call.1} parent=1 // pred_check
      _
    $region55: #{tpu_custom_call.1} parent=1 // pred_check_branch
      %8727 = sbr.rel (0) target = $region57
    $region56: #{tpu_custom_call.1} parent=1 // pred_region
      _
    $region57: #{tpu_custom_call.1} parent=1 // pred_fallthru
      _
    // Predicated region
    $region58: #{tpu_custom_call.1} parent=1 // pred_check
      _
    $region59: #{tpu_custom_call.1} parent=1 // pred_check_branch
      %8729 = sbr.rel (0) target = $region61
    $region60: #{tpu_custom_call.1} parent=1 // pred_region
      _
    $region61: #{tpu_custom_call.1} parent=1 // pred_fallthru
      _
    %8730 = vsyncpa [#allocation4], 1
    %8731 = vsyncpa [#allocation6], 1

</llo_original>
